<compile_context>
chip_gen: v6e
topology: v6e:2x2x1
jax: 0.10.0
libtpu: 0.0.40
codegen_flags: <defaults>
</compile_context>

<pallas_src>
import numpy as np
import jax
import jax.numpy as jnp
from jax.experimental import pallas as pl
from jax.experimental.pallas import tpu as pltpu


# ---------------------------------------------------------------------------
# Trace-time constants (numpy, baked into the executable)
# ---------------------------------------------------------------------------

def _round_up(v, m):
    return ((v + m - 1) // m) * m


def _edge_masks(h, w):
    """Column-edge masks for the dx=0 / dx=2 conv taps on a row-flattened image."""
    x = np.arange(h * w) % w
    left = (x != 0).astype(np.float32)       # tap reads (x-1): invalid at x == 0
    right = (x != w - 1).astype(np.float32)  # tap reads (x+1): invalid at x == w-1
    return jnp.asarray(np.stack([left, right])[:, :, None], dtype=jnp.bfloat16)


def _pool_select(h, w):
    """Four 0/1 selection matrices (H/2*W/2, H*W) picking the 2x2 window elements."""
    ho, wo = h // 2, w // 2
    mats = np.zeros((4, ho * wo, h * w), np.float32)
    for k, (dy, dx) in enumerate(((0, 0), (0, 1), (1, 0), (1, 1))):
        for y2 in range(ho):
            for x2 in range(wo):
                mats[k, y2 * wo + x2, (2 * y2 + dy) * w + (2 * x2 + dx)] = 1.0
    return jnp.asarray(mats, dtype=jnp.bfloat16)


# ---------------------------------------------------------------------------
# Fused backbone forward (single pallas_call)
# ---------------------------------------------------------------------------

def cnn_backbone_forward(x, params):
    """x: (bs, T, 4, H, W) float32 -> (bs, T, 64) float32."""
    bs, t, cin, h, w = x.shape
    assert h % 2 == 0 and w % 2 == 0
    n = bs * t
    hw = h * w
    h2, w2 = h // 2, w // 2
    hw2 = h2 * w2
    pad1 = _round_up(w + 1, 16)     # zero-pad rows around the flattened 16x16 image
    pad2 = _round_up(w2 + 1, 16)    # zero-pad rows around the flattened 8x8 image

    # ---- layout-only glue: NCHW -> row-flattened (N, H*W, C), bf16 activations ----
    xr = (x.reshape(n, cin, h, w).transpose(0, 2, 3, 1)
           .reshape(n, hw, cin).astype(jnp.bfloat16))

    m16 = _edge_masks(h, w)          # (2, hw, 1)   bf16
    m8 = _edge_masks(h2, w2)         # (2, hw2, 1)  bf16
    psel = _pool_select(h, w)        # (4, hw2, hw) bf16

    def kernel(x_ref, m16_ref, m8_ref, pool_ref,
               w0_ref, b0_ref, w1_ref, b1_ref, w2_ref, b2_ref,
               bnf_s_ref, bnf_b_ref, o_ref, scr0, scr1, scr2):

        def conv3x3(act_f32, scr, wt_ref, b_ref, msk_ref, width, npix, pad):
            """3x3 / pad=1 / stride=1 conv (+ folded-BN shift + ReLU) on a
            row-flattened image via 9 shifted row-slices of a zero-padded
            VMEM scratch, each contracted on the MXU in bf16 with f32 acc."""
            cout = wt_ref.shape[2]
            scr[...] = jnp.zeros_like(scr)
            scr[pad:pad + npix, :] = act_f32
            acc = jnp.zeros((npix, cout), jnp.float32)
            for dy in range(3):
                for dx in range(3):
                    s = (dy - 1) * width + (dx - 1)
                    tap = scr[pad + s:pad + s + npix, :].astype(jnp.bfloat16)
                    if dx == 0:            # mask left-edge wrap-around
                        tap = tap * msk_ref[0]
                    elif dx == 2:          # mask right-edge wrap-around
                        tap = tap * msk_ref[1]
                    acc = acc + jnp.dot(tap, wt_ref[dy * 3 + dx],
                                        preferred_element_type=jnp.float32)
            return jnp.maximum(acc + b_ref[...], 0.0)       # f32 (npix, cout)

        # stem: conv3x3(4 -> 32) + BN + ReLU  (stem's MaxPool is unused in forward)
        y = conv3x3(x_ref[0].astype(jnp.float32), scr0, w0_ref, b0_ref,
                    m16_ref, w, hw, pad1)
        # BasicBlock conv1 (32 -> 64) + BN + ReLU
        y = conv3x3(y, scr1, w1_ref, b1_ref, m16_ref, w, hw, pad1)
        # 2x2 / stride-2 max pool: four 0/1 row-selection matmuls on the MXU
        v = y.astype(jnp.bfloat16)                          # (hw, 64)
        p00 = jnp.dot(pool_ref[0], v, preferred_element_type=jnp.float32)
        p01 = jnp.dot(pool_ref[1], v, preferred_element_type=jnp.float32)
        p10 = jnp.dot(pool_ref[2], v, preferred_element_type=jnp.float32)
        p11 = jnp.dot(pool_ref[3], v, preferred_element_type=jnp.float32)
        y = jnp.maximum(jnp.maximum(p00, p01), jnp.maximum(p10, p11))  # (hw2, 64)
        # BasicBlock conv2 (64 -> 64) + BN + ReLU
        y = conv3x3(y, scr2, w2_ref, b2_ref, m8_ref, w2, hw2, pad2)
        # global avg pool + BatchNorm1d (folded, eval mode) + ReLU
        mean = jnp.sum(y, axis=0, keepdims=True) * (1.0 / hw2)         # (1, 64)
        z = jnp.maximum(mean * bnf_s_ref[...] + bnf_b_ref[...], 0.0)
        o_ref[0] = z.astype(o_ref.dtype)

    out = pl.pallas_call(
        kernel,
        out_shape=jax.ShapeDtypeStruct((n, 1, 64), jnp.float32),
        grid=(n,),
        in_specs=[
            pl.BlockSpec((1, hw, cin), lambda i: (i, 0, 0)),   # x (per image)
            pl.BlockSpec((2, hw, 1), lambda i: (0, 0, 0)),     # edge masks (HxW)
            pl.BlockSpec((2, hw2, 1), lambda i: (0, 0, 0)),    # edge masks (H/2 x W/2)
            pl.BlockSpec((4, hw2, hw), lambda i: (0, 0, 0)),   # pool selection
            pl.BlockSpec((9, cin, 32), lambda i: (0, 0, 0)),   # w0 (BN scale folded)
            pl.BlockSpec((1, 32), lambda i: (0, 0)),           # b0 (BN shift)
            pl.BlockSpec((9, 32, 64), lambda i: (0, 0, 0)),    # w1
            pl.BlockSpec((1, 64), lambda i: (0, 0)),           # b1
            pl.BlockSpec((9, 64, 64), lambda i: (0, 0, 0)),    # w2
            pl.BlockSpec((1, 64), lambda i: (0, 0)),           # b2
            pl.BlockSpec((1, 64), lambda i: (0, 0)),           # bnf scale
            pl.BlockSpec((1, 64), lambda i: (0, 0)),           # bnf shift
        ],
        out_specs=pl.BlockSpec((1, 1, 64), lambda i: (i, 0, 0)),
        scratch_shapes=[
            pltpu.VMEM((2 * pad1 + hw, cin), jnp.float32),     # padded act, layer 0
            pltpu.VMEM((2 * pad1 + hw, 32), jnp.float32),      # padded act, layer 1
            pltpu.VMEM((2 * pad2 + hw2, 64), jnp.float32),     # padded act, layer 2
        ],
        compiler_params=pltpu.CompilerParams(
            dimension_semantics=("parallel",),
            vmem_limit_bytes=32 * 1024 * 1024),
    )(xr, m16, m8, psel,
      params["w0"], params["b0"], params["w1"], params["b1"],
      params["w2"], params["b2"], params["bnf_scale"], params["bnf_shift"])

    return out.reshape(bs, t, 64)


# ---------------------------------------------------------------------------
# Deterministic parameter construction (eval-mode BN folded; scale folded into W)
# ---------------------------------------------------------------------------

def _bn_fold(num_channels):
    c = jnp.arange(num_channels, dtype=jnp.float32)
    gamma = 1.0 + 0.01 * c
    beta = 0.02 * c - 0.1
    running_mean = 0.05 * jnp.sin(c)
    running_var = 1.0 + 0.1 * jnp.cos(c) ** 2
    eps = 1e-5
    scale = gamma / jnp.sqrt(running_var + eps)
    shift = beta - running_mean * scale
    return scale, shift


def make_params(key):
    k0, k1, k2 = jax.random.split(key, 3)
    s0, b0 = _bn_fold(32)
    s1, b1 = _bn_fold(64)
    s2, b2 = _bn_fold(64)
    sf, bf_ = _bn_fold(64)
    w0 = jax.random.normal(k0, (3, 3, 4, 32), jnp.float32) * 0.20
    w1 = jax.random.normal(k1, (3, 3, 32, 64), jnp.float32) * 0.06
    w2 = jax.random.normal(k2, (3, 3, 64, 64), jnp.float32) * 0.04
    # one-time constant fold of the BN scale into the conv weights; store tap-major bf16
    w0 = (w0 * s0).reshape(9, 4, 32).astype(jnp.bfloat16)
    w1 = (w1 * s1).reshape(9, 32, 64).astype(jnp.bfloat16)
    w2 = (w2 * s2).reshape(9, 64, 64).astype(jnp.bfloat16)
    return {
        "w0": w0, "b0": b0.reshape(1, 32),
        "w1": w1, "b1": b1.reshape(1, 64),
        "w2": w2, "b2": b2.reshape(1, 64),
        "bnf_scale": sf.reshape(1, 64), "bnf_shift": bf_.reshape(1, 64),
    }


# ---------------------------------------------------------------------------
# Pure-JAX reference (same math, XLA convs) for a sanity check
# ---------------------------------------------------------------------------

def reference_forward(x, p):
    bs, t, c, h, w = x.shape
    xr = x.reshape(bs * t, c, h, w).transpose(0, 2, 3, 1)

    def conv_bn_relu(v, w_taps, shift):
        k = w_taps.reshape(3, 3, w_taps.shape[1], w_taps.shape[2])
        y = jax.lax.conv_general_dilated(
            v.astype(jnp.bfloat16), k, window_strides=(1, 1),
            padding=((1, 1), (1, 1)),
            dimension_numbers=("NHWC", "HWIO", "NHWC"),
            preferred_element_type=jnp.float32)
        return jnp.maximum(y + shift, 0.0)

    y = conv_bn_relu(xr, p["w0"], p["b0"])
    y = conv_bn_relu(y, p["w1"], p["b1"])
    y = y.astype(jnp.bfloat16).astype(jnp.float32)
    y = jax.lax.reduce_window(y, -jnp.inf, jax.lax.max,
                              (1, 2, 2, 1), (1, 2, 2, 1), "VALID")
    y = conv_bn_relu(y, p["w2"], p["b2"])
    y = jnp.mean(y, axis=(1, 2))
    y = jnp.maximum(y * p["bnf_scale"] + p["bnf_shift"], 0.0)
    return y.reshape(bs, t, 64)


# ---------------------------------------------------------------------------
# Main
# ---------------------------------------------------------------------------

if __name__ == "__main__":
    # small shapes consistent with the forward: [bs, T, 4, lon, lat]
    bs, T, C, LON, LAT = 2, 2, 4, 16, 16
    key = jax.random.PRNGKey(0)
    kx, kp = jax.random.split(key)
    x = jax.random.normal(kx, (bs, T, C, LON, LAT), jnp.float32)
    params = make_params(kp)

    fwd = jax.jit(cnn_backbone_forward)
    out = jax.block_until_ready(fwd(x, params))
    assert out.shape == (bs, T, 64), out.shape

    ref = jax.block_until_ready(reference_forward(x, params))
    np.testing.assert_allclose(np.asarray(out), np.asarray(ref),
                               rtol=2e-2, atol=2e-2)
    print("KERNEL_OK")
</pallas_src>

<mosaic_0001>
module attributes {stable_mosaic.version = 11 : i64} {
  func.func @kernel(%arg0: i32, %arg1: memref<1x256x4xbf16, #tpu.memory_space<vmem>>, %arg2: memref<2x256x1xbf16, #tpu.memory_space<vmem>>, %arg3: memref<2x64x1xbf16, #tpu.memory_space<vmem>>, %arg4: memref<4x64x256xbf16, #tpu.memory_space<vmem>>, %arg5: memref<9x4x32xbf16, #tpu.memory_space<vmem>>, %arg6: memref<1x32xf32, #tpu.memory_space<vmem>>, %arg7: memref<9x32x64xbf16, #tpu.memory_space<vmem>>, %arg8: memref<1x64xf32, #tpu.memory_space<vmem>>, %arg9: memref<9x64x64xbf16, #tpu.memory_space<vmem>>, %arg10: memref<1x64xf32, #tpu.memory_space<vmem>>, %arg11: memref<1x64xf32, #tpu.memory_space<vmem>>, %arg12: memref<1x64xf32, #tpu.memory_space<vmem>>, %arg13: memref<1x1x64xf32, #tpu.memory_space<vmem>>, %arg14: memref<320x4xf32, #tpu.memory_space<vmem>>, %arg15: memref<320x32xf32, #tpu.memory_space<vmem>>, %arg16: memref<96x64xf32, #tpu.memory_space<vmem>>) attributes {dimension_semantics = [#tpu.dimension_semantics<parallel>], iteration_bounds = array<i64: 4>, scalar_prefetch = 0 : i64, scratch_operands = 3 : i64, tpu.core_type = #tpu.core_type<tc>, window_params = [{transform_indices = @transform_0, window_bounds = array<i64: 1, 256, 4>}, {pipeline_mode = #tpu.pipeline_mode<synchronous>, transform_indices = @transform_1, window_bounds = array<i64: 2, 256, 1>}, {pipeline_mode = #tpu.pipeline_mode<synchronous>, transform_indices = @transform_2, window_bounds = array<i64: 2, 64, 1>}, {pipeline_mode = #tpu.pipeline_mode<synchronous>, transform_indices = @transform_3, window_bounds = array<i64: 4, 64, 256>}, {pipeline_mode = #tpu.pipeline_mode<synchronous>, transform_indices = @transform_4, window_bounds = array<i64: 9, 4, 32>}, {pipeline_mode = #tpu.pipeline_mode<synchronous>, transform_indices = @transform_5, window_bounds = array<i64: 1, 32>}, {pipeline_mode = #tpu.pipeline_mode<synchronous>, transform_indices = @transform_6, window_bounds = array<i64: 9, 32, 64>}, {pipeline_mode = #tpu.pipeline_mode<synchronous>, transform_indices = @transform_7, window_bounds = array<i64: 1, 64>}, {pipeline_mode = #tpu.pipeline_mode<synchronous>, transform_indices = @transform_8, window_bounds = array<i64: 9, 64, 64>}, {pipeline_mode = #tpu.pipeline_mode<synchronous>, transform_indices = @transform_9, window_bounds = array<i64: 1, 64>}, {pipeline_mode = #tpu.pipeline_mode<synchronous>, transform_indices = @transform_10, window_bounds = array<i64: 1, 64>}, {pipeline_mode = #tpu.pipeline_mode<synchronous>, transform_indices = @transform_11, window_bounds = array<i64: 1, 64>}, {transform_indices = @transform_12, window_bounds = array<i64: 1, 1, 64>}]} {
    %c0 = arith.constant 0 : index
    %c0_0 = arith.constant 0 : index
    %c0_1 = arith.constant 0 : index
    %0 = vector.load %arg1[%c0, %c0_0, %c0_1] : memref<1x256x4xbf16, #tpu.memory_space<vmem>>, vector<1x256x4xbf16>
    %1 = vector.shape_cast %0 : vector<1x256x4xbf16> to vector<256x4xbf16>
    %2 = arith.extf %1 : vector<256x4xbf16> to vector<256x4xf32>
    %cst = arith.constant 0.000000e+00 : f32
    %3 = vector.broadcast %cst : f32 to vector<320x4xf32>
    %c0_2 = arith.constant 0 : index
    %c0_3 = arith.constant 0 : index
    %4 = vector.load %arg14[%c0_2, %c0_3] : memref<320x4xf32, #tpu.memory_space<vmem>>, vector<320x4xf32>
    tpu.vector_store %arg14[%c0_2, %c0_3], %3 {strides = array<i32>} : memref<320x4xf32, #tpu.memory_space<vmem>>, vector<320x4xf32>,
    %c32 = arith.constant 32 : index
    %c0_4 = arith.constant 0 : index
    %5 = vector.load %arg14[%c32, %c0_4] : memref<320x4xf32, #tpu.memory_space<vmem>>, vector<256x4xf32>
    tpu.vector_store %arg14[%c32, %c0_4], %2 {strides = array<i32>} : memref<320x4xf32, #tpu.memory_space<vmem>>, vector<256x4xf32>,
    %cst_5 = arith.constant 0.000000e+00 : f32
    %6 = vector.broadcast %cst_5 : f32 to vector<256x32xf32>
    %c15 = arith.constant 15 : index
    %c0_6 = arith.constant 0 : index
    %7 = vector.load %arg14[%c15, %c0_6] : memref<320x4xf32, #tpu.memory_space<vmem>>, vector<256x4xf32>
    %8 = arith.truncf %7 : vector<256x4xf32> to vector<256x4xbf16>
    %c0_7 = arith.constant 0 : index
    %c0_8 = arith.constant 0 : index
    %c0_9 = arith.constant 0 : index
    %9 = vector.load %arg2[%c0_7, %c0_8, %c0_9] : memref<2x256x1xbf16, #tpu.memory_space<vmem>>, vector<1x256x1xbf16>
    %10 = vector.shape_cast %9 : vector<1x256x1xbf16> to vector<256x1xbf16>
    %11 = vector.broadcast %10 : vector<256x1xbf16> to vector<256x4xbf16>
    %12 = arith.mulf %8, %11 : vector<256x4xbf16>
    %c0_10 = arith.constant 0 : index
    %c0_11 = arith.constant 0 : index
    %c0_12 = arith.constant 0 : index
    %13 = vector.load %arg5[%c0_10, %c0_11, %c0_12] : memref<9x4x32xbf16, #tpu.memory_space<vmem>>, vector<1x4x32xbf16>
    %14 = vector.shape_cast %13 : vector<1x4x32xbf16> to vector<4x32xbf16>
    %cst_13 = arith.constant dense<0.000000e+00> : vector<256x32xf32>
    %15 = tpu.matmul %12, %14, %cst_13 {dimension_numbers = #tpu.dot_dimension_numbers<[1], [0], [0], [1], [0, 0, 1, 1], [], []>} : vector<256x4xbf16>, vector<4x32xbf16>, vector<256x32xf32> -> vector<256x32xf32>
    %16 = arith.addf %6, %15 : vector<256x32xf32>
    %c16 = arith.constant 16 : index
    %c0_14 = arith.constant 0 : index
    %17 = vector.load %arg14[%c16, %c0_14] : memref<320x4xf32, #tpu.memory_space<vmem>>, vector<256x4xf32>
    %18 = arith.truncf %17 : vector<256x4xf32> to vector<256x4xbf16>
    %c1 = arith.constant 1 : index
    %c0_15 = arith.constant 0 : index
    %c0_16 = arith.constant 0 : index
    %19 = vector.load %arg5[%c1, %c0_15, %c0_16] : memref<9x4x32xbf16, #tpu.memory_space<vmem>>, vector<1x4x32xbf16>
    %20 = vector.shape_cast %19 : vector<1x4x32xbf16> to vector<4x32xbf16>
    %cst_17 = arith.constant dense<0.000000e+00> : vector<256x32xf32>
    %21 = tpu.matmul %18, %20, %cst_17 {dimension_numbers = #tpu.dot_dimension_numbers<[1], [0], [0], [1], [0, 0, 1, 1], [], []>} : vector<256x4xbf16>, vector<4x32xbf16>, vector<256x32xf32> -> vector<256x32xf32>
    %22 = arith.addf %16, %21 : vector<256x32xf32>
    %c17 = arith.constant 17 : index
    %c0_18 = arith.constant 0 : index
    %23 = vector.load %arg14[%c17, %c0_18] : memref<320x4xf32, #tpu.memory_space<vmem>>, vector<256x4xf32>
    %24 = arith.truncf %23 : vector<256x4xf32> to vector<256x4xbf16>
    %c1_19 = arith.constant 1 : index
    %c0_20 = arith.constant 0 : index
    %c0_21 = arith.constant 0 : index
    %25 = vector.load %arg2[%c1_19, %c0_20, %c0_21] : memref<2x256x1xbf16, #tpu.memory_space<vmem>>, vector<1x256x1xbf16>
    %26 = vector.shape_cast %25 : vector<1x256x1xbf16> to vector<256x1xbf16>
    %27 = vector.broadcast %26 : vector<256x1xbf16> to vector<256x4xbf16>
    %28 = arith.mulf %24, %27 : vector<256x4xbf16>
    %c2 = arith.constant 2 : index
    %c0_22 = arith.constant 0 : index
    %c0_23 = arith.constant 0 : index
    %29 = vector.load %arg5[%c2, %c0_22, %c0_23] : memref<9x4x32xbf16, #tpu.memory_space<vmem>>, vector<1x4x32xbf16>
    %30 = vector.shape_cast %29 : vector<1x4x32xbf16> to vector<4x32xbf16>
    %cst_24 = arith.constant dense<0.000000e+00> : vector<256x32xf32>
    %31 = tpu.matmul %28, %30, %cst_24 {dimension_numbers = #tpu.dot_dimension_numbers<[1], [0], [0], [1], [0, 0, 1, 1], [], []>} : vector<256x4xbf16>, vector<4x32xbf16>, vector<256x32xf32> -> vector<256x32xf32>
    %32 = arith.addf %22, %31 : vector<256x32xf32>
    %c31 = arith.constant 31 : index
    %c0_25 = arith.constant 0 : index
    %33 = vector.load %arg14[%c31, %c0_25] : memref<320x4xf32, #tpu.memory_space<vmem>>, vector<256x4xf32>
    %34 = arith.truncf %33 : vector<256x4xf32> to vector<256x4xbf16>
    %c0_26 = arith.constant 0 : index
    %c0_27 = arith.constant 0 : index
    %c0_28 = arith.constant 0 : index
    %35 = vector.load %arg2[%c0_26, %c0_27, %c0_28] : memref<2x256x1xbf16, #tpu.memory_space<vmem>>, vector<1x256x1xbf16>
    %36 = vector.shape_cast %35 : vector<1x256x1xbf16> to vector<256x1xbf16>
    %37 = vector.broadcast %36 : vector<256x1xbf16> to vector<256x4xbf16>
    %38 = arith.mulf %34, %37 : vector<256x4xbf16>
    %c3 = arith.constant 3 : index
    %c0_29 = arith.constant 0 : index
    %c0_30 = arith.constant 0 : index
    %39 = vector.load %arg5[%c3, %c0_29, %c0_30] : memref<9x4x32xbf16, #tpu.memory_space<vmem>>, vector<1x4x32xbf16>
    %40 = vector.shape_cast %39 : vector<1x4x32xbf16> to vector<4x32xbf16>
    %cst_31 = arith.constant dense<0.000000e+00> : vector<256x32xf32>
    %41 = tpu.matmul %38, %40, %cst_31 {dimension_numbers = #tpu.dot_dimension_numbers<[1], [0], [0], [1], [0, 0, 1, 1], [], []>} : vector<256x4xbf16>, vector<4x32xbf16>, vector<256x32xf32> -> vector<256x32xf32>
    %42 = arith.addf %32, %41 : vector<256x32xf32>
    %c32_32 = arith.constant 32 : index
    %c0_33 = arith.constant 0 : index
    %43 = vector.load %arg14[%c32_32, %c0_33] : memref<320x4xf32, #tpu.memory_space<vmem>>, vector<256x4xf32>
    %44 = arith.truncf %43 : vector<256x4xf32> to vector<256x4xbf16>
    %c4 = arith.constant 4 : index
    %c0_34 = arith.constant 0 : index
    %c0_35 = arith.constant 0 : index
    %45 = vector.load %arg5[%c4, %c0_34, %c0_35] : memref<9x4x32xbf16, #tpu.memory_space<vmem>>, vector<1x4x32xbf16>
    %46 = vector.shape_cast %45 : vector<1x4x32xbf16> to vector<4x32xbf16>
    %cst_36 = arith.constant dense<0.000000e+00> : vector<256x32xf32>
    %47 = tpu.matmul %44, %46, %cst_36 {dimension_numbers = #tpu.dot_dimension_numbers<[1], [0], [0], [1], [0, 0, 1, 1], [], []>} : vector<256x4xbf16>, vector<4x32xbf16>, vector<256x32xf32> -> vector<256x32xf32>
    %48 = arith.addf %42, %47 : vector<256x32xf32>
    %c33 = arith.constant 33 : index
    %c0_37 = arith.constant 0 : index
    %49 = vector.load %arg14[%c33, %c0_37] : memref<320x4xf32, #tpu.memory_space<vmem>>, vector<256x4xf32>
    %50 = arith.truncf %49 : vector<256x4xf32> to vector<256x4xbf16>
    %c1_38 = arith.constant 1 : index
    %c0_39 = arith.constant 0 : index
    %c0_40 = arith.constant 0 : index
    %51 = vector.load %arg2[%c1_38, %c0_39, %c0_40] : memref<2x256x1xbf16, #tpu.memory_space<vmem>>, vector<1x256x1xbf16>
    %52 = vector.shape_cast %51 : vector<1x256x1xbf16> to vector<256x1xbf16>
    %53 = vector.broadcast %52 : vector<256x1xbf16> to vector<256x4xbf16>
    %54 = arith.mulf %50, %53 : vector<256x4xbf16>
    %c5 = arith.constant 5 : index
    %c0_41 = arith.constant 0 : index
    %c0_42 = arith.constant 0 : index
    %55 = vector.load %arg5[%c5, %c0_41, %c0_42] : memref<9x4x32xbf16, #tpu.memory_space<vmem>>, vector<1x4x32xbf16>
    %56 = vector.shape_cast %55 : vector<1x4x32xbf16> to vector<4x32xbf16>
    %cst_43 = arith.constant dense<0.000000e+00> : vector<256x32xf32>
    %57 = tpu.matmul %54, %56, %cst_43 {dimension_numbers = #tpu.dot_dimension_numbers<[1], [0], [0], [1], [0, 0, 1, 1], [], []>} : vector<256x4xbf16>, vector<4x32xbf16>, vector<256x32xf32> -> vector<256x32xf32>
    %58 = arith.addf %48, %57 : vector<256x32xf32>
    %c47 = arith.constant 47 : index
    %c0_44 = arith.constant 0 : index
    %59 = vector.load %arg14[%c47, %c0_44] : memref<320x4xf32, #tpu.memory_space<vmem>>, vector<256x4xf32>
    %60 = arith.truncf %59 : vector<256x4xf32> to vector<256x4xbf16>
    %c0_45 = arith.constant 0 : index
    %c0_46 = arith.constant 0 : index
    %c0_47 = arith.constant 0 : index
    %61 = vector.load %arg2[%c0_45, %c0_46, %c0_47] : memref<2x256x1xbf16, #tpu.memory_space<vmem>>, vector<1x256x1xbf16>
    %62 = vector.shape_cast %61 : vector<1x256x1xbf16> to vector<256x1xbf16>
    %63 = vector.broadcast %62 : vector<256x1xbf16> to vector<256x4xbf16>
    %64 = arith.mulf %60, %63 : vector<256x4xbf16>
    %c6 = arith.constant 6 : index
    %c0_48 = arith.constant 0 : index
    %c0_49 = arith.constant 0 : index
    %65 = vector.load %arg5[%c6, %c0_48, %c0_49] : memref<9x4x32xbf16, #tpu.memory_space<vmem>>, vector<1x4x32xbf16>
    %66 = vector.shape_cast %65 : vector<1x4x32xbf16> to vector<4x32xbf16>
    %cst_50 = arith.constant dense<0.000000e+00> : vector<256x32xf32>
    %67 = tpu.matmul %64, %66, %cst_50 {dimension_numbers = #tpu.dot_dimension_numbers<[1], [0], [0], [1], [0, 0, 1, 1], [], []>} : vector<256x4xbf16>, vector<4x32xbf16>, vector<256x32xf32> -> vector<256x32xf32>
    %68 = arith.addf %58, %67 : vector<256x32xf32>
    %c48 = arith.constant 48 : index
    %c0_51 = arith.constant 0 : index
    %69 = vector.load %arg14[%c48, %c0_51] : memref<320x4xf32, #tpu.memory_space<vmem>>, vector<256x4xf32>
    %70 = arith.truncf %69 : vector<256x4xf32> to vector<256x4xbf16>
    %c7 = arith.constant 7 : index
    %c0_52 = arith.constant 0 : index
    %c0_53 = arith.constant 0 : index
    %71 = vector.load %arg5[%c7, %c0_52, %c0_53] : memref<9x4x32xbf16, #tpu.memory_space<vmem>>, vector<1x4x32xbf16>
    %72 = vector.shape_cast %71 : vector<1x4x32xbf16> to vector<4x32xbf16>
    %cst_54 = arith.constant dense<0.000000e+00> : vector<256x32xf32>
    %73 = tpu.matmul %70, %72, %cst_54 {dimension_numbers = #tpu.dot_dimension_numbers<[1], [0], [0], [1], [0, 0, 1, 1], [], []>} : vector<256x4xbf16>, vector<4x32xbf16>, vector<256x32xf32> -> vector<256x32xf32>
    %74 = arith.addf %68, %73 : vector<256x32xf32>
    %c49 = arith.constant 49 : index
    %c0_55 = arith.constant 0 : index
    %75 = vector.load %arg14[%c49, %c0_55] : memref<320x4xf32, #tpu.memory_space<vmem>>, vector<256x4xf32>
    %76 = arith.truncf %75 : vector<256x4xf32> to vector<256x4xbf16>
    %c1_56 = arith.constant 1 : index
    %c0_57 = arith.constant 0 : index
    %c0_58 = arith.constant 0 : index
    %77 = vector.load %arg2[%c1_56, %c0_57, %c0_58] : memref<2x256x1xbf16, #tpu.memory_space<vmem>>, vector<1x256x1xbf16>
    %78 = vector.shape_cast %77 : vector<1x256x1xbf16> to vector<256x1xbf16>
    %79 = vector.broadcast %78 : vector<256x1xbf16> to vector<256x4xbf16>
    %80 = arith.mulf %76, %79 : vector<256x4xbf16>
    %c8 = arith.constant 8 : index
    %c0_59 = arith.constant 0 : index
    %c0_60 = arith.constant 0 : index
    %81 = vector.load %arg5[%c8, %c0_59, %c0_60] : memref<9x4x32xbf16, #tpu.memory_space<vmem>>, vector<1x4x32xbf16>
    %82 = vector.shape_cast %81 : vector<1x4x32xbf16> to vector<4x32xbf16>
    %cst_61 = arith.constant dense<0.000000e+00> : vector<256x32xf32>
    %83 = tpu.matmul %80, %82, %cst_61 {dimension_numbers = #tpu.dot_dimension_numbers<[1], [0], [0], [1], [0, 0, 1, 1], [], []>} : vector<256x4xbf16>, vector<4x32xbf16>, vector<256x32xf32> -> vector<256x32xf32>
    %84 = arith.addf %74, %83 : vector<256x32xf32>
    %c0_62 = arith.constant 0 : index
    %c0_63 = arith.constant 0 : index
    %85 = vector.load %arg6[%c0_62, %c0_63] : memref<1x32xf32, #tpu.memory_space<vmem>>, vector<1x32xf32>
    %86 = vector.broadcast %85 : vector<1x32xf32> to vector<256x32xf32>
    %87 = arith.addf %84, %86 : vector<256x32xf32>
    %cst_64 = arith.constant 0.000000e+00 : f32
    %88 = vector.broadcast %cst_64 : f32 to vector<256x32xf32>
    %89 = arith.maximumf %87, %88 : vector<256x32xf32>
    %cst_65 = arith.constant 0.000000e+00 : f32
    %90 = vector.broadcast %cst_65 : f32 to vector<320x32xf32>
    %c0_66 = arith.constant 0 : index
    %c0_67 = arith.constant 0 : index
    %91 = vector.load %arg15[%c0_66, %c0_67] : memref<320x32xf32, #tpu.memory_space<vmem>>, vector<320x32xf32>
    tpu.vector_store %arg15[%c0_66, %c0_67], %90 {strides = array<i32>} : memref<320x32xf32, #tpu.memory_space<vmem>>, vector<320x32xf32>,
    %c32_68 = arith.constant 32 : index
    %c0_69 = arith.constant 0 : index
    %92 = vector.load %arg15[%c32_68, %c0_69] : memref<320x32xf32, #tpu.memory_space<vmem>>, vector<256x32xf32>
    tpu.vector_store %arg15[%c32_68, %c0_69], %89 {strides = array<i32>} : memref<320x32xf32, #tpu.memory_space<vmem>>, vector<256x32xf32>,
    %cst_70 = arith.constant 0.000000e+00 : f32
    %93 = vector.broadcast %cst_70 : f32 to vector<256x64xf32>
    %c15_71 = arith.constant 15 : index
    %c0_72 = arith.constant 0 : index
    %94 = vector.load %arg15[%c15_71, %c0_72] : memref<320x32xf32, #tpu.memory_space<vmem>>, vector<256x32xf32>
    %95 = arith.truncf %94 : vector<256x32xf32> to vector<256x32xbf16>
    %c0_73 = arith.constant 0 : index
    %c0_74 = arith.constant 0 : index
    %c0_75 = arith.constant 0 : index
    %96 = vector.load %arg2[%c0_73, %c0_74, %c0_75] : memref<2x256x1xbf16, #tpu.memory_space<vmem>>, vector<1x256x1xbf16>
    %97 = vector.shape_cast %96 : vector<1x256x1xbf16> to vector<256x1xbf16>
    %98 = vector.broadcast %97 : vector<256x1xbf16> to vector<256x32xbf16>
    %99 = arith.mulf %95, %98 : vector<256x32xbf16>
    %c0_76 = arith.constant 0 : index
    %c0_77 = arith.constant 0 : index
    %c0_78 = arith.constant 0 : index
    %100 = vector.load %arg7[%c0_76, %c0_77, %c0_78] : memref<9x32x64xbf16, #tpu.memory_space<vmem>>, vector<1x32x64xbf16>
    %101 = vector.shape_cast %100 : vector<1x32x64xbf16> to vector<32x64xbf16>
    %cst_79 = arith.constant dense<0.000000e+00> : vector<256x64xf32>
    %102 = tpu.matmul %99, %101, %cst_79 {dimension_numbers = #tpu.dot_dimension_numbers<[1], [0], [0], [1], [0, 0, 1, 1], [], []>} : vector<256x32xbf16>, vector<32x64xbf16>, vector<256x64xf32> -> vector<256x64xf32>
    %103 = arith.addf %93, %102 : vector<256x64xf32>
    %c16_80 = arith.constant 16 : index
    %c0_81 = arith.constant 0 : index
    %104 = vector.load %arg15[%c16_80, %c0_81] : memref<320x32xf32, #tpu.memory_space<vmem>>, vector<256x32xf32>
    %105 = arith.truncf %104 : vector<256x32xf32> to vector<256x32xbf16>
    %c1_82 = arith.constant 1 : index
    %c0_83 = arith.constant 0 : index
    %c0_84 = arith.constant 0 : index
    %106 = vector.load %arg7[%c1_82, %c0_83, %c0_84] : memref<9x32x64xbf16, #tpu.memory_space<vmem>>, vector<1x32x64xbf16>
    %107 = vector.shape_cast %106 : vector<1x32x64xbf16> to vector<32x64xbf16>
    %cst_85 = arith.constant dense<0.000000e+00> : vector<256x64xf32>
    %108 = tpu.matmul %105, %107, %cst_85 {dimension_numbers = #tpu.dot_dimension_numbers<[1], [0], [0], [1], [0, 0, 1, 1], [], []>} : vector<256x32xbf16>, vector<32x64xbf16>, vector<256x64xf32> -> vector<256x64xf32>
    %109 = arith.addf %103, %108 : vector<256x64xf32>
    %c17_86 = arith.constant 17 : index
    %c0_87 = arith.constant 0 : index
    %110 = vector.load %arg15[%c17_86, %c0_87] : memref<320x32xf32, #tpu.memory_space<vmem>>, vector<256x32xf32>
    %111 = arith.truncf %110 : vector<256x32xf32> to vector<256x32xbf16>
    %c1_88 = arith.constant 1 : index
    %c0_89 = arith.constant 0 : index
    %c0_90 = arith.constant 0 : index
    %112 = vector.load %arg2[%c1_88, %c0_89, %c0_90] : memref<2x256x1xbf16, #tpu.memory_space<vmem>>, vector<1x256x1xbf16>
    %113 = vector.shape_cast %112 : vector<1x256x1xbf16> to vector<256x1xbf16>
    %114 = vector.broadcast %113 : vector<256x1xbf16> to vector<256x32xbf16>
    %115 = arith.mulf %111, %114 : vector<256x32xbf16>
    %c2_91 = arith.constant 2 : index
    %c0_92 = arith.constant 0 : index
    %c0_93 = arith.constant 0 : index
    %116 = vector.load %arg7[%c2_91, %c0_92, %c0_93] : memref<9x32x64xbf16, #tpu.memory_space<vmem>>, vector<1x32x64xbf16>
    %117 = vector.shape_cast %116 : vector<1x32x64xbf16> to vector<32x64xbf16>
    %cst_94 = arith.constant dense<0.000000e+00> : vector<256x64xf32>
    %118 = tpu.matmul %115, %117, %cst_94 {dimension_numbers = #tpu.dot_dimension_numbers<[1], [0], [0], [1], [0, 0, 1, 1], [], []>} : vector<256x32xbf16>, vector<32x64xbf16>, vector<256x64xf32> -> vector<256x64xf32>
    %119 = arith.addf %109, %118 : vector<256x64xf32>
    %c31_95 = arith.constant 31 : index
    %c0_96 = arith.constant 0 : index
    %120 = vector.load %arg15[%c31_95, %c0_96] : memref<320x32xf32, #tpu.memory_space<vmem>>, vector<256x32xf32>
    %121 = arith.truncf %120 : vector<256x32xf32> to vector<256x32xbf16>
    %c0_97 = arith.constant 0 : index
    %c0_98 = arith.constant 0 : index
    %c0_99 = arith.constant 0 : index
    %122 = vector.load %arg2[%c0_97, %c0_98, %c0_99] : memref<2x256x1xbf16, #tpu.memory_space<vmem>>, vector<1x256x1xbf16>
    %123 = vector.shape_cast %122 : vector<1x256x1xbf16> to vector<256x1xbf16>
    %124 = vector.broadcast %123 : vector<256x1xbf16> to vector<256x32xbf16>
    %125 = arith.mulf %121, %124 : vector<256x32xbf16>
    %c3_100 = arith.constant 3 : index
    %c0_101 = arith.constant 0 : index
    %c0_102 = arith.constant 0 : index
    %126 = vector.load %arg7[%c3_100, %c0_101, %c0_102] : memref<9x32x64xbf16, #tpu.memory_space<vmem>>, vector<1x32x64xbf16>
    %127 = vector.shape_cast %126 : vector<1x32x64xbf16> to vector<32x64xbf16>
    %cst_103 = arith.constant dense<0.000000e+00> : vector<256x64xf32>
    %128 = tpu.matmul %125, %127, %cst_103 {dimension_numbers = #tpu.dot_dimension_numbers<[1], [0], [0], [1], [0, 0, 1, 1], [], []>} : vector<256x32xbf16>, vector<32x64xbf16>, vector<256x64xf32> -> vector<256x64xf32>
    %129 = arith.addf %119, %128 : vector<256x64xf32>
    %c32_104 = arith.constant 32 : index
    %c0_105 = arith.constant 0 : index
    %130 = vector.load %arg15[%c32_104, %c0_105] : memref<320x32xf32, #tpu.memory_space<vmem>>, vector<256x32xf32>
    %131 = arith.truncf %130 : vector<256x32xf32> to vector<256x32xbf16>
    %c4_106 = arith.constant 4 : index
    %c0_107 = arith.constant 0 : index
    %c0_108 = arith.constant 0 : index
    %132 = vector.load %arg7[%c4_106, %c0_107, %c0_108] : memref<9x32x64xbf16, #tpu.memory_space<vmem>>, vector<1x32x64xbf16>
    %133 = vector.shape_cast %132 : vector<1x32x64xbf16> to vector<32x64xbf16>
    %cst_109 = arith.constant dense<0.000000e+00> : vector<256x64xf32>
    %134 = tpu.matmul %131, %133, %cst_109 {dimension_numbers = #tpu.dot_dimension_numbers<[1], [0], [0], [1], [0, 0, 1, 1], [], []>} : vector<256x32xbf16>, vector<32x64xbf16>, vector<256x64xf32> -> vector<256x64xf32>
    %135 = arith.addf %129, %134 : vector<256x64xf32>
    %c33_110 = arith.constant 33 : index
    %c0_111 = arith.constant 0 : index
    %136 = vector.load %arg15[%c33_110, %c0_111] : memref<320x32xf32, #tpu.memory_space<vmem>>, vector<256x32xf32>
    %137 = arith.truncf %136 : vector<256x32xf32> to vector<256x32xbf16>
    %c1_112 = arith.constant 1 : index
    %c0_113 = arith.constant 0 : index
    %c0_114 = arith.constant 0 : index
    %138 = vector.load %arg2[%c1_112, %c0_113, %c0_114] : memref<2x256x1xbf16, #tpu.memory_space<vmem>>, vector<1x256x1xbf16>
    %139 = vector.shape_cast %138 : vector<1x256x1xbf16> to vector<256x1xbf16>
    %140 = vector.broadcast %139 : vector<256x1xbf16> to vector<256x32xbf16>
    %141 = arith.mulf %137, %140 : vector<256x32xbf16>
    %c5_115 = arith.constant 5 : index
    %c0_116 = arith.constant 0 : index
    %c0_117 = arith.constant 0 : index
    %142 = vector.load %arg7[%c5_115, %c0_116, %c0_117] : memref<9x32x64xbf16, #tpu.memory_space<vmem>>, vector<1x32x64xbf16>
    %143 = vector.shape_cast %142 : vector<1x32x64xbf16> to vector<32x64xbf16>
    %cst_118 = arith.constant dense<0.000000e+00> : vector<256x64xf32>
    %144 = tpu.matmul %141, %143, %cst_118 {dimension_numbers = #tpu.dot_dimension_numbers<[1], [0], [0], [1], [0, 0, 1, 1], [], []>} : vector<256x32xbf16>, vector<32x64xbf16>, vector<256x64xf32> -> vector<256x64xf32>
    %145 = arith.addf %135, %144 : vector<256x64xf32>
    %c47_119 = arith.constant 47 : index
    %c0_120 = arith.constant 0 : index
    %146 = vector.load %arg15[%c47_119, %c0_120] : memref<320x32xf32, #tpu.memory_space<vmem>>, vector<256x32xf32>
    %147 = arith.truncf %146 : vector<256x32xf32> to vector<256x32xbf16>
    %c0_121 = arith.constant 0 : index
    %c0_122 = arith.constant 0 : index
    %c0_123 = arith.constant 0 : index
    %148 = vector.load %arg2[%c0_121, %c0_122, %c0_123] : memref<2x256x1xbf16, #tpu.memory_space<vmem>>, vector<1x256x1xbf16>
    %149 = vector.shape_cast %148 : vector<1x256x1xbf16> to vector<256x1xbf16>
    %150 = vector.broadcast %149 : vector<256x1xbf16> to vector<256x32xbf16>
    %151 = arith.mulf %147, %150 : vector<256x32xbf16>
    %c6_124 = arith.constant 6 : index
    %c0_125 = arith.constant 0 : index
    %c0_126 = arith.constant 0 : index
    %152 = vector.load %arg7[%c6_124, %c0_125, %c0_126] : memref<9x32x64xbf16, #tpu.memory_space<vmem>>, vector<1x32x64xbf16>
    %153 = vector.shape_cast %152 : vector<1x32x64xbf16> to vector<32x64xbf16>
    %cst_127 = arith.constant dense<0.000000e+00> : vector<256x64xf32>
    %154 = tpu.matmul %151, %153, %cst_127 {dimension_numbers = #tpu.dot_dimension_numbers<[1], [0], [0], [1], [0, 0, 1, 1], [], []>} : vector<256x32xbf16>, vector<32x64xbf16>, vector<256x64xf32> -> vector<256x64xf32>
    %155 = arith.addf %145, %154 : vector<256x64xf32>
    %c48_128 = arith.constant 48 : index
    %c0_129 = arith.constant 0 : index
    %156 = vector.load %arg15[%c48_128, %c0_129] : memref<320x32xf32, #tpu.memory_space<vmem>>, vector<256x32xf32>
    %157 = arith.truncf %156 : vector<256x32xf32> to vector<256x32xbf16>
    %c7_130 = arith.constant 7 : index
    %c0_131 = arith.constant 0 : index
    %c0_132 = arith.constant 0 : index
    %158 = vector.load %arg7[%c7_130, %c0_131, %c0_132] : memref<9x32x64xbf16, #tpu.memory_space<vmem>>, vector<1x32x64xbf16>
    %159 = vector.shape_cast %158 : vector<1x32x64xbf16> to vector<32x64xbf16>
    %cst_133 = arith.constant dense<0.000000e+00> : vector<256x64xf32>
    %160 = tpu.matmul %157, %159, %cst_133 {dimension_numbers = #tpu.dot_dimension_numbers<[1], [0], [0], [1], [0, 0, 1, 1], [], []>} : vector<256x32xbf16>, vector<32x64xbf16>, vector<256x64xf32> -> vector<256x64xf32>
    %161 = arith.addf %155, %160 : vector<256x64xf32>
    %c49_134 = arith.constant 49 : index
    %c0_135 = arith.constant 0 : index
    %162 = vector.load %arg15[%c49_134, %c0_135] : memref<320x32xf32, #tpu.memory_space<vmem>>, vector<256x32xf32>
    %163 = arith.truncf %162 : vector<256x32xf32> to vector<256x32xbf16>
    %c1_136 = arith.constant 1 : index
    %c0_137 = arith.constant 0 : index
    %c0_138 = arith.constant 0 : index
    %164 = vector.load %arg2[%c1_136, %c0_137, %c0_138] : memref<2x256x1xbf16, #tpu.memory_space<vmem>>, vector<1x256x1xbf16>
    %165 = vector.shape_cast %164 : vector<1x256x1xbf16> to vector<256x1xbf16>
    %166 = vector.broadcast %165 : vector<256x1xbf16> to vector<256x32xbf16>
    %167 = arith.mulf %163, %166 : vector<256x32xbf16>
    %c8_139 = arith.constant 8 : index
    %c0_140 = arith.constant 0 : index
    %c0_141 = arith.constant 0 : index
    %168 = vector.load %arg7[%c8_139, %c0_140, %c0_141] : memref<9x32x64xbf16, #tpu.memory_space<vmem>>, vector<1x32x64xbf16>
    %169 = vector.shape_cast %168 : vector<1x32x64xbf16> to vector<32x64xbf16>
    %cst_142 = arith.constant dense<0.000000e+00> : vector<256x64xf32>
    %170 = tpu.matmul %167, %169, %cst_142 {dimension_numbers = #tpu.dot_dimension_numbers<[1], [0], [0], [1], [0, 0, 1, 1], [], []>} : vector<256x32xbf16>, vector<32x64xbf16>, vector<256x64xf32> -> vector<256x64xf32>
    %171 = arith.addf %161, %170 : vector<256x64xf32>
    %c0_143 = arith.constant 0 : index
    %c0_144 = arith.constant 0 : index
    %172 = vector.load %arg8[%c0_143, %c0_144] : memref<1x64xf32, #tpu.memory_space<vmem>>, vector<1x64xf32>
    %173 = vector.broadcast %172 : vector<1x64xf32> to vector<256x64xf32>
    %174 = arith.addf %171, %173 : vector<256x64xf32>
    %cst_145 = arith.constant 0.000000e+00 : f32
    %175 = vector.broadcast %cst_145 : f32 to vector<256x64xf32>
    %176 = arith.maximumf %174, %175 : vector<256x64xf32>
    %177 = arith.truncf %176 : vector<256x64xf32> to vector<256x64xbf16>
    %c0_146 = arith.constant 0 : index
    %c0_147 = arith.constant 0 : index
    %c0_148 = arith.constant 0 : index
    %178 = vector.load %arg4[%c0_146, %c0_147, %c0_148] : memref<4x64x256xbf16, #tpu.memory_space<vmem>>, vector<1x64x256xbf16>
    %179 = vector.shape_cast %178 : vector<1x64x256xbf16> to vector<64x256xbf16>
    %cst_149 = arith.constant dense<0.000000e+00> : vector<64x64xf32>
    %180 = tpu.matmul %179, %177, %cst_149 {dimension_numbers = #tpu.dot_dimension_numbers<[1], [0], [0], [1], [0, 0, 1, 1], [], []>} : vector<64x256xbf16>, vector<256x64xbf16>, vector<64x64xf32> -> vector<64x64xf32>
    %c1_150 = arith.constant 1 : index
    %c0_151 = arith.constant 0 : index
    %c0_152 = arith.constant 0 : index
    %181 = vector.load %arg4[%c1_150, %c0_151, %c0_152] : memref<4x64x256xbf16, #tpu.memory_space<vmem>>, vector<1x64x256xbf16>
    %182 = vector.shape_cast %181 : vector<1x64x256xbf16> to vector<64x256xbf16>
    %cst_153 = arith.constant dense<0.000000e+00> : vector<64x64xf32>
    %183 = tpu.matmul %182, %177, %cst_153 {dimension_numbers = #tpu.dot_dimension_numbers<[1], [0], [0], [1], [0, 0, 1, 1], [], []>} : vector<64x256xbf16>, vector<256x64xbf16>, vector<64x64xf32> -> vector<64x64xf32>
    %c2_154 = arith.constant 2 : index
    %c0_155 = arith.constant 0 : index
    %c0_156 = arith.constant 0 : index
    %184 = vector.load %arg4[%c2_154, %c0_155, %c0_156] : memref<4x64x256xbf16, #tpu.memory_space<vmem>>, vector<1x64x256xbf16>
    %185 = vector.shape_cast %184 : vector<1x64x256xbf16> to vector<64x256xbf16>
    %cst_157 = arith.constant dense<0.000000e+00> : vector<64x64xf32>
    %186 = tpu.matmul %185, %177, %cst_157 {dimension_numbers = #tpu.dot_dimension_numbers<[1], [0], [0], [1], [0, 0, 1, 1], [], []>} : vector<64x256xbf16>, vector<256x64xbf16>, vector<64x64xf32> -> vector<64x64xf32>
    %c3_158 = arith.constant 3 : index
    %c0_159 = arith.constant 0 : index
    %c0_160 = arith.constant 0 : index
    %187 = vector.load %arg4[%c3_158, %c0_159, %c0_160] : memref<4x64x256xbf16, #tpu.memory_space<vmem>>, vector<1x64x256xbf16>
    %188 = vector.shape_cast %187 : vector<1x64x256xbf16> to vector<64x256xbf16>
    %cst_161 = arith.constant dense<0.000000e+00> : vector<64x64xf32>
    %189 = tpu.matmul %188, %177, %cst_161 {dimension_numbers = #tpu.dot_dimension_numbers<[1], [0], [0], [1], [0, 0, 1, 1], [], []>} : vector<64x256xbf16>, vector<256x64xbf16>, vector<64x64xf32> -> vector<64x64xf32>
    %190 = arith.maximumf %180, %183 : vector<64x64xf32>
    %191 = arith.maximumf %186, %189 : vector<64x64xf32>
    %192 = arith.maximumf %190, %191 : vector<64x64xf32>
    %cst_162 = arith.constant 0.000000e+00 : f32
    %193 = vector.broadcast %cst_162 : f32 to vector<96x64xf32>
    %c0_163 = arith.constant 0 : index
    %c0_164 = arith.constant 0 : index
    %194 = vector.load %arg16[%c0_163, %c0_164] : memref<96x64xf32, #tpu.memory_space<vmem>>, vector<96x64xf32>
    tpu.vector_store %arg16[%c0_163, %c0_164], %193 {strides = array<i32>} : memref<96x64xf32, #tpu.memory_space<vmem>>, vector<96x64xf32>,
    %c16_165 = arith.constant 16 : index
    %c0_166 = arith.constant 0 : index
    %195 = vector.load %arg16[%c16_165, %c0_166] : memref<96x64xf32, #tpu.memory_space<vmem>>, vector<64x64xf32>
    tpu.vector_store %arg16[%c16_165, %c0_166], %192 {strides = array<i32>} : memref<96x64xf32, #tpu.memory_space<vmem>>, vector<64x64xf32>,
    %cst_167 = arith.constant 0.000000e+00 : f32
    %196 = vector.broadcast %cst_167 : f32 to vector<64x64xf32>
    %c7_168 = arith.constant 7 : index
    %c0_169 = arith.constant 0 : index
    %197 = vector.load %arg16[%c7_168, %c0_169] : memref<96x64xf32, #tpu.memory_space<vmem>>, vector<64x64xf32>
    %198 = arith.truncf %197 : vector<64x64xf32> to vector<64x64xbf16>
    %c0_170 = arith.constant 0 : index
    %c0_171 = arith.constant 0 : index
    %c0_172 = arith.constant 0 : index
    %199 = vector.load %arg3[%c0_170, %c0_171, %c0_172] : memref<2x64x1xbf16, #tpu.memory_space<vmem>>, vector<1x64x1xbf16>
    %200 = vector.shape_cast %199 : vector<1x64x1xbf16> to vector<64x1xbf16>
    %201 = vector.broadcast %200 : vector<64x1xbf16> to vector<64x64xbf16>
    %202 = arith.mulf %198, %201 : vector<64x64xbf16>
    %c0_173 = arith.constant 0 : index
    %c0_174 = arith.constant 0 : index
    %c0_175 = arith.constant 0 : index
    %203 = vector.load %arg9[%c0_173, %c0_174, %c0_175] : memref<9x64x64xbf16, #tpu.memory_space<vmem>>, vector<1x64x64xbf16>
    %204 = vector.shape_cast %203 : vector<1x64x64xbf16> to vector<64x64xbf16>
    %cst_176 = arith.constant dense<0.000000e+00> : vector<64x64xf32>
    %205 = tpu.matmul %202, %204, %cst_176 {dimension_numbers = #tpu.dot_dimension_numbers<[1], [0], [0], [1], [0, 0, 1, 1], [], []>} : vector<64x64xbf16>, vector<64x64xbf16>, vector<64x64xf32> -> vector<64x64xf32>
    %206 = arith.addf %196, %205 : vector<64x64xf32>
    %c8_177 = arith.constant 8 : index
    %c0_178 = arith.constant 0 : index
    %207 = vector.load %arg16[%c8_177, %c0_178] : memref<96x64xf32, #tpu.memory_space<vmem>>, vector<64x64xf32>
    %208 = arith.truncf %207 : vector<64x64xf32> to vector<64x64xbf16>
    %c1_179 = arith.constant 1 : index
    %c0_180 = arith.constant 0 : index
    %c0_181 = arith.constant 0 : index
    %209 = vector.load %arg9[%c1_179, %c0_180, %c0_181] : memref<9x64x64xbf16, #tpu.memory_space<vmem>>, vector<1x64x64xbf16>
    %210 = vector.shape_cast %209 : vector<1x64x64xbf16> to vector<64x64xbf16>
    %cst_182 = arith.constant dense<0.000000e+00> : vector<64x64xf32>
    %211 = tpu.matmul %208, %210, %cst_182 {dimension_numbers = #tpu.dot_dimension_numbers<[1], [0], [0], [1], [0, 0, 1, 1], [], []>} : vector<64x64xbf16>, vector<64x64xbf16>, vector<64x64xf32> -> vector<64x64xf32>
    %212 = arith.addf %206, %211 : vector<64x64xf32>
    %c9 = arith.constant 9 : index
    %c0_183 = arith.constant 0 : index
    %213 = vector.load %arg16[%c9, %c0_183] : memref<96x64xf32, #tpu.memory_space<vmem>>, vector<64x64xf32>
    %214 = arith.truncf %213 : vector<64x64xf32> to vector<64x64xbf16>
    %c1_184 = arith.constant 1 : index
    %c0_185 = arith.constant 0 : index
    %c0_186 = arith.constant 0 : index
    %215 = vector.load %arg3[%c1_184, %c0_185, %c0_186] : memref<2x64x1xbf16, #tpu.memory_space<vmem>>, vector<1x64x1xbf16>
    %216 = vector.shape_cast %215 : vector<1x64x1xbf16> to vector<64x1xbf16>
    %217 = vector.broadcast %216 : vector<64x1xbf16> to vector<64x64xbf16>
    %218 = arith.mulf %214, %217 : vector<64x64xbf16>
    %c2_187 = arith.constant 2 : index
    %c0_188 = arith.constant 0 : index
    %c0_189 = arith.constant 0 : index
    %219 = vector.load %arg9[%c2_187, %c0_188, %c0_189] : memref<9x64x64xbf16, #tpu.memory_space<vmem>>, vector<1x64x64xbf16>
    %220 = vector.shape_cast %219 : vector<1x64x64xbf16> to vector<64x64xbf16>
    %cst_190 = arith.constant dense<0.000000e+00> : vector<64x64xf32>
    %221 = tpu.matmul %218, %220, %cst_190 {dimension_numbers = #tpu.dot_dimension_numbers<[1], [0], [0], [1], [0, 0, 1, 1], [], []>} : vector<64x64xbf16>, vector<64x64xbf16>, vector<64x64xf32> -> vector<64x64xf32>
    %222 = arith.addf %212, %221 : vector<64x64xf32>
    %c15_191 = arith.constant 15 : index
    %c0_192 = arith.constant 0 : index
    %223 = vector.load %arg16[%c15_191, %c0_192] : memref<96x64xf32, #tpu.memory_space<vmem>>, vector<64x64xf32>
    %224 = arith.truncf %223 : vector<64x64xf32> to vector<64x64xbf16>
    %c0_193 = arith.constant 0 : index
    %c0_194 = arith.constant 0 : index
    %c0_195 = arith.constant 0 : index
    %225 = vector.load %arg3[%c0_193, %c0_194, %c0_195] : memref<2x64x1xbf16, #tpu.memory_space<vmem>>, vector<1x64x1xbf16>
    %226 = vector.shape_cast %225 : vector<1x64x1xbf16> to vector<64x1xbf16>
    %227 = vector.broadcast %226 : vector<64x1xbf16> to vector<64x64xbf16>
    %228 = arith.mulf %224, %227 : vector<64x64xbf16>
    %c3_196 = arith.constant 3 : index
    %c0_197 = arith.constant 0 : index
    %c0_198 = arith.constant 0 : index
    %229 = vector.load %arg9[%c3_196, %c0_197, %c0_198] : memref<9x64x64xbf16, #tpu.memory_space<vmem>>, vector<1x64x64xbf16>
    %230 = vector.shape_cast %229 : vector<1x64x64xbf16> to vector<64x64xbf16>
    %cst_199 = arith.constant dense<0.000000e+00> : vector<64x64xf32>
    %231 = tpu.matmul %228, %230, %cst_199 {dimension_numbers = #tpu.dot_dimension_numbers<[1], [0], [0], [1], [0, 0, 1, 1], [], []>} : vector<64x64xbf16>, vector<64x64xbf16>, vector<64x64xf32> -> vector<64x64xf32>
    %232 = arith.addf %222, %231 : vector<64x64xf32>
    %c16_200 = arith.constant 16 : index
    %c0_201 = arith.constant 0 : index
    %233 = vector.load %arg16[%c16_200, %c0_201] : memref<96x64xf32, #tpu.memory_space<vmem>>, vector<64x64xf32>
    %234 = arith.truncf %233 : vector<64x64xf32> to vector<64x64xbf16>
    %c4_202 = arith.constant 4 : index
    %c0_203 = arith.constant 0 : index
    %c0_204 = arith.constant 0 : index
    %235 = vector.load %arg9[%c4_202, %c0_203, %c0_204] : memref<9x64x64xbf16, #tpu.memory_space<vmem>>, vector<1x64x64xbf16>
    %236 = vector.shape_cast %235 : vector<1x64x64xbf16> to vector<64x64xbf16>
    %cst_205 = arith.constant dense<0.000000e+00> : vector<64x64xf32>
    %237 = tpu.matmul %234, %236, %cst_205 {dimension_numbers = #tpu.dot_dimension_numbers<[1], [0], [0], [1], [0, 0, 1, 1], [], []>} : vector<64x64xbf16>, vector<64x64xbf16>, vector<64x64xf32> -> vector<64x64xf32>
    %238 = arith.addf %232, %237 : vector<64x64xf32>
    %c17_206 = arith.constant 17 : index
    %c0_207 = arith.constant 0 : index
    %239 = vector.load %arg16[%c17_206, %c0_207] : memref<96x64xf32, #tpu.memory_space<vmem>>, vector<64x64xf32>
    %240 = arith.truncf %239 : vector<64x64xf32> to vector<64x64xbf16>
    %c1_208 = arith.constant 1 : index
    %c0_209 = arith.constant 0 : index
    %c0_210 = arith.constant 0 : index
    %241 = vector.load %arg3[%c1_208, %c0_209, %c0_210] : memref<2x64x1xbf16, #tpu.memory_space<vmem>>, vector<1x64x1xbf16>
    %242 = vector.shape_cast %241 : vector<1x64x1xbf16> to vector<64x1xbf16>
    %243 = vector.broadcast %242 : vector<64x1xbf16> to vector<64x64xbf16>
    %244 = arith.mulf %240, %243 : vector<64x64xbf16>
    %c5_211 = arith.constant 5 : index
    %c0_212 = arith.constant 0 : index
    %c0_213 = arith.constant 0 : index
    %245 = vector.load %arg9[%c5_211, %c0_212, %c0_213] : memref<9x64x64xbf16, #tpu.memory_space<vmem>>, vector<1x64x64xbf16>
    %246 = vector.shape_cast %245 : vector<1x64x64xbf16> to vector<64x64xbf16>
    %cst_214 = arith.constant dense<0.000000e+00> : vector<64x64xf32>
    %247 = tpu.matmul %244, %246, %cst_214 {dimension_numbers = #tpu.dot_dimension_numbers<[1], [0], [0], [1], [0, 0, 1, 1], [], []>} : vector<64x64xbf16>, vector<64x64xbf16>, vector<64x64xf32> -> vector<64x64xf32>
    %248 = arith.addf %238, %247 : vector<64x64xf32>
    %c23 = arith.constant 23 : index
    %c0_215 = arith.constant 0 : index
    %249 = vector.load %arg16[%c23, %c0_215] : memref<96x64xf32, #tpu.memory_space<vmem>>, vector<64x64xf32>
    %250 = arith.truncf %249 : vector<64x64xf32> to vector<64x64xbf16>
    %c0_216 = arith.constant 0 : index
    %c0_217 = arith.constant 0 : index
    %c0_218 = arith.constant 0 : index
    %251 = vector.load %arg3[%c0_216, %c0_217, %c0_218] : memref<2x64x1xbf16, #tpu.memory_space<vmem>>, vector<1x64x1xbf16>
    %252 = vector.shape_cast %251 : vector<1x64x1xbf16> to vector<64x1xbf16>
    %253 = vector.broadcast %252 : vector<64x1xbf16> to vector<64x64xbf16>
    %254 = arith.mulf %250, %253 : vector<64x64xbf16>
    %c6_219 = arith.constant 6 : index
    %c0_220 = arith.constant 0 : index
    %c0_221 = arith.constant 0 : index
    %255 = vector.load %arg9[%c6_219, %c0_220, %c0_221] : memref<9x64x64xbf16, #tpu.memory_space<vmem>>, vector<1x64x64xbf16>
    %256 = vector.shape_cast %255 : vector<1x64x64xbf16> to vector<64x64xbf16>
    %cst_222 = arith.constant dense<0.000000e+00> : vector<64x64xf32>
    %257 = tpu.matmul %254, %256, %cst_222 {dimension_numbers = #tpu.dot_dimension_numbers<[1], [0], [0], [1], [0, 0, 1, 1], [], []>} : vector<64x64xbf16>, vector<64x64xbf16>, vector<64x64xf32> -> vector<64x64xf32>
    %258 = arith.addf %248, %257 : vector<64x64xf32>
    %c24 = arith.constant 24 : index
    %c0_223 = arith.constant 0 : index
    %259 = vector.load %arg16[%c24, %c0_223] : memref<96x64xf32, #tpu.memory_space<vmem>>, vector<64x64xf32>
    %260 = arith.truncf %259 : vector<64x64xf32> to vector<64x64xbf16>
    %c7_224 = arith.constant 7 : index
    %c0_225 = arith.constant 0 : index
    %c0_226 = arith.constant 0 : index
    %261 = vector.load %arg9[%c7_224, %c0_225, %c0_226] : memref<9x64x64xbf16, #tpu.memory_space<vmem>>, vector<1x64x64xbf16>
    %262 = vector.shape_cast %261 : vector<1x64x64xbf16> to vector<64x64xbf16>
    %cst_227 = arith.constant dense<0.000000e+00> : vector<64x64xf32>
    %263 = tpu.matmul %260, %262, %cst_227 {dimension_numbers = #tpu.dot_dimension_numbers<[1], [0], [0], [1], [0, 0, 1, 1], [], []>} : vector<64x64xbf16>, vector<64x64xbf16>, vector<64x64xf32> -> vector<64x64xf32>
    %264 = arith.addf %258, %263 : vector<64x64xf32>
    %c25 = arith.constant 25 : index
    %c0_228 = arith.constant 0 : index
    %265 = vector.load %arg16[%c25, %c0_228] : memref<96x64xf32, #tpu.memory_space<vmem>>, vector<64x64xf32>
    %266 = arith.truncf %265 : vector<64x64xf32> to vector<64x64xbf16>
    %c1_229 = arith.constant 1 : index
    %c0_230 = arith.constant 0 : index
    %c0_231 = arith.constant 0 : index
    %267 = vector.load %arg3[%c1_229, %c0_230, %c0_231] : memref<2x64x1xbf16, #tpu.memory_space<vmem>>, vector<1x64x1xbf16>
    %268 = vector.shape_cast %267 : vector<1x64x1xbf16> to vector<64x1xbf16>
    %269 = vector.broadcast %268 : vector<64x1xbf16> to vector<64x64xbf16>
    %270 = arith.mulf %266, %269 : vector<64x64xbf16>
    %c8_232 = arith.constant 8 : index
    %c0_233 = arith.constant 0 : index
    %c0_234 = arith.constant 0 : index
    %271 = vector.load %arg9[%c8_232, %c0_233, %c0_234] : memref<9x64x64xbf16, #tpu.memory_space<vmem>>, vector<1x64x64xbf16>
    %272 = vector.shape_cast %271 : vector<1x64x64xbf16> to vector<64x64xbf16>
    %cst_235 = arith.constant dense<0.000000e+00> : vector<64x64xf32>
    %273 = tpu.matmul %270, %272, %cst_235 {dimension_numbers = #tpu.dot_dimension_numbers<[1], [0], [0], [1], [0, 0, 1, 1], [], []>} : vector<64x64xbf16>, vector<64x64xbf16>, vector<64x64xf32> -> vector<64x64xf32>
    %274 = arith.addf %264, %273 : vector<64x64xf32>
    %c0_236 = arith.constant 0 : index
    %c0_237 = arith.constant 0 : index
    %275 = vector.load %arg10[%c0_236, %c0_237] : memref<1x64xf32, #tpu.memory_space<vmem>>, vector<1x64xf32>
    %276 = vector.broadcast %275 : vector<1x64xf32> to vector<64x64xf32>
    %277 = arith.addf %274, %276 : vector<64x64xf32>
    %cst_238 = arith.constant 0.000000e+00 : f32
    %278 = vector.broadcast %cst_238 : f32 to vector<64x64xf32>
    %279 = arith.maximumf %277, %278 : vector<64x64xf32>
    %cst_239 = arith.constant dense<0.000000e+00> : vector<64xf32>
    %280 = vector.multi_reduction <add>, %279, %cst_239 [0] : vector<64x64xf32> to vector<64xf32>
    %281 = vector.shape_cast %280 : vector<64xf32> to vector<1x64xf32>
    %cst_240 = arith.constant 1.562500e-02 : f32
    %282 = vector.broadcast %cst_240 : f32 to vector<1x64xf32>
    %283 = arith.mulf %281, %282 : vector<1x64xf32>
    %c0_241 = arith.constant 0 : index
    %c0_242 = arith.constant 0 : index
    %284 = vector.load %arg11[%c0_241, %c0_242] : memref<1x64xf32, #tpu.memory_space<vmem>>, vector<1x64xf32>
    %285 = arith.mulf %283, %284 : vector<1x64xf32>
    %c0_243 = arith.constant 0 : index
    %c0_244 = arith.constant 0 : index
    %286 = vector.load %arg12[%c0_243, %c0_244] : memref<1x64xf32, #tpu.memory_space<vmem>>, vector<1x64xf32>
    %287 = arith.addf %285, %286 : vector<1x64xf32>
    %cst_245 = arith.constant 0.000000e+00 : f32
    %288 = vector.broadcast %cst_245 : f32 to vector<1x64xf32>
    %289 = arith.maximumf %287, %288 : vector<1x64xf32>
    %c0_246 = arith.constant 0 : index
    %c0_247 = arith.constant 0 : index
    %c0_248 = arith.constant 0 : index
    %290 = vector.load %arg13[%c0_246, %c0_247, %c0_248] : memref<1x1x64xf32, #tpu.memory_space<vmem>>, vector<1x1x64xf32>
    %291 = vector.shape_cast %290 : vector<1x1x64xf32> to vector<1x64xf32>
    %292 = vector.shape_cast %289 : vector<1x64xf32> to vector<1x1x64xf32>
    tpu.vector_store %arg13[%c0_246, %c0_247, %c0_248], %292 {strides = array<i32>} : memref<1x1x64xf32, #tpu.memory_space<vmem>>, vector<1x1x64xf32>,
    return
  }
  func.func @transform_0(%arg0: i32) -> (i32, i32, i32) {
    %c0_i32 = arith.constant 0 : i32
    %c0_i32_0 = arith.constant 0 : i32
    %c0_i32_1 = arith.constant 0 : i32
    return %arg0, %c0_i32, %c0_i32_0 : i32, i32, i32
  }
  func.func @transform_1(%arg0: i32) -> (i32, i32, i32) {
    %c0_i32 = arith.constant 0 : i32
    %c0_i32_0 = arith.constant 0 : i32
    %c0_i32_1 = arith.constant 0 : i32
    %c0_i32_2 = arith.constant 0 : i32
    return %c0_i32, %c0_i32_0, %c0_i32_1 : i32, i32, i32
  }
  func.func @transform_2(%arg0: i32) -> (i32, i32, i32) {
    %c0_i32 = arith.constant 0 : i32
    %c0_i32_0 = arith.constant 0 : i32
    %c0_i32_1 = arith.constant 0 : i32
    %c0_i32_2 = arith.constant 0 : i32
    return %c0_i32, %c0_i32_0, %c0_i32_1 : i32, i32, i32
  }
  func.func @transform_3(%arg0: i32) -> (i32, i32, i32) {
    %c0_i32 = arith.constant 0 : i32
    %c0_i32_0 = arith.constant 0 : i32
    %c0_i32_1 = arith.constant 0 : i32
    %c0_i32_2 = arith.constant 0 : i32
    return %c0_i32, %c0_i32_0, %c0_i32_1 : i32, i32, i32
  }
  func.func @transform_4(%arg0: i32) -> (i32, i32, i32) {
    %c0_i32 = arith.constant 0 : i32
    %c0_i32_0 = arith.constant 0 : i32
    %c0_i32_1 = arith.constant 0 : i32
    %c0_i32_2 = arith.constant 0 : i32
    return %c0_i32, %c0_i32_0, %c0_i32_1 : i32, i32, i32
  }
  func.func @transform_5(%arg0: i32) -> (i32, i32) {
    %c0_i32 = arith.constant 0 : i32
    %c0_i32_0 = arith.constant 0 : i32
    %c0_i32_1 = arith.constant 0 : i32
    return %c0_i32, %c0_i32_0 : i32, i32
  }
  func.func @transform_6(%arg0: i32) -> (i32, i32, i32) {
    %c0_i32 = arith.constant 0 : i32
    %c0_i32_0 = arith.constant 0 : i32
    %c0_i32_1 = arith.constant 0 : i32
    %c0_i32_2 = arith.constant 0 : i32
    return %c0_i32, %c0_i32_0, %c0_i32_1 : i32, i32, i32
  }
  func.func @transform_7(%arg0: i32) -> (i32, i32) {
    %c0_i32 = arith.constant 0 : i32
    %c0_i32_0 = arith.constant 0 : i32
    %c0_i32_1 = arith.constant 0 : i32
    return %c0_i32, %c0_i32_0 : i32, i32
  }
  func.func @transform_8(%arg0: i32) -> (i32, i32, i32) {
    %c0_i32 = arith.constant 0 : i32
    %c0_i32_0 = arith.constant 0 : i32
    %c0_i32_1 = arith.constant 0 : i32
    %c0_i32_2 = arith.constant 0 : i32
    return %c0_i32, %c0_i32_0, %c0_i32_1 : i32, i32, i32
  }
  func.func @transform_9(%arg0: i32) -> (i32, i32) {
    %c0_i32 = arith.constant 0 : i32
    %c0_i32_0 = arith.constant 0 : i32
    %c0_i32_1 = arith.constant 0 : i32
    return %c0_i32, %c0_i32_0 : i32, i32
  }
  func.func @transform_10(%arg0: i32) -> (i32, i32) {
    %c0_i32 = arith.constant 0 : i32
    %c0_i32_0 = arith.constant 0 : i32
    %c0_i32_1 = arith.constant 0 : i32
    return %c0_i32, %c0_i32_0 : i32, i32
  }
  func.func @transform_11(%arg0: i32) -> (i32, i32) {
    %c0_i32 = arith.constant 0 : i32
    %c0_i32_0 = arith.constant 0 : i32
    %c0_i32_1 = arith.constant 0 : i32
    return %c0_i32, %c0_i32_0 : i32, i32
  }
  func.func @transform_12(%arg0: i32) -> (i32, i32, i32) {
    %c0_i32 = arith.constant 0 : i32
    %c0_i32_0 = arith.constant 0 : i32
    %c0_i32_1 = arith.constant 0 : i32
    return %arg0, %c0_i32, %c0_i32_0 : i32, i32, i32
  }
}

</mosaic_0001>

<llo_original>
// kernel: cnn_backbone_forward.1
$region0: #{cnn_backbone_forward.1}
  #allocation0 [shape = 'u32[]', space=smem, size = 0x4, offset = 0x4, fixed_abs, tag = 'smem constant byte address 0x4 - core index']
  #allocation1 [shape = 'u32[144,128]{1,0:T(1,128)}', space=vmem, size = 0x12000, scoped, tag = 'internal scratch']
  #allocation2 [shape = 'f32[320,4]{1,0:T(8,128)}', space=vmem, size = 0x28000, scoped, tag = 'scratch operand']
  #allocation3 [shape = 'f32[320,32]{1,0:T(8,128)}', space=vmem, size = 0x28000, scoped, tag = 'scratch operand']
  #allocation4 [shape = 'f32[96,64]{1,0:T(8,128)}', space=vmem, size = 0xc000, scoped, tag = 'scratch operand']
  %s0 = inlined_call_operand.vmem [shape: bf16[4,256,4], index: 0, kind: input, shape index: {}]
  %s1 = inlined_call_operand.vmem [shape: bf16[2,256,1], index: 1, kind: input, shape index: {}]
  %s2 = inlined_call_operand.vmem [shape: bf16[2,64,1], index: 2, kind: input, shape index: {}]
  %s3 = inlined_call_operand.vmem [shape: bf16[4,64,256], index: 3, kind: input, shape index: {}]
  %s4 = inlined_call_operand.vmem [shape: bf16[9,4,32], index: 4, kind: input, shape index: {}]
  %s5 = inlined_call_operand.vmem [shape: f32[1,32], index: 5, kind: input, shape index: {}]
  %s6 = inlined_call_operand.vmem [shape: bf16[9,32,64], index: 6, kind: input, shape index: {}]
  %s7 = inlined_call_operand.hbm [shape: f32[1,64], index: 7, kind: input, shape index: {}]
  %s8 = inlined_call_operand.vmem [shape: bf16[9,64,64], index: 8, kind: input, shape index: {}]
  %s9 = inlined_call_operand.hbm [shape: f32[1,64], index: 9, kind: input, shape index: {}]
  %s10 = inlined_call_operand.hbm [shape: f32[1,64], index: 10, kind: input, shape index: {}]
  %s11 = inlined_call_operand.hbm [shape: f32[1,64], index: 11, kind: input, shape index: {}]
  %s12 = inlined_call_operand.hbm [shape: f32[4,1,64], index: 12, kind: output, shape index: {}]
  %s13 = sld [smem:[#allocation0]]
  $region97: #{cnn_backbone_forward.1} parent=0
    _
  %s15 = ssub.s32 1, %s13
  %s16 = scalar_select 0, %s15, %s13
  $region1: #{cnn_backbone_forward.1} parent=0
    #allocation5 [shape = 'u8[512]{0}', space=vmem, size = 0x400, scoped, tag = 'input window, operand 7, single buffered']
    #allocation6 [shape = 's32[2]{0}', space=sflag, size = 0x8, scoped, tag = 'scoped memory for cnn_backbone_forward.1']
    #allocation7 [shape = 's32[2]{0}', space=sflag, size = 0x8, scoped, tag = 'scoped memory for cnn_backbone_forward.1']
    #allocation8 [shape = 'u8[512]{0}', space=vmem, size = 0x400, scoped, tag = 'input window, operand 9, single buffered']
    #allocation9 [shape = 's32[1]{0}', space=sflag, size = 0x4, scoped, tag = 'scoped memory for cnn_backbone_forward.1']
    #allocation10 [shape = 'u8[512]{0}', space=vmem, size = 0x400, scoped, tag = 'input window, operand 10, single buffered']
    #allocation11 [shape = 'u8[512]{0}', space=vmem, size = 0x400, scoped, tag = 'input window, operand 11, single buffered']
    #allocation12 [shape = 's32[1]{0}', space=sflag, size = 0x4, scoped, tag = 'scoped memory for cnn_backbone_forward.1']
    #allocation13 [shape = 'u8[1024]{0}', space=vmem, size = 0x400, scoped, tag = 'output window, operand 0']
    %17 = vsyncpa [#allocation6], 0
    %18 = vsyncpa [#allocation9], 0
    %19 = vsyncpa [#allocation12], 0
    %20 = vsyncpa [#allocation7], 0
    %s21 = scalar_lea.sflag [#allocation7], 1
    %22 = vsyncpa %s21, 0
    loop: start=0, step=1, limit=6
    $region2: #{cnn_backbone_forward.1} parent=1 // loop_pre_header
      _
    $region3: #{cnn_backbone_forward.1} parent=1 // loop_header
      %s24 = sphi 0, %s28
      %p25 = scmp.ge.s32.totalorder %s24, 6
      %s34 = sphi 0, %s36
      %s37 = sphi 0, %s34
      %s38 = sphi 0, %s37
      %s54 = sphi 0, %s38
      %s58 = sphi 0, %s58
      %s60 = sphi 0, %s58
      %s61 = sphi 0, %s60
      %s75 = sphi 0, %s61
      %s79 = sphi 0, %s79
      %s81 = sphi 0, %s79
      %s82 = sphi 0, %s81
      %s96 = sphi 0, %s82
      %s100 = sphi 0, %s100
      %s102 = sphi 0, %s100
      %s103 = sphi 0, %s102
      %s117 = sphi 0, %s103
      %s121 = sphi 0, %s121
      %s123 = sphi 0, %s121
      %s124 = sphi 0, %s123
      %s138 = sphi 0, %s124
      %s142 = sphi 0, %s142
      %s144 = sphi 0, %s142
      %s145 = sphi 0, %s144
      %s159 = sphi 0, %s145
      %s163 = sphi 0, %s163
      %s165 = sphi 0, %s163
      %s166 = sphi 0, %s165
      %s180 = sphi 0, %s166
      %s184 = sphi 0, %s184
      %s186 = sphi 0, %s184
      %s187 = sphi 0, %s186
      %s201 = sphi 0, %s187
      %s205 = sphi 0, %s205
      %s207 = sphi 0, %s205
      %s208 = sphi 0, %s207
      %s222 = sphi 0, %s208
      %s226 = sphi 0, %s226
      %s228 = sphi 0, %s226
      %s229 = sphi 0, %s228
      %s243 = sphi 0, %s229
      %s247 = sphi 0, %s247
      %s249 = sphi 0, %s247
      %s250 = sphi 0, %s249
      %s264 = sphi 0, %s250
      %s268 = sphi 0, %s268
      %s270 = sphi 0, %s268
      %s271 = sphi 0, %s270
      %s285 = sphi 0, %s271
      %s291 = sphi 0, %s293
      %s294 = sphi 0, %s291
      %s295 = sphi 0, %s294
      %s311 = sphi 0, %s295
    $region4: #{cnn_backbone_forward.1} parent=1 // loop_header_branch
      %27 = sbr.rel (%p25) target = $region8
    $region5: #{cnn_backbone_forward.1} parent=1 // loop_body
      %s29 = ssub.s32 %s24, 1
      %s30 = ssub.s32 %s24, 2
      %s31 = sadd.s32 %s24, 1
      %s32 = ssub.s32 %s24, %s31
      %p33 = scmp.eq.s32.totalorder %s32, 0
      %s35 = sadd.s32 %s34, 1
      %s36 = scalar_select %p33, %s34, %s35
      %p39 = pneg %p33
      %p40 = scmp.eq.s32.totalorder %s24, 3
      %p41 = por %p39, %p40
      %p42 = scmp.ne.s32.totalorder %s34, %s37
      %p43 = scmp.eq.s32.totalorder %s24, 0
      %p44 = por %p42, %p43
      %p45 = scmp.ne.s32.totalorder %s34, %s37
      %p46 = scmp.eq.s32.totalorder %s29, 3
      %p47 = por %p45, %p46
      %p48 = scmp.ne.s32.totalorder %s37, %s38
      %p49 = scmp.eq.s32.totalorder %s29, 0
      %p50 = por %p48, %p49
      %p51 = scmp.ne.s32.totalorder %s37, %s38
      %p52 = scmp.eq.s32.totalorder %s30, 3
      %p53 = por %p51, %p52
      %p55 = scmp.ne.s32.totalorder %s38, %s54
      %p56 = scmp.eq.s32.totalorder %s30, 0
      %p57 = por %p55, %p56
      %s59 = sadd.s32 %s58, 1
      %p62 = scmp.eq.s32.totalorder %s24, 3
      %p63 = scmp.ne.s32.totalorder %s58, %s60
      %p64 = scmp.eq.s32.totalorder %s24, 0
      %p65 = por %p63, %p64
      %p66 = scmp.ne.s32.totalorder %s58, %s60
      %p67 = scmp.eq.s32.totalorder %s29, 3
      %p68 = por %p66, %p67
      %p69 = scmp.ne.s32.totalorder %s60, %s61
      %p70 = scmp.eq.s32.totalorder %s29, 0
      %p71 = por %p69, %p70
      %p72 = scmp.ne.s32.totalorder %s60, %s61
      %p73 = scmp.eq.s32.totalorder %s30, 3
      %p74 = por %p72, %p73
      %p76 = scmp.ne.s32.totalorder %s61, %s75
      %p77 = scmp.eq.s32.totalorder %s30, 0
      %p78 = por %p76, %p77
      %s80 = sadd.s32 %s79, 1
      %p83 = scmp.eq.s32.totalorder %s24, 3
      %p84 = scmp.ne.s32.totalorder %s79, %s81
      %p85 = scmp.eq.s32.totalorder %s24, 0
      %p86 = por %p84, %p85
      %p87 = scmp.ne.s32.totalorder %s79, %s81
      %p88 = scmp.eq.s32.totalorder %s29, 3
      %p89 = por %p87, %p88
      %p90 = scmp.ne.s32.totalorder %s81, %s82
      %p91 = scmp.eq.s32.totalorder %s29, 0
      %p92 = por %p90, %p91
      %p93 = scmp.ne.s32.totalorder %s81, %s82
      %p94 = scmp.eq.s32.totalorder %s30, 3
      %p95 = por %p93, %p94
      %p97 = scmp.ne.s32.totalorder %s82, %s96
      %p98 = scmp.eq.s32.totalorder %s30, 0
      %p99 = por %p97, %p98
      %s101 = sadd.s32 %s100, 1
      %p104 = scmp.eq.s32.totalorder %s24, 3
      %p105 = scmp.ne.s32.totalorder %s100, %s102
      %p106 = scmp.eq.s32.totalorder %s24, 0
      %p107 = por %p105, %p106
      %p108 = scmp.ne.s32.totalorder %s100, %s102
      %p109 = scmp.eq.s32.totalorder %s29, 3
      %p110 = por %p108, %p109
      %p111 = scmp.ne.s32.totalorder %s102, %s103
      %p112 = scmp.eq.s32.totalorder %s29, 0
      %p113 = por %p111, %p112
      %p114 = scmp.ne.s32.totalorder %s102, %s103
      %p115 = scmp.eq.s32.totalorder %s30, 3
      %p116 = por %p114, %p115
      %p118 = scmp.ne.s32.totalorder %s103, %s117
      %p119 = scmp.eq.s32.totalorder %s30, 0
      %p120 = por %p118, %p119
      %s122 = sadd.s32 %s121, 1
      %p125 = scmp.eq.s32.totalorder %s24, 3
      %p126 = scmp.ne.s32.totalorder %s121, %s123
      %p127 = scmp.eq.s32.totalorder %s24, 0
      %p128 = por %p126, %p127
      %p129 = scmp.ne.s32.totalorder %s121, %s123
      %p130 = scmp.eq.s32.totalorder %s29, 3
      %p131 = por %p129, %p130
      %p132 = scmp.ne.s32.totalorder %s123, %s124
      %p133 = scmp.eq.s32.totalorder %s29, 0
      %p134 = por %p132, %p133
      %p135 = scmp.ne.s32.totalorder %s123, %s124
      %p136 = scmp.eq.s32.totalorder %s30, 3
      %p137 = por %p135, %p136
      %p139 = scmp.ne.s32.totalorder %s124, %s138
      %p140 = scmp.eq.s32.totalorder %s30, 0
      %p141 = por %p139, %p140
      %s143 = sadd.s32 %s142, 1
      %p146 = scmp.eq.s32.totalorder %s24, 3
      %p147 = scmp.ne.s32.totalorder %s142, %s144
      %p148 = scmp.eq.s32.totalorder %s24, 0
      %p149 = por %p147, %p148
      %p150 = scmp.ne.s32.totalorder %s142, %s144
      %p151 = scmp.eq.s32.totalorder %s29, 3
      %p152 = por %p150, %p151
      %p153 = scmp.ne.s32.totalorder %s144, %s145
      %p154 = scmp.eq.s32.totalorder %s29, 0
      %p155 = por %p153, %p154
      %p156 = scmp.ne.s32.totalorder %s144, %s145
      %p157 = scmp.eq.s32.totalorder %s30, 3
      %p158 = por %p156, %p157
      %p160 = scmp.ne.s32.totalorder %s145, %s159
      %p161 = scmp.eq.s32.totalorder %s30, 0
      %p162 = por %p160, %p161
      %s164 = sadd.s32 %s163, 1
      %p167 = scmp.eq.s32.totalorder %s24, 3
      %p168 = scmp.ne.s32.totalorder %s163, %s165
      %p169 = scmp.eq.s32.totalorder %s24, 0
      %p170 = por %p168, %p169
      %p171 = scmp.ne.s32.totalorder %s163, %s165
      %p172 = scmp.eq.s32.totalorder %s29, 3
      %p173 = por %p171, %p172
      %p174 = scmp.ne.s32.totalorder %s165, %s166
      %p175 = scmp.eq.s32.totalorder %s29, 0
      %p176 = por %p174, %p175
      %p177 = scmp.ne.s32.totalorder %s165, %s166
      %p178 = scmp.eq.s32.totalorder %s30, 3
      %p179 = por %p177, %p178
      %p181 = scmp.ne.s32.totalorder %s166, %s180
      %p182 = scmp.eq.s32.totalorder %s30, 0
      %p183 = por %p181, %p182
      %s185 = sadd.s32 %s184, 1
      %p188 = scmp.eq.s32.totalorder %s24, 3
      %p189 = scmp.ne.s32.totalorder %s184, %s186
      %p190 = scmp.eq.s32.totalorder %s24, 0
      %p191 = por %p189, %p190
      %p192 = scmp.ne.s32.totalorder %s184, %s186
      %p193 = scmp.eq.s32.totalorder %s29, 3
      %p194 = por %p192, %p193
      %p195 = scmp.ne.s32.totalorder %s186, %s187
      %p196 = scmp.eq.s32.totalorder %s29, 0
      %p197 = por %p195, %p196
      %p198 = scmp.ne.s32.totalorder %s186, %s187
      %p199 = scmp.eq.s32.totalorder %s30, 3
      %p200 = por %p198, %p199
      %p202 = scmp.ne.s32.totalorder %s187, %s201
      %p203 = scmp.eq.s32.totalorder %s30, 0
      %p204 = por %p202, %p203
      %s206 = sadd.s32 %s205, 1
      %p209 = scmp.eq.s32.totalorder %s24, 3
      %p210 = scmp.ne.s32.totalorder %s205, %s207
      %p211 = scmp.eq.s32.totalorder %s24, 0
      %p212 = por %p210, %p211
      %p213 = scmp.ne.s32.totalorder %s205, %s207
      %p214 = scmp.eq.s32.totalorder %s29, 3
      %p215 = por %p213, %p214
      %p216 = scmp.ne.s32.totalorder %s207, %s208
      %p217 = scmp.eq.s32.totalorder %s29, 0
      %p218 = por %p216, %p217
      %p219 = scmp.ne.s32.totalorder %s207, %s208
      %p220 = scmp.eq.s32.totalorder %s30, 3
      %p221 = por %p219, %p220
      %p223 = scmp.ne.s32.totalorder %s208, %s222
      %p224 = scmp.eq.s32.totalorder %s30, 0
      %p225 = por %p223, %p224
      %s227 = sadd.s32 %s226, 1
      %p230 = scmp.eq.s32.totalorder %s24, 3
      %p231 = scmp.ne.s32.totalorder %s226, %s228
      %p232 = scmp.eq.s32.totalorder %s24, 0
      %p233 = por %p231, %p232
      %p234 = scmp.ne.s32.totalorder %s226, %s228
      %p235 = scmp.eq.s32.totalorder %s29, 3
      %p236 = por %p234, %p235
      %p237 = scmp.ne.s32.totalorder %s228, %s229
      %p238 = scmp.eq.s32.totalorder %s29, 0
      %p239 = por %p237, %p238
      %p240 = scmp.ne.s32.totalorder %s228, %s229
      %p241 = scmp.eq.s32.totalorder %s30, 3
      %p242 = por %p240, %p241
      %p244 = scmp.ne.s32.totalorder %s229, %s243
      %p245 = scmp.eq.s32.totalorder %s30, 0
      %p246 = por %p244, %p245
      %s248 = sadd.s32 %s247, 1
      %p251 = scmp.eq.s32.totalorder %s24, 3
      %p252 = scmp.ne.s32.totalorder %s247, %s249
      %p253 = scmp.eq.s32.totalorder %s24, 0
      %p254 = por %p252, %p253
      %p255 = scmp.ne.s32.totalorder %s247, %s249
      %p256 = scmp.eq.s32.totalorder %s29, 3
      %p257 = por %p255, %p256
      %p258 = scmp.ne.s32.totalorder %s249, %s250
      %p259 = scmp.eq.s32.totalorder %s29, 0
      %p260 = por %p258, %p259
      %p261 = scmp.ne.s32.totalorder %s249, %s250
      %p262 = scmp.eq.s32.totalorder %s30, 3
      %p263 = por %p261, %p262
      %p265 = scmp.ne.s32.totalorder %s250, %s264
      %p266 = scmp.eq.s32.totalorder %s30, 0
      %p267 = por %p265, %p266
      %s269 = sadd.s32 %s268, 1
      %p272 = scmp.eq.s32.totalorder %s24, 3
      %p273 = scmp.ne.s32.totalorder %s268, %s270
      %p274 = scmp.eq.s32.totalorder %s24, 0
      %p275 = por %p273, %p274
      %p276 = scmp.ne.s32.totalorder %s268, %s270
      %p277 = scmp.eq.s32.totalorder %s29, 3
      %p278 = por %p276, %p277
      %p279 = scmp.ne.s32.totalorder %s270, %s271
      %p280 = scmp.eq.s32.totalorder %s29, 0
      %p281 = por %p279, %p280
      %p282 = scmp.ne.s32.totalorder %s270, %s271
      %p283 = scmp.eq.s32.totalorder %s30, 3
      %p284 = por %p282, %p283
      %p286 = scmp.ne.s32.totalorder %s271, %s285
      %p287 = scmp.eq.s32.totalorder %s30, 0
      %p288 = por %p286, %p287
      %s289 = ssub.s32 %s24, %s31
      %p290 = scmp.eq.s32.totalorder %s289, 0
      %s292 = sadd.s32 %s291, 1
      %s293 = scalar_select %p290, %s291, %s292
      %p296 = pneg %p290
      %p297 = scmp.eq.s32.totalorder %s24, 3
      %p298 = por %p296, %p297
      %p299 = scmp.ne.s32.totalorder %s291, %s294
      %p300 = scmp.eq.s32.totalorder %s24, 0
      %p301 = por %p299, %p300
      %p302 = scmp.ne.s32.totalorder %s291, %s294
      %p303 = scmp.eq.s32.totalorder %s29, 3
      %p304 = por %p302, %p303
      %p305 = scmp.ne.s32.totalorder %s294, %s295
      %p306 = scmp.eq.s32.totalorder %s29, 0
      %p307 = por %p305, %p306
      %p308 = scmp.ne.s32.totalorder %s294, %s295
      %p309 = scmp.eq.s32.totalorder %s30, 3
      %p310 = por %p308, %p309
      %p312 = scmp.ne.s32.totalorder %s295, %s311
      %p313 = scmp.eq.s32.totalorder %s30, 0
      %p314 = por %p312, %p313
      %p315 = scmp.le.s32.totalorder 1, %s24
      %p316 = scmp.lt.s32.totalorder %s24, 5
      %p317 = pnand %p315, %p316
      %p318 = pneg %p317
      // Predicated region
      $region9: #{cnn_backbone_forward.1} parent=5 // pred_check
        _
      $region10: #{cnn_backbone_forward.1} parent=5 // pred_check_branch
        %320 = sbr.rel (%p317) target = $region12
      $region11: #{cnn_backbone_forward.1} parent=5 // pred_region
        %s321 = ssub.s32 %s24, 1
        // Predicated region
        $region13: #{cnn_backbone_forward.1} parent=11 // pred_check
          %p322 = pneg %p71
        $region14: #{cnn_backbone_forward.1} parent=11 // pred_check_branch
          %324 = sbr.rel (%p322) target = $region16
        $region15: #{cnn_backbone_forward.1} parent=11 // pred_region
          _
        $region16: #{cnn_backbone_forward.1} parent=11 // pred_fallthru
          _
        // Predicated region
        $region17: #{cnn_backbone_forward.1} parent=11 // pred_check
          %p325 = pneg %p92
        $region18: #{cnn_backbone_forward.1} parent=11 // pred_check_branch
          %327 = sbr.rel (%p325) target = $region20
        $region19: #{cnn_backbone_forward.1} parent=11 // pred_region
          _
        $region20: #{cnn_backbone_forward.1} parent=11 // pred_fallthru
          _
        // Predicated region
        $region21: #{cnn_backbone_forward.1} parent=11 // pred_check
          %p328 = pneg %p113
        $region22: #{cnn_backbone_forward.1} parent=11 // pred_check_branch
          %330 = sbr.rel (%p328) target = $region24
        $region23: #{cnn_backbone_forward.1} parent=11 // pred_region
          _
        $region24: #{cnn_backbone_forward.1} parent=11 // pred_fallthru
          _
        // Predicated region
        $region25: #{cnn_backbone_forward.1} parent=11 // pred_check
          %p331 = pneg %p134
        $region26: #{cnn_backbone_forward.1} parent=11 // pred_check_branch
          %333 = sbr.rel (%p331) target = $region28
        $region27: #{cnn_backbone_forward.1} parent=11 // pred_region
          _
        $region28: #{cnn_backbone_forward.1} parent=11 // pred_fallthru
          _
        // Predicated region
        $region29: #{cnn_backbone_forward.1} parent=11 // pred_check
          %p334 = pneg %p155
        $region30: #{cnn_backbone_forward.1} parent=11 // pred_check_branch
          %336 = sbr.rel (%p334) target = $region32
        $region31: #{cnn_backbone_forward.1} parent=11 // pred_region
          _
        $region32: #{cnn_backbone_forward.1} parent=11 // pred_fallthru
          _
        // Predicated region
        $region33: #{cnn_backbone_forward.1} parent=11 // pred_check
          %p337 = pneg %p176
        $region34: #{cnn_backbone_forward.1} parent=11 // pred_check_branch
          %339 = sbr.rel (%p337) target = $region36
        $region35: #{cnn_backbone_forward.1} parent=11 // pred_region
          _
        $region36: #{cnn_backbone_forward.1} parent=11 // pred_fallthru
          _
        // Predicated region
        $region37: #{cnn_backbone_forward.1} parent=11 // pred_check
          %p340 = pneg %p197
        $region38: #{cnn_backbone_forward.1} parent=11 // pred_check_branch
          %342 = sbr.rel (%p340) target = $region40
        $region39: #{cnn_backbone_forward.1} parent=11 // pred_region
          %s344 = ssub.s32 16, 16
          %345 = vsyncadd [#allocation6], %s344
          %s347 = sshll.u32 [#allocation5], 4
          %s348 = int_to_ptr.vmem [resolvable:$true] %s347
          %350 = dma.hbm_to_vmem [thread:$0]  %s7, 16, %s348, [#allocation6]
        $region40: #{cnn_backbone_forward.1} parent=11 // pred_fallthru
          _
        // Predicated region
        $region41: #{cnn_backbone_forward.1} parent=11 // pred_check
          %p351 = pneg %p218
        $region42: #{cnn_backbone_forward.1} parent=11 // pred_check_branch
          %353 = sbr.rel (%p351) target = $region44
        $region43: #{cnn_backbone_forward.1} parent=11 // pred_region
          _
        $region44: #{cnn_backbone_forward.1} parent=11 // pred_fallthru
          _
        // Predicated region
        $region45: #{cnn_backbone_forward.1} parent=11 // pred_check
          %p354 = pneg %p239
        $region46: #{cnn_backbone_forward.1} parent=11 // pred_check_branch
          %356 = sbr.rel (%p354) target = $region48
        $region47: #{cnn_backbone_forward.1} parent=11 // pred_region
          %s358 = ssub.s32 16, 16
          %359 = vsyncadd [#allocation9], %s358
          %s361 = sshll.u32 [#allocation8], 4
          %s362 = int_to_ptr.vmem [resolvable:$true] %s361
          %364 = dma.hbm_to_vmem [thread:$0]  %s9, 16, %s362, [#allocation9]
        $region48: #{cnn_backbone_forward.1} parent=11 // pred_fallthru
          _
        // Predicated region
        $region49: #{cnn_backbone_forward.1} parent=11 // pred_check
          %p365 = pneg %p260
        $region50: #{cnn_backbone_forward.1} parent=11 // pred_check_branch
          %367 = sbr.rel (%p365) target = $region52
        $region51: #{cnn_backbone_forward.1} parent=11 // pred_region
          %s369 = ssub.s32 16, 16
          %370 = vsyncadd [#allocation9], %s369
          %s372 = sshll.u32 [#allocation10], 4
          %s373 = int_to_ptr.vmem [resolvable:$true] %s372
          %375 = dma.hbm_to_vmem [thread:$0]  %s10, 16, %s373, [#allocation9]
        $region52: #{cnn_backbone_forward.1} parent=11 // pred_fallthru
          _
        // Predicated region
        $region53: #{cnn_backbone_forward.1} parent=11 // pred_check
          %p376 = pneg %p281
        $region54: #{cnn_backbone_forward.1} parent=11 // pred_check_branch
          %378 = sbr.rel (%p376) target = $region56
        $region55: #{cnn_backbone_forward.1} parent=11 // pred_region
          %s380 = ssub.s32 16, 16
          %381 = vsyncadd [#allocation12], %s380
          %s383 = sshll.u32 [#allocation11], 4
          %s384 = int_to_ptr.vmem [resolvable:$true] %s383
          %386 = dma.hbm_to_vmem [thread:$0]  %s11, 16, %s384, [#allocation12]
        $region56: #{cnn_backbone_forward.1} parent=11 // pred_fallthru
          _
      $region12: #{cnn_backbone_forward.1} parent=5 // pred_fallthru
        _
      %p387 = scmp.lt.s32.totalorder %s24, 4
      // Predicated region
      $region57: #{cnn_backbone_forward.1} parent=5 // pred_check
        %p388 = pneg %p387
      $region58: #{cnn_backbone_forward.1} parent=5 // pred_check_branch
        %390 = sbr.rel (%p388) target = $region60
      $region59: #{cnn_backbone_forward.1} parent=5 // pred_region
        // Predicated region
        $region61: #{cnn_backbone_forward.1} parent=59 // pred_check
          %p391 = pneg %p44
        $region62: #{cnn_backbone_forward.1} parent=59 // pred_check_branch
          %393 = sbr.rel (%p391) target = $region64
        $region63: #{cnn_backbone_forward.1} parent=59 // pred_region
          %p394 = scmp.lt.s32.totalorder %s24, 3
          %s395 = scalar_select %p394, %s24, 3
          %s396 = smul.addr %s395, 32
          %s397 = smul.addr %s396, 4
          %s398 = scalar_lea.vmem %s0, %s397
        $region64: #{cnn_backbone_forward.1} parent=59 // pred_fallthru
          _
      $region60: #{cnn_backbone_forward.1} parent=5 // pred_fallthru
        _
      %p399 = scmp.le.s32.totalorder 1, %s24
      %p400 = scmp.lt.s32.totalorder %s24, 5
      %p401 = pnand %p399, %p400
      %p402 = pneg %p401
      // Predicated region
      $region65: #{cnn_backbone_forward.1} parent=5 // pred_check
        _
      $region66: #{cnn_backbone_forward.1} parent=5 // pred_check_branch
        %404 = sbr.rel (%p401) target = $region68
      $region67: #{cnn_backbone_forward.1} parent=5 // pred_region
        %s405 = ssub.s32 %s24, 1
        // Predicated region
        $region69: #{cnn_backbone_forward.1} parent=67 // pred_check
          %p406 = pneg %p197
        $region70: #{cnn_backbone_forward.1} parent=67 // pred_check_branch
          %408 = sbr.rel (%p406) target = $region72
        $region71: #{cnn_backbone_forward.1} parent=67 // pred_region
          %409 = dma.done [#allocation6], 16
        $region72: #{cnn_backbone_forward.1} parent=67 // pred_fallthru
          _
        // Predicated region
        $region73: #{cnn_backbone_forward.1} parent=67 // pred_check
          %p410 = pneg %p239
        $region74: #{cnn_backbone_forward.1} parent=67 // pred_check_branch
          %412 = sbr.rel (%p410) target = $region76
        $region75: #{cnn_backbone_forward.1} parent=67 // pred_region
          %413 = dma.done [#allocation9], 16
        $region76: #{cnn_backbone_forward.1} parent=67 // pred_fallthru
          _
        // Predicated region
        $region77: #{cnn_backbone_forward.1} parent=67 // pred_check
          %p414 = pneg %p260
        $region78: #{cnn_backbone_forward.1} parent=67 // pred_check_branch
          %416 = sbr.rel (%p414) target = $region80
        $region79: #{cnn_backbone_forward.1} parent=67 // pred_region
          %417 = dma.done [#allocation9], 16
        $region80: #{cnn_backbone_forward.1} parent=67 // pred_fallthru
          _
        // Predicated region
        $region81: #{cnn_backbone_forward.1} parent=67 // pred_check
          %p418 = pneg %p281
        $region82: #{cnn_backbone_forward.1} parent=67 // pred_check_branch
          %420 = sbr.rel (%p418) target = $region84
        $region83: #{cnn_backbone_forward.1} parent=67 // pred_region
          %421 = dma.done [#allocation12], 16
        $region84: #{cnn_backbone_forward.1} parent=67 // pred_fallthru
          _
        %p422 = scmp.lt.s32.totalorder %s29, 3
        %s423 = scalar_select %p422, %s29, 3
        %s424 = smul.addr %s423, 32
        %s425 = smul.addr %s424, 4
        %s426 = scalar_lea.vmem %s0, %s425
        %p427 = pneg %p50
        %p428 = pneg %p47
        %p429 = pneg %p71
        %p430 = pneg %p68
        %p431 = pneg %p92
        %p432 = pneg %p89
        %p433 = pneg %p113
        %p434 = pneg %p110
        %p435 = pneg %p134
        %p436 = pneg %p131
        %p437 = pneg %p155
        %p438 = pneg %p152
        %p439 = pneg %p176
        %p440 = pneg %p173
        %p441 = pneg %p197
        %p442 = pneg %p194
        %p443 = pneg %p218
        %p444 = pneg %p215
        %p445 = pneg %p239
        %p446 = pneg %p236
        %p447 = pneg %p260
        %p448 = pneg %p257
        %p449 = pneg %p281
        %p450 = pneg %p278
        %p451 = pneg %p307
        %p452 = pneg %p304
        %s453 = sand.u32 %s294, 1
        %s454 = scalar_lea.sflag [#allocation7], %s453
        %s455 = sand.u32 %s294, 1
        %s456 = scalar_lea.vmem [#allocation13], %s455
        %p457 = scmp.lt.s32.totalorder %s29, 3
        %s458 = scalar_select %p457, %s29, 3
        %s459 = smul.addr %s458, 32
        %s460 = smul.addr %s459, 4
        %s461 = scalar_lea.vmem %s0, %s460
        %v463 = vld [vmem:[%s461] sm:$0xf]
        %v464 = vld [vmem:[%s461 + $0x4] sm:$0xf]
        %v465 = vld [vmem:[%s461 + $0x8] sm:$0xf]
        %v466 = vld [vmem:[%s461 + $0xc] sm:$0xf]
        %v467 = vld [vmem:[%s461 + $0x10] sm:$0xf]
        %v468 = vld [vmem:[%s461 + $0x14] sm:$0xf]
        %v469 = vld [vmem:[%s461 + $0x18] sm:$0xf]
        %v470 = vld [vmem:[%s461 + $0x1c] sm:$0xf]
        %v471 = vld [vmem:[%s461 + $0x20] sm:$0xf]
        %v472 = vld [vmem:[%s461 + $0x24] sm:$0xf]
        %v473 = vld [vmem:[%s461 + $0x28] sm:$0xf]
        %v474 = vld [vmem:[%s461 + $0x2c] sm:$0xf]
        %v475 = vld [vmem:[%s461 + $0x30] sm:$0xf]
        %v476 = vld [vmem:[%s461 + $0x34] sm:$0xf]
        %v477 = vld [vmem:[%s461 + $0x38] sm:$0xf]
        %v478 = vld [vmem:[%s461 + $0x3c] sm:$0xf]
        %v479 = vld [vmem:[%s461 + $0x40] sm:$0xf]
        %v480 = vld [vmem:[%s461 + $0x44] sm:$0xf]
        %v481 = vld [vmem:[%s461 + $0x48] sm:$0xf]
        %v482 = vld [vmem:[%s461 + $0x4c] sm:$0xf]
        %v483 = vld [vmem:[%s461 + $0x50] sm:$0xf]
        %v484 = vld [vmem:[%s461 + $0x54] sm:$0xf]
        %v485 = vld [vmem:[%s461 + $0x58] sm:$0xf]
        %v486 = vld [vmem:[%s461 + $0x5c] sm:$0xf]
        %v487 = vld [vmem:[%s461 + $0x60] sm:$0xf]
        %v488 = vld [vmem:[%s461 + $0x64] sm:$0xf]
        %v489 = vld [vmem:[%s461 + $0x68] sm:$0xf]
        %v490 = vld [vmem:[%s461 + $0x6c] sm:$0xf]
        %v491 = vld [vmem:[%s461 + $0x70] sm:$0xf]
        %v492 = vld [vmem:[%s461 + $0x74] sm:$0xf]
        %v493 = vld [vmem:[%s461 + $0x78] sm:$0xf]
        %v494 = vld [vmem:[%s461 + $0x7c] sm:$0xf]
        %v495 = vunpack.c.l.bf16 %v463
        %v496 = vunpack.c.l.bf16 %v464
        %v497 = vunpack.c.l.bf16 %v465
        %v498 = vunpack.c.l.bf16 %v466
        %v499 = vunpack.c.l.bf16 %v467
        %v500 = vunpack.c.l.bf16 %v468
        %v501 = vunpack.c.l.bf16 %v469
        %v502 = vunpack.c.l.bf16 %v470
        %v503 = vunpack.c.l.bf16 %v471
        %v504 = vunpack.c.l.bf16 %v472
        %v505 = vunpack.c.l.bf16 %v473
        %v506 = vunpack.c.l.bf16 %v474
        %v507 = vunpack.c.l.bf16 %v475
        %v508 = vunpack.c.l.bf16 %v476
        %v509 = vunpack.c.l.bf16 %v477
        %v510 = vunpack.c.l.bf16 %v478
        %v511 = vunpack.c.l.bf16 %v479
        %v512 = vunpack.c.l.bf16 %v480
        %v513 = vunpack.c.l.bf16 %v481
        %v514 = vunpack.c.l.bf16 %v482
        %v515 = vunpack.c.l.bf16 %v483
        %v516 = vunpack.c.l.bf16 %v484
        %v517 = vunpack.c.l.bf16 %v485
        %v518 = vunpack.c.l.bf16 %v486
        %v519 = vunpack.c.l.bf16 %v487
        %v520 = vunpack.c.l.bf16 %v488
        %v521 = vunpack.c.l.bf16 %v489
        %v522 = vunpack.c.l.bf16 %v490
        %v523 = vunpack.c.l.bf16 %v491
        %v524 = vunpack.c.l.bf16 %v492
        %v525 = vunpack.c.l.bf16 %v493
        %v526 = vunpack.c.l.bf16 %v494
        %vm527 = vcmask 31744
        %528 = vst.msk [vmem:[#allocation2] sm:$0xff] %vm527, 0.0
        %529 = vst.msk [vmem:[#allocation2 + $0x8] sm:$0xff] %vm527, 0.0
        %530 = vst.msk [vmem:[#allocation2 + $0x10] sm:$0xff] %vm527, 0.0
        %531 = vst.msk [vmem:[#allocation2 + $0x18] sm:$0xff] %vm527, 0.0
        %532 = vst.msk [vmem:[#allocation2 + $0x20] sm:$0xff] %vm527, 0.0
        %533 = vst.msk [vmem:[#allocation2 + $0x28] sm:$0xff] %vm527, 0.0
        %534 = vst.msk [vmem:[#allocation2 + $0x30] sm:$0xff] %vm527, 0.0
        %535 = vst.msk [vmem:[#allocation2 + $0x38] sm:$0xff] %vm527, 0.0
        %536 = vst.msk [vmem:[#allocation2 + $0x40] sm:$0xff] %vm527, 0.0
        %537 = vst.msk [vmem:[#allocation2 + $0x48] sm:$0xff] %vm527, 0.0
        %538 = vst.msk [vmem:[#allocation2 + $0x50] sm:$0xff] %vm527, 0.0
        %539 = vst.msk [vmem:[#allocation2 + $0x58] sm:$0xff] %vm527, 0.0
        %540 = vst.msk [vmem:[#allocation2 + $0x60] sm:$0xff] %vm527, 0.0
        %541 = vst.msk [vmem:[#allocation2 + $0x68] sm:$0xff] %vm527, 0.0
        %542 = vst.msk [vmem:[#allocation2 + $0x70] sm:$0xff] %vm527, 0.0
        %543 = vst.msk [vmem:[#allocation2 + $0x78] sm:$0xff] %vm527, 0.0
        %544 = vst.msk [vmem:[#allocation2 + $0x80] sm:$0xff] %vm527, 0.0
        %545 = vst.msk [vmem:[#allocation2 + $0x88] sm:$0xff] %vm527, 0.0
        %546 = vst.msk [vmem:[#allocation2 + $0x90] sm:$0xff] %vm527, 0.0
        %547 = vst.msk [vmem:[#allocation2 + $0x98] sm:$0xff] %vm527, 0.0
        %548 = vst.msk [vmem:[#allocation2 + $0xa0] sm:$0xff] %vm527, 0.0
        %549 = vst.msk [vmem:[#allocation2 + $0xa8] sm:$0xff] %vm527, 0.0
        %550 = vst.msk [vmem:[#allocation2 + $0xb0] sm:$0xff] %vm527, 0.0
        %551 = vst.msk [vmem:[#allocation2 + $0xb8] sm:$0xff] %vm527, 0.0
        %552 = vst.msk [vmem:[#allocation2 + $0xc0] sm:$0xff] %vm527, 0.0
        %553 = vst.msk [vmem:[#allocation2 + $0xc8] sm:$0xff] %vm527, 0.0
        %554 = vst.msk [vmem:[#allocation2 + $0xd0] sm:$0xff] %vm527, 0.0
        %555 = vst.msk [vmem:[#allocation2 + $0xd8] sm:$0xff] %vm527, 0.0
        %556 = vst.msk [vmem:[#allocation2 + $0xe0] sm:$0xff] %vm527, 0.0
        %557 = vst.msk [vmem:[#allocation2 + $0xe8] sm:$0xff] %vm527, 0.0
        %558 = vst.msk [vmem:[#allocation2 + $0xf0] sm:$0xff] %vm527, 0.0
        %559 = vst.msk [vmem:[#allocation2 + $0xf8] sm:$0xff] %vm527, 0.0
        %560 = vst.msk [vmem:[#allocation2 + $0x100] sm:$0xff] %vm527, 0.0
        %561 = vst.msk [vmem:[#allocation2 + $0x108] sm:$0xff] %vm527, 0.0
        %562 = vst.msk [vmem:[#allocation2 + $0x110] sm:$0xff] %vm527, 0.0
        %563 = vst.msk [vmem:[#allocation2 + $0x118] sm:$0xff] %vm527, 0.0
        %564 = vst.msk [vmem:[#allocation2 + $0x120] sm:$0xff] %vm527, 0.0
        %565 = vst.msk [vmem:[#allocation2 + $0x128] sm:$0xff] %vm527, 0.0
        %566 = vst.msk [vmem:[#allocation2 + $0x130] sm:$0xff] %vm527, 0.0
        %567 = vst.msk [vmem:[#allocation2 + $0x138] sm:$0xff] %vm527, 0.0
        %568 = vst.msk [vmem:[#allocation2 + $0x20] sm:$0xff] %vm527, %v495
        %569 = vst.msk [vmem:[#allocation2 + $0x28] sm:$0xff] %vm527, %v496
        %570 = vst.msk [vmem:[#allocation2 + $0x30] sm:$0xff] %vm527, %v497
        %571 = vst.msk [vmem:[#allocation2 + $0x38] sm:$0xff] %vm527, %v498
        %572 = vst.msk [vmem:[#allocation2 + $0x40] sm:$0xff] %vm527, %v499
        %573 = vst.msk [vmem:[#allocation2 + $0x48] sm:$0xff] %vm527, %v500
        %574 = vst.msk [vmem:[#allocation2 + $0x50] sm:$0xff] %vm527, %v501
        %575 = vst.msk [vmem:[#allocation2 + $0x58] sm:$0xff] %vm527, %v502
        %576 = vst.msk [vmem:[#allocation2 + $0x60] sm:$0xff] %vm527, %v503
        %577 = vst.msk [vmem:[#allocation2 + $0x68] sm:$0xff] %vm527, %v504
        %578 = vst.msk [vmem:[#allocation2 + $0x70] sm:$0xff] %vm527, %v505
        %579 = vst.msk [vmem:[#allocation2 + $0x78] sm:$0xff] %vm527, %v506
        %580 = vst.msk [vmem:[#allocation2 + $0x80] sm:$0xff] %vm527, %v507
        %581 = vst.msk [vmem:[#allocation2 + $0x88] sm:$0xff] %vm527, %v508
        %582 = vst.msk [vmem:[#allocation2 + $0x90] sm:$0xff] %vm527, %v509
        %583 = vst.msk [vmem:[#allocation2 + $0x98] sm:$0xff] %vm527, %v510
        %584 = vst.msk [vmem:[#allocation2 + $0xa0] sm:$0xff] %vm527, %v511
        %585 = vst.msk [vmem:[#allocation2 + $0xa8] sm:$0xff] %vm527, %v512
        %586 = vst.msk [vmem:[#allocation2 + $0xb0] sm:$0xff] %vm527, %v513
        %587 = vst.msk [vmem:[#allocation2 + $0xb8] sm:$0xff] %vm527, %v514
        %588 = vst.msk [vmem:[#allocation2 + $0xc0] sm:$0xff] %vm527, %v515
        %589 = vst.msk [vmem:[#allocation2 + $0xc8] sm:$0xff] %vm527, %v516
        %590 = vst.msk [vmem:[#allocation2 + $0xd0] sm:$0xff] %vm527, %v517
        %591 = vst.msk [vmem:[#allocation2 + $0xd8] sm:$0xff] %vm527, %v518
        %592 = vst.msk [vmem:[#allocation2 + $0xe0] sm:$0xff] %vm527, %v519
        %593 = vst.msk [vmem:[#allocation2 + $0xe8] sm:$0xff] %vm527, %v520
        %594 = vst.msk [vmem:[#allocation2 + $0xf0] sm:$0xff] %vm527, %v521
        %595 = vst.msk [vmem:[#allocation2 + $0xf8] sm:$0xff] %vm527, %v522
        %596 = vst.msk [vmem:[#allocation2 + $0x100] sm:$0xff] %vm527, %v523
        %597 = vst.msk [vmem:[#allocation2 + $0x108] sm:$0xff] %vm527, %v524
        %598 = vst.msk [vmem:[#allocation2 + $0x110] sm:$0xff] %vm527, %v525
        %599 = vst.msk [vmem:[#allocation2 + $0x118] sm:$0xff] %vm527, %v526
        %v600 = vld [vmem:[#allocation2 + $0xf] sm:$0xff]
        %v601 = vld [vmem:[#allocation2 + $0x17] sm:$0xff]
        %v602 = vld [vmem:[#allocation2 + $0x1f] sm:$0xff]
        %v603 = vld [vmem:[#allocation2 + $0x27] sm:$0xff]
        %v604 = vld [vmem:[#allocation2 + $0x2f] sm:$0xff]
        %v605 = vld [vmem:[#allocation2 + $0x37] sm:$0xff]
        %v606 = vld [vmem:[#allocation2 + $0x3f] sm:$0xff]
        %v607 = vld [vmem:[#allocation2 + $0x47] sm:$0xff]
        %v608 = vld [vmem:[#allocation2 + $0x4f] sm:$0xff]
        %v609 = vld [vmem:[#allocation2 + $0x57] sm:$0xff]
        %v610 = vld [vmem:[#allocation2 + $0x5f] sm:$0xff]
        %v611 = vld [vmem:[#allocation2 + $0x67] sm:$0xff]
        %v612 = vld [vmem:[#allocation2 + $0x6f] sm:$0xff]
        %v613 = vld [vmem:[#allocation2 + $0x77] sm:$0xff]
        %v614 = vld [vmem:[#allocation2 + $0x7f] sm:$0xff]
        %v615 = vld [vmem:[#allocation2 + $0x87] sm:$0xff]
        %v616 = vld [vmem:[#allocation2 + $0x8f] sm:$0xff]
        %v617 = vld [vmem:[#allocation2 + $0x97] sm:$0xff]
        %v618 = vld [vmem:[#allocation2 + $0x9f] sm:$0xff]
        %v619 = vld [vmem:[#allocation2 + $0xa7] sm:$0xff]
        %v620 = vld [vmem:[#allocation2 + $0xaf] sm:$0xff]
        %v621 = vld [vmem:[#allocation2 + $0xb7] sm:$0xff]
        %v622 = vld [vmem:[#allocation2 + $0xbf] sm:$0xff]
        %v623 = vld [vmem:[#allocation2 + $0xc7] sm:$0xff]
        %v624 = vld [vmem:[#allocation2 + $0xcf] sm:$0xff]
        %v625 = vld [vmem:[#allocation2 + $0xd7] sm:$0xff]
        %v626 = vld [vmem:[#allocation2 + $0xdf] sm:$0xff]
        %v627 = vld [vmem:[#allocation2 + $0xe7] sm:$0xff]
        %v628 = vld [vmem:[#allocation2 + $0xef] sm:$0xff]
        %v629 = vld [vmem:[#allocation2 + $0xf7] sm:$0xff]
        %v630 = vld [vmem:[#allocation2 + $0xff] sm:$0xff]
        %v631 = vld [vmem:[#allocation2 + $0x107] sm:$0xff]
        %v632 = vpack.c.bf16 %v601, %v600
        %v633 = vpack.c.bf16 %v603, %v602
        %v634 = vpack.c.bf16 %v605, %v604
        %v635 = vpack.c.bf16 %v607, %v606
        %v636 = vpack.c.bf16 %v609, %v608
        %v637 = vpack.c.bf16 %v611, %v610
        %v638 = vpack.c.bf16 %v613, %v612
        %v639 = vpack.c.bf16 %v615, %v614
        %v640 = vpack.c.bf16 %v617, %v616
        %v641 = vpack.c.bf16 %v619, %v618
        %v642 = vpack.c.bf16 %v621, %v620
        %v643 = vpack.c.bf16 %v623, %v622
        %v644 = vpack.c.bf16 %v625, %v624
        %v645 = vpack.c.bf16 %v627, %v626
        %v646 = vpack.c.bf16 %v629, %v628
        %v647 = vpack.c.bf16 %v631, %v630
        %v648 = vld [vmem:[%s1] sm:$0xf]
        %v649 = vld [vmem:[%s1 + $0x4] sm:$0xf]
        %v650 = vld [vmem:[%s1 + $0x8] sm:$0xf]
        %v651 = vld [vmem:[%s1 + $0xc] sm:$0xf]
        %v652 = vld [vmem:[%s1 + $0x10] sm:$0xf]
        %v653 = vld [vmem:[%s1 + $0x14] sm:$0xf]
        %v654 = vld [vmem:[%s1 + $0x18] sm:$0xf]
        %v655 = vld [vmem:[%s1 + $0x1c] sm:$0xf]
        %v656 = vld [vmem:[%s1 + $0x20] sm:$0xf]
        %v657 = vld [vmem:[%s1 + $0x24] sm:$0xf]
        %v658 = vld [vmem:[%s1 + $0x28] sm:$0xf]
        %v659 = vld [vmem:[%s1 + $0x2c] sm:$0xf]
        %v660 = vld [vmem:[%s1 + $0x30] sm:$0xf]
        %v661 = vld [vmem:[%s1 + $0x34] sm:$0xf]
        %v662 = vld [vmem:[%s1 + $0x38] sm:$0xf]
        %v663 = vld [vmem:[%s1 + $0x3c] sm:$0xf]
        %v664 = vld [vmem:[%s1 + $0x40] sm:$0xf]
        %v665 = vld [vmem:[%s1 + $0x44] sm:$0xf]
        %v666 = vld [vmem:[%s1 + $0x48] sm:$0xf]
        %v667 = vld [vmem:[%s1 + $0x4c] sm:$0xf]
        %v668 = vld [vmem:[%s1 + $0x50] sm:$0xf]
        %v669 = vld [vmem:[%s1 + $0x54] sm:$0xf]
        %v670 = vld [vmem:[%s1 + $0x58] sm:$0xf]
        %v671 = vld [vmem:[%s1 + $0x5c] sm:$0xf]
        %v672 = vld [vmem:[%s1 + $0x60] sm:$0xf]
        %v673 = vld [vmem:[%s1 + $0x64] sm:$0xf]
        %v674 = vld [vmem:[%s1 + $0x68] sm:$0xf]
        %v675 = vld [vmem:[%s1 + $0x6c] sm:$0xf]
        %v676 = vld [vmem:[%s1 + $0x70] sm:$0xf]
        %v677 = vld [vmem:[%s1 + $0x74] sm:$0xf]
        %v678 = vld [vmem:[%s1 + $0x78] sm:$0xf]
        %v679 = vld [vmem:[%s1 + $0x7c] sm:$0xf]
        %681 = vset.pattern.permute.xlu0 0
        %682 = vperm.xlu0 %681, %v648
        %v683 = vpop.permute.xlu0 %682
        %v686 = vunpack.c.l.s4 839922192
        %v687 = vunpack.c.0.s8 %v686
        %v688 = vlaneseq
        %v689 = vshrl.u32 %v688, 7
        %v690 = vsub.s32 %v687, %v689
        %v691 = vrot.slane %v683, %v690
        %693 = vset.pattern.permute.xlu0 0
        %694 = vperm.xlu0 %693, %v649
        %v695 = vpop.permute.xlu0 %694
        %v698 = vunpack.c.l.s4 839922192
        %v699 = vunpack.c.0.s8 %v698
        %v700 = vlaneseq
        %v701 = vshrl.u32 %v700, 7
        %v702 = vsub.s32 %v699, %v701
        %v703 = vrot.slane %v695, %v702
        %705 = vset.pattern.permute.xlu0 0
        %706 = vperm.xlu0 %705, %v650
        %v707 = vpop.permute.xlu0 %706
        %v710 = vunpack.c.l.s4 839922192
        %v711 = vunpack.c.0.s8 %v710
        %v712 = vlaneseq
        %v713 = vshrl.u32 %v712, 7
        %v714 = vsub.s32 %v711, %v713
        %v715 = vrot.slane %v707, %v714
        %717 = vset.pattern.permute.xlu0 0
        %718 = vperm.xlu0 %717, %v651
        %v719 = vpop.permute.xlu0 %718
        %v722 = vunpack.c.l.s4 839922192
        %v723 = vunpack.c.0.s8 %v722
        %v724 = vlaneseq
        %v725 = vshrl.u32 %v724, 7
        %v726 = vsub.s32 %v723, %v725
        %v727 = vrot.slane %v719, %v726
        %729 = vset.pattern.permute.xlu0 0
        %730 = vperm.xlu0 %729, %v652
        %v731 = vpop.permute.xlu0 %730
        %v734 = vunpack.c.l.s4 839922192
        %v735 = vunpack.c.0.s8 %v734
        %v736 = vlaneseq
        %v737 = vshrl.u32 %v736, 7
        %v738 = vsub.s32 %v735, %v737
        %v739 = vrot.slane %v731, %v738
        %741 = vset.pattern.permute.xlu0 0
        %742 = vperm.xlu0 %741, %v653
        %v743 = vpop.permute.xlu0 %742
        %v746 = vunpack.c.l.s4 839922192
        %v747 = vunpack.c.0.s8 %v746
        %v748 = vlaneseq
        %v749 = vshrl.u32 %v748, 7
        %v750 = vsub.s32 %v747, %v749
        %v751 = vrot.slane %v743, %v750
        %753 = vset.pattern.permute.xlu0 0
        %754 = vperm.xlu0 %753, %v654
        %v755 = vpop.permute.xlu0 %754
        %v758 = vunpack.c.l.s4 839922192
        %v759 = vunpack.c.0.s8 %v758
        %v760 = vlaneseq
        %v761 = vshrl.u32 %v760, 7
        %v762 = vsub.s32 %v759, %v761
        %v763 = vrot.slane %v755, %v762
        %765 = vset.pattern.permute.xlu0 0
        %766 = vperm.xlu0 %765, %v655
        %v767 = vpop.permute.xlu0 %766
        %v770 = vunpack.c.l.s4 839922192
        %v771 = vunpack.c.0.s8 %v770
        %v772 = vlaneseq
        %v773 = vshrl.u32 %v772, 7
        %v774 = vsub.s32 %v771, %v773
        %v775 = vrot.slane %v767, %v774
        %777 = vset.pattern.permute.xlu0 0
        %778 = vperm.xlu0 %777, %v656
        %v779 = vpop.permute.xlu0 %778
        %v782 = vunpack.c.l.s4 839922192
        %v783 = vunpack.c.0.s8 %v782
        %v784 = vlaneseq
        %v785 = vshrl.u32 %v784, 7
        %v786 = vsub.s32 %v783, %v785
        %v787 = vrot.slane %v779, %v786
        %789 = vset.pattern.permute.xlu0 0
        %790 = vperm.xlu0 %789, %v657
        %v791 = vpop.permute.xlu0 %790
        %v794 = vunpack.c.l.s4 839922192
        %v795 = vunpack.c.0.s8 %v794
        %v796 = vlaneseq
        %v797 = vshrl.u32 %v796, 7
        %v798 = vsub.s32 %v795, %v797
        %v799 = vrot.slane %v791, %v798
        %801 = vset.pattern.permute.xlu0 0
        %802 = vperm.xlu0 %801, %v658
        %v803 = vpop.permute.xlu0 %802
        %v806 = vunpack.c.l.s4 839922192
        %v807 = vunpack.c.0.s8 %v806
        %v808 = vlaneseq
        %v809 = vshrl.u32 %v808, 7
        %v810 = vsub.s32 %v807, %v809
        %v811 = vrot.slane %v803, %v810
        %813 = vset.pattern.permute.xlu0 0
        %814 = vperm.xlu0 %813, %v659
        %v815 = vpop.permute.xlu0 %814
        %v818 = vunpack.c.l.s4 839922192
        %v819 = vunpack.c.0.s8 %v818
        %v820 = vlaneseq
        %v821 = vshrl.u32 %v820, 7
        %v822 = vsub.s32 %v819, %v821
        %v823 = vrot.slane %v815, %v822
        %825 = vset.pattern.permute.xlu0 0
        %826 = vperm.xlu0 %825, %v660
        %v827 = vpop.permute.xlu0 %826
        %v830 = vunpack.c.l.s4 839922192
        %v831 = vunpack.c.0.s8 %v830
        %v832 = vlaneseq
        %v833 = vshrl.u32 %v832, 7
        %v834 = vsub.s32 %v831, %v833
        %v835 = vrot.slane %v827, %v834
        %837 = vset.pattern.permute.xlu0 0
        %838 = vperm.xlu0 %837, %v661
        %v839 = vpop.permute.xlu0 %838
        %v842 = vunpack.c.l.s4 839922192
        %v843 = vunpack.c.0.s8 %v842
        %v844 = vlaneseq
        %v845 = vshrl.u32 %v844, 7
        %v846 = vsub.s32 %v843, %v845
        %v847 = vrot.slane %v839, %v846
        %849 = vset.pattern.permute.xlu0 0
        %850 = vperm.xlu0 %849, %v662
        %v851 = vpop.permute.xlu0 %850
        %v854 = vunpack.c.l.s4 839922192
        %v855 = vunpack.c.0.s8 %v854
        %v856 = vlaneseq
        %v857 = vshrl.u32 %v856, 7
        %v858 = vsub.s32 %v855, %v857
        %v859 = vrot.slane %v851, %v858
        %861 = vset.pattern.permute.xlu0 0
        %862 = vperm.xlu0 %861, %v663
        %v863 = vpop.permute.xlu0 %862
        %v866 = vunpack.c.l.s4 839922192
        %v867 = vunpack.c.0.s8 %v866
        %v868 = vlaneseq
        %v869 = vshrl.u32 %v868, 7
        %v870 = vsub.s32 %v867, %v869
        %v871 = vrot.slane %v863, %v870
        %873 = vset.pattern.permute.xlu0 0
        %874 = vperm.xlu0 %873, %v664
        %v875 = vpop.permute.xlu0 %874
        %v878 = vunpack.c.l.s4 839922192
        %v879 = vunpack.c.0.s8 %v878
        %v880 = vlaneseq
        %v881 = vshrl.u32 %v880, 7
        %v882 = vsub.s32 %v879, %v881
        %v883 = vrot.slane %v875, %v882
        %885 = vset.pattern.permute.xlu0 0
        %886 = vperm.xlu0 %885, %v665
        %v887 = vpop.permute.xlu0 %886
        %v890 = vunpack.c.l.s4 839922192
        %v891 = vunpack.c.0.s8 %v890
        %v892 = vlaneseq
        %v893 = vshrl.u32 %v892, 7
        %v894 = vsub.s32 %v891, %v893
        %v895 = vrot.slane %v887, %v894
        %897 = vset.pattern.permute.xlu0 0
        %898 = vperm.xlu0 %897, %v666
        %v899 = vpop.permute.xlu0 %898
        %v902 = vunpack.c.l.s4 839922192
        %v903 = vunpack.c.0.s8 %v902
        %v904 = vlaneseq
        %v905 = vshrl.u32 %v904, 7
        %v906 = vsub.s32 %v903, %v905
        %v907 = vrot.slane %v899, %v906
        %909 = vset.pattern.permute.xlu0 0
        %910 = vperm.xlu0 %909, %v667
        %v911 = vpop.permute.xlu0 %910
        %v914 = vunpack.c.l.s4 839922192
        %v915 = vunpack.c.0.s8 %v914
        %v916 = vlaneseq
        %v917 = vshrl.u32 %v916, 7
        %v918 = vsub.s32 %v915, %v917
        %v919 = vrot.slane %v911, %v918
        %921 = vset.pattern.permute.xlu0 0
        %922 = vperm.xlu0 %921, %v668
        %v923 = vpop.permute.xlu0 %922
        %v926 = vunpack.c.l.s4 839922192
        %v927 = vunpack.c.0.s8 %v926
        %v928 = vlaneseq
        %v929 = vshrl.u32 %v928, 7
        %v930 = vsub.s32 %v927, %v929
        %v931 = vrot.slane %v923, %v930
        %933 = vset.pattern.permute.xlu0 0
        %934 = vperm.xlu0 %933, %v669
        %v935 = vpop.permute.xlu0 %934
        %v938 = vunpack.c.l.s4 839922192
        %v939 = vunpack.c.0.s8 %v938
        %v940 = vlaneseq
        %v941 = vshrl.u32 %v940, 7
        %v942 = vsub.s32 %v939, %v941
        %v943 = vrot.slane %v935, %v942
        %945 = vset.pattern.permute.xlu0 0
        %946 = vperm.xlu0 %945, %v670
        %v947 = vpop.permute.xlu0 %946
        %v950 = vunpack.c.l.s4 839922192
        %v951 = vunpack.c.0.s8 %v950
        %v952 = vlaneseq
        %v953 = vshrl.u32 %v952, 7
        %v954 = vsub.s32 %v951, %v953
        %v955 = vrot.slane %v947, %v954
        %957 = vset.pattern.permute.xlu0 0
        %958 = vperm.xlu0 %957, %v671
        %v959 = vpop.permute.xlu0 %958
        %v962 = vunpack.c.l.s4 839922192
        %v963 = vunpack.c.0.s8 %v962
        %v964 = vlaneseq
        %v965 = vshrl.u32 %v964, 7
        %v966 = vsub.s32 %v963, %v965
        %v967 = vrot.slane %v959, %v966
        %969 = vset.pattern.permute.xlu0 0
        %970 = vperm.xlu0 %969, %v672
        %v971 = vpop.permute.xlu0 %970
        %v974 = vunpack.c.l.s4 839922192
        %v975 = vunpack.c.0.s8 %v974
        %v976 = vlaneseq
        %v977 = vshrl.u32 %v976, 7
        %v978 = vsub.s32 %v975, %v977
        %v979 = vrot.slane %v971, %v978
        %981 = vset.pattern.permute.xlu0 0
        %982 = vperm.xlu0 %981, %v673
        %v983 = vpop.permute.xlu0 %982
        %v986 = vunpack.c.l.s4 839922192
        %v987 = vunpack.c.0.s8 %v986
        %v988 = vlaneseq
        %v989 = vshrl.u32 %v988, 7
        %v990 = vsub.s32 %v987, %v989
        %v991 = vrot.slane %v983, %v990
        %993 = vset.pattern.permute.xlu0 0
        %994 = vperm.xlu0 %993, %v674
        %v995 = vpop.permute.xlu0 %994
        %v998 = vunpack.c.l.s4 839922192
        %v999 = vunpack.c.0.s8 %v998
        %v1000 = vlaneseq
        %v1001 = vshrl.u32 %v1000, 7
        %v1002 = vsub.s32 %v999, %v1001
        %v1003 = vrot.slane %v995, %v1002
        %1005 = vset.pattern.permute.xlu0 0
        %1006 = vperm.xlu0 %1005, %v675
        %v1007 = vpop.permute.xlu0 %1006
        %v1010 = vunpack.c.l.s4 839922192
        %v1011 = vunpack.c.0.s8 %v1010
        %v1012 = vlaneseq
        %v1013 = vshrl.u32 %v1012, 7
        %v1014 = vsub.s32 %v1011, %v1013
        %v1015 = vrot.slane %v1007, %v1014
        %1017 = vset.pattern.permute.xlu0 0
        %1018 = vperm.xlu0 %1017, %v676
        %v1019 = vpop.permute.xlu0 %1018
        %v1022 = vunpack.c.l.s4 839922192
        %v1023 = vunpack.c.0.s8 %v1022
        %v1024 = vlaneseq
        %v1025 = vshrl.u32 %v1024, 7
        %v1026 = vsub.s32 %v1023, %v1025
        %v1027 = vrot.slane %v1019, %v1026
        %1029 = vset.pattern.permute.xlu0 0
        %1030 = vperm.xlu0 %1029, %v677
        %v1031 = vpop.permute.xlu0 %1030
        %v1034 = vunpack.c.l.s4 839922192
        %v1035 = vunpack.c.0.s8 %v1034
        %v1036 = vlaneseq
        %v1037 = vshrl.u32 %v1036, 7
        %v1038 = vsub.s32 %v1035, %v1037
        %v1039 = vrot.slane %v1031, %v1038
        %1041 = vset.pattern.permute.xlu0 0
        %1042 = vperm.xlu0 %1041, %v678
        %v1043 = vpop.permute.xlu0 %1042
        %v1046 = vunpack.c.l.s4 839922192
        %v1047 = vunpack.c.0.s8 %v1046
        %v1048 = vlaneseq
        %v1049 = vshrl.u32 %v1048, 7
        %v1050 = vsub.s32 %v1047, %v1049
        %v1051 = vrot.slane %v1043, %v1050
        %1053 = vset.pattern.permute.xlu0 0
        %1054 = vperm.xlu0 %1053, %v679
        %v1055 = vpop.permute.xlu0 %1054
        %v1058 = vunpack.c.l.s4 839922192
        %v1059 = vunpack.c.0.s8 %v1058
        %v1060 = vlaneseq
        %v1061 = vshrl.u32 %v1060, 7
        %v1062 = vsub.s32 %v1059, %v1061
        %v1063 = vrot.slane %v1055, %v1062
        %v1096 = vunpack.c.l.b16 %v691
        %v1097 = vunpack.c.l.b16 %v703
        %v1098 = vunpack.c.l.b16 %v715
        %v1099 = vunpack.c.l.b16 %v727
        %v1100 = vunpack.c.l.b16 %v739
        %v1101 = vunpack.c.l.b16 %v751
        %v1102 = vunpack.c.l.b16 %v763
        %v1103 = vunpack.c.l.b16 %v775
        %v1104 = vunpack.c.l.b16 %v787
        %v1105 = vunpack.c.l.b16 %v799
        %v1106 = vunpack.c.l.b16 %v811
        %v1107 = vunpack.c.l.b16 %v823
        %v1108 = vunpack.c.l.b16 %v835
        %v1109 = vunpack.c.l.b16 %v847
        %v1110 = vunpack.c.l.b16 %v859
        %v1111 = vunpack.c.l.b16 %v871
        %v1112 = vunpack.c.l.b16 %v883
        %v1113 = vunpack.c.l.b16 %v895
        %v1114 = vunpack.c.l.b16 %v907
        %v1115 = vunpack.c.l.b16 %v919
        %v1116 = vunpack.c.l.b16 %v931
        %v1117 = vunpack.c.l.b16 %v943
        %v1118 = vunpack.c.l.b16 %v955
        %v1119 = vunpack.c.l.b16 %v967
        %v1120 = vunpack.c.l.b16 %v979
        %v1121 = vunpack.c.l.b16 %v991
        %v1122 = vunpack.c.l.b16 %v1003
        %v1123 = vunpack.c.l.b16 %v1015
        %v1124 = vunpack.c.l.b16 %v1027
        %v1125 = vunpack.c.l.b16 %v1039
        %v1126 = vunpack.c.l.b16 %v1051
        %v1127 = vunpack.c.l.b16 %v1063
        %v1128 = vpack.c.b16 %v1097, %v1096
        %v1129 = vpack.c.b16 %v1099, %v1098
        %v1130 = vpack.c.b16 %v1101, %v1100
        %v1131 = vpack.c.b16 %v1103, %v1102
        %v1132 = vpack.c.b16 %v1105, %v1104
        %v1133 = vpack.c.b16 %v1107, %v1106
        %v1134 = vpack.c.b16 %v1109, %v1108
        %v1135 = vpack.c.b16 %v1111, %v1110
        %v1136 = vpack.c.b16 %v1113, %v1112
        %v1137 = vpack.c.b16 %v1115, %v1114
        %v1138 = vpack.c.b16 %v1117, %v1116
        %v1139 = vpack.c.b16 %v1119, %v1118
        %v1140 = vpack.c.b16 %v1121, %v1120
        %v1141 = vpack.c.b16 %v1123, %v1122
        %v1142 = vpack.c.b16 %v1125, %v1124
        %v1143 = vpack.c.b16 %v1127, %v1126
        %v1160 = vmul.bf16 %v632, %v1128
        %v1161 = vmul.bf16 %v633, %v1129
        %v1162 = vmul.bf16 %v634, %v1130
        %v1163 = vmul.bf16 %v635, %v1131
        %v1164 = vmul.bf16 %v636, %v1132
        %v1165 = vmul.bf16 %v637, %v1133
        %v1166 = vmul.bf16 %v638, %v1134
        %v1167 = vmul.bf16 %v639, %v1135
        %v1168 = vmul.bf16 %v640, %v1136
        %v1169 = vmul.bf16 %v641, %v1137
        %v1170 = vmul.bf16 %v642, %v1138
        %v1171 = vmul.bf16 %v643, %v1139
        %v1172 = vmul.bf16 %v644, %v1140
        %v1173 = vmul.bf16 %v645, %v1141
        %v1174 = vmul.bf16 %v646, %v1142
        %v1175 = vmul.bf16 %v647, %v1143
        %v1176 = vld [vmem:[%s4] sm:$0x3]
        %v1177 = vld [vmem:[#allocation2 + $0x10] sm:$0xff]
        %v1178 = vld [vmem:[#allocation2 + $0x18] sm:$0xff]
        %v1179 = vld [vmem:[#allocation2 + $0x20] sm:$0xff]
        %v1180 = vld [vmem:[#allocation2 + $0x28] sm:$0xff]
        %v1181 = vld [vmem:[#allocation2 + $0x30] sm:$0xff]
        %v1182 = vld [vmem:[#allocation2 + $0x38] sm:$0xff]
        %v1183 = vld [vmem:[#allocation2 + $0x40] sm:$0xff]
        %v1184 = vld [vmem:[#allocation2 + $0x48] sm:$0xff]
        %v1185 = vld [vmem:[#allocation2 + $0x50] sm:$0xff]
        %v1186 = vld [vmem:[#allocation2 + $0x58] sm:$0xff]
        %v1187 = vld [vmem:[#allocation2 + $0x60] sm:$0xff]
        %v1188 = vld [vmem:[#allocation2 + $0x68] sm:$0xff]
        %v1189 = vld [vmem:[#allocation2 + $0x70] sm:$0xff]
        %v1190 = vld [vmem:[#allocation2 + $0x78] sm:$0xff]
        %v1191 = vld [vmem:[#allocation2 + $0x80] sm:$0xff]
        %v1192 = vld [vmem:[#allocation2 + $0x88] sm:$0xff]
        %v1193 = vld [vmem:[#allocation2 + $0x90] sm:$0xff]
        %v1194 = vld [vmem:[#allocation2 + $0x98] sm:$0xff]
        %v1195 = vld [vmem:[#allocation2 + $0xa0] sm:$0xff]
        %v1196 = vld [vmem:[#allocation2 + $0xa8] sm:$0xff]
        %v1197 = vld [vmem:[#allocation2 + $0xb0] sm:$0xff]
        %v1198 = vld [vmem:[#allocation2 + $0xb8] sm:$0xff]
        %v1199 = vld [vmem:[#allocation2 + $0xc0] sm:$0xff]
        %v1200 = vld [vmem:[#allocation2 + $0xc8] sm:$0xff]
        %v1201 = vld [vmem:[#allocation2 + $0xd0] sm:$0xff]
        %v1202 = vld [vmem:[#allocation2 + $0xd8] sm:$0xff]
        %v1203 = vld [vmem:[#allocation2 + $0xe0] sm:$0xff]
        %v1204 = vld [vmem:[#allocation2 + $0xe8] sm:$0xff]
        %v1205 = vld [vmem:[#allocation2 + $0xf0] sm:$0xff]
        %v1206 = vld [vmem:[#allocation2 + $0xf8] sm:$0xff]
        %v1207 = vld [vmem:[#allocation2 + $0x100] sm:$0xff]
        %v1208 = vld [vmem:[#allocation2 + $0x108] sm:$0xff]
        %v1209 = vpack.c.bf16 %v1178, %v1177
        %v1210 = vpack.c.bf16 %v1180, %v1179
        %v1211 = vpack.c.bf16 %v1182, %v1181
        %v1212 = vpack.c.bf16 %v1184, %v1183
        %v1213 = vpack.c.bf16 %v1186, %v1185
        %v1214 = vpack.c.bf16 %v1188, %v1187
        %v1215 = vpack.c.bf16 %v1190, %v1189
        %v1216 = vpack.c.bf16 %v1192, %v1191
        %v1217 = vpack.c.bf16 %v1194, %v1193
        %v1218 = vpack.c.bf16 %v1196, %v1195
        %v1219 = vpack.c.bf16 %v1198, %v1197
        %v1220 = vpack.c.bf16 %v1200, %v1199
        %v1221 = vpack.c.bf16 %v1202, %v1201
        %v1222 = vpack.c.bf16 %v1204, %v1203
        %v1223 = vpack.c.bf16 %v1206, %v1205
        %v1224 = vpack.c.bf16 %v1208, %v1207
        %s1225 = scalar_lea.vmem %s4, 2
        %v1226 = vld [vmem:[%s1225] sm:$0x3]
        %v1228 = vsel %vm527, %v1209, 0
        %v1231 = vsel %vm527, %v1210, 0
        %v1234 = vsel %vm527, %v1211, 0
        %v1237 = vsel %vm527, %v1212, 0
        %v1240 = vsel %vm527, %v1213, 0
        %v1243 = vsel %vm527, %v1214, 0
        %v1246 = vsel %vm527, %v1215, 0
        %v1249 = vsel %vm527, %v1216, 0
        %v1252 = vsel %vm527, %v1217, 0
        %v1255 = vsel %vm527, %v1218, 0
        %v1258 = vsel %vm527, %v1219, 0
        %v1261 = vsel %vm527, %v1220, 0
        %v1264 = vsel %vm527, %v1221, 0
        %v1267 = vsel %vm527, %v1222, 0
        %v1270 = vsel %vm527, %v1223, 0
        %v1273 = vsel %vm527, %v1224, 0
        %vm1275 = vcmask 1041408
        %v1277 = vsel %vm1275, %v1226, 0
        %1279 = vmatprep.subr.bf16.mxu0 0
        %1280 = vmatpush1.bf16.msra.mxu0 0
        %1281 = vmatprep.subr.bf16.mxu0 0
        %1282 = vmatpush1.bf16.msra.mxu0 0
        %1283 = vmatprep.subr.bf16.mxu0 0
        %1284 = vmatpush1.bf16.msra.mxu0 0
        %1285 = vmatprep.subr.bf16.mxu0 0
        %1286 = vmatpush1.bf16.msra.mxu0 0
        %1287 = vmatprep.subr.bf16.mxu0 0
        %1288 = vmatpush1.bf16.msra.mxu0 0
        %1289 = vmatprep.subr.bf16.mxu0 0
        %1290 = vmatpush1.bf16.msra.mxu0 0
        %1291 = vmatprep.subr.bf16.mxu0 0
        %1292 = vmatpush1.bf16.msra.mxu0 0
        %1293 = vmatprep.subr.bf16.mxu0 0
        %1294 = vmatpush1.bf16.msra.mxu0 %v1277
        %1295 = vmatprep.subr.bf16.mxu0 0
        %1296 = vmatpush2.bf16.msra.mxu0 0
        %1297 = vmatprep.subr.bf16.mxu0 0
        %1298 = vmatpush2.bf16.msra.mxu0 0
        %1299 = vmatprep.subr.bf16.mxu0 0
        %1300 = vmatpush2.bf16.msra.mxu0 0
        %1301 = vmatprep.subr.bf16.mxu0 0
        %1302 = vmatpush2.bf16.msra.mxu0 0
        %1303 = vmatprep.subr.bf16.mxu0 0
        %1304 = vmatpush2.bf16.msra.mxu0 0
        %1305 = vmatprep.subr.bf16.mxu0 0
        %1306 = vmatpush2.bf16.msra.mxu0 0
        %1307 = vmatprep.subr.bf16.mxu0 0
        %1308 = vmatpush2.bf16.msra.mxu0 0
        %1309 = vmatprep.subr.bf16.mxu0 0
        %1310 = vmatpush2.bf16.msra.mxu0 0
        %1311 = vmatprep.mubr.bf16.mxu0 0
        %1312 = vmatmul.mubr.bf16.gmra.mxu0 %v1228
        %v1313 = vpop.f32.mrf.mxu0
        %v1314 = vadd.f32 0.0, %v1313
        %v1315 = vpop.f32.mrf.mxu0
        %v1316 = vpop.f32.mrf.mxu0
        %v1317 = vadd.f32 0.0, %v1316
        %v1318 = vpop.f32.mrf.mxu0
        %1319 = vmatprep.mubr.bf16.mxu0 0
        %1320 = vmatmul.mubr.bf16.gmra.mxu0 %v1231
        %v1321 = vpop.f32.mrf.mxu0
        %v1322 = vadd.f32 0.0, %v1321
        %v1323 = vpop.f32.mrf.mxu0
        %v1324 = vpop.f32.mrf.mxu0
        %v1325 = vadd.f32 0.0, %v1324
        %v1326 = vpop.f32.mrf.mxu0
        %1327 = vmatprep.mubr.bf16.mxu0 0
        %1328 = vmatmul.mubr.bf16.gmra.mxu0 %v1234
        %v1329 = vpop.f32.mrf.mxu0
        %v1330 = vadd.f32 0.0, %v1329
        %v1331 = vpop.f32.mrf.mxu0
        %v1332 = vpop.f32.mrf.mxu0
        %v1333 = vadd.f32 0.0, %v1332
        %v1334 = vpop.f32.mrf.mxu0
        %1335 = vmatprep.mubr.bf16.mxu0 0
        %1336 = vmatmul.mubr.bf16.gmra.mxu0 %v1237
        %v1337 = vpop.f32.mrf.mxu0
        %v1338 = vadd.f32 0.0, %v1337
        %v1339 = vpop.f32.mrf.mxu0
        %v1340 = vpop.f32.mrf.mxu0
        %v1341 = vadd.f32 0.0, %v1340
        %v1342 = vpop.f32.mrf.mxu0
        %1343 = vmatprep.mubr.bf16.mxu0 0
        %1344 = vmatmul.mubr.bf16.gmra.mxu0 %v1240
        %v1345 = vpop.f32.mrf.mxu0
        %v1346 = vadd.f32 0.0, %v1345
        %v1347 = vpop.f32.mrf.mxu0
        %v1348 = vpop.f32.mrf.mxu0
        %v1349 = vadd.f32 0.0, %v1348
        %v1350 = vpop.f32.mrf.mxu0
        %1351 = vmatprep.mubr.bf16.mxu0 0
        %1352 = vmatmul.mubr.bf16.gmra.mxu0 %v1243
        %v1353 = vpop.f32.mrf.mxu0
        %v1354 = vadd.f32 0.0, %v1353
        %v1355 = vpop.f32.mrf.mxu0
        %v1356 = vpop.f32.mrf.mxu0
        %v1357 = vadd.f32 0.0, %v1356
        %v1358 = vpop.f32.mrf.mxu0
        %1359 = vmatprep.mubr.bf16.mxu0 0
        %1360 = vmatmul.mubr.bf16.gmra.mxu0 %v1246
        %v1361 = vpop.f32.mrf.mxu0
        %v1362 = vadd.f32 0.0, %v1361
        %v1363 = vpop.f32.mrf.mxu0
        %v1364 = vpop.f32.mrf.mxu0
        %v1365 = vadd.f32 0.0, %v1364
        %v1366 = vpop.f32.mrf.mxu0
        %1367 = vmatprep.mubr.bf16.mxu0 0
        %1368 = vmatmul.mubr.bf16.gmra.mxu0 %v1249
        %v1369 = vpop.f32.mrf.mxu0
        %v1370 = vadd.f32 0.0, %v1369
        %v1371 = vpop.f32.mrf.mxu0
        %v1372 = vpop.f32.mrf.mxu0
        %v1373 = vadd.f32 0.0, %v1372
        %v1374 = vpop.f32.mrf.mxu0
        %1375 = vmatprep.mubr.bf16.mxu0 0
        %1376 = vmatmul.mubr.bf16.gmra.mxu0 %v1252
        %v1377 = vpop.f32.mrf.mxu0
        %v1378 = vadd.f32 0.0, %v1377
        %v1379 = vpop.f32.mrf.mxu0
        %v1380 = vpop.f32.mrf.mxu0
        %v1381 = vadd.f32 0.0, %v1380
        %v1382 = vpop.f32.mrf.mxu0
        %1383 = vmatprep.mubr.bf16.mxu0 0
        %1384 = vmatmul.mubr.bf16.gmra.mxu0 %v1255
        %v1385 = vpop.f32.mrf.mxu0
        %v1386 = vadd.f32 0.0, %v1385
        %v1387 = vpop.f32.mrf.mxu0
        %v1388 = vpop.f32.mrf.mxu0
        %v1389 = vadd.f32 0.0, %v1388
        %v1390 = vpop.f32.mrf.mxu0
        %1391 = vmatprep.mubr.bf16.mxu0 0
        %1392 = vmatmul.mubr.bf16.gmra.mxu0 %v1258
        %v1393 = vpop.f32.mrf.mxu0
        %v1394 = vadd.f32 0.0, %v1393
        %v1395 = vpop.f32.mrf.mxu0
        %v1396 = vpop.f32.mrf.mxu0
        %v1397 = vadd.f32 0.0, %v1396
        %v1398 = vpop.f32.mrf.mxu0
        %1399 = vmatprep.mubr.bf16.mxu0 0
        %1400 = vmatmul.mubr.bf16.gmra.mxu0 %v1261
        %v1401 = vpop.f32.mrf.mxu0
        %v1402 = vadd.f32 0.0, %v1401
        %v1403 = vpop.f32.mrf.mxu0
        %v1404 = vpop.f32.mrf.mxu0
        %v1405 = vadd.f32 0.0, %v1404
        %v1406 = vpop.f32.mrf.mxu0
        %1407 = vmatprep.mubr.bf16.mxu0 0
        %1408 = vmatmul.mubr.bf16.gmra.mxu0 %v1264
        %v1409 = vpop.f32.mrf.mxu0
        %v1410 = vadd.f32 0.0, %v1409
        %v1411 = vpop.f32.mrf.mxu0
        %v1412 = vpop.f32.mrf.mxu0
        %v1413 = vadd.f32 0.0, %v1412
        %v1414 = vpop.f32.mrf.mxu0
        %1415 = vmatprep.mubr.bf16.mxu0 0
        %1416 = vmatmul.mubr.bf16.gmra.mxu0 %v1267
        %v1417 = vpop.f32.mrf.mxu0
        %v1418 = vadd.f32 0.0, %v1417
        %v1419 = vpop.f32.mrf.mxu0
        %v1420 = vpop.f32.mrf.mxu0
        %v1421 = vadd.f32 0.0, %v1420
        %v1422 = vpop.f32.mrf.mxu0
        %1423 = vmatprep.mubr.bf16.mxu0 0
        %1424 = vmatmul.mubr.bf16.gmra.mxu0 %v1270
        %v1425 = vpop.f32.mrf.mxu0
        %v1426 = vadd.f32 0.0, %v1425
        %v1427 = vpop.f32.mrf.mxu0
        %v1428 = vpop.f32.mrf.mxu0
        %v1429 = vadd.f32 0.0, %v1428
        %v1430 = vpop.f32.mrf.mxu0
        %1431 = vmatprep.mubr.bf16.mxu0 0
        %1432 = vmatmul.mubr.bf16.gmra.mxu0 %v1273
        %v1433 = vpop.f32.mrf.mxu0
        %v1434 = vadd.f32 0.0, %v1433
        %v1435 = vpop.f32.mrf.mxu0
        %v1436 = vpop.f32.mrf.mxu0
        %v1437 = vadd.f32 0.0, %v1436
        %v1438 = vpop.f32.mrf.mxu0
        %1439 = vdwg.mxu0
        %v1441 = vsel %vm527, %v1160, 0
        %v1444 = vsel %vm527, %v1161, 0
        %v1447 = vsel %vm527, %v1162, 0
        %v1450 = vsel %vm527, %v1163, 0
        %v1453 = vsel %vm527, %v1164, 0
        %v1456 = vsel %vm527, %v1165, 0
        %v1459 = vsel %vm527, %v1166, 0
        %v1462 = vsel %vm527, %v1167, 0
        %v1465 = vsel %vm527, %v1168, 0
        %v1468 = vsel %vm527, %v1169, 0
        %v1471 = vsel %vm527, %v1170, 0
        %v1474 = vsel %vm527, %v1171, 0
        %v1477 = vsel %vm527, %v1172, 0
        %v1480 = vsel %vm527, %v1173, 0
        %v1483 = vsel %vm527, %v1174, 0
        %v1486 = vsel %vm527, %v1175, 0
        %v1489 = vsel %vm1275, %v1176, 0
        %1491 = vmatprep.subr.bf16.mxu0 0
        %1492 = vmatpush1.bf16.msra.mxu0 0
        %1493 = vmatprep.subr.bf16.mxu0 0
        %1494 = vmatpush1.bf16.msra.mxu0 0
        %1495 = vmatprep.subr.bf16.mxu0 0
        %1496 = vmatpush1.bf16.msra.mxu0 0
        %1497 = vmatprep.subr.bf16.mxu0 0
        %1498 = vmatpush1.bf16.msra.mxu0 0
        %1499 = vmatprep.subr.bf16.mxu0 0
        %1500 = vmatpush1.bf16.msra.mxu0 0
        %1501 = vmatprep.subr.bf16.mxu0 0
        %1502 = vmatpush1.bf16.msra.mxu0 0
        %1503 = vmatprep.subr.bf16.mxu0 0
        %1504 = vmatpush1.bf16.msra.mxu0 0
        %1505 = vmatprep.subr.bf16.mxu0 0
        %1506 = vmatpush1.bf16.msra.mxu0 %v1489
        %1507 = vmatprep.subr.bf16.mxu0 0
        %1508 = vmatpush2.bf16.msra.mxu0 0
        %1509 = vmatprep.subr.bf16.mxu0 0
        %1510 = vmatpush2.bf16.msra.mxu0 0
        %1511 = vmatprep.subr.bf16.mxu0 0
        %1512 = vmatpush2.bf16.msra.mxu0 0
        %1513 = vmatprep.subr.bf16.mxu0 0
        %1514 = vmatpush2.bf16.msra.mxu0 0
        %1515 = vmatprep.subr.bf16.mxu0 0
        %1516 = vmatpush2.bf16.msra.mxu0 0
        %1517 = vmatprep.subr.bf16.mxu0 0
        %1518 = vmatpush2.bf16.msra.mxu0 0
        %1519 = vmatprep.subr.bf16.mxu0 0
        %1520 = vmatpush2.bf16.msra.mxu0 0
        %1521 = vmatprep.subr.bf16.mxu0 0
        %1522 = vmatpush2.bf16.msra.mxu0 0
        %1523 = vmatprep.mubr.bf16.mxu0 0
        %1524 = vmatmul.mubr.bf16.gmra.mxu0 %v1441
        %v1525 = vpop.f32.mrf.mxu0
        %v1526 = vadd.f32 %v1314, %v1525
        %v1527 = vpop.f32.mrf.mxu0
        %v1528 = vpop.f32.mrf.mxu0
        %v1529 = vadd.f32 %v1317, %v1528
        %v1530 = vpop.f32.mrf.mxu0
        %1531 = vmatprep.mubr.bf16.mxu0 0
        %1532 = vmatmul.mubr.bf16.gmra.mxu0 %v1444
        %v1533 = vpop.f32.mrf.mxu0
        %v1534 = vadd.f32 %v1322, %v1533
        %v1535 = vpop.f32.mrf.mxu0
        %v1536 = vpop.f32.mrf.mxu0
        %v1537 = vadd.f32 %v1325, %v1536
        %v1538 = vpop.f32.mrf.mxu0
        %1539 = vmatprep.mubr.bf16.mxu0 0
        %1540 = vmatmul.mubr.bf16.gmra.mxu0 %v1447
        %v1541 = vpop.f32.mrf.mxu0
        %v1542 = vadd.f32 %v1330, %v1541
        %v1543 = vpop.f32.mrf.mxu0
        %v1544 = vpop.f32.mrf.mxu0
        %v1545 = vadd.f32 %v1333, %v1544
        %v1546 = vpop.f32.mrf.mxu0
        %1547 = vmatprep.mubr.bf16.mxu0 0
        %1548 = vmatmul.mubr.bf16.gmra.mxu0 %v1450
        %v1549 = vpop.f32.mrf.mxu0
        %v1550 = vadd.f32 %v1338, %v1549
        %v1551 = vpop.f32.mrf.mxu0
        %v1552 = vpop.f32.mrf.mxu0
        %v1553 = vadd.f32 %v1341, %v1552
        %v1554 = vpop.f32.mrf.mxu0
        %1555 = vmatprep.mubr.bf16.mxu0 0
        %1556 = vmatmul.mubr.bf16.gmra.mxu0 %v1453
        %v1557 = vpop.f32.mrf.mxu0
        %v1558 = vadd.f32 %v1346, %v1557
        %v1559 = vpop.f32.mrf.mxu0
        %v1560 = vpop.f32.mrf.mxu0
        %v1561 = vadd.f32 %v1349, %v1560
        %v1562 = vpop.f32.mrf.mxu0
        %1563 = vmatprep.mubr.bf16.mxu0 0
        %1564 = vmatmul.mubr.bf16.gmra.mxu0 %v1456
        %v1565 = vpop.f32.mrf.mxu0
        %v1566 = vadd.f32 %v1354, %v1565
        %v1567 = vpop.f32.mrf.mxu0
        %v1568 = vpop.f32.mrf.mxu0
        %v1569 = vadd.f32 %v1357, %v1568
        %v1570 = vpop.f32.mrf.mxu0
        %1571 = vmatprep.mubr.bf16.mxu0 0
        %1572 = vmatmul.mubr.bf16.gmra.mxu0 %v1459
        %v1573 = vpop.f32.mrf.mxu0
        %v1574 = vadd.f32 %v1362, %v1573
        %v1575 = vpop.f32.mrf.mxu0
        %v1576 = vpop.f32.mrf.mxu0
        %v1577 = vadd.f32 %v1365, %v1576
        %v1578 = vpop.f32.mrf.mxu0
        %1579 = vmatprep.mubr.bf16.mxu0 0
        %1580 = vmatmul.mubr.bf16.gmra.mxu0 %v1462
        %v1581 = vpop.f32.mrf.mxu0
        %v1582 = vadd.f32 %v1370, %v1581
        %v1583 = vpop.f32.mrf.mxu0
        %v1584 = vpop.f32.mrf.mxu0
        %v1585 = vadd.f32 %v1373, %v1584
        %v1586 = vpop.f32.mrf.mxu0
        %1587 = vmatprep.mubr.bf16.mxu0 0
        %1588 = vmatmul.mubr.bf16.gmra.mxu0 %v1465
        %v1589 = vpop.f32.mrf.mxu0
        %v1590 = vadd.f32 %v1378, %v1589
        %v1591 = vpop.f32.mrf.mxu0
        %v1592 = vpop.f32.mrf.mxu0
        %v1593 = vadd.f32 %v1381, %v1592
        %v1594 = vpop.f32.mrf.mxu0
        %1595 = vmatprep.mubr.bf16.mxu0 0
        %1596 = vmatmul.mubr.bf16.gmra.mxu0 %v1468
        %v1597 = vpop.f32.mrf.mxu0
        %v1598 = vadd.f32 %v1386, %v1597
        %v1599 = vpop.f32.mrf.mxu0
        %v1600 = vpop.f32.mrf.mxu0
        %v1601 = vadd.f32 %v1389, %v1600
        %v1602 = vpop.f32.mrf.mxu0
        %1603 = vmatprep.mubr.bf16.mxu0 0
        %1604 = vmatmul.mubr.bf16.gmra.mxu0 %v1471
        %v1605 = vpop.f32.mrf.mxu0
        %v1606 = vadd.f32 %v1394, %v1605
        %v1607 = vpop.f32.mrf.mxu0
        %v1608 = vpop.f32.mrf.mxu0
        %v1609 = vadd.f32 %v1397, %v1608
        %v1610 = vpop.f32.mrf.mxu0
        %1611 = vmatprep.mubr.bf16.mxu0 0
        %1612 = vmatmul.mubr.bf16.gmra.mxu0 %v1474
        %v1613 = vpop.f32.mrf.mxu0
        %v1614 = vadd.f32 %v1402, %v1613
        %v1615 = vpop.f32.mrf.mxu0
        %v1616 = vpop.f32.mrf.mxu0
        %v1617 = vadd.f32 %v1405, %v1616
        %v1618 = vpop.f32.mrf.mxu0
        %1619 = vmatprep.mubr.bf16.mxu0 0
        %1620 = vmatmul.mubr.bf16.gmra.mxu0 %v1477
        %v1621 = vpop.f32.mrf.mxu0
        %v1622 = vadd.f32 %v1410, %v1621
        %v1623 = vpop.f32.mrf.mxu0
        %v1624 = vpop.f32.mrf.mxu0
        %v1625 = vadd.f32 %v1413, %v1624
        %v1626 = vpop.f32.mrf.mxu0
        %1627 = vmatprep.mubr.bf16.mxu0 0
        %1628 = vmatmul.mubr.bf16.gmra.mxu0 %v1480
        %v1629 = vpop.f32.mrf.mxu0
        %v1630 = vadd.f32 %v1418, %v1629
        %v1631 = vpop.f32.mrf.mxu0
        %v1632 = vpop.f32.mrf.mxu0
        %v1633 = vadd.f32 %v1421, %v1632
        %v1634 = vpop.f32.mrf.mxu0
        %1635 = vmatprep.mubr.bf16.mxu0 0
        %1636 = vmatmul.mubr.bf16.gmra.mxu0 %v1483
        %v1637 = vpop.f32.mrf.mxu0
        %v1638 = vadd.f32 %v1426, %v1637
        %v1639 = vpop.f32.mrf.mxu0
        %v1640 = vpop.f32.mrf.mxu0
        %v1641 = vadd.f32 %v1429, %v1640
        %v1642 = vpop.f32.mrf.mxu0
        %1643 = vmatprep.mubr.bf16.mxu0 0
        %1644 = vmatmul.mubr.bf16.gmra.mxu0 %v1486
        %v1645 = vpop.f32.mrf.mxu0
        %v1646 = vadd.f32 %v1434, %v1645
        %v1647 = vpop.f32.mrf.mxu0
        %v1648 = vpop.f32.mrf.mxu0
        %v1649 = vadd.f32 %v1437, %v1648
        %v1650 = vpop.f32.mrf.mxu0
        %1651 = vdwg.mxu0
        %v1652 = vld [vmem:[#allocation2 + $0x11] sm:$0xff]
        %v1653 = vld [vmem:[#allocation2 + $0x19] sm:$0xff]
        %v1654 = vld [vmem:[#allocation2 + $0x21] sm:$0xff]
        %v1655 = vld [vmem:[#allocation2 + $0x29] sm:$0xff]
        %v1656 = vld [vmem:[#allocation2 + $0x31] sm:$0xff]
        %v1657 = vld [vmem:[#allocation2 + $0x39] sm:$0xff]
        %v1658 = vld [vmem:[#allocation2 + $0x41] sm:$0xff]
        %v1659 = vld [vmem:[#allocation2 + $0x49] sm:$0xff]
        %v1660 = vld [vmem:[#allocation2 + $0x51] sm:$0xff]
        %v1661 = vld [vmem:[#allocation2 + $0x59] sm:$0xff]
        %v1662 = vld [vmem:[#allocation2 + $0x61] sm:$0xff]
        %v1663 = vld [vmem:[#allocation2 + $0x69] sm:$0xff]
        %v1664 = vld [vmem:[#allocation2 + $0x71] sm:$0xff]
        %v1665 = vld [vmem:[#allocation2 + $0x79] sm:$0xff]
        %v1666 = vld [vmem:[#allocation2 + $0x81] sm:$0xff]
        %v1667 = vld [vmem:[#allocation2 + $0x89] sm:$0xff]
        %v1668 = vld [vmem:[#allocation2 + $0x91] sm:$0xff]
        %v1669 = vld [vmem:[#allocation2 + $0x99] sm:$0xff]
        %v1670 = vld [vmem:[#allocation2 + $0xa1] sm:$0xff]
        %v1671 = vld [vmem:[#allocation2 + $0xa9] sm:$0xff]
        %v1672 = vld [vmem:[#allocation2 + $0xb1] sm:$0xff]
        %v1673 = vld [vmem:[#allocation2 + $0xb9] sm:$0xff]
        %v1674 = vld [vmem:[#allocation2 + $0xc1] sm:$0xff]
        %v1675 = vld [vmem:[#allocation2 + $0xc9] sm:$0xff]
        %v1676 = vld [vmem:[#allocation2 + $0xd1] sm:$0xff]
        %v1677 = vld [vmem:[#allocation2 + $0xd9] sm:$0xff]
        %v1678 = vld [vmem:[#allocation2 + $0xe1] sm:$0xff]
        %v1679 = vld [vmem:[#allocation2 + $0xe9] sm:$0xff]
        %v1680 = vld [vmem:[#allocation2 + $0xf1] sm:$0xff]
        %v1681 = vld [vmem:[#allocation2 + $0xf9] sm:$0xff]
        %v1682 = vld [vmem:[#allocation2 + $0x101] sm:$0xff]
        %v1683 = vld [vmem:[#allocation2 + $0x109] sm:$0xff]
        %v1684 = vpack.c.bf16 %v1653, %v1652
        %v1685 = vpack.c.bf16 %v1655, %v1654
        %v1686 = vpack.c.bf16 %v1657, %v1656
        %v1687 = vpack.c.bf16 %v1659, %v1658
        %v1688 = vpack.c.bf16 %v1661, %v1660
        %v1689 = vpack.c.bf16 %v1663, %v1662
        %v1690 = vpack.c.bf16 %v1665, %v1664
        %v1691 = vpack.c.bf16 %v1667, %v1666
        %v1692 = vpack.c.bf16 %v1669, %v1668
        %v1693 = vpack.c.bf16 %v1671, %v1670
        %v1694 = vpack.c.bf16 %v1673, %v1672
        %v1695 = vpack.c.bf16 %v1675, %v1674
        %v1696 = vpack.c.bf16 %v1677, %v1676
        %v1697 = vpack.c.bf16 %v1679, %v1678
        %v1698 = vpack.c.bf16 %v1681, %v1680
        %v1699 = vpack.c.bf16 %v1683, %v1682
        %s1700 = scalar_lea.vmem %s1, 128
        %v1701 = vld [vmem:[%s1700] sm:$0xf]
        %v1702 = vld [vmem:[%s1700 + $0x4] sm:$0xf]
        %v1703 = vld [vmem:[%s1700 + $0x8] sm:$0xf]
        %v1704 = vld [vmem:[%s1700 + $0xc] sm:$0xf]
        %v1705 = vld [vmem:[%s1700 + $0x10] sm:$0xf]
        %v1706 = vld [vmem:[%s1700 + $0x14] sm:$0xf]
        %v1707 = vld [vmem:[%s1700 + $0x18] sm:$0xf]
        %v1708 = vld [vmem:[%s1700 + $0x1c] sm:$0xf]
        %v1709 = vld [vmem:[%s1700 + $0x20] sm:$0xf]
        %v1710 = vld [vmem:[%s1700 + $0x24] sm:$0xf]
        %v1711 = vld [vmem:[%s1700 + $0x28] sm:$0xf]
        %v1712 = vld [vmem:[%s1700 + $0x2c] sm:$0xf]
        %v1713 = vld [vmem:[%s1700 + $0x30] sm:$0xf]
        %v1714 = vld [vmem:[%s1700 + $0x34] sm:$0xf]
        %v1715 = vld [vmem:[%s1700 + $0x38] sm:$0xf]
        %v1716 = vld [vmem:[%s1700 + $0x3c] sm:$0xf]
        %v1717 = vld [vmem:[%s1700 + $0x40] sm:$0xf]
        %v1718 = vld [vmem:[%s1700 + $0x44] sm:$0xf]
        %v1719 = vld [vmem:[%s1700 + $0x48] sm:$0xf]
        %v1720 = vld [vmem:[%s1700 + $0x4c] sm:$0xf]
        %v1721 = vld [vmem:[%s1700 + $0x50] sm:$0xf]
        %v1722 = vld [vmem:[%s1700 + $0x54] sm:$0xf]
        %v1723 = vld [vmem:[%s1700 + $0x58] sm:$0xf]
        %v1724 = vld [vmem:[%s1700 + $0x5c] sm:$0xf]
        %v1725 = vld [vmem:[%s1700 + $0x60] sm:$0xf]
        %v1726 = vld [vmem:[%s1700 + $0x64] sm:$0xf]
        %v1727 = vld [vmem:[%s1700 + $0x68] sm:$0xf]
        %v1728 = vld [vmem:[%s1700 + $0x6c] sm:$0xf]
        %v1729 = vld [vmem:[%s1700 + $0x70] sm:$0xf]
        %v1730 = vld [vmem:[%s1700 + $0x74] sm:$0xf]
        %v1731 = vld [vmem:[%s1700 + $0x78] sm:$0xf]
        %v1732 = vld [vmem:[%s1700 + $0x7c] sm:$0xf]
        %1734 = vset.pattern.permute.xlu0 0
        %1735 = vperm.xlu0 %1734, %v1701
        %v1736 = vpop.permute.xlu0 %1735
        %v1739 = vunpack.c.l.s4 839922192
        %v1740 = vunpack.c.0.s8 %v1739
        %v1741 = vlaneseq
        %v1742 = vshrl.u32 %v1741, 7
        %v1743 = vsub.s32 %v1740, %v1742
        %v1744 = vrot.slane %v1736, %v1743
        %1746 = vset.pattern.permute.xlu0 0
        %1747 = vperm.xlu0 %1746, %v1702
        %v1748 = vpop.permute.xlu0 %1747
        %v1751 = vunpack.c.l.s4 839922192
        %v1752 = vunpack.c.0.s8 %v1751
        %v1753 = vlaneseq
        %v1754 = vshrl.u32 %v1753, 7
        %v1755 = vsub.s32 %v1752, %v1754
        %v1756 = vrot.slane %v1748, %v1755
        %1758 = vset.pattern.permute.xlu0 0
        %1759 = vperm.xlu0 %1758, %v1703
        %v1760 = vpop.permute.xlu0 %1759
        %v1763 = vunpack.c.l.s4 839922192
        %v1764 = vunpack.c.0.s8 %v1763
        %v1765 = vlaneseq
        %v1766 = vshrl.u32 %v1765, 7
        %v1767 = vsub.s32 %v1764, %v1766
        %v1768 = vrot.slane %v1760, %v1767
        %1770 = vset.pattern.permute.xlu0 0
        %1771 = vperm.xlu0 %1770, %v1704
        %v1772 = vpop.permute.xlu0 %1771
        %v1775 = vunpack.c.l.s4 839922192
        %v1776 = vunpack.c.0.s8 %v1775
        %v1777 = vlaneseq
        %v1778 = vshrl.u32 %v1777, 7
        %v1779 = vsub.s32 %v1776, %v1778
        %v1780 = vrot.slane %v1772, %v1779
        %1782 = vset.pattern.permute.xlu0 0
        %1783 = vperm.xlu0 %1782, %v1705
        %v1784 = vpop.permute.xlu0 %1783
        %v1787 = vunpack.c.l.s4 839922192
        %v1788 = vunpack.c.0.s8 %v1787
        %v1789 = vlaneseq
        %v1790 = vshrl.u32 %v1789, 7
        %v1791 = vsub.s32 %v1788, %v1790
        %v1792 = vrot.slane %v1784, %v1791
        %1794 = vset.pattern.permute.xlu0 0
        %1795 = vperm.xlu0 %1794, %v1706
        %v1796 = vpop.permute.xlu0 %1795
        %v1799 = vunpack.c.l.s4 839922192
        %v1800 = vunpack.c.0.s8 %v1799
        %v1801 = vlaneseq
        %v1802 = vshrl.u32 %v1801, 7
        %v1803 = vsub.s32 %v1800, %v1802
        %v1804 = vrot.slane %v1796, %v1803
        %1806 = vset.pattern.permute.xlu0 0
        %1807 = vperm.xlu0 %1806, %v1707
        %v1808 = vpop.permute.xlu0 %1807
        %v1811 = vunpack.c.l.s4 839922192
        %v1812 = vunpack.c.0.s8 %v1811
        %v1813 = vlaneseq
        %v1814 = vshrl.u32 %v1813, 7
        %v1815 = vsub.s32 %v1812, %v1814
        %v1816 = vrot.slane %v1808, %v1815
        %1818 = vset.pattern.permute.xlu0 0
        %1819 = vperm.xlu0 %1818, %v1708
        %v1820 = vpop.permute.xlu0 %1819
        %v1823 = vunpack.c.l.s4 839922192
        %v1824 = vunpack.c.0.s8 %v1823
        %v1825 = vlaneseq
        %v1826 = vshrl.u32 %v1825, 7
        %v1827 = vsub.s32 %v1824, %v1826
        %v1828 = vrot.slane %v1820, %v1827
        %1830 = vset.pattern.permute.xlu0 0
        %1831 = vperm.xlu0 %1830, %v1709
        %v1832 = vpop.permute.xlu0 %1831
        %v1835 = vunpack.c.l.s4 839922192
        %v1836 = vunpack.c.0.s8 %v1835
        %v1837 = vlaneseq
        %v1838 = vshrl.u32 %v1837, 7
        %v1839 = vsub.s32 %v1836, %v1838
        %v1840 = vrot.slane %v1832, %v1839
        %1842 = vset.pattern.permute.xlu0 0
        %1843 = vperm.xlu0 %1842, %v1710
        %v1844 = vpop.permute.xlu0 %1843
        %v1847 = vunpack.c.l.s4 839922192
        %v1848 = vunpack.c.0.s8 %v1847
        %v1849 = vlaneseq
        %v1850 = vshrl.u32 %v1849, 7
        %v1851 = vsub.s32 %v1848, %v1850
        %v1852 = vrot.slane %v1844, %v1851
        %1854 = vset.pattern.permute.xlu0 0
        %1855 = vperm.xlu0 %1854, %v1711
        %v1856 = vpop.permute.xlu0 %1855
        %v1859 = vunpack.c.l.s4 839922192
        %v1860 = vunpack.c.0.s8 %v1859
        %v1861 = vlaneseq
        %v1862 = vshrl.u32 %v1861, 7
        %v1863 = vsub.s32 %v1860, %v1862
        %v1864 = vrot.slane %v1856, %v1863
        %1866 = vset.pattern.permute.xlu0 0
        %1867 = vperm.xlu0 %1866, %v1712
        %v1868 = vpop.permute.xlu0 %1867
        %v1871 = vunpack.c.l.s4 839922192
        %v1872 = vunpack.c.0.s8 %v1871
        %v1873 = vlaneseq
        %v1874 = vshrl.u32 %v1873, 7
        %v1875 = vsub.s32 %v1872, %v1874
        %v1876 = vrot.slane %v1868, %v1875
        %1878 = vset.pattern.permute.xlu0 0
        %1879 = vperm.xlu0 %1878, %v1713
        %v1880 = vpop.permute.xlu0 %1879
        %v1883 = vunpack.c.l.s4 839922192
        %v1884 = vunpack.c.0.s8 %v1883
        %v1885 = vlaneseq
        %v1886 = vshrl.u32 %v1885, 7
        %v1887 = vsub.s32 %v1884, %v1886
        %v1888 = vrot.slane %v1880, %v1887
        %1890 = vset.pattern.permute.xlu0 0
        %1891 = vperm.xlu0 %1890, %v1714
        %v1892 = vpop.permute.xlu0 %1891
        %v1895 = vunpack.c.l.s4 839922192
        %v1896 = vunpack.c.0.s8 %v1895
        %v1897 = vlaneseq
        %v1898 = vshrl.u32 %v1897, 7
        %v1899 = vsub.s32 %v1896, %v1898
        %v1900 = vrot.slane %v1892, %v1899
        %1902 = vset.pattern.permute.xlu0 0
        %1903 = vperm.xlu0 %1902, %v1715
        %v1904 = vpop.permute.xlu0 %1903
        %v1907 = vunpack.c.l.s4 839922192
        %v1908 = vunpack.c.0.s8 %v1907
        %v1909 = vlaneseq
        %v1910 = vshrl.u32 %v1909, 7
        %v1911 = vsub.s32 %v1908, %v1910
        %v1912 = vrot.slane %v1904, %v1911
        %1914 = vset.pattern.permute.xlu0 0
        %1915 = vperm.xlu0 %1914, %v1716
        %v1916 = vpop.permute.xlu0 %1915
        %v1919 = vunpack.c.l.s4 839922192
        %v1920 = vunpack.c.0.s8 %v1919
        %v1921 = vlaneseq
        %v1922 = vshrl.u32 %v1921, 7
        %v1923 = vsub.s32 %v1920, %v1922
        %v1924 = vrot.slane %v1916, %v1923
        %1926 = vset.pattern.permute.xlu0 0
        %1927 = vperm.xlu0 %1926, %v1717
        %v1928 = vpop.permute.xlu0 %1927
        %v1931 = vunpack.c.l.s4 839922192
        %v1932 = vunpack.c.0.s8 %v1931
        %v1933 = vlaneseq
        %v1934 = vshrl.u32 %v1933, 7
        %v1935 = vsub.s32 %v1932, %v1934
        %v1936 = vrot.slane %v1928, %v1935
        %1938 = vset.pattern.permute.xlu0 0
        %1939 = vperm.xlu0 %1938, %v1718
        %v1940 = vpop.permute.xlu0 %1939
        %v1943 = vunpack.c.l.s4 839922192
        %v1944 = vunpack.c.0.s8 %v1943
        %v1945 = vlaneseq
        %v1946 = vshrl.u32 %v1945, 7
        %v1947 = vsub.s32 %v1944, %v1946
        %v1948 = vrot.slane %v1940, %v1947
        %1950 = vset.pattern.permute.xlu0 0
        %1951 = vperm.xlu0 %1950, %v1719
        %v1952 = vpop.permute.xlu0 %1951
        %v1955 = vunpack.c.l.s4 839922192
        %v1956 = vunpack.c.0.s8 %v1955
        %v1957 = vlaneseq
        %v1958 = vshrl.u32 %v1957, 7
        %v1959 = vsub.s32 %v1956, %v1958
        %v1960 = vrot.slane %v1952, %v1959
        %1962 = vset.pattern.permute.xlu0 0
        %1963 = vperm.xlu0 %1962, %v1720
        %v1964 = vpop.permute.xlu0 %1963
        %v1967 = vunpack.c.l.s4 839922192
        %v1968 = vunpack.c.0.s8 %v1967
        %v1969 = vlaneseq
        %v1970 = vshrl.u32 %v1969, 7
        %v1971 = vsub.s32 %v1968, %v1970
        %v1972 = vrot.slane %v1964, %v1971
        %1974 = vset.pattern.permute.xlu0 0
        %1975 = vperm.xlu0 %1974, %v1721
        %v1976 = vpop.permute.xlu0 %1975
        %v1979 = vunpack.c.l.s4 839922192
        %v1980 = vunpack.c.0.s8 %v1979
        %v1981 = vlaneseq
        %v1982 = vshrl.u32 %v1981, 7
        %v1983 = vsub.s32 %v1980, %v1982
        %v1984 = vrot.slane %v1976, %v1983
        %1986 = vset.pattern.permute.xlu0 0
        %1987 = vperm.xlu0 %1986, %v1722
        %v1988 = vpop.permute.xlu0 %1987
        %v1991 = vunpack.c.l.s4 839922192
        %v1992 = vunpack.c.0.s8 %v1991
        %v1993 = vlaneseq
        %v1994 = vshrl.u32 %v1993, 7
        %v1995 = vsub.s32 %v1992, %v1994
        %v1996 = vrot.slane %v1988, %v1995
        %1998 = vset.pattern.permute.xlu0 0
        %1999 = vperm.xlu0 %1998, %v1723
        %v2000 = vpop.permute.xlu0 %1999
        %v2003 = vunpack.c.l.s4 839922192
        %v2004 = vunpack.c.0.s8 %v2003
        %v2005 = vlaneseq
        %v2006 = vshrl.u32 %v2005, 7
        %v2007 = vsub.s32 %v2004, %v2006
        %v2008 = vrot.slane %v2000, %v2007
        %2010 = vset.pattern.permute.xlu0 0
        %2011 = vperm.xlu0 %2010, %v1724
        %v2012 = vpop.permute.xlu0 %2011
        %v2015 = vunpack.c.l.s4 839922192
        %v2016 = vunpack.c.0.s8 %v2015
        %v2017 = vlaneseq
        %v2018 = vshrl.u32 %v2017, 7
        %v2019 = vsub.s32 %v2016, %v2018
        %v2020 = vrot.slane %v2012, %v2019
        %2022 = vset.pattern.permute.xlu0 0
        %2023 = vperm.xlu0 %2022, %v1725
        %v2024 = vpop.permute.xlu0 %2023
        %v2027 = vunpack.c.l.s4 839922192
        %v2028 = vunpack.c.0.s8 %v2027
        %v2029 = vlaneseq
        %v2030 = vshrl.u32 %v2029, 7
        %v2031 = vsub.s32 %v2028, %v2030
        %v2032 = vrot.slane %v2024, %v2031
        %2034 = vset.pattern.permute.xlu0 0
        %2035 = vperm.xlu0 %2034, %v1726
        %v2036 = vpop.permute.xlu0 %2035
        %v2039 = vunpack.c.l.s4 839922192
        %v2040 = vunpack.c.0.s8 %v2039
        %v2041 = vlaneseq
        %v2042 = vshrl.u32 %v2041, 7
        %v2043 = vsub.s32 %v2040, %v2042
        %v2044 = vrot.slane %v2036, %v2043
        %2046 = vset.pattern.permute.xlu0 0
        %2047 = vperm.xlu0 %2046, %v1727
        %v2048 = vpop.permute.xlu0 %2047
        %v2051 = vunpack.c.l.s4 839922192
        %v2052 = vunpack.c.0.s8 %v2051
        %v2053 = vlaneseq
        %v2054 = vshrl.u32 %v2053, 7
        %v2055 = vsub.s32 %v2052, %v2054
        %v2056 = vrot.slane %v2048, %v2055
        %2058 = vset.pattern.permute.xlu0 0
        %2059 = vperm.xlu0 %2058, %v1728
        %v2060 = vpop.permute.xlu0 %2059
        %v2063 = vunpack.c.l.s4 839922192
        %v2064 = vunpack.c.0.s8 %v2063
        %v2065 = vlaneseq
        %v2066 = vshrl.u32 %v2065, 7
        %v2067 = vsub.s32 %v2064, %v2066
        %v2068 = vrot.slane %v2060, %v2067
        %2070 = vset.pattern.permute.xlu0 0
        %2071 = vperm.xlu0 %2070, %v1729
        %v2072 = vpop.permute.xlu0 %2071
        %v2075 = vunpack.c.l.s4 839922192
        %v2076 = vunpack.c.0.s8 %v2075
        %v2077 = vlaneseq
        %v2078 = vshrl.u32 %v2077, 7
        %v2079 = vsub.s32 %v2076, %v2078
        %v2080 = vrot.slane %v2072, %v2079
        %2082 = vset.pattern.permute.xlu0 0
        %2083 = vperm.xlu0 %2082, %v1730
        %v2084 = vpop.permute.xlu0 %2083
        %v2087 = vunpack.c.l.s4 839922192
        %v2088 = vunpack.c.0.s8 %v2087
        %v2089 = vlaneseq
        %v2090 = vshrl.u32 %v2089, 7
        %v2091 = vsub.s32 %v2088, %v2090
        %v2092 = vrot.slane %v2084, %v2091
        %2094 = vset.pattern.permute.xlu0 0
        %2095 = vperm.xlu0 %2094, %v1731
        %v2096 = vpop.permute.xlu0 %2095
        %v2099 = vunpack.c.l.s4 839922192
        %v2100 = vunpack.c.0.s8 %v2099
        %v2101 = vlaneseq
        %v2102 = vshrl.u32 %v2101, 7
        %v2103 = vsub.s32 %v2100, %v2102
        %v2104 = vrot.slane %v2096, %v2103
        %2106 = vset.pattern.permute.xlu0 0
        %2107 = vperm.xlu0 %2106, %v1732
        %v2108 = vpop.permute.xlu0 %2107
        %v2111 = vunpack.c.l.s4 839922192
        %v2112 = vunpack.c.0.s8 %v2111
        %v2113 = vlaneseq
        %v2114 = vshrl.u32 %v2113, 7
        %v2115 = vsub.s32 %v2112, %v2114
        %v2116 = vrot.slane %v2108, %v2115
        %v2149 = vunpack.c.l.b16 %v1744
        %v2150 = vunpack.c.l.b16 %v1756
        %v2151 = vunpack.c.l.b16 %v1768
        %v2152 = vunpack.c.l.b16 %v1780
        %v2153 = vunpack.c.l.b16 %v1792
        %v2154 = vunpack.c.l.b16 %v1804
        %v2155 = vunpack.c.l.b16 %v1816
        %v2156 = vunpack.c.l.b16 %v1828
        %v2157 = vunpack.c.l.b16 %v1840
        %v2158 = vunpack.c.l.b16 %v1852
        %v2159 = vunpack.c.l.b16 %v1864
        %v2160 = vunpack.c.l.b16 %v1876
        %v2161 = vunpack.c.l.b16 %v1888
        %v2162 = vunpack.c.l.b16 %v1900
        %v2163 = vunpack.c.l.b16 %v1912
        %v2164 = vunpack.c.l.b16 %v1924
        %v2165 = vunpack.c.l.b16 %v1936
        %v2166 = vunpack.c.l.b16 %v1948
        %v2167 = vunpack.c.l.b16 %v1960
        %v2168 = vunpack.c.l.b16 %v1972
        %v2169 = vunpack.c.l.b16 %v1984
        %v2170 = vunpack.c.l.b16 %v1996
        %v2171 = vunpack.c.l.b16 %v2008
        %v2172 = vunpack.c.l.b16 %v2020
        %v2173 = vunpack.c.l.b16 %v2032
        %v2174 = vunpack.c.l.b16 %v2044
        %v2175 = vunpack.c.l.b16 %v2056
        %v2176 = vunpack.c.l.b16 %v2068
        %v2177 = vunpack.c.l.b16 %v2080
        %v2178 = vunpack.c.l.b16 %v2092
        %v2179 = vunpack.c.l.b16 %v2104
        %v2180 = vunpack.c.l.b16 %v2116
        %v2181 = vpack.c.b16 %v2150, %v2149
        %v2182 = vpack.c.b16 %v2152, %v2151
        %v2183 = vpack.c.b16 %v2154, %v2153
        %v2184 = vpack.c.b16 %v2156, %v2155
        %v2185 = vpack.c.b16 %v2158, %v2157
        %v2186 = vpack.c.b16 %v2160, %v2159
        %v2187 = vpack.c.b16 %v2162, %v2161
        %v2188 = vpack.c.b16 %v2164, %v2163
        %v2189 = vpack.c.b16 %v2166, %v2165
        %v2190 = vpack.c.b16 %v2168, %v2167
        %v2191 = vpack.c.b16 %v2170, %v2169
        %v2192 = vpack.c.b16 %v2172, %v2171
        %v2193 = vpack.c.b16 %v2174, %v2173
        %v2194 = vpack.c.b16 %v2176, %v2175
        %v2195 = vpack.c.b16 %v2178, %v2177
        %v2196 = vpack.c.b16 %v2180, %v2179
        %v2213 = vmul.bf16 %v1684, %v2181
        %v2214 = vmul.bf16 %v1685, %v2182
        %v2215 = vmul.bf16 %v1686, %v2183
        %v2216 = vmul.bf16 %v1687, %v2184
        %v2217 = vmul.bf16 %v1688, %v2185
        %v2218 = vmul.bf16 %v1689, %v2186
        %v2219 = vmul.bf16 %v1690, %v2187
        %v2220 = vmul.bf16 %v1691, %v2188
        %v2221 = vmul.bf16 %v1692, %v2189
        %v2222 = vmul.bf16 %v1693, %v2190
        %v2223 = vmul.bf16 %v1694, %v2191
        %v2224 = vmul.bf16 %v1695, %v2192
        %v2225 = vmul.bf16 %v1696, %v2193
        %v2226 = vmul.bf16 %v1697, %v2194
        %v2227 = vmul.bf16 %v1698, %v2195
        %v2228 = vmul.bf16 %v1699, %v2196
        %s2229 = scalar_lea.vmem %s4, 4
        %v2230 = vld [vmem:[%s2229] sm:$0x3]
        %v2232 = vsel %vm527, %v2213, 0
        %v2235 = vsel %vm527, %v2214, 0
        %v2238 = vsel %vm527, %v2215, 0
        %v2241 = vsel %vm527, %v2216, 0
        %v2244 = vsel %vm527, %v2217, 0
        %v2247 = vsel %vm527, %v2218, 0
        %v2250 = vsel %vm527, %v2219, 0
        %v2253 = vsel %vm527, %v2220, 0
        %v2256 = vsel %vm527, %v2221, 0
        %v2259 = vsel %vm527, %v2222, 0
        %v2262 = vsel %vm527, %v2223, 0
        %v2265 = vsel %vm527, %v2224, 0
        %v2268 = vsel %vm527, %v2225, 0
        %v2271 = vsel %vm527, %v2226, 0
        %v2274 = vsel %vm527, %v2227, 0
        %v2277 = vsel %vm527, %v2228, 0
        %v2280 = vsel %vm1275, %v2230, 0
        %2282 = vmatprep.subr.bf16.mxu0 0
        %2283 = vmatpush1.bf16.msra.mxu0 0
        %2284 = vmatprep.subr.bf16.mxu0 0
        %2285 = vmatpush1.bf16.msra.mxu0 0
        %2286 = vmatprep.subr.bf16.mxu0 0
        %2287 = vmatpush1.bf16.msra.mxu0 0
        %2288 = vmatprep.subr.bf16.mxu0 0
        %2289 = vmatpush1.bf16.msra.mxu0 0
        %2290 = vmatprep.subr.bf16.mxu0 0
        %2291 = vmatpush1.bf16.msra.mxu0 0
        %2292 = vmatprep.subr.bf16.mxu0 0
        %2293 = vmatpush1.bf16.msra.mxu0 0
        %2294 = vmatprep.subr.bf16.mxu0 0
        %2295 = vmatpush1.bf16.msra.mxu0 0
        %2296 = vmatprep.subr.bf16.mxu0 0
        %2297 = vmatpush1.bf16.msra.mxu0 %v2280
        %2298 = vmatprep.subr.bf16.mxu0 0
        %2299 = vmatpush2.bf16.msra.mxu0 0
        %2300 = vmatprep.subr.bf16.mxu0 0
        %2301 = vmatpush2.bf16.msra.mxu0 0
        %2302 = vmatprep.subr.bf16.mxu0 0
        %2303 = vmatpush2.bf16.msra.mxu0 0
        %2304 = vmatprep.subr.bf16.mxu0 0
        %2305 = vmatpush2.bf16.msra.mxu0 0
        %2306 = vmatprep.subr.bf16.mxu0 0
        %2307 = vmatpush2.bf16.msra.mxu0 0
        %2308 = vmatprep.subr.bf16.mxu0 0
        %2309 = vmatpush2.bf16.msra.mxu0 0
        %2310 = vmatprep.subr.bf16.mxu0 0
        %2311 = vmatpush2.bf16.msra.mxu0 0
        %2312 = vmatprep.subr.bf16.mxu0 0
        %2313 = vmatpush2.bf16.msra.mxu0 0
        %2314 = vmatprep.mubr.bf16.mxu0 0
        %2315 = vmatmul.mubr.bf16.gmra.mxu0 %v2232
        %v2316 = vpop.f32.mrf.mxu0
        %v2317 = vadd.f32 0.0, %v2316
        %v2318 = vpop.f32.mrf.mxu0
        %v2319 = vpop.f32.mrf.mxu0
        %v2320 = vadd.f32 0.0, %v2319
        %v2321 = vpop.f32.mrf.mxu0
        %2322 = vmatprep.mubr.bf16.mxu0 0
        %2323 = vmatmul.mubr.bf16.gmra.mxu0 %v2235
        %v2324 = vpop.f32.mrf.mxu0
        %v2325 = vadd.f32 0.0, %v2324
        %v2326 = vpop.f32.mrf.mxu0
        %v2327 = vpop.f32.mrf.mxu0
        %v2328 = vadd.f32 0.0, %v2327
        %v2329 = vpop.f32.mrf.mxu0
        %2330 = vmatprep.mubr.bf16.mxu0 0
        %2331 = vmatmul.mubr.bf16.gmra.mxu0 %v2238
        %v2332 = vpop.f32.mrf.mxu0
        %v2333 = vadd.f32 0.0, %v2332
        %v2334 = vpop.f32.mrf.mxu0
        %v2335 = vpop.f32.mrf.mxu0
        %v2336 = vadd.f32 0.0, %v2335
        %v2337 = vpop.f32.mrf.mxu0
        %2338 = vmatprep.mubr.bf16.mxu0 0
        %2339 = vmatmul.mubr.bf16.gmra.mxu0 %v2241
        %v2340 = vpop.f32.mrf.mxu0
        %v2341 = vadd.f32 0.0, %v2340
        %v2342 = vpop.f32.mrf.mxu0
        %v2343 = vpop.f32.mrf.mxu0
        %v2344 = vadd.f32 0.0, %v2343
        %v2345 = vpop.f32.mrf.mxu0
        %2346 = vmatprep.mubr.bf16.mxu0 0
        %2347 = vmatmul.mubr.bf16.gmra.mxu0 %v2244
        %v2348 = vpop.f32.mrf.mxu0
        %v2349 = vadd.f32 0.0, %v2348
        %v2350 = vpop.f32.mrf.mxu0
        %v2351 = vpop.f32.mrf.mxu0
        %v2352 = vadd.f32 0.0, %v2351
        %v2353 = vpop.f32.mrf.mxu0
        %2354 = vmatprep.mubr.bf16.mxu0 0
        %2355 = vmatmul.mubr.bf16.gmra.mxu0 %v2247
        %v2356 = vpop.f32.mrf.mxu0
        %v2357 = vadd.f32 0.0, %v2356
        %v2358 = vpop.f32.mrf.mxu0
        %v2359 = vpop.f32.mrf.mxu0
        %v2360 = vadd.f32 0.0, %v2359
        %v2361 = vpop.f32.mrf.mxu0
        %2362 = vmatprep.mubr.bf16.mxu0 0
        %2363 = vmatmul.mubr.bf16.gmra.mxu0 %v2250
        %v2364 = vpop.f32.mrf.mxu0
        %v2365 = vadd.f32 0.0, %v2364
        %v2366 = vpop.f32.mrf.mxu0
        %v2367 = vpop.f32.mrf.mxu0
        %v2368 = vadd.f32 0.0, %v2367
        %v2369 = vpop.f32.mrf.mxu0
        %2370 = vmatprep.mubr.bf16.mxu0 0
        %2371 = vmatmul.mubr.bf16.gmra.mxu0 %v2253
        %v2372 = vpop.f32.mrf.mxu0
        %v2373 = vadd.f32 0.0, %v2372
        %v2374 = vpop.f32.mrf.mxu0
        %v2375 = vpop.f32.mrf.mxu0
        %v2376 = vadd.f32 0.0, %v2375
        %v2377 = vpop.f32.mrf.mxu0
        %2378 = vmatprep.mubr.bf16.mxu0 0
        %2379 = vmatmul.mubr.bf16.gmra.mxu0 %v2256
        %v2380 = vpop.f32.mrf.mxu0
        %v2381 = vadd.f32 0.0, %v2380
        %v2382 = vpop.f32.mrf.mxu0
        %v2383 = vpop.f32.mrf.mxu0
        %v2384 = vadd.f32 0.0, %v2383
        %v2385 = vpop.f32.mrf.mxu0
        %2386 = vmatprep.mubr.bf16.mxu0 0
        %2387 = vmatmul.mubr.bf16.gmra.mxu0 %v2259
        %v2388 = vpop.f32.mrf.mxu0
        %v2389 = vadd.f32 0.0, %v2388
        %v2390 = vpop.f32.mrf.mxu0
        %v2391 = vpop.f32.mrf.mxu0
        %v2392 = vadd.f32 0.0, %v2391
        %v2393 = vpop.f32.mrf.mxu0
        %2394 = vmatprep.mubr.bf16.mxu0 0
        %2395 = vmatmul.mubr.bf16.gmra.mxu0 %v2262
        %v2396 = vpop.f32.mrf.mxu0
        %v2397 = vadd.f32 0.0, %v2396
        %v2398 = vpop.f32.mrf.mxu0
        %v2399 = vpop.f32.mrf.mxu0
        %v2400 = vadd.f32 0.0, %v2399
        %v2401 = vpop.f32.mrf.mxu0
        %2402 = vmatprep.mubr.bf16.mxu0 0
        %2403 = vmatmul.mubr.bf16.gmra.mxu0 %v2265
        %v2404 = vpop.f32.mrf.mxu0
        %v2405 = vadd.f32 0.0, %v2404
        %v2406 = vpop.f32.mrf.mxu0
        %v2407 = vpop.f32.mrf.mxu0
        %v2408 = vadd.f32 0.0, %v2407
        %v2409 = vpop.f32.mrf.mxu0
        %2410 = vmatprep.mubr.bf16.mxu0 0
        %2411 = vmatmul.mubr.bf16.gmra.mxu0 %v2268
        %v2412 = vpop.f32.mrf.mxu0
        %v2413 = vadd.f32 0.0, %v2412
        %v2414 = vpop.f32.mrf.mxu0
        %v2415 = vpop.f32.mrf.mxu0
        %v2416 = vadd.f32 0.0, %v2415
        %v2417 = vpop.f32.mrf.mxu0
        %2418 = vmatprep.mubr.bf16.mxu0 0
        %2419 = vmatmul.mubr.bf16.gmra.mxu0 %v2271
        %v2420 = vpop.f32.mrf.mxu0
        %v2421 = vadd.f32 0.0, %v2420
        %v2422 = vpop.f32.mrf.mxu0
        %v2423 = vpop.f32.mrf.mxu0
        %v2424 = vadd.f32 0.0, %v2423
        %v2425 = vpop.f32.mrf.mxu0
        %2426 = vmatprep.mubr.bf16.mxu0 0
        %2427 = vmatmul.mubr.bf16.gmra.mxu0 %v2274
        %v2428 = vpop.f32.mrf.mxu0
        %v2429 = vadd.f32 0.0, %v2428
        %v2430 = vpop.f32.mrf.mxu0
        %v2431 = vpop.f32.mrf.mxu0
        %v2432 = vadd.f32 0.0, %v2431
        %v2433 = vpop.f32.mrf.mxu0
        %2434 = vmatprep.mubr.bf16.mxu0 0
        %2435 = vmatmul.mubr.bf16.gmra.mxu0 %v2277
        %v2436 = vpop.f32.mrf.mxu0
        %v2437 = vadd.f32 0.0, %v2436
        %v2438 = vpop.f32.mrf.mxu0
        %v2439 = vpop.f32.mrf.mxu0
        %v2440 = vadd.f32 0.0, %v2439
        %v2441 = vpop.f32.mrf.mxu0
        %2442 = vdwg.mxu0
        %v2443 = vadd.f32 %v1526, %v2317
        %v2444 = vadd.f32 %v1529, %v2320
        %v2445 = vadd.f32 %v1534, %v2325
        %v2446 = vadd.f32 %v1537, %v2328
        %v2447 = vadd.f32 %v1542, %v2333
        %v2448 = vadd.f32 %v1545, %v2336
        %v2449 = vadd.f32 %v1550, %v2341
        %v2450 = vadd.f32 %v1553, %v2344
        %v2451 = vadd.f32 %v1558, %v2349
        %v2452 = vadd.f32 %v1561, %v2352
        %v2453 = vadd.f32 %v1566, %v2357
        %v2454 = vadd.f32 %v1569, %v2360
        %v2455 = vadd.f32 %v1574, %v2365
        %v2456 = vadd.f32 %v1577, %v2368
        %v2457 = vadd.f32 %v1582, %v2373
        %v2458 = vadd.f32 %v1585, %v2376
        %v2459 = vadd.f32 %v1590, %v2381
        %v2460 = vadd.f32 %v1593, %v2384
        %v2461 = vadd.f32 %v1598, %v2389
        %v2462 = vadd.f32 %v1601, %v2392
        %v2463 = vadd.f32 %v1606, %v2397
        %v2464 = vadd.f32 %v1609, %v2400
        %v2465 = vadd.f32 %v1614, %v2405
        %v2466 = vadd.f32 %v1617, %v2408
        %v2467 = vadd.f32 %v1622, %v2413
        %v2468 = vadd.f32 %v1625, %v2416
        %v2469 = vadd.f32 %v1630, %v2421
        %v2470 = vadd.f32 %v1633, %v2424
        %v2471 = vadd.f32 %v1638, %v2429
        %v2472 = vadd.f32 %v1641, %v2432
        %v2473 = vadd.f32 %v1646, %v2437
        %v2474 = vadd.f32 %v1649, %v2440
        %v2475 = vld [vmem:[#allocation2 + $0x1f] sm:$0xff]
        %v2476 = vld [vmem:[#allocation2 + $0x27] sm:$0xff]
        %v2477 = vld [vmem:[#allocation2 + $0x2f] sm:$0xff]
        %v2478 = vld [vmem:[#allocation2 + $0x37] sm:$0xff]
        %v2479 = vld [vmem:[#allocation2 + $0x3f] sm:$0xff]
        %v2480 = vld [vmem:[#allocation2 + $0x47] sm:$0xff]
        %v2481 = vld [vmem:[#allocation2 + $0x4f] sm:$0xff]
        %v2482 = vld [vmem:[#allocation2 + $0x57] sm:$0xff]
        %v2483 = vld [vmem:[#allocation2 + $0x5f] sm:$0xff]
        %v2484 = vld [vmem:[#allocation2 + $0x67] sm:$0xff]
        %v2485 = vld [vmem:[#allocation2 + $0x6f] sm:$0xff]
        %v2486 = vld [vmem:[#allocation2 + $0x77] sm:$0xff]
        %v2487 = vld [vmem:[#allocation2 + $0x7f] sm:$0xff]
        %v2488 = vld [vmem:[#allocation2 + $0x87] sm:$0xff]
        %v2489 = vld [vmem:[#allocation2 + $0x8f] sm:$0xff]
        %v2490 = vld [vmem:[#allocation2 + $0x97] sm:$0xff]
        %v2491 = vld [vmem:[#allocation2 + $0x9f] sm:$0xff]
        %v2492 = vld [vmem:[#allocation2 + $0xa7] sm:$0xff]
        %v2493 = vld [vmem:[#allocation2 + $0xaf] sm:$0xff]
        %v2494 = vld [vmem:[#allocation2 + $0xb7] sm:$0xff]
        %v2495 = vld [vmem:[#allocation2 + $0xbf] sm:$0xff]
        %v2496 = vld [vmem:[#allocation2 + $0xc7] sm:$0xff]
        %v2497 = vld [vmem:[#allocation2 + $0xcf] sm:$0xff]
        %v2498 = vld [vmem:[#allocation2 + $0xd7] sm:$0xff]
        %v2499 = vld [vmem:[#allocation2 + $0xdf] sm:$0xff]
        %v2500 = vld [vmem:[#allocation2 + $0xe7] sm:$0xff]
        %v2501 = vld [vmem:[#allocation2 + $0xef] sm:$0xff]
        %v2502 = vld [vmem:[#allocation2 + $0xf7] sm:$0xff]
        %v2503 = vld [vmem:[#allocation2 + $0xff] sm:$0xff]
        %v2504 = vld [vmem:[#allocation2 + $0x107] sm:$0xff]
        %v2505 = vld [vmem:[#allocation2 + $0x10f] sm:$0xff]
        %v2506 = vld [vmem:[#allocation2 + $0x117] sm:$0xff]
        %v2507 = vpack.c.bf16 %v2476, %v2475
        %v2508 = vpack.c.bf16 %v2478, %v2477
        %v2509 = vpack.c.bf16 %v2480, %v2479
        %v2510 = vpack.c.bf16 %v2482, %v2481
        %v2511 = vpack.c.bf16 %v2484, %v2483
        %v2512 = vpack.c.bf16 %v2486, %v2485
        %v2513 = vpack.c.bf16 %v2488, %v2487
        %v2514 = vpack.c.bf16 %v2490, %v2489
        %v2515 = vpack.c.bf16 %v2492, %v2491
        %v2516 = vpack.c.bf16 %v2494, %v2493
        %v2517 = vpack.c.bf16 %v2496, %v2495
        %v2518 = vpack.c.bf16 %v2498, %v2497
        %v2519 = vpack.c.bf16 %v2500, %v2499
        %v2520 = vpack.c.bf16 %v2502, %v2501
        %v2521 = vpack.c.bf16 %v2504, %v2503
        %v2522 = vpack.c.bf16 %v2506, %v2505
        %v2523 = vmul.bf16 %v2507, %v1128
        %v2524 = vmul.bf16 %v2508, %v1129
        %v2525 = vmul.bf16 %v2509, %v1130
        %v2526 = vmul.bf16 %v2510, %v1131
        %v2527 = vmul.bf16 %v2511, %v1132
        %v2528 = vmul.bf16 %v2512, %v1133
        %v2529 = vmul.bf16 %v2513, %v1134
        %v2530 = vmul.bf16 %v2514, %v1135
        %v2531 = vmul.bf16 %v2515, %v1136
        %v2532 = vmul.bf16 %v2516, %v1137
        %v2533 = vmul.bf16 %v2517, %v1138
        %v2534 = vmul.bf16 %v2518, %v1139
        %v2535 = vmul.bf16 %v2519, %v1140
        %v2536 = vmul.bf16 %v2520, %v1141
        %v2537 = vmul.bf16 %v2521, %v1142
        %v2538 = vmul.bf16 %v2522, %v1143
        %s2539 = scalar_lea.vmem %s4, 6
        %v2540 = vld [vmem:[%s2539] sm:$0x3]
        %v2542 = vsel %vm527, %v2523, 0
        %v2545 = vsel %vm527, %v2524, 0
        %v2548 = vsel %vm527, %v2525, 0
        %v2551 = vsel %vm527, %v2526, 0
        %v2554 = vsel %vm527, %v2527, 0
        %v2557 = vsel %vm527, %v2528, 0
        %v2560 = vsel %vm527, %v2529, 0
        %v2563 = vsel %vm527, %v2530, 0
        %v2566 = vsel %vm527, %v2531, 0
        %v2569 = vsel %vm527, %v2532, 0
        %v2572 = vsel %vm527, %v2533, 0
        %v2575 = vsel %vm527, %v2534, 0
        %v2578 = vsel %vm527, %v2535, 0
        %v2581 = vsel %vm527, %v2536, 0
        %v2584 = vsel %vm527, %v2537, 0
        %v2587 = vsel %vm527, %v2538, 0
        %v2590 = vsel %vm1275, %v2540, 0
        %2592 = vmatprep.subr.bf16.mxu0 0
        %2593 = vmatpush1.bf16.msra.mxu0 0
        %2594 = vmatprep.subr.bf16.mxu0 0
        %2595 = vmatpush1.bf16.msra.mxu0 0
        %2596 = vmatprep.subr.bf16.mxu0 0
        %2597 = vmatpush1.bf16.msra.mxu0 0
        %2598 = vmatprep.subr.bf16.mxu0 0
        %2599 = vmatpush1.bf16.msra.mxu0 0
        %2600 = vmatprep.subr.bf16.mxu0 0
        %2601 = vmatpush1.bf16.msra.mxu0 0
        %2602 = vmatprep.subr.bf16.mxu0 0
        %2603 = vmatpush1.bf16.msra.mxu0 0
        %2604 = vmatprep.subr.bf16.mxu0 0
        %2605 = vmatpush1.bf16.msra.mxu0 0
        %2606 = vmatprep.subr.bf16.mxu0 0
        %2607 = vmatpush1.bf16.msra.mxu0 %v2590
        %2608 = vmatprep.subr.bf16.mxu0 0
        %2609 = vmatpush2.bf16.msra.mxu0 0
        %2610 = vmatprep.subr.bf16.mxu0 0
        %2611 = vmatpush2.bf16.msra.mxu0 0
        %2612 = vmatprep.subr.bf16.mxu0 0
        %2613 = vmatpush2.bf16.msra.mxu0 0
        %2614 = vmatprep.subr.bf16.mxu0 0
        %2615 = vmatpush2.bf16.msra.mxu0 0
        %2616 = vmatprep.subr.bf16.mxu0 0
        %2617 = vmatpush2.bf16.msra.mxu0 0
        %2618 = vmatprep.subr.bf16.mxu0 0
        %2619 = vmatpush2.bf16.msra.mxu0 0
        %2620 = vmatprep.subr.bf16.mxu0 0
        %2621 = vmatpush2.bf16.msra.mxu0 0
        %2622 = vmatprep.subr.bf16.mxu0 0
        %2623 = vmatpush2.bf16.msra.mxu0 0
        %2624 = vmatprep.mubr.bf16.mxu0 0
        %2625 = vmatmul.mubr.bf16.gmra.mxu0 %v2542
        %v2626 = vpop.f32.mrf.mxu0
        %v2627 = vadd.f32 0.0, %v2626
        %v2628 = vpop.f32.mrf.mxu0
        %v2629 = vpop.f32.mrf.mxu0
        %v2630 = vadd.f32 0.0, %v2629
        %v2631 = vpop.f32.mrf.mxu0
        %2632 = vmatprep.mubr.bf16.mxu0 0
        %2633 = vmatmul.mubr.bf16.gmra.mxu0 %v2545
        %v2634 = vpop.f32.mrf.mxu0
        %v2635 = vadd.f32 0.0, %v2634
        %v2636 = vpop.f32.mrf.mxu0
        %v2637 = vpop.f32.mrf.mxu0
        %v2638 = vadd.f32 0.0, %v2637
        %v2639 = vpop.f32.mrf.mxu0
        %2640 = vmatprep.mubr.bf16.mxu0 0
        %2641 = vmatmul.mubr.bf16.gmra.mxu0 %v2548
        %v2642 = vpop.f32.mrf.mxu0
        %v2643 = vadd.f32 0.0, %v2642
        %v2644 = vpop.f32.mrf.mxu0
        %v2645 = vpop.f32.mrf.mxu0
        %v2646 = vadd.f32 0.0, %v2645
        %v2647 = vpop.f32.mrf.mxu0
        %2648 = vmatprep.mubr.bf16.mxu0 0
        %2649 = vmatmul.mubr.bf16.gmra.mxu0 %v2551
        %v2650 = vpop.f32.mrf.mxu0
        %v2651 = vadd.f32 0.0, %v2650
        %v2652 = vpop.f32.mrf.mxu0
        %v2653 = vpop.f32.mrf.mxu0
        %v2654 = vadd.f32 0.0, %v2653
        %v2655 = vpop.f32.mrf.mxu0
        %2656 = vmatprep.mubr.bf16.mxu0 0
        %2657 = vmatmul.mubr.bf16.gmra.mxu0 %v2554
        %v2658 = vpop.f32.mrf.mxu0
        %v2659 = vadd.f32 0.0, %v2658
        %v2660 = vpop.f32.mrf.mxu0
        %v2661 = vpop.f32.mrf.mxu0
        %v2662 = vadd.f32 0.0, %v2661
        %v2663 = vpop.f32.mrf.mxu0
        %2664 = vmatprep.mubr.bf16.mxu0 0
        %2665 = vmatmul.mubr.bf16.gmra.mxu0 %v2557
        %v2666 = vpop.f32.mrf.mxu0
        %v2667 = vadd.f32 0.0, %v2666
        %v2668 = vpop.f32.mrf.mxu0
        %v2669 = vpop.f32.mrf.mxu0
        %v2670 = vadd.f32 0.0, %v2669
        %v2671 = vpop.f32.mrf.mxu0
        %2672 = vmatprep.mubr.bf16.mxu0 0
        %2673 = vmatmul.mubr.bf16.gmra.mxu0 %v2560
        %v2674 = vpop.f32.mrf.mxu0
        %v2675 = vadd.f32 0.0, %v2674
        %v2676 = vpop.f32.mrf.mxu0
        %v2677 = vpop.f32.mrf.mxu0
        %v2678 = vadd.f32 0.0, %v2677
        %v2679 = vpop.f32.mrf.mxu0
        %2680 = vmatprep.mubr.bf16.mxu0 0
        %2681 = vmatmul.mubr.bf16.gmra.mxu0 %v2563
        %v2682 = vpop.f32.mrf.mxu0
        %v2683 = vadd.f32 0.0, %v2682
        %v2684 = vpop.f32.mrf.mxu0
        %v2685 = vpop.f32.mrf.mxu0
        %v2686 = vadd.f32 0.0, %v2685
        %v2687 = vpop.f32.mrf.mxu0
        %2688 = vmatprep.mubr.bf16.mxu0 0
        %2689 = vmatmul.mubr.bf16.gmra.mxu0 %v2566
        %v2690 = vpop.f32.mrf.mxu0
        %v2691 = vadd.f32 0.0, %v2690
        %v2692 = vpop.f32.mrf.mxu0
        %v2693 = vpop.f32.mrf.mxu0
        %v2694 = vadd.f32 0.0, %v2693
        %v2695 = vpop.f32.mrf.mxu0
        %2696 = vmatprep.mubr.bf16.mxu0 0
        %2697 = vmatmul.mubr.bf16.gmra.mxu0 %v2569
        %v2698 = vpop.f32.mrf.mxu0
        %v2699 = vadd.f32 0.0, %v2698
        %v2700 = vpop.f32.mrf.mxu0
        %v2701 = vpop.f32.mrf.mxu0
        %v2702 = vadd.f32 0.0, %v2701
        %v2703 = vpop.f32.mrf.mxu0
        %2704 = vmatprep.mubr.bf16.mxu0 0
        %2705 = vmatmul.mubr.bf16.gmra.mxu0 %v2572
        %v2706 = vpop.f32.mrf.mxu0
        %v2707 = vadd.f32 0.0, %v2706
        %v2708 = vpop.f32.mrf.mxu0
        %v2709 = vpop.f32.mrf.mxu0
        %v2710 = vadd.f32 0.0, %v2709
        %v2711 = vpop.f32.mrf.mxu0
        %2712 = vmatprep.mubr.bf16.mxu0 0
        %2713 = vmatmul.mubr.bf16.gmra.mxu0 %v2575
        %v2714 = vpop.f32.mrf.mxu0
        %v2715 = vadd.f32 0.0, %v2714
        %v2716 = vpop.f32.mrf.mxu0
        %v2717 = vpop.f32.mrf.mxu0
        %v2718 = vadd.f32 0.0, %v2717
        %v2719 = vpop.f32.mrf.mxu0
        %2720 = vmatprep.mubr.bf16.mxu0 0
        %2721 = vmatmul.mubr.bf16.gmra.mxu0 %v2578
        %v2722 = vpop.f32.mrf.mxu0
        %v2723 = vadd.f32 0.0, %v2722
        %v2724 = vpop.f32.mrf.mxu0
        %v2725 = vpop.f32.mrf.mxu0
        %v2726 = vadd.f32 0.0, %v2725
        %v2727 = vpop.f32.mrf.mxu0
        %2728 = vmatprep.mubr.bf16.mxu0 0
        %2729 = vmatmul.mubr.bf16.gmra.mxu0 %v2581
        %v2730 = vpop.f32.mrf.mxu0
        %v2731 = vadd.f32 0.0, %v2730
        %v2732 = vpop.f32.mrf.mxu0
        %v2733 = vpop.f32.mrf.mxu0
        %v2734 = vadd.f32 0.0, %v2733
        %v2735 = vpop.f32.mrf.mxu0
        %2736 = vmatprep.mubr.bf16.mxu0 0
        %2737 = vmatmul.mubr.bf16.gmra.mxu0 %v2584
        %v2738 = vpop.f32.mrf.mxu0
        %v2739 = vadd.f32 0.0, %v2738
        %v2740 = vpop.f32.mrf.mxu0
        %v2741 = vpop.f32.mrf.mxu0
        %v2742 = vadd.f32 0.0, %v2741
        %v2743 = vpop.f32.mrf.mxu0
        %2744 = vmatprep.mubr.bf16.mxu0 0
        %2745 = vmatmul.mubr.bf16.gmra.mxu0 %v2587
        %v2746 = vpop.f32.mrf.mxu0
        %v2747 = vadd.f32 0.0, %v2746
        %v2748 = vpop.f32.mrf.mxu0
        %v2749 = vpop.f32.mrf.mxu0
        %v2750 = vadd.f32 0.0, %v2749
        %v2751 = vpop.f32.mrf.mxu0
        %2752 = vdwg.mxu0
        %v2753 = vadd.f32 %v2443, %v2627
        %v2754 = vadd.f32 %v2444, %v2630
        %v2755 = vadd.f32 %v2445, %v2635
        %v2756 = vadd.f32 %v2446, %v2638
        %v2757 = vadd.f32 %v2447, %v2643
        %v2758 = vadd.f32 %v2448, %v2646
        %v2759 = vadd.f32 %v2449, %v2651
        %v2760 = vadd.f32 %v2450, %v2654
        %v2761 = vadd.f32 %v2451, %v2659
        %v2762 = vadd.f32 %v2452, %v2662
        %v2763 = vadd.f32 %v2453, %v2667
        %v2764 = vadd.f32 %v2454, %v2670
        %v2765 = vadd.f32 %v2455, %v2675
        %v2766 = vadd.f32 %v2456, %v2678
        %v2767 = vadd.f32 %v2457, %v2683
        %v2768 = vadd.f32 %v2458, %v2686
        %v2769 = vadd.f32 %v2459, %v2691
        %v2770 = vadd.f32 %v2460, %v2694
        %v2771 = vadd.f32 %v2461, %v2699
        %v2772 = vadd.f32 %v2462, %v2702
        %v2773 = vadd.f32 %v2463, %v2707
        %v2774 = vadd.f32 %v2464, %v2710
        %v2775 = vadd.f32 %v2465, %v2715
        %v2776 = vadd.f32 %v2466, %v2718
        %v2777 = vadd.f32 %v2467, %v2723
        %v2778 = vadd.f32 %v2468, %v2726
        %v2779 = vadd.f32 %v2469, %v2731
        %v2780 = vadd.f32 %v2470, %v2734
        %v2781 = vadd.f32 %v2471, %v2739
        %v2782 = vadd.f32 %v2472, %v2742
        %v2783 = vadd.f32 %v2473, %v2747
        %v2784 = vadd.f32 %v2474, %v2750
        %v2785 = vld [vmem:[#allocation2 + $0x20] sm:$0xff]
        %v2786 = vld [vmem:[#allocation2 + $0x28] sm:$0xff]
        %v2787 = vld [vmem:[#allocation2 + $0x30] sm:$0xff]
        %v2788 = vld [vmem:[#allocation2 + $0x38] sm:$0xff]
        %v2789 = vld [vmem:[#allocation2 + $0x40] sm:$0xff]
        %v2790 = vld [vmem:[#allocation2 + $0x48] sm:$0xff]
        %v2791 = vld [vmem:[#allocation2 + $0x50] sm:$0xff]
        %v2792 = vld [vmem:[#allocation2 + $0x58] sm:$0xff]
        %v2793 = vld [vmem:[#allocation2 + $0x60] sm:$0xff]
        %v2794 = vld [vmem:[#allocation2 + $0x68] sm:$0xff]
        %v2795 = vld [vmem:[#allocation2 + $0x70] sm:$0xff]
        %v2796 = vld [vmem:[#allocation2 + $0x78] sm:$0xff]
        %v2797 = vld [vmem:[#allocation2 + $0x80] sm:$0xff]
        %v2798 = vld [vmem:[#allocation2 + $0x88] sm:$0xff]
        %v2799 = vld [vmem:[#allocation2 + $0x90] sm:$0xff]
        %v2800 = vld [vmem:[#allocation2 + $0x98] sm:$0xff]
        %v2801 = vld [vmem:[#allocation2 + $0xa0] sm:$0xff]
        %v2802 = vld [vmem:[#allocation2 + $0xa8] sm:$0xff]
        %v2803 = vld [vmem:[#allocation2 + $0xb0] sm:$0xff]
        %v2804 = vld [vmem:[#allocation2 + $0xb8] sm:$0xff]
        %v2805 = vld [vmem:[#allocation2 + $0xc0] sm:$0xff]
        %v2806 = vld [vmem:[#allocation2 + $0xc8] sm:$0xff]
        %v2807 = vld [vmem:[#allocation2 + $0xd0] sm:$0xff]
        %v2808 = vld [vmem:[#allocation2 + $0xd8] sm:$0xff]
        %v2809 = vld [vmem:[#allocation2 + $0xe0] sm:$0xff]
        %v2810 = vld [vmem:[#allocation2 + $0xe8] sm:$0xff]
        %v2811 = vld [vmem:[#allocation2 + $0xf0] sm:$0xff]
        %v2812 = vld [vmem:[#allocation2 + $0xf8] sm:$0xff]
        %v2813 = vld [vmem:[#allocation2 + $0x100] sm:$0xff]
        %v2814 = vld [vmem:[#allocation2 + $0x108] sm:$0xff]
        %v2815 = vld [vmem:[#allocation2 + $0x110] sm:$0xff]
        %v2816 = vld [vmem:[#allocation2 + $0x118] sm:$0xff]
        %v2817 = vpack.c.bf16 %v2786, %v2785
        %v2818 = vpack.c.bf16 %v2788, %v2787
        %v2819 = vpack.c.bf16 %v2790, %v2789
        %v2820 = vpack.c.bf16 %v2792, %v2791
        %v2821 = vpack.c.bf16 %v2794, %v2793
        %v2822 = vpack.c.bf16 %v2796, %v2795
        %v2823 = vpack.c.bf16 %v2798, %v2797
        %v2824 = vpack.c.bf16 %v2800, %v2799
        %v2825 = vpack.c.bf16 %v2802, %v2801
        %v2826 = vpack.c.bf16 %v2804, %v2803
        %v2827 = vpack.c.bf16 %v2806, %v2805
        %v2828 = vpack.c.bf16 %v2808, %v2807
        %v2829 = vpack.c.bf16 %v2810, %v2809
        %v2830 = vpack.c.bf16 %v2812, %v2811
        %v2831 = vpack.c.bf16 %v2814, %v2813
        %v2832 = vpack.c.bf16 %v2816, %v2815
        %s2833 = scalar_lea.vmem %s4, 8
        %v2834 = vld [vmem:[%s2833] sm:$0x3]
        %v2836 = vsel %vm527, %v2817, 0
        %v2839 = vsel %vm527, %v2818, 0
        %v2842 = vsel %vm527, %v2819, 0
        %v2845 = vsel %vm527, %v2820, 0
        %v2848 = vsel %vm527, %v2821, 0
        %v2851 = vsel %vm527, %v2822, 0
        %v2854 = vsel %vm527, %v2823, 0
        %v2857 = vsel %vm527, %v2824, 0
        %v2860 = vsel %vm527, %v2825, 0
        %v2863 = vsel %vm527, %v2826, 0
        %v2866 = vsel %vm527, %v2827, 0
        %v2869 = vsel %vm527, %v2828, 0
        %v2872 = vsel %vm527, %v2829, 0
        %v2875 = vsel %vm527, %v2830, 0
        %v2878 = vsel %vm527, %v2831, 0
        %v2881 = vsel %vm527, %v2832, 0
        %v2884 = vsel %vm1275, %v2834, 0
        %2886 = vmatprep.subr.bf16.mxu0 0
        %2887 = vmatpush1.bf16.msra.mxu0 0
        %2888 = vmatprep.subr.bf16.mxu0 0
        %2889 = vmatpush1.bf16.msra.mxu0 0
        %2890 = vmatprep.subr.bf16.mxu0 0
        %2891 = vmatpush1.bf16.msra.mxu0 0
        %2892 = vmatprep.subr.bf16.mxu0 0
        %2893 = vmatpush1.bf16.msra.mxu0 0
        %2894 = vmatprep.subr.bf16.mxu0 0
        %2895 = vmatpush1.bf16.msra.mxu0 0
        %2896 = vmatprep.subr.bf16.mxu0 0
        %2897 = vmatpush1.bf16.msra.mxu0 0
        %2898 = vmatprep.subr.bf16.mxu0 0
        %2899 = vmatpush1.bf16.msra.mxu0 0
        %2900 = vmatprep.subr.bf16.mxu0 0
        %2901 = vmatpush1.bf16.msra.mxu0 %v2884
        %2902 = vmatprep.subr.bf16.mxu0 0
        %2903 = vmatpush2.bf16.msra.mxu0 0
        %2904 = vmatprep.subr.bf16.mxu0 0
        %2905 = vmatpush2.bf16.msra.mxu0 0
        %2906 = vmatprep.subr.bf16.mxu0 0
        %2907 = vmatpush2.bf16.msra.mxu0 0
        %2908 = vmatprep.subr.bf16.mxu0 0
        %2909 = vmatpush2.bf16.msra.mxu0 0
        %2910 = vmatprep.subr.bf16.mxu0 0
        %2911 = vmatpush2.bf16.msra.mxu0 0
        %2912 = vmatprep.subr.bf16.mxu0 0
        %2913 = vmatpush2.bf16.msra.mxu0 0
        %2914 = vmatprep.subr.bf16.mxu0 0
        %2915 = vmatpush2.bf16.msra.mxu0 0
        %2916 = vmatprep.subr.bf16.mxu0 0
        %2917 = vmatpush2.bf16.msra.mxu0 0
        %2918 = vmatprep.mubr.bf16.mxu0 0
        %2919 = vmatmul.mubr.bf16.gmra.mxu0 %v2836
        %v2920 = vpop.f32.mrf.mxu0
        %v2921 = vadd.f32 0.0, %v2920
        %v2922 = vpop.f32.mrf.mxu0
        %v2923 = vpop.f32.mrf.mxu0
        %v2924 = vadd.f32 0.0, %v2923
        %v2925 = vpop.f32.mrf.mxu0
        %2926 = vmatprep.mubr.bf16.mxu0 0
        %2927 = vmatmul.mubr.bf16.gmra.mxu0 %v2839
        %v2928 = vpop.f32.mrf.mxu0
        %v2929 = vadd.f32 0.0, %v2928
        %v2930 = vpop.f32.mrf.mxu0
        %v2931 = vpop.f32.mrf.mxu0
        %v2932 = vadd.f32 0.0, %v2931
        %v2933 = vpop.f32.mrf.mxu0
        %2934 = vmatprep.mubr.bf16.mxu0 0
        %2935 = vmatmul.mubr.bf16.gmra.mxu0 %v2842
        %v2936 = vpop.f32.mrf.mxu0
        %v2937 = vadd.f32 0.0, %v2936
        %v2938 = vpop.f32.mrf.mxu0
        %v2939 = vpop.f32.mrf.mxu0
        %v2940 = vadd.f32 0.0, %v2939
        %v2941 = vpop.f32.mrf.mxu0
        %2942 = vmatprep.mubr.bf16.mxu0 0
        %2943 = vmatmul.mubr.bf16.gmra.mxu0 %v2845
        %v2944 = vpop.f32.mrf.mxu0
        %v2945 = vadd.f32 0.0, %v2944
        %v2946 = vpop.f32.mrf.mxu0
        %v2947 = vpop.f32.mrf.mxu0
        %v2948 = vadd.f32 0.0, %v2947
        %v2949 = vpop.f32.mrf.mxu0
        %2950 = vmatprep.mubr.bf16.mxu0 0
        %2951 = vmatmul.mubr.bf16.gmra.mxu0 %v2848
        %v2952 = vpop.f32.mrf.mxu0
        %v2953 = vadd.f32 0.0, %v2952
        %v2954 = vpop.f32.mrf.mxu0
        %v2955 = vpop.f32.mrf.mxu0
        %v2956 = vadd.f32 0.0, %v2955
        %v2957 = vpop.f32.mrf.mxu0
        %2958 = vmatprep.mubr.bf16.mxu0 0
        %2959 = vmatmul.mubr.bf16.gmra.mxu0 %v2851
        %v2960 = vpop.f32.mrf.mxu0
        %v2961 = vadd.f32 0.0, %v2960
        %v2962 = vpop.f32.mrf.mxu0
        %v2963 = vpop.f32.mrf.mxu0
        %v2964 = vadd.f32 0.0, %v2963
        %v2965 = vpop.f32.mrf.mxu0
        %2966 = vmatprep.mubr.bf16.mxu0 0
        %2967 = vmatmul.mubr.bf16.gmra.mxu0 %v2854
        %v2968 = vpop.f32.mrf.mxu0
        %v2969 = vadd.f32 0.0, %v2968
        %v2970 = vpop.f32.mrf.mxu0
        %v2971 = vpop.f32.mrf.mxu0
        %v2972 = vadd.f32 0.0, %v2971
        %v2973 = vpop.f32.mrf.mxu0
        %2974 = vmatprep.mubr.bf16.mxu0 0
        %2975 = vmatmul.mubr.bf16.gmra.mxu0 %v2857
        %v2976 = vpop.f32.mrf.mxu0
        %v2977 = vadd.f32 0.0, %v2976
        %v2978 = vpop.f32.mrf.mxu0
        %v2979 = vpop.f32.mrf.mxu0
        %v2980 = vadd.f32 0.0, %v2979
        %v2981 = vpop.f32.mrf.mxu0
        %2982 = vmatprep.mubr.bf16.mxu0 0
        %2983 = vmatmul.mubr.bf16.gmra.mxu0 %v2860
        %v2984 = vpop.f32.mrf.mxu0
        %v2985 = vadd.f32 0.0, %v2984
        %v2986 = vpop.f32.mrf.mxu0
        %v2987 = vpop.f32.mrf.mxu0
        %v2988 = vadd.f32 0.0, %v2987
        %v2989 = vpop.f32.mrf.mxu0
        %2990 = vmatprep.mubr.bf16.mxu0 0
        %2991 = vmatmul.mubr.bf16.gmra.mxu0 %v2863
        %v2992 = vpop.f32.mrf.mxu0
        %v2993 = vadd.f32 0.0, %v2992
        %v2994 = vpop.f32.mrf.mxu0
        %v2995 = vpop.f32.mrf.mxu0
        %v2996 = vadd.f32 0.0, %v2995
        %v2997 = vpop.f32.mrf.mxu0
        %2998 = vmatprep.mubr.bf16.mxu0 0
        %2999 = vmatmul.mubr.bf16.gmra.mxu0 %v2866
        %v3000 = vpop.f32.mrf.mxu0
        %v3001 = vadd.f32 0.0, %v3000
        %v3002 = vpop.f32.mrf.mxu0
        %v3003 = vpop.f32.mrf.mxu0
        %v3004 = vadd.f32 0.0, %v3003
        %v3005 = vpop.f32.mrf.mxu0
        %3006 = vmatprep.mubr.bf16.mxu0 0
        %3007 = vmatmul.mubr.bf16.gmra.mxu0 %v2869
        %v3008 = vpop.f32.mrf.mxu0
        %v3009 = vadd.f32 0.0, %v3008
        %v3010 = vpop.f32.mrf.mxu0
        %v3011 = vpop.f32.mrf.mxu0
        %v3012 = vadd.f32 0.0, %v3011
        %v3013 = vpop.f32.mrf.mxu0
        %3014 = vmatprep.mubr.bf16.mxu0 0
        %3015 = vmatmul.mubr.bf16.gmra.mxu0 %v2872
        %v3016 = vpop.f32.mrf.mxu0
        %v3017 = vadd.f32 0.0, %v3016
        %v3018 = vpop.f32.mrf.mxu0
        %v3019 = vpop.f32.mrf.mxu0
        %v3020 = vadd.f32 0.0, %v3019
        %v3021 = vpop.f32.mrf.mxu0
        %3022 = vmatprep.mubr.bf16.mxu0 0
        %3023 = vmatmul.mubr.bf16.gmra.mxu0 %v2875
        %v3024 = vpop.f32.mrf.mxu0
        %v3025 = vadd.f32 0.0, %v3024
        %v3026 = vpop.f32.mrf.mxu0
        %v3027 = vpop.f32.mrf.mxu0
        %v3028 = vadd.f32 0.0, %v3027
        %v3029 = vpop.f32.mrf.mxu0
        %3030 = vmatprep.mubr.bf16.mxu0 0
        %3031 = vmatmul.mubr.bf16.gmra.mxu0 %v2878
        %v3032 = vpop.f32.mrf.mxu0
        %v3033 = vadd.f32 0.0, %v3032
        %v3034 = vpop.f32.mrf.mxu0
        %v3035 = vpop.f32.mrf.mxu0
        %v3036 = vadd.f32 0.0, %v3035
        %v3037 = vpop.f32.mrf.mxu0
        %3038 = vmatprep.mubr.bf16.mxu0 0
        %3039 = vmatmul.mubr.bf16.gmra.mxu0 %v2881
        %v3040 = vpop.f32.mrf.mxu0
        %v3041 = vadd.f32 0.0, %v3040
        %v3042 = vpop.f32.mrf.mxu0
        %v3043 = vpop.f32.mrf.mxu0
        %v3044 = vadd.f32 0.0, %v3043
        %v3045 = vpop.f32.mrf.mxu0
        %3046 = vdwg.mxu0
        %v3047 = vadd.f32 %v2753, %v2921
        %v3048 = vadd.f32 %v2754, %v2924
        %v3049 = vadd.f32 %v2755, %v2929
        %v3050 = vadd.f32 %v2756, %v2932
        %v3051 = vadd.f32 %v2757, %v2937
        %v3052 = vadd.f32 %v2758, %v2940
        %v3053 = vadd.f32 %v2759, %v2945
        %v3054 = vadd.f32 %v2760, %v2948
        %v3055 = vadd.f32 %v2761, %v2953
        %v3056 = vadd.f32 %v2762, %v2956
        %v3057 = vadd.f32 %v2763, %v2961
        %v3058 = vadd.f32 %v2764, %v2964
        %v3059 = vadd.f32 %v2765, %v2969
        %v3060 = vadd.f32 %v2766, %v2972
        %v3061 = vadd.f32 %v2767, %v2977
        %v3062 = vadd.f32 %v2768, %v2980
        %v3063 = vadd.f32 %v2769, %v2985
        %v3064 = vadd.f32 %v2770, %v2988
        %v3065 = vadd.f32 %v2771, %v2993
        %v3066 = vadd.f32 %v2772, %v2996
        %v3067 = vadd.f32 %v2773, %v3001
        %v3068 = vadd.f32 %v2774, %v3004
        %v3069 = vadd.f32 %v2775, %v3009
        %v3070 = vadd.f32 %v2776, %v3012
        %v3071 = vadd.f32 %v2777, %v3017
        %v3072 = vadd.f32 %v2778, %v3020
        %v3073 = vadd.f32 %v2779, %v3025
        %v3074 = vadd.f32 %v2780, %v3028
        %v3075 = vadd.f32 %v2781, %v3033
        %v3076 = vadd.f32 %v2782, %v3036
        %v3077 = vadd.f32 %v2783, %v3041
        %v3078 = vadd.f32 %v2784, %v3044
        %v3079 = vld [vmem:[#allocation2 + $0x21] sm:$0xff]
        %v3080 = vld [vmem:[#allocation2 + $0x29] sm:$0xff]
        %v3081 = vld [vmem:[#allocation2 + $0x31] sm:$0xff]
        %v3082 = vld [vmem:[#allocation2 + $0x39] sm:$0xff]
        %v3083 = vld [vmem:[#allocation2 + $0x41] sm:$0xff]
        %v3084 = vld [vmem:[#allocation2 + $0x49] sm:$0xff]
        %v3085 = vld [vmem:[#allocation2 + $0x51] sm:$0xff]
        %v3086 = vld [vmem:[#allocation2 + $0x59] sm:$0xff]
        %v3087 = vld [vmem:[#allocation2 + $0x61] sm:$0xff]
        %v3088 = vld [vmem:[#allocation2 + $0x69] sm:$0xff]
        %v3089 = vld [vmem:[#allocation2 + $0x71] sm:$0xff]
        %v3090 = vld [vmem:[#allocation2 + $0x79] sm:$0xff]
        %v3091 = vld [vmem:[#allocation2 + $0x81] sm:$0xff]
        %v3092 = vld [vmem:[#allocation2 + $0x89] sm:$0xff]
        %v3093 = vld [vmem:[#allocation2 + $0x91] sm:$0xff]
        %v3094 = vld [vmem:[#allocation2 + $0x99] sm:$0xff]
        %v3095 = vld [vmem:[#allocation2 + $0xa1] sm:$0xff]
        %v3096 = vld [vmem:[#allocation2 + $0xa9] sm:$0xff]
        %v3097 = vld [vmem:[#allocation2 + $0xb1] sm:$0xff]
        %v3098 = vld [vmem:[#allocation2 + $0xb9] sm:$0xff]
        %v3099 = vld [vmem:[#allocation2 + $0xc1] sm:$0xff]
        %v3100 = vld [vmem:[#allocation2 + $0xc9] sm:$0xff]
        %v3101 = vld [vmem:[#allocation2 + $0xd1] sm:$0xff]
        %v3102 = vld [vmem:[#allocation2 + $0xd9] sm:$0xff]
        %v3103 = vld [vmem:[#allocation2 + $0xe1] sm:$0xff]
        %v3104 = vld [vmem:[#allocation2 + $0xe9] sm:$0xff]
        %v3105 = vld [vmem:[#allocation2 + $0xf1] sm:$0xff]
        %v3106 = vld [vmem:[#allocation2 + $0xf9] sm:$0xff]
        %v3107 = vld [vmem:[#allocation2 + $0x101] sm:$0xff]
        %v3108 = vld [vmem:[#allocation2 + $0x109] sm:$0xff]
        %v3109 = vld [vmem:[#allocation2 + $0x111] sm:$0xff]
        %v3110 = vld [vmem:[#allocation2 + $0x119] sm:$0xff]
        %v3111 = vpack.c.bf16 %v3080, %v3079
        %v3112 = vpack.c.bf16 %v3082, %v3081
        %v3113 = vpack.c.bf16 %v3084, %v3083
        %v3114 = vpack.c.bf16 %v3086, %v3085
        %v3115 = vpack.c.bf16 %v3088, %v3087
        %v3116 = vpack.c.bf16 %v3090, %v3089
        %v3117 = vpack.c.bf16 %v3092, %v3091
        %v3118 = vpack.c.bf16 %v3094, %v3093
        %v3119 = vpack.c.bf16 %v3096, %v3095
        %v3120 = vpack.c.bf16 %v3098, %v3097
        %v3121 = vpack.c.bf16 %v3100, %v3099
        %v3122 = vpack.c.bf16 %v3102, %v3101
        %v3123 = vpack.c.bf16 %v3104, %v3103
        %v3124 = vpack.c.bf16 %v3106, %v3105
        %v3125 = vpack.c.bf16 %v3108, %v3107
        %v3126 = vpack.c.bf16 %v3110, %v3109
        %v3127 = vmul.bf16 %v3111, %v2181
        %v3128 = vmul.bf16 %v3112, %v2182
        %v3129 = vmul.bf16 %v3113, %v2183
        %v3130 = vmul.bf16 %v3114, %v2184
        %v3131 = vmul.bf16 %v3115, %v2185
        %v3132 = vmul.bf16 %v3116, %v2186
        %v3133 = vmul.bf16 %v3117, %v2187
        %v3134 = vmul.bf16 %v3118, %v2188
        %v3135 = vmul.bf16 %v3119, %v2189
        %v3136 = vmul.bf16 %v3120, %v2190
        %v3137 = vmul.bf16 %v3121, %v2191
        %v3138 = vmul.bf16 %v3122, %v2192
        %v3139 = vmul.bf16 %v3123, %v2193
        %v3140 = vmul.bf16 %v3124, %v2194
        %v3141 = vmul.bf16 %v3125, %v2195
        %v3142 = vmul.bf16 %v3126, %v2196
        %s3143 = scalar_lea.vmem %s4, 10
        %v3144 = vld [vmem:[%s3143] sm:$0x3]
        %v3146 = vsel %vm527, %v3127, 0
        %v3149 = vsel %vm527, %v3128, 0
        %v3152 = vsel %vm527, %v3129, 0
        %v3155 = vsel %vm527, %v3130, 0
        %v3158 = vsel %vm527, %v3131, 0
        %v3161 = vsel %vm527, %v3132, 0
        %v3164 = vsel %vm527, %v3133, 0
        %v3167 = vsel %vm527, %v3134, 0
        %v3170 = vsel %vm527, %v3135, 0
        %v3173 = vsel %vm527, %v3136, 0
        %v3176 = vsel %vm527, %v3137, 0
        %v3179 = vsel %vm527, %v3138, 0
        %v3182 = vsel %vm527, %v3139, 0
        %v3185 = vsel %vm527, %v3140, 0
        %v3188 = vsel %vm527, %v3141, 0
        %v3191 = vsel %vm527, %v3142, 0
        %v3194 = vsel %vm1275, %v3144, 0
        %3196 = vmatprep.subr.bf16.mxu0 0
        %3197 = vmatpush1.bf16.msra.mxu0 0
        %3198 = vmatprep.subr.bf16.mxu0 0
        %3199 = vmatpush1.bf16.msra.mxu0 0
        %3200 = vmatprep.subr.bf16.mxu0 0
        %3201 = vmatpush1.bf16.msra.mxu0 0
        %3202 = vmatprep.subr.bf16.mxu0 0
        %3203 = vmatpush1.bf16.msra.mxu0 0
        %3204 = vmatprep.subr.bf16.mxu0 0
        %3205 = vmatpush1.bf16.msra.mxu0 0
        %3206 = vmatprep.subr.bf16.mxu0 0
        %3207 = vmatpush1.bf16.msra.mxu0 0
        %3208 = vmatprep.subr.bf16.mxu0 0
        %3209 = vmatpush1.bf16.msra.mxu0 0
        %3210 = vmatprep.subr.bf16.mxu0 0
        %3211 = vmatpush1.bf16.msra.mxu0 %v3194
        %3212 = vmatprep.subr.bf16.mxu0 0
        %3213 = vmatpush2.bf16.msra.mxu0 0
        %3214 = vmatprep.subr.bf16.mxu0 0
        %3215 = vmatpush2.bf16.msra.mxu0 0
        %3216 = vmatprep.subr.bf16.mxu0 0
        %3217 = vmatpush2.bf16.msra.mxu0 0
        %3218 = vmatprep.subr.bf16.mxu0 0
        %3219 = vmatpush2.bf16.msra.mxu0 0
        %3220 = vmatprep.subr.bf16.mxu0 0
        %3221 = vmatpush2.bf16.msra.mxu0 0
        %3222 = vmatprep.subr.bf16.mxu0 0
        %3223 = vmatpush2.bf16.msra.mxu0 0
        %3224 = vmatprep.subr.bf16.mxu0 0
        %3225 = vmatpush2.bf16.msra.mxu0 0
        %3226 = vmatprep.subr.bf16.mxu0 0
        %3227 = vmatpush2.bf16.msra.mxu0 0
        %3228 = vmatprep.mubr.bf16.mxu0 0
        %3229 = vmatmul.mubr.bf16.gmra.mxu0 %v3146
        %v3230 = vpop.f32.mrf.mxu0
        %v3231 = vadd.f32 0.0, %v3230
        %v3232 = vpop.f32.mrf.mxu0
        %v3233 = vpop.f32.mrf.mxu0
        %v3234 = vadd.f32 0.0, %v3233
        %v3235 = vpop.f32.mrf.mxu0
        %3236 = vmatprep.mubr.bf16.mxu0 0
        %3237 = vmatmul.mubr.bf16.gmra.mxu0 %v3149
        %v3238 = vpop.f32.mrf.mxu0
        %v3239 = vadd.f32 0.0, %v3238
        %v3240 = vpop.f32.mrf.mxu0
        %v3241 = vpop.f32.mrf.mxu0
        %v3242 = vadd.f32 0.0, %v3241
        %v3243 = vpop.f32.mrf.mxu0
        %3244 = vmatprep.mubr.bf16.mxu0 0
        %3245 = vmatmul.mubr.bf16.gmra.mxu0 %v3152
        %v3246 = vpop.f32.mrf.mxu0
        %v3247 = vadd.f32 0.0, %v3246
        %v3248 = vpop.f32.mrf.mxu0
        %v3249 = vpop.f32.mrf.mxu0
        %v3250 = vadd.f32 0.0, %v3249
        %v3251 = vpop.f32.mrf.mxu0
        %3252 = vmatprep.mubr.bf16.mxu0 0
        %3253 = vmatmul.mubr.bf16.gmra.mxu0 %v3155
        %v3254 = vpop.f32.mrf.mxu0
        %v3255 = vadd.f32 0.0, %v3254
        %v3256 = vpop.f32.mrf.mxu0
        %v3257 = vpop.f32.mrf.mxu0
        %v3258 = vadd.f32 0.0, %v3257
        %v3259 = vpop.f32.mrf.mxu0
        %3260 = vmatprep.mubr.bf16.mxu0 0
        %3261 = vmatmul.mubr.bf16.gmra.mxu0 %v3158
        %v3262 = vpop.f32.mrf.mxu0
        %v3263 = vadd.f32 0.0, %v3262
        %v3264 = vpop.f32.mrf.mxu0
        %v3265 = vpop.f32.mrf.mxu0
        %v3266 = vadd.f32 0.0, %v3265
        %v3267 = vpop.f32.mrf.mxu0
        %3268 = vmatprep.mubr.bf16.mxu0 0
        %3269 = vmatmul.mubr.bf16.gmra.mxu0 %v3161
        %v3270 = vpop.f32.mrf.mxu0
        %v3271 = vadd.f32 0.0, %v3270
        %v3272 = vpop.f32.mrf.mxu0
        %v3273 = vpop.f32.mrf.mxu0
        %v3274 = vadd.f32 0.0, %v3273
        %v3275 = vpop.f32.mrf.mxu0
        %3276 = vmatprep.mubr.bf16.mxu0 0
        %3277 = vmatmul.mubr.bf16.gmra.mxu0 %v3164
        %v3278 = vpop.f32.mrf.mxu0
        %v3279 = vadd.f32 0.0, %v3278
        %v3280 = vpop.f32.mrf.mxu0
        %v3281 = vpop.f32.mrf.mxu0
        %v3282 = vadd.f32 0.0, %v3281
        %v3283 = vpop.f32.mrf.mxu0
        %3284 = vmatprep.mubr.bf16.mxu0 0
        %3285 = vmatmul.mubr.bf16.gmra.mxu0 %v3167
        %v3286 = vpop.f32.mrf.mxu0
        %v3287 = vadd.f32 0.0, %v3286
        %v3288 = vpop.f32.mrf.mxu0
        %v3289 = vpop.f32.mrf.mxu0
        %v3290 = vadd.f32 0.0, %v3289
        %v3291 = vpop.f32.mrf.mxu0
        %3292 = vmatprep.mubr.bf16.mxu0 0
        %3293 = vmatmul.mubr.bf16.gmra.mxu0 %v3170
        %v3294 = vpop.f32.mrf.mxu0
        %v3295 = vadd.f32 0.0, %v3294
        %v3296 = vpop.f32.mrf.mxu0
        %v3297 = vpop.f32.mrf.mxu0
        %v3298 = vadd.f32 0.0, %v3297
        %v3299 = vpop.f32.mrf.mxu0
        %3300 = vmatprep.mubr.bf16.mxu0 0
        %3301 = vmatmul.mubr.bf16.gmra.mxu0 %v3173
        %v3302 = vpop.f32.mrf.mxu0
        %v3303 = vadd.f32 0.0, %v3302
        %v3304 = vpop.f32.mrf.mxu0
        %v3305 = vpop.f32.mrf.mxu0
        %v3306 = vadd.f32 0.0, %v3305
        %v3307 = vpop.f32.mrf.mxu0
        %3308 = vmatprep.mubr.bf16.mxu0 0
        %3309 = vmatmul.mubr.bf16.gmra.mxu0 %v3176
        %v3310 = vpop.f32.mrf.mxu0
        %v3311 = vadd.f32 0.0, %v3310
        %v3312 = vpop.f32.mrf.mxu0
        %v3313 = vpop.f32.mrf.mxu0
        %v3314 = vadd.f32 0.0, %v3313
        %v3315 = vpop.f32.mrf.mxu0
        %3316 = vmatprep.mubr.bf16.mxu0 0
        %3317 = vmatmul.mubr.bf16.gmra.mxu0 %v3179
        %v3318 = vpop.f32.mrf.mxu0
        %v3319 = vadd.f32 0.0, %v3318
        %v3320 = vpop.f32.mrf.mxu0
        %v3321 = vpop.f32.mrf.mxu0
        %v3322 = vadd.f32 0.0, %v3321
        %v3323 = vpop.f32.mrf.mxu0
        %3324 = vmatprep.mubr.bf16.mxu0 0
        %3325 = vmatmul.mubr.bf16.gmra.mxu0 %v3182
        %v3326 = vpop.f32.mrf.mxu0
        %v3327 = vadd.f32 0.0, %v3326
        %v3328 = vpop.f32.mrf.mxu0
        %v3329 = vpop.f32.mrf.mxu0
        %v3330 = vadd.f32 0.0, %v3329
        %v3331 = vpop.f32.mrf.mxu0
        %3332 = vmatprep.mubr.bf16.mxu0 0
        %3333 = vmatmul.mubr.bf16.gmra.mxu0 %v3185
        %v3334 = vpop.f32.mrf.mxu0
        %v3335 = vadd.f32 0.0, %v3334
        %v3336 = vpop.f32.mrf.mxu0
        %v3337 = vpop.f32.mrf.mxu0
        %v3338 = vadd.f32 0.0, %v3337
        %v3339 = vpop.f32.mrf.mxu0
        %3340 = vmatprep.mubr.bf16.mxu0 0
        %3341 = vmatmul.mubr.bf16.gmra.mxu0 %v3188
        %v3342 = vpop.f32.mrf.mxu0
        %v3343 = vadd.f32 0.0, %v3342
        %v3344 = vpop.f32.mrf.mxu0
        %v3345 = vpop.f32.mrf.mxu0
        %v3346 = vadd.f32 0.0, %v3345
        %v3347 = vpop.f32.mrf.mxu0
        %3348 = vmatprep.mubr.bf16.mxu0 0
        %3349 = vmatmul.mubr.bf16.gmra.mxu0 %v3191
        %v3350 = vpop.f32.mrf.mxu0
        %v3351 = vadd.f32 0.0, %v3350
        %v3352 = vpop.f32.mrf.mxu0
        %v3353 = vpop.f32.mrf.mxu0
        %v3354 = vadd.f32 0.0, %v3353
        %v3355 = vpop.f32.mrf.mxu0
        %3356 = vdwg.mxu0
        %v3357 = vadd.f32 %v3047, %v3231
        %v3358 = vadd.f32 %v3048, %v3234
        %v3359 = vadd.f32 %v3049, %v3239
        %v3360 = vadd.f32 %v3050, %v3242
        %v3361 = vadd.f32 %v3051, %v3247
        %v3362 = vadd.f32 %v3052, %v3250
        %v3363 = vadd.f32 %v3053, %v3255
        %v3364 = vadd.f32 %v3054, %v3258
        %v3365 = vadd.f32 %v3055, %v3263
        %v3366 = vadd.f32 %v3056, %v3266
        %v3367 = vadd.f32 %v3057, %v3271
        %v3368 = vadd.f32 %v3058, %v3274
        %v3369 = vadd.f32 %v3059, %v3279
        %v3370 = vadd.f32 %v3060, %v3282
        %v3371 = vadd.f32 %v3061, %v3287
        %v3372 = vadd.f32 %v3062, %v3290
        %v3373 = vadd.f32 %v3063, %v3295
        %v3374 = vadd.f32 %v3064, %v3298
        %v3375 = vadd.f32 %v3065, %v3303
        %v3376 = vadd.f32 %v3066, %v3306
        %v3377 = vadd.f32 %v3067, %v3311
        %v3378 = vadd.f32 %v3068, %v3314
        %v3379 = vadd.f32 %v3069, %v3319
        %v3380 = vadd.f32 %v3070, %v3322
        %v3381 = vadd.f32 %v3071, %v3327
        %v3382 = vadd.f32 %v3072, %v3330
        %v3383 = vadd.f32 %v3073, %v3335
        %v3384 = vadd.f32 %v3074, %v3338
        %v3385 = vadd.f32 %v3075, %v3343
        %v3386 = vadd.f32 %v3076, %v3346
        %v3387 = vadd.f32 %v3077, %v3351
        %v3388 = vadd.f32 %v3078, %v3354
        %v3389 = vld [vmem:[#allocation2 + $0x2f] sm:$0xff]
        %v3390 = vld [vmem:[#allocation2 + $0x37] sm:$0xff]
        %v3391 = vld [vmem:[#allocation2 + $0x3f] sm:$0xff]
        %v3392 = vld [vmem:[#allocation2 + $0x47] sm:$0xff]
        %v3393 = vld [vmem:[#allocation2 + $0x4f] sm:$0xff]
        %v3394 = vld [vmem:[#allocation2 + $0x57] sm:$0xff]
        %v3395 = vld [vmem:[#allocation2 + $0x5f] sm:$0xff]
        %v3396 = vld [vmem:[#allocation2 + $0x67] sm:$0xff]
        %v3397 = vld [vmem:[#allocation2 + $0x6f] sm:$0xff]
        %v3398 = vld [vmem:[#allocation2 + $0x77] sm:$0xff]
        %v3399 = vld [vmem:[#allocation2 + $0x7f] sm:$0xff]
        %v3400 = vld [vmem:[#allocation2 + $0x87] sm:$0xff]
        %v3401 = vld [vmem:[#allocation2 + $0x8f] sm:$0xff]
        %v3402 = vld [vmem:[#allocation2 + $0x97] sm:$0xff]
        %v3403 = vld [vmem:[#allocation2 + $0x9f] sm:$0xff]
        %v3404 = vld [vmem:[#allocation2 + $0xa7] sm:$0xff]
        %v3405 = vld [vmem:[#allocation2 + $0xaf] sm:$0xff]
        %v3406 = vld [vmem:[#allocation2 + $0xb7] sm:$0xff]
        %v3407 = vld [vmem:[#allocation2 + $0xbf] sm:$0xff]
        %v3408 = vld [vmem:[#allocation2 + $0xc7] sm:$0xff]
        %v3409 = vld [vmem:[#allocation2 + $0xcf] sm:$0xff]
        %v3410 = vld [vmem:[#allocation2 + $0xd7] sm:$0xff]
        %v3411 = vld [vmem:[#allocation2 + $0xdf] sm:$0xff]
        %v3412 = vld [vmem:[#allocation2 + $0xe7] sm:$0xff]
        %v3413 = vld [vmem:[#allocation2 + $0xef] sm:$0xff]
        %v3414 = vld [vmem:[#allocation2 + $0xf7] sm:$0xff]
        %v3415 = vld [vmem:[#allocation2 + $0xff] sm:$0xff]
        %v3416 = vld [vmem:[#allocation2 + $0x107] sm:$0xff]
        %v3417 = vld [vmem:[#allocation2 + $0x10f] sm:$0xff]
        %v3418 = vld [vmem:[#allocation2 + $0x117] sm:$0xff]
        %v3419 = vld [vmem:[#allocation2 + $0x11f] sm:$0xff]
        %v3420 = vld [vmem:[#allocation2 + $0x127] sm:$0xff]
        %v3421 = vpack.c.bf16 %v3390, %v3389
        %v3422 = vpack.c.bf16 %v3392, %v3391
        %v3423 = vpack.c.bf16 %v3394, %v3393
        %v3424 = vpack.c.bf16 %v3396, %v3395
        %v3425 = vpack.c.bf16 %v3398, %v3397
        %v3426 = vpack.c.bf16 %v3400, %v3399
        %v3427 = vpack.c.bf16 %v3402, %v3401
        %v3428 = vpack.c.bf16 %v3404, %v3403
        %v3429 = vpack.c.bf16 %v3406, %v3405
        %v3430 = vpack.c.bf16 %v3408, %v3407
        %v3431 = vpack.c.bf16 %v3410, %v3409
        %v3432 = vpack.c.bf16 %v3412, %v3411
        %v3433 = vpack.c.bf16 %v3414, %v3413
        %v3434 = vpack.c.bf16 %v3416, %v3415
        %v3435 = vpack.c.bf16 %v3418, %v3417
        %v3436 = vpack.c.bf16 %v3420, %v3419
        %v3437 = vmul.bf16 %v3421, %v1128
        %v3438 = vmul.bf16 %v3422, %v1129
        %v3439 = vmul.bf16 %v3423, %v1130
        %v3440 = vmul.bf16 %v3424, %v1131
        %v3441 = vmul.bf16 %v3425, %v1132
        %v3442 = vmul.bf16 %v3426, %v1133
        %v3443 = vmul.bf16 %v3427, %v1134
        %v3444 = vmul.bf16 %v3428, %v1135
        %v3445 = vmul.bf16 %v3429, %v1136
        %v3446 = vmul.bf16 %v3430, %v1137
        %v3447 = vmul.bf16 %v3431, %v1138
        %v3448 = vmul.bf16 %v3432, %v1139
        %v3449 = vmul.bf16 %v3433, %v1140
        %v3450 = vmul.bf16 %v3434, %v1141
        %v3451 = vmul.bf16 %v3435, %v1142
        %v3452 = vmul.bf16 %v3436, %v1143
        %s3453 = scalar_lea.vmem %s4, 12
        %v3454 = vld [vmem:[%s3453] sm:$0x3]
        %v3456 = vsel %vm527, %v3437, 0
        %v3459 = vsel %vm527, %v3438, 0
        %v3462 = vsel %vm527, %v3439, 0
        %v3465 = vsel %vm527, %v3440, 0
        %v3468 = vsel %vm527, %v3441, 0
        %v3471 = vsel %vm527, %v3442, 0
        %v3474 = vsel %vm527, %v3443, 0
        %v3477 = vsel %vm527, %v3444, 0
        %v3480 = vsel %vm527, %v3445, 0
        %v3483 = vsel %vm527, %v3446, 0
        %v3486 = vsel %vm527, %v3447, 0
        %v3489 = vsel %vm527, %v3448, 0
        %v3492 = vsel %vm527, %v3449, 0
        %v3495 = vsel %vm527, %v3450, 0
        %v3498 = vsel %vm527, %v3451, 0
        %v3501 = vsel %vm527, %v3452, 0
        %v3504 = vsel %vm1275, %v3454, 0
        %3506 = vmatprep.subr.bf16.mxu0 0
        %3507 = vmatpush1.bf16.msra.mxu0 0
        %3508 = vmatprep.subr.bf16.mxu0 0
        %3509 = vmatpush1.bf16.msra.mxu0 0
        %3510 = vmatprep.subr.bf16.mxu0 0
        %3511 = vmatpush1.bf16.msra.mxu0 0
        %3512 = vmatprep.subr.bf16.mxu0 0
        %3513 = vmatpush1.bf16.msra.mxu0 0
        %3514 = vmatprep.subr.bf16.mxu0 0
        %3515 = vmatpush1.bf16.msra.mxu0 0
        %3516 = vmatprep.subr.bf16.mxu0 0
        %3517 = vmatpush1.bf16.msra.mxu0 0
        %3518 = vmatprep.subr.bf16.mxu0 0
        %3519 = vmatpush1.bf16.msra.mxu0 0
        %3520 = vmatprep.subr.bf16.mxu0 0
        %3521 = vmatpush1.bf16.msra.mxu0 %v3504
        %3522 = vmatprep.subr.bf16.mxu0 0
        %3523 = vmatpush2.bf16.msra.mxu0 0
        %3524 = vmatprep.subr.bf16.mxu0 0
        %3525 = vmatpush2.bf16.msra.mxu0 0
        %3526 = vmatprep.subr.bf16.mxu0 0
        %3527 = vmatpush2.bf16.msra.mxu0 0
        %3528 = vmatprep.subr.bf16.mxu0 0
        %3529 = vmatpush2.bf16.msra.mxu0 0
        %3530 = vmatprep.subr.bf16.mxu0 0
        %3531 = vmatpush2.bf16.msra.mxu0 0
        %3532 = vmatprep.subr.bf16.mxu0 0
        %3533 = vmatpush2.bf16.msra.mxu0 0
        %3534 = vmatprep.subr.bf16.mxu0 0
        %3535 = vmatpush2.bf16.msra.mxu0 0
        %3536 = vmatprep.subr.bf16.mxu0 0
        %3537 = vmatpush2.bf16.msra.mxu0 0
        %3538 = vmatprep.mubr.bf16.mxu0 0
        %3539 = vmatmul.mubr.bf16.gmra.mxu0 %v3456
        %v3540 = vpop.f32.mrf.mxu0
        %v3541 = vadd.f32 0.0, %v3540
        %v3542 = vpop.f32.mrf.mxu0
        %v3543 = vpop.f32.mrf.mxu0
        %v3544 = vadd.f32 0.0, %v3543
        %v3545 = vpop.f32.mrf.mxu0
        %3546 = vmatprep.mubr.bf16.mxu0 0
        %3547 = vmatmul.mubr.bf16.gmra.mxu0 %v3459
        %v3548 = vpop.f32.mrf.mxu0
        %v3549 = vadd.f32 0.0, %v3548
        %v3550 = vpop.f32.mrf.mxu0
        %v3551 = vpop.f32.mrf.mxu0
        %v3552 = vadd.f32 0.0, %v3551
        %v3553 = vpop.f32.mrf.mxu0
        %3554 = vmatprep.mubr.bf16.mxu0 0
        %3555 = vmatmul.mubr.bf16.gmra.mxu0 %v3462
        %v3556 = vpop.f32.mrf.mxu0
        %v3557 = vadd.f32 0.0, %v3556
        %v3558 = vpop.f32.mrf.mxu0
        %v3559 = vpop.f32.mrf.mxu0
        %v3560 = vadd.f32 0.0, %v3559
        %v3561 = vpop.f32.mrf.mxu0
        %3562 = vmatprep.mubr.bf16.mxu0 0
        %3563 = vmatmul.mubr.bf16.gmra.mxu0 %v3465
        %v3564 = vpop.f32.mrf.mxu0
        %v3565 = vadd.f32 0.0, %v3564
        %v3566 = vpop.f32.mrf.mxu0
        %v3567 = vpop.f32.mrf.mxu0
        %v3568 = vadd.f32 0.0, %v3567
        %v3569 = vpop.f32.mrf.mxu0
        %3570 = vmatprep.mubr.bf16.mxu0 0
        %3571 = vmatmul.mubr.bf16.gmra.mxu0 %v3468
        %v3572 = vpop.f32.mrf.mxu0
        %v3573 = vadd.f32 0.0, %v3572
        %v3574 = vpop.f32.mrf.mxu0
        %v3575 = vpop.f32.mrf.mxu0
        %v3576 = vadd.f32 0.0, %v3575
        %v3577 = vpop.f32.mrf.mxu0
        %3578 = vmatprep.mubr.bf16.mxu0 0
        %3579 = vmatmul.mubr.bf16.gmra.mxu0 %v3471
        %v3580 = vpop.f32.mrf.mxu0
        %v3581 = vadd.f32 0.0, %v3580
        %v3582 = vpop.f32.mrf.mxu0
        %v3583 = vpop.f32.mrf.mxu0
        %v3584 = vadd.f32 0.0, %v3583
        %v3585 = vpop.f32.mrf.mxu0
        %3586 = vmatprep.mubr.bf16.mxu0 0
        %3587 = vmatmul.mubr.bf16.gmra.mxu0 %v3474
        %v3588 = vpop.f32.mrf.mxu0
        %v3589 = vadd.f32 0.0, %v3588
        %v3590 = vpop.f32.mrf.mxu0
        %v3591 = vpop.f32.mrf.mxu0
        %v3592 = vadd.f32 0.0, %v3591
        %v3593 = vpop.f32.mrf.mxu0
        %3594 = vmatprep.mubr.bf16.mxu0 0
        %3595 = vmatmul.mubr.bf16.gmra.mxu0 %v3477
        %v3596 = vpop.f32.mrf.mxu0
        %v3597 = vadd.f32 0.0, %v3596
        %v3598 = vpop.f32.mrf.mxu0
        %v3599 = vpop.f32.mrf.mxu0
        %v3600 = vadd.f32 0.0, %v3599
        %v3601 = vpop.f32.mrf.mxu0
        %3602 = vmatprep.mubr.bf16.mxu0 0
        %3603 = vmatmul.mubr.bf16.gmra.mxu0 %v3480
        %v3604 = vpop.f32.mrf.mxu0
        %v3605 = vadd.f32 0.0, %v3604
        %v3606 = vpop.f32.mrf.mxu0
        %v3607 = vpop.f32.mrf.mxu0
        %v3608 = vadd.f32 0.0, %v3607
        %v3609 = vpop.f32.mrf.mxu0
        %3610 = vmatprep.mubr.bf16.mxu0 0
        %3611 = vmatmul.mubr.bf16.gmra.mxu0 %v3483
        %v3612 = vpop.f32.mrf.mxu0
        %v3613 = vadd.f32 0.0, %v3612
        %v3614 = vpop.f32.mrf.mxu0
        %v3615 = vpop.f32.mrf.mxu0
        %v3616 = vadd.f32 0.0, %v3615
        %v3617 = vpop.f32.mrf.mxu0
        %3618 = vmatprep.mubr.bf16.mxu0 0
        %3619 = vmatmul.mubr.bf16.gmra.mxu0 %v3486
        %v3620 = vpop.f32.mrf.mxu0
        %v3621 = vadd.f32 0.0, %v3620
        %v3622 = vpop.f32.mrf.mxu0
        %v3623 = vpop.f32.mrf.mxu0
        %v3624 = vadd.f32 0.0, %v3623
        %v3625 = vpop.f32.mrf.mxu0
        %3626 = vmatprep.mubr.bf16.mxu0 0
        %3627 = vmatmul.mubr.bf16.gmra.mxu0 %v3489
        %v3628 = vpop.f32.mrf.mxu0
        %v3629 = vadd.f32 0.0, %v3628
        %v3630 = vpop.f32.mrf.mxu0
        %v3631 = vpop.f32.mrf.mxu0
        %v3632 = vadd.f32 0.0, %v3631
        %v3633 = vpop.f32.mrf.mxu0
        %3634 = vmatprep.mubr.bf16.mxu0 0
        %3635 = vmatmul.mubr.bf16.gmra.mxu0 %v3492
        %v3636 = vpop.f32.mrf.mxu0
        %v3637 = vadd.f32 0.0, %v3636
        %v3638 = vpop.f32.mrf.mxu0
        %v3639 = vpop.f32.mrf.mxu0
        %v3640 = vadd.f32 0.0, %v3639
        %v3641 = vpop.f32.mrf.mxu0
        %3642 = vmatprep.mubr.bf16.mxu0 0
        %3643 = vmatmul.mubr.bf16.gmra.mxu0 %v3495
        %v3644 = vpop.f32.mrf.mxu0
        %v3645 = vadd.f32 0.0, %v3644
        %v3646 = vpop.f32.mrf.mxu0
        %v3647 = vpop.f32.mrf.mxu0
        %v3648 = vadd.f32 0.0, %v3647
        %v3649 = vpop.f32.mrf.mxu0
        %3650 = vmatprep.mubr.bf16.mxu0 0
        %3651 = vmatmul.mubr.bf16.gmra.mxu0 %v3498
        %v3652 = vpop.f32.mrf.mxu0
        %v3653 = vadd.f32 0.0, %v3652
        %v3654 = vpop.f32.mrf.mxu0
        %v3655 = vpop.f32.mrf.mxu0
        %v3656 = vadd.f32 0.0, %v3655
        %v3657 = vpop.f32.mrf.mxu0
        %3658 = vmatprep.mubr.bf16.mxu0 0
        %3659 = vmatmul.mubr.bf16.gmra.mxu0 %v3501
        %v3660 = vpop.f32.mrf.mxu0
        %v3661 = vadd.f32 0.0, %v3660
        %v3662 = vpop.f32.mrf.mxu0
        %v3663 = vpop.f32.mrf.mxu0
        %v3664 = vadd.f32 0.0, %v3663
        %v3665 = vpop.f32.mrf.mxu0
        %3666 = vdwg.mxu0
        %v3667 = vadd.f32 %v3357, %v3541
        %v3668 = vadd.f32 %v3358, %v3544
        %v3669 = vadd.f32 %v3359, %v3549
        %v3670 = vadd.f32 %v3360, %v3552
        %v3671 = vadd.f32 %v3361, %v3557
        %v3672 = vadd.f32 %v3362, %v3560
        %v3673 = vadd.f32 %v3363, %v3565
        %v3674 = vadd.f32 %v3364, %v3568
        %v3675 = vadd.f32 %v3365, %v3573
        %v3676 = vadd.f32 %v3366, %v3576
        %v3677 = vadd.f32 %v3367, %v3581
        %v3678 = vadd.f32 %v3368, %v3584
        %v3679 = vadd.f32 %v3369, %v3589
        %v3680 = vadd.f32 %v3370, %v3592
        %v3681 = vadd.f32 %v3371, %v3597
        %v3682 = vadd.f32 %v3372, %v3600
        %v3683 = vadd.f32 %v3373, %v3605
        %v3684 = vadd.f32 %v3374, %v3608
        %v3685 = vadd.f32 %v3375, %v3613
        %v3686 = vadd.f32 %v3376, %v3616
        %v3687 = vadd.f32 %v3377, %v3621
        %v3688 = vadd.f32 %v3378, %v3624
        %v3689 = vadd.f32 %v3379, %v3629
        %v3690 = vadd.f32 %v3380, %v3632
        %v3691 = vadd.f32 %v3381, %v3637
        %v3692 = vadd.f32 %v3382, %v3640
        %v3693 = vadd.f32 %v3383, %v3645
        %v3694 = vadd.f32 %v3384, %v3648
        %v3695 = vadd.f32 %v3385, %v3653
        %v3696 = vadd.f32 %v3386, %v3656
        %v3697 = vadd.f32 %v3387, %v3661
        %v3698 = vadd.f32 %v3388, %v3664
        %v3699 = vld [vmem:[#allocation2 + $0x30] sm:$0xff]
        %v3700 = vld [vmem:[#allocation2 + $0x38] sm:$0xff]
        %v3701 = vld [vmem:[#allocation2 + $0x40] sm:$0xff]
        %v3702 = vld [vmem:[#allocation2 + $0x48] sm:$0xff]
        %v3703 = vld [vmem:[#allocation2 + $0x50] sm:$0xff]
        %v3704 = vld [vmem:[#allocation2 + $0x58] sm:$0xff]
        %v3705 = vld [vmem:[#allocation2 + $0x60] sm:$0xff]
        %v3706 = vld [vmem:[#allocation2 + $0x68] sm:$0xff]
        %v3707 = vld [vmem:[#allocation2 + $0x70] sm:$0xff]
        %v3708 = vld [vmem:[#allocation2 + $0x78] sm:$0xff]
        %v3709 = vld [vmem:[#allocation2 + $0x80] sm:$0xff]
        %v3710 = vld [vmem:[#allocation2 + $0x88] sm:$0xff]
        %v3711 = vld [vmem:[#allocation2 + $0x90] sm:$0xff]
        %v3712 = vld [vmem:[#allocation2 + $0x98] sm:$0xff]
        %v3713 = vld [vmem:[#allocation2 + $0xa0] sm:$0xff]
        %v3714 = vld [vmem:[#allocation2 + $0xa8] sm:$0xff]
        %v3715 = vld [vmem:[#allocation2 + $0xb0] sm:$0xff]
        %v3716 = vld [vmem:[#allocation2 + $0xb8] sm:$0xff]
        %v3717 = vld [vmem:[#allocation2 + $0xc0] sm:$0xff]
        %v3718 = vld [vmem:[#allocation2 + $0xc8] sm:$0xff]
        %v3719 = vld [vmem:[#allocation2 + $0xd0] sm:$0xff]
        %v3720 = vld [vmem:[#allocation2 + $0xd8] sm:$0xff]
        %v3721 = vld [vmem:[#allocation2 + $0xe0] sm:$0xff]
        %v3722 = vld [vmem:[#allocation2 + $0xe8] sm:$0xff]
        %v3723 = vld [vmem:[#allocation2 + $0xf0] sm:$0xff]
        %v3724 = vld [vmem:[#allocation2 + $0xf8] sm:$0xff]
        %v3725 = vld [vmem:[#allocation2 + $0x100] sm:$0xff]
        %v3726 = vld [vmem:[#allocation2 + $0x108] sm:$0xff]
        %v3727 = vld [vmem:[#allocation2 + $0x110] sm:$0xff]
        %v3728 = vld [vmem:[#allocation2 + $0x118] sm:$0xff]
        %v3729 = vld [vmem:[#allocation2 + $0x120] sm:$0xff]
        %v3730 = vld [vmem:[#allocation2 + $0x128] sm:$0xff]
        %v3731 = vpack.c.bf16 %v3700, %v3699
        %v3732 = vpack.c.bf16 %v3702, %v3701
        %v3733 = vpack.c.bf16 %v3704, %v3703
        %v3734 = vpack.c.bf16 %v3706, %v3705
        %v3735 = vpack.c.bf16 %v3708, %v3707
        %v3736 = vpack.c.bf16 %v3710, %v3709
        %v3737 = vpack.c.bf16 %v3712, %v3711
        %v3738 = vpack.c.bf16 %v3714, %v3713
        %v3739 = vpack.c.bf16 %v3716, %v3715
        %v3740 = vpack.c.bf16 %v3718, %v3717
        %v3741 = vpack.c.bf16 %v3720, %v3719
        %v3742 = vpack.c.bf16 %v3722, %v3721
        %v3743 = vpack.c.bf16 %v3724, %v3723
        %v3744 = vpack.c.bf16 %v3726, %v3725
        %v3745 = vpack.c.bf16 %v3728, %v3727
        %v3746 = vpack.c.bf16 %v3730, %v3729
        %s3747 = scalar_lea.vmem %s4, 14
        %v3748 = vld [vmem:[%s3747] sm:$0x3]
        %v3750 = vsel %vm527, %v3731, 0
        %v3753 = vsel %vm527, %v3732, 0
        %v3756 = vsel %vm527, %v3733, 0
        %v3759 = vsel %vm527, %v3734, 0
        %v3762 = vsel %vm527, %v3735, 0
        %v3765 = vsel %vm527, %v3736, 0
        %v3768 = vsel %vm527, %v3737, 0
        %v3771 = vsel %vm527, %v3738, 0
        %v3774 = vsel %vm527, %v3739, 0
        %v3777 = vsel %vm527, %v3740, 0
        %v3780 = vsel %vm527, %v3741, 0
        %v3783 = vsel %vm527, %v3742, 0
        %v3786 = vsel %vm527, %v3743, 0
        %v3789 = vsel %vm527, %v3744, 0
        %v3792 = vsel %vm527, %v3745, 0
        %v3795 = vsel %vm527, %v3746, 0
        %v3798 = vsel %vm1275, %v3748, 0
        %3800 = vmatprep.subr.bf16.mxu0 0
        %3801 = vmatpush1.bf16.msra.mxu0 0
        %3802 = vmatprep.subr.bf16.mxu0 0
        %3803 = vmatpush1.bf16.msra.mxu0 0
        %3804 = vmatprep.subr.bf16.mxu0 0
        %3805 = vmatpush1.bf16.msra.mxu0 0
        %3806 = vmatprep.subr.bf16.mxu0 0
        %3807 = vmatpush1.bf16.msra.mxu0 0
        %3808 = vmatprep.subr.bf16.mxu0 0
        %3809 = vmatpush1.bf16.msra.mxu0 0
        %3810 = vmatprep.subr.bf16.mxu0 0
        %3811 = vmatpush1.bf16.msra.mxu0 0
        %3812 = vmatprep.subr.bf16.mxu0 0
        %3813 = vmatpush1.bf16.msra.mxu0 0
        %3814 = vmatprep.subr.bf16.mxu0 0
        %3815 = vmatpush1.bf16.msra.mxu0 %v3798
        %3816 = vmatprep.subr.bf16.mxu0 0
        %3817 = vmatpush2.bf16.msra.mxu0 0
        %3818 = vmatprep.subr.bf16.mxu0 0
        %3819 = vmatpush2.bf16.msra.mxu0 0
        %3820 = vmatprep.subr.bf16.mxu0 0
        %3821 = vmatpush2.bf16.msra.mxu0 0
        %3822 = vmatprep.subr.bf16.mxu0 0
        %3823 = vmatpush2.bf16.msra.mxu0 0
        %3824 = vmatprep.subr.bf16.mxu0 0
        %3825 = vmatpush2.bf16.msra.mxu0 0
        %3826 = vmatprep.subr.bf16.mxu0 0
        %3827 = vmatpush2.bf16.msra.mxu0 0
        %3828 = vmatprep.subr.bf16.mxu0 0
        %3829 = vmatpush2.bf16.msra.mxu0 0
        %3830 = vmatprep.subr.bf16.mxu0 0
        %3831 = vmatpush2.bf16.msra.mxu0 0
        %3832 = vmatprep.mubr.bf16.mxu0 0
        %3833 = vmatmul.mubr.bf16.gmra.mxu0 %v3750
        %v3834 = vpop.f32.mrf.mxu0
        %v3835 = vadd.f32 0.0, %v3834
        %v3836 = vpop.f32.mrf.mxu0
        %v3837 = vpop.f32.mrf.mxu0
        %v3838 = vadd.f32 0.0, %v3837
        %v3839 = vpop.f32.mrf.mxu0
        %3840 = vmatprep.mubr.bf16.mxu0 0
        %3841 = vmatmul.mubr.bf16.gmra.mxu0 %v3753
        %v3842 = vpop.f32.mrf.mxu0
        %v3843 = vadd.f32 0.0, %v3842
        %v3844 = vpop.f32.mrf.mxu0
        %v3845 = vpop.f32.mrf.mxu0
        %v3846 = vadd.f32 0.0, %v3845
        %v3847 = vpop.f32.mrf.mxu0
        %3848 = vmatprep.mubr.bf16.mxu0 0
        %3849 = vmatmul.mubr.bf16.gmra.mxu0 %v3756
        %v3850 = vpop.f32.mrf.mxu0
        %v3851 = vadd.f32 0.0, %v3850
        %v3852 = vpop.f32.mrf.mxu0
        %v3853 = vpop.f32.mrf.mxu0
        %v3854 = vadd.f32 0.0, %v3853
        %v3855 = vpop.f32.mrf.mxu0
        %3856 = vmatprep.mubr.bf16.mxu0 0
        %3857 = vmatmul.mubr.bf16.gmra.mxu0 %v3759
        %v3858 = vpop.f32.mrf.mxu0
        %v3859 = vadd.f32 0.0, %v3858
        %v3860 = vpop.f32.mrf.mxu0
        %v3861 = vpop.f32.mrf.mxu0
        %v3862 = vadd.f32 0.0, %v3861
        %v3863 = vpop.f32.mrf.mxu0
        %3864 = vmatprep.mubr.bf16.mxu0 0
        %3865 = vmatmul.mubr.bf16.gmra.mxu0 %v3762
        %v3866 = vpop.f32.mrf.mxu0
        %v3867 = vadd.f32 0.0, %v3866
        %v3868 = vpop.f32.mrf.mxu0
        %v3869 = vpop.f32.mrf.mxu0
        %v3870 = vadd.f32 0.0, %v3869
        %v3871 = vpop.f32.mrf.mxu0
        %3872 = vmatprep.mubr.bf16.mxu0 0
        %3873 = vmatmul.mubr.bf16.gmra.mxu0 %v3765
        %v3874 = vpop.f32.mrf.mxu0
        %v3875 = vadd.f32 0.0, %v3874
        %v3876 = vpop.f32.mrf.mxu0
        %v3877 = vpop.f32.mrf.mxu0
        %v3878 = vadd.f32 0.0, %v3877
        %v3879 = vpop.f32.mrf.mxu0
        %3880 = vmatprep.mubr.bf16.mxu0 0
        %3881 = vmatmul.mubr.bf16.gmra.mxu0 %v3768
        %v3882 = vpop.f32.mrf.mxu0
        %v3883 = vadd.f32 0.0, %v3882
        %v3884 = vpop.f32.mrf.mxu0
        %v3885 = vpop.f32.mrf.mxu0
        %v3886 = vadd.f32 0.0, %v3885
        %v3887 = vpop.f32.mrf.mxu0
        %3888 = vmatprep.mubr.bf16.mxu0 0
        %3889 = vmatmul.mubr.bf16.gmra.mxu0 %v3771
        %v3890 = vpop.f32.mrf.mxu0
        %v3891 = vadd.f32 0.0, %v3890
        %v3892 = vpop.f32.mrf.mxu0
        %v3893 = vpop.f32.mrf.mxu0
        %v3894 = vadd.f32 0.0, %v3893
        %v3895 = vpop.f32.mrf.mxu0
        %3896 = vmatprep.mubr.bf16.mxu0 0
        %3897 = vmatmul.mubr.bf16.gmra.mxu0 %v3774
        %v3898 = vpop.f32.mrf.mxu0
        %v3899 = vadd.f32 0.0, %v3898
        %v3900 = vpop.f32.mrf.mxu0
        %v3901 = vpop.f32.mrf.mxu0
        %v3902 = vadd.f32 0.0, %v3901
        %v3903 = vpop.f32.mrf.mxu0
        %3904 = vmatprep.mubr.bf16.mxu0 0
        %3905 = vmatmul.mubr.bf16.gmra.mxu0 %v3777
        %v3906 = vpop.f32.mrf.mxu0
        %v3907 = vadd.f32 0.0, %v3906
        %v3908 = vpop.f32.mrf.mxu0
        %v3909 = vpop.f32.mrf.mxu0
        %v3910 = vadd.f32 0.0, %v3909
        %v3911 = vpop.f32.mrf.mxu0
        %3912 = vmatprep.mubr.bf16.mxu0 0
        %3913 = vmatmul.mubr.bf16.gmra.mxu0 %v3780
        %v3914 = vpop.f32.mrf.mxu0
        %v3915 = vadd.f32 0.0, %v3914
        %v3916 = vpop.f32.mrf.mxu0
        %v3917 = vpop.f32.mrf.mxu0
        %v3918 = vadd.f32 0.0, %v3917
        %v3919 = vpop.f32.mrf.mxu0
        %3920 = vmatprep.mubr.bf16.mxu0 0
        %3921 = vmatmul.mubr.bf16.gmra.mxu0 %v3783
        %v3922 = vpop.f32.mrf.mxu0
        %v3923 = vadd.f32 0.0, %v3922
        %v3924 = vpop.f32.mrf.mxu0
        %v3925 = vpop.f32.mrf.mxu0
        %v3926 = vadd.f32 0.0, %v3925
        %v3927 = vpop.f32.mrf.mxu0
        %3928 = vmatprep.mubr.bf16.mxu0 0
        %3929 = vmatmul.mubr.bf16.gmra.mxu0 %v3786
        %v3930 = vpop.f32.mrf.mxu0
        %v3931 = vadd.f32 0.0, %v3930
        %v3932 = vpop.f32.mrf.mxu0
        %v3933 = vpop.f32.mrf.mxu0
        %v3934 = vadd.f32 0.0, %v3933
        %v3935 = vpop.f32.mrf.mxu0
        %3936 = vmatprep.mubr.bf16.mxu0 0
        %3937 = vmatmul.mubr.bf16.gmra.mxu0 %v3789
        %v3938 = vpop.f32.mrf.mxu0
        %v3939 = vadd.f32 0.0, %v3938
        %v3940 = vpop.f32.mrf.mxu0
        %v3941 = vpop.f32.mrf.mxu0
        %v3942 = vadd.f32 0.0, %v3941
        %v3943 = vpop.f32.mrf.mxu0
        %3944 = vmatprep.mubr.bf16.mxu0 0
        %3945 = vmatmul.mubr.bf16.gmra.mxu0 %v3792
        %v3946 = vpop.f32.mrf.mxu0
        %v3947 = vadd.f32 0.0, %v3946
        %v3948 = vpop.f32.mrf.mxu0
        %v3949 = vpop.f32.mrf.mxu0
        %v3950 = vadd.f32 0.0, %v3949
        %v3951 = vpop.f32.mrf.mxu0
        %3952 = vmatprep.mubr.bf16.mxu0 0
        %3953 = vmatmul.mubr.bf16.gmra.mxu0 %v3795
        %v3954 = vpop.f32.mrf.mxu0
        %v3955 = vadd.f32 0.0, %v3954
        %v3956 = vpop.f32.mrf.mxu0
        %v3957 = vpop.f32.mrf.mxu0
        %v3958 = vadd.f32 0.0, %v3957
        %v3959 = vpop.f32.mrf.mxu0
        %3960 = vdwg.mxu0
        %v3961 = vadd.f32 %v3667, %v3835
        %v3962 = vadd.f32 %v3668, %v3838
        %v3963 = vadd.f32 %v3669, %v3843
        %v3964 = vadd.f32 %v3670, %v3846
        %v3965 = vadd.f32 %v3671, %v3851
        %v3966 = vadd.f32 %v3672, %v3854
        %v3967 = vadd.f32 %v3673, %v3859
        %v3968 = vadd.f32 %v3674, %v3862
        %v3969 = vadd.f32 %v3675, %v3867
        %v3970 = vadd.f32 %v3676, %v3870
        %v3971 = vadd.f32 %v3677, %v3875
        %v3972 = vadd.f32 %v3678, %v3878
        %v3973 = vadd.f32 %v3679, %v3883
        %v3974 = vadd.f32 %v3680, %v3886
        %v3975 = vadd.f32 %v3681, %v3891
        %v3976 = vadd.f32 %v3682, %v3894
        %v3977 = vadd.f32 %v3683, %v3899
        %v3978 = vadd.f32 %v3684, %v3902
        %v3979 = vadd.f32 %v3685, %v3907
        %v3980 = vadd.f32 %v3686, %v3910
        %v3981 = vadd.f32 %v3687, %v3915
        %v3982 = vadd.f32 %v3688, %v3918
        %v3983 = vadd.f32 %v3689, %v3923
        %v3984 = vadd.f32 %v3690, %v3926
        %v3985 = vadd.f32 %v3691, %v3931
        %v3986 = vadd.f32 %v3692, %v3934
        %v3987 = vadd.f32 %v3693, %v3939
        %v3988 = vadd.f32 %v3694, %v3942
        %v3989 = vadd.f32 %v3695, %v3947
        %v3990 = vadd.f32 %v3696, %v3950
        %v3991 = vadd.f32 %v3697, %v3955
        %v3992 = vadd.f32 %v3698, %v3958
        %v3993 = vld [vmem:[#allocation2 + $0x31] sm:$0xff]
        %v3994 = vld [vmem:[#allocation2 + $0x39] sm:$0xff]
        %v3995 = vld [vmem:[#allocation2 + $0x41] sm:$0xff]
        %v3996 = vld [vmem:[#allocation2 + $0x49] sm:$0xff]
        %v3997 = vld [vmem:[#allocation2 + $0x51] sm:$0xff]
        %v3998 = vld [vmem:[#allocation2 + $0x59] sm:$0xff]
        %v3999 = vld [vmem:[#allocation2 + $0x61] sm:$0xff]
        %v4000 = vld [vmem:[#allocation2 + $0x69] sm:$0xff]
        %v4001 = vld [vmem:[#allocation2 + $0x71] sm:$0xff]
        %v4002 = vld [vmem:[#allocation2 + $0x79] sm:$0xff]
        %v4003 = vld [vmem:[#allocation2 + $0x81] sm:$0xff]
        %v4004 = vld [vmem:[#allocation2 + $0x89] sm:$0xff]
        %v4005 = vld [vmem:[#allocation2 + $0x91] sm:$0xff]
        %v4006 = vld [vmem:[#allocation2 + $0x99] sm:$0xff]
        %v4007 = vld [vmem:[#allocation2 + $0xa1] sm:$0xff]
        %v4008 = vld [vmem:[#allocation2 + $0xa9] sm:$0xff]
        %v4009 = vld [vmem:[#allocation2 + $0xb1] sm:$0xff]
        %v4010 = vld [vmem:[#allocation2 + $0xb9] sm:$0xff]
        %v4011 = vld [vmem:[#allocation2 + $0xc1] sm:$0xff]
        %v4012 = vld [vmem:[#allocation2 + $0xc9] sm:$0xff]
        %v4013 = vld [vmem:[#allocation2 + $0xd1] sm:$0xff]
        %v4014 = vld [vmem:[#allocation2 + $0xd9] sm:$0xff]
        %v4015 = vld [vmem:[#allocation2 + $0xe1] sm:$0xff]
        %v4016 = vld [vmem:[#allocation2 + $0xe9] sm:$0xff]
        %v4017 = vld [vmem:[#allocation2 + $0xf1] sm:$0xff]
        %v4018 = vld [vmem:[#allocation2 + $0xf9] sm:$0xff]
        %v4019 = vld [vmem:[#allocation2 + $0x101] sm:$0xff]
        %v4020 = vld [vmem:[#allocation2 + $0x109] sm:$0xff]
        %v4021 = vld [vmem:[#allocation2 + $0x111] sm:$0xff]
        %v4022 = vld [vmem:[#allocation2 + $0x119] sm:$0xff]
        %v4023 = vld [vmem:[#allocation2 + $0x121] sm:$0xff]
        %v4024 = vld [vmem:[#allocation2 + $0x129] sm:$0xff]
        %v4025 = vpack.c.bf16 %v3994, %v3993
        %v4026 = vpack.c.bf16 %v3996, %v3995
        %v4027 = vpack.c.bf16 %v3998, %v3997
        %v4028 = vpack.c.bf16 %v4000, %v3999
        %v4029 = vpack.c.bf16 %v4002, %v4001
        %v4030 = vpack.c.bf16 %v4004, %v4003
        %v4031 = vpack.c.bf16 %v4006, %v4005
        %v4032 = vpack.c.bf16 %v4008, %v4007
        %v4033 = vpack.c.bf16 %v4010, %v4009
        %v4034 = vpack.c.bf16 %v4012, %v4011
        %v4035 = vpack.c.bf16 %v4014, %v4013
        %v4036 = vpack.c.bf16 %v4016, %v4015
        %v4037 = vpack.c.bf16 %v4018, %v4017
        %v4038 = vpack.c.bf16 %v4020, %v4019
        %v4039 = vpack.c.bf16 %v4022, %v4021
        %v4040 = vpack.c.bf16 %v4024, %v4023
        %v4041 = vmul.bf16 %v4025, %v2181
        %v4042 = vmul.bf16 %v4026, %v2182
        %v4043 = vmul.bf16 %v4027, %v2183
        %v4044 = vmul.bf16 %v4028, %v2184
        %v4045 = vmul.bf16 %v4029, %v2185
        %v4046 = vmul.bf16 %v4030, %v2186
        %v4047 = vmul.bf16 %v4031, %v2187
        %v4048 = vmul.bf16 %v4032, %v2188
        %v4049 = vmul.bf16 %v4033, %v2189
        %v4050 = vmul.bf16 %v4034, %v2190
        %v4051 = vmul.bf16 %v4035, %v2191
        %v4052 = vmul.bf16 %v4036, %v2192
        %v4053 = vmul.bf16 %v4037, %v2193
        %v4054 = vmul.bf16 %v4038, %v2194
        %v4055 = vmul.bf16 %v4039, %v2195
        %v4056 = vmul.bf16 %v4040, %v2196
        %s4057 = scalar_lea.vmem %s4, 16
        %v4058 = vld [vmem:[%s4057] sm:$0x3]
        %v4060 = vsel %vm527, %v4041, 0
        %v4063 = vsel %vm527, %v4042, 0
        %v4066 = vsel %vm527, %v4043, 0
        %v4069 = vsel %vm527, %v4044, 0
        %v4072 = vsel %vm527, %v4045, 0
        %v4075 = vsel %vm527, %v4046, 0
        %v4078 = vsel %vm527, %v4047, 0
        %v4081 = vsel %vm527, %v4048, 0
        %v4084 = vsel %vm527, %v4049, 0
        %v4087 = vsel %vm527, %v4050, 0
        %v4090 = vsel %vm527, %v4051, 0
        %v4093 = vsel %vm527, %v4052, 0
        %v4096 = vsel %vm527, %v4053, 0
        %v4099 = vsel %vm527, %v4054, 0
        %v4102 = vsel %vm527, %v4055, 0
        %v4105 = vsel %vm527, %v4056, 0
        %v4108 = vsel %vm1275, %v4058, 0
        %4110 = vmatprep.subr.bf16.mxu0 0
        %4111 = vmatpush1.bf16.msra.mxu0 0
        %4112 = vmatprep.subr.bf16.mxu0 0
        %4113 = vmatpush1.bf16.msra.mxu0 0
        %4114 = vmatprep.subr.bf16.mxu0 0
        %4115 = vmatpush1.bf16.msra.mxu0 0
        %4116 = vmatprep.subr.bf16.mxu0 0
        %4117 = vmatpush1.bf16.msra.mxu0 0
        %4118 = vmatprep.subr.bf16.mxu0 0
        %4119 = vmatpush1.bf16.msra.mxu0 0
        %4120 = vmatprep.subr.bf16.mxu0 0
        %4121 = vmatpush1.bf16.msra.mxu0 0
        %4122 = vmatprep.subr.bf16.mxu0 0
        %4123 = vmatpush1.bf16.msra.mxu0 0
        %4124 = vmatprep.subr.bf16.mxu0 0
        %4125 = vmatpush1.bf16.msra.mxu0 %v4108
        %4126 = vmatprep.subr.bf16.mxu0 0
        %4127 = vmatpush2.bf16.msra.mxu0 0
        %4128 = vmatprep.subr.bf16.mxu0 0
        %4129 = vmatpush2.bf16.msra.mxu0 0
        %4130 = vmatprep.subr.bf16.mxu0 0
        %4131 = vmatpush2.bf16.msra.mxu0 0
        %4132 = vmatprep.subr.bf16.mxu0 0
        %4133 = vmatpush2.bf16.msra.mxu0 0
        %4134 = vmatprep.subr.bf16.mxu0 0
        %4135 = vmatpush2.bf16.msra.mxu0 0
        %4136 = vmatprep.subr.bf16.mxu0 0
        %4137 = vmatpush2.bf16.msra.mxu0 0
        %4138 = vmatprep.subr.bf16.mxu0 0
        %4139 = vmatpush2.bf16.msra.mxu0 0
        %4140 = vmatprep.subr.bf16.mxu0 0
        %4141 = vmatpush2.bf16.msra.mxu0 0
        %4142 = vmatprep.mubr.bf16.mxu0 0
        %4143 = vmatmul.mubr.bf16.gmra.mxu0 %v4060
        %v4144 = vpop.f32.mrf.mxu0
        %v4145 = vadd.f32 0.0, %v4144
        %v4146 = vpop.f32.mrf.mxu0
        %v4147 = vpop.f32.mrf.mxu0
        %v4148 = vadd.f32 0.0, %v4147
        %v4149 = vpop.f32.mrf.mxu0
        %4150 = vmatprep.mubr.bf16.mxu0 0
        %4151 = vmatmul.mubr.bf16.gmra.mxu0 %v4063
        %v4152 = vpop.f32.mrf.mxu0
        %v4153 = vadd.f32 0.0, %v4152
        %v4154 = vpop.f32.mrf.mxu0
        %v4155 = vpop.f32.mrf.mxu0
        %v4156 = vadd.f32 0.0, %v4155
        %v4157 = vpop.f32.mrf.mxu0
        %4158 = vmatprep.mubr.bf16.mxu0 0
        %4159 = vmatmul.mubr.bf16.gmra.mxu0 %v4066
        %v4160 = vpop.f32.mrf.mxu0
        %v4161 = vadd.f32 0.0, %v4160
        %v4162 = vpop.f32.mrf.mxu0
        %v4163 = vpop.f32.mrf.mxu0
        %v4164 = vadd.f32 0.0, %v4163
        %v4165 = vpop.f32.mrf.mxu0
        %4166 = vmatprep.mubr.bf16.mxu0 0
        %4167 = vmatmul.mubr.bf16.gmra.mxu0 %v4069
        %v4168 = vpop.f32.mrf.mxu0
        %v4169 = vadd.f32 0.0, %v4168
        %v4170 = vpop.f32.mrf.mxu0
        %v4171 = vpop.f32.mrf.mxu0
        %v4172 = vadd.f32 0.0, %v4171
        %v4173 = vpop.f32.mrf.mxu0
        %4174 = vmatprep.mubr.bf16.mxu0 0
        %4175 = vmatmul.mubr.bf16.gmra.mxu0 %v4072
        %v4176 = vpop.f32.mrf.mxu0
        %v4177 = vadd.f32 0.0, %v4176
        %v4178 = vpop.f32.mrf.mxu0
        %v4179 = vpop.f32.mrf.mxu0
        %v4180 = vadd.f32 0.0, %v4179
        %v4181 = vpop.f32.mrf.mxu0
        %4182 = vmatprep.mubr.bf16.mxu0 0
        %4183 = vmatmul.mubr.bf16.gmra.mxu0 %v4075
        %v4184 = vpop.f32.mrf.mxu0
        %v4185 = vadd.f32 0.0, %v4184
        %v4186 = vpop.f32.mrf.mxu0
        %v4187 = vpop.f32.mrf.mxu0
        %v4188 = vadd.f32 0.0, %v4187
        %v4189 = vpop.f32.mrf.mxu0
        %4190 = vmatprep.mubr.bf16.mxu0 0
        %4191 = vmatmul.mubr.bf16.gmra.mxu0 %v4078
        %v4192 = vpop.f32.mrf.mxu0
        %v4193 = vadd.f32 0.0, %v4192
        %v4194 = vpop.f32.mrf.mxu0
        %v4195 = vpop.f32.mrf.mxu0
        %v4196 = vadd.f32 0.0, %v4195
        %v4197 = vpop.f32.mrf.mxu0
        %4198 = vmatprep.mubr.bf16.mxu0 0
        %4199 = vmatmul.mubr.bf16.gmra.mxu0 %v4081
        %v4200 = vpop.f32.mrf.mxu0
        %v4201 = vadd.f32 0.0, %v4200
        %v4202 = vpop.f32.mrf.mxu0
        %v4203 = vpop.f32.mrf.mxu0
        %v4204 = vadd.f32 0.0, %v4203
        %v4205 = vpop.f32.mrf.mxu0
        %4206 = vmatprep.mubr.bf16.mxu0 0
        %4207 = vmatmul.mubr.bf16.gmra.mxu0 %v4084
        %v4208 = vpop.f32.mrf.mxu0
        %v4209 = vadd.f32 0.0, %v4208
        %v4210 = vpop.f32.mrf.mxu0
        %v4211 = vpop.f32.mrf.mxu0
        %v4212 = vadd.f32 0.0, %v4211
        %v4213 = vpop.f32.mrf.mxu0
        %4214 = vmatprep.mubr.bf16.mxu0 0
        %4215 = vmatmul.mubr.bf16.gmra.mxu0 %v4087
        %v4216 = vpop.f32.mrf.mxu0
        %v4217 = vadd.f32 0.0, %v4216
        %v4218 = vpop.f32.mrf.mxu0
        %v4219 = vpop.f32.mrf.mxu0
        %v4220 = vadd.f32 0.0, %v4219
        %v4221 = vpop.f32.mrf.mxu0
        %4222 = vmatprep.mubr.bf16.mxu0 0
        %4223 = vmatmul.mubr.bf16.gmra.mxu0 %v4090
        %v4224 = vpop.f32.mrf.mxu0
        %v4225 = vadd.f32 0.0, %v4224
        %v4226 = vpop.f32.mrf.mxu0
        %v4227 = vpop.f32.mrf.mxu0
        %v4228 = vadd.f32 0.0, %v4227
        %v4229 = vpop.f32.mrf.mxu0
        %4230 = vmatprep.mubr.bf16.mxu0 0
        %4231 = vmatmul.mubr.bf16.gmra.mxu0 %v4093
        %v4232 = vpop.f32.mrf.mxu0
        %v4233 = vadd.f32 0.0, %v4232
        %v4234 = vpop.f32.mrf.mxu0
        %v4235 = vpop.f32.mrf.mxu0
        %v4236 = vadd.f32 0.0, %v4235
        %v4237 = vpop.f32.mrf.mxu0
        %4238 = vmatprep.mubr.bf16.mxu0 0
        %4239 = vmatmul.mubr.bf16.gmra.mxu0 %v4096
        %v4240 = vpop.f32.mrf.mxu0
        %v4241 = vadd.f32 0.0, %v4240
        %v4242 = vpop.f32.mrf.mxu0
        %v4243 = vpop.f32.mrf.mxu0
        %v4244 = vadd.f32 0.0, %v4243
        %v4245 = vpop.f32.mrf.mxu0
        %4246 = vmatprep.mubr.bf16.mxu0 0
        %4247 = vmatmul.mubr.bf16.gmra.mxu0 %v4099
        %v4248 = vpop.f32.mrf.mxu0
        %v4249 = vadd.f32 0.0, %v4248
        %v4250 = vpop.f32.mrf.mxu0
        %v4251 = vpop.f32.mrf.mxu0
        %v4252 = vadd.f32 0.0, %v4251
        %v4253 = vpop.f32.mrf.mxu0
        %4254 = vmatprep.mubr.bf16.mxu0 0
        %4255 = vmatmul.mubr.bf16.gmra.mxu0 %v4102
        %v4256 = vpop.f32.mrf.mxu0
        %v4257 = vadd.f32 0.0, %v4256
        %v4258 = vpop.f32.mrf.mxu0
        %v4259 = vpop.f32.mrf.mxu0
        %v4260 = vadd.f32 0.0, %v4259
        %v4261 = vpop.f32.mrf.mxu0
        %4262 = vmatprep.mubr.bf16.mxu0 0
        %4263 = vmatmul.mubr.bf16.gmra.mxu0 %v4105
        %v4264 = vpop.f32.mrf.mxu0
        %v4265 = vadd.f32 0.0, %v4264
        %v4266 = vpop.f32.mrf.mxu0
        %v4267 = vpop.f32.mrf.mxu0
        %v4268 = vadd.f32 0.0, %v4267
        %v4269 = vpop.f32.mrf.mxu0
        %4270 = vdwg.mxu0
        %v4271 = vadd.f32 %v3961, %v4145
        %v4272 = vadd.f32 %v3962, %v4148
        %v4273 = vadd.f32 %v3963, %v4153
        %v4274 = vadd.f32 %v3964, %v4156
        %v4275 = vadd.f32 %v3965, %v4161
        %v4276 = vadd.f32 %v3966, %v4164
        %v4277 = vadd.f32 %v3967, %v4169
        %v4278 = vadd.f32 %v3968, %v4172
        %v4279 = vadd.f32 %v3969, %v4177
        %v4280 = vadd.f32 %v3970, %v4180
        %v4281 = vadd.f32 %v3971, %v4185
        %v4282 = vadd.f32 %v3972, %v4188
        %v4283 = vadd.f32 %v3973, %v4193
        %v4284 = vadd.f32 %v3974, %v4196
        %v4285 = vadd.f32 %v3975, %v4201
        %v4286 = vadd.f32 %v3976, %v4204
        %v4287 = vadd.f32 %v3977, %v4209
        %v4288 = vadd.f32 %v3978, %v4212
        %v4289 = vadd.f32 %v3979, %v4217
        %v4290 = vadd.f32 %v3980, %v4220
        %v4291 = vadd.f32 %v3981, %v4225
        %v4292 = vadd.f32 %v3982, %v4228
        %v4293 = vadd.f32 %v3983, %v4233
        %v4294 = vadd.f32 %v3984, %v4236
        %v4295 = vadd.f32 %v3985, %v4241
        %v4296 = vadd.f32 %v3986, %v4244
        %v4297 = vadd.f32 %v3987, %v4249
        %v4298 = vadd.f32 %v3988, %v4252
        %v4299 = vadd.f32 %v3989, %v4257
        %v4300 = vadd.f32 %v3990, %v4260
        %v4301 = vadd.f32 %v3991, %v4265
        %v4302 = vadd.f32 %v3992, %v4268
        %v4303 = vld [vmem:[%s5] sm:$0x1]
        %v4305 = vlaneseq
        %v4306 = vshrl.u32 %v4305, 7
        %v4307 = vsub.s32 0, %v4306
        %v4308 = vrot.slane %v4303, %v4307
        %v4310 = vadd.f32 %v4271, %v4308
        %v4311 = vadd.f32 %v4272, %v4308
        %v4312 = vadd.f32 %v4273, %v4308
        %v4313 = vadd.f32 %v4274, %v4308
        %v4314 = vadd.f32 %v4275, %v4308
        %v4315 = vadd.f32 %v4276, %v4308
        %v4316 = vadd.f32 %v4277, %v4308
        %v4317 = vadd.f32 %v4278, %v4308
        %v4318 = vadd.f32 %v4279, %v4308
        %v4319 = vadd.f32 %v4280, %v4308
        %v4320 = vadd.f32 %v4281, %v4308
        %v4321 = vadd.f32 %v4282, %v4308
        %v4322 = vadd.f32 %v4283, %v4308
        %v4323 = vadd.f32 %v4284, %v4308
        %v4324 = vadd.f32 %v4285, %v4308
        %v4325 = vadd.f32 %v4286, %v4308
        %v4326 = vadd.f32 %v4287, %v4308
        %v4327 = vadd.f32 %v4288, %v4308
        %v4328 = vadd.f32 %v4289, %v4308
        %v4329 = vadd.f32 %v4290, %v4308
        %v4330 = vadd.f32 %v4291, %v4308
        %v4331 = vadd.f32 %v4292, %v4308
        %v4332 = vadd.f32 %v4293, %v4308
        %v4333 = vadd.f32 %v4294, %v4308
        %v4334 = vadd.f32 %v4295, %v4308
        %v4335 = vadd.f32 %v4296, %v4308
        %v4336 = vadd.f32 %v4297, %v4308
        %v4337 = vadd.f32 %v4298, %v4308
        %v4338 = vadd.f32 %v4299, %v4308
        %v4339 = vadd.f32 %v4300, %v4308
        %v4340 = vadd.f32 %v4301, %v4308
        %v4341 = vadd.f32 %v4302, %v4308
        %v4342 = vmax.f32 %v4310, 0.0
        %v4343 = vmax.f32 %v4311, 0.0
        %v4344 = vmax.f32 %v4312, 0.0
        %v4345 = vmax.f32 %v4313, 0.0
        %v4346 = vmax.f32 %v4314, 0.0
        %v4347 = vmax.f32 %v4315, 0.0
        %v4348 = vmax.f32 %v4316, 0.0
        %v4349 = vmax.f32 %v4317, 0.0
        %v4350 = vmax.f32 %v4318, 0.0
        %v4351 = vmax.f32 %v4319, 0.0
        %v4352 = vmax.f32 %v4320, 0.0
        %v4353 = vmax.f32 %v4321, 0.0
        %v4354 = vmax.f32 %v4322, 0.0
        %v4355 = vmax.f32 %v4323, 0.0
        %v4356 = vmax.f32 %v4324, 0.0
        %v4357 = vmax.f32 %v4325, 0.0
        %v4358 = vmax.f32 %v4326, 0.0
        %v4359 = vmax.f32 %v4327, 0.0
        %v4360 = vmax.f32 %v4328, 0.0
        %v4361 = vmax.f32 %v4329, 0.0
        %v4362 = vmax.f32 %v4330, 0.0
        %v4363 = vmax.f32 %v4331, 0.0
        %v4364 = vmax.f32 %v4332, 0.0
        %v4365 = vmax.f32 %v4333, 0.0
        %v4366 = vmax.f32 %v4334, 0.0
        %v4367 = vmax.f32 %v4335, 0.0
        %v4368 = vmax.f32 %v4336, 0.0
        %v4369 = vmax.f32 %v4337, 0.0
        %v4370 = vmax.f32 %v4338, 0.0
        %v4371 = vmax.f32 %v4339, 0.0
        %v4372 = vmax.f32 %v4340, 0.0
        %v4373 = vmax.f32 %v4341, 0.0
        %vm4374 = vcmask 261120
        %4375 = vst.msk [vmem:[#allocation3] sm:$0xff] %vm4374, 0.0
        %4376 = vst.msk [vmem:[#allocation3 + $0x8] sm:$0xff] %vm4374, 0.0
        %4377 = vst.msk [vmem:[#allocation3 + $0x10] sm:$0xff] %vm4374, 0.0
        %4378 = vst.msk [vmem:[#allocation3 + $0x18] sm:$0xff] %vm4374, 0.0
        %4379 = vst.msk [vmem:[#allocation3 + $0x20] sm:$0xff] %vm4374, 0.0
        %4380 = vst.msk [vmem:[#allocation3 + $0x28] sm:$0xff] %vm4374, 0.0
        %4381 = vst.msk [vmem:[#allocation3 + $0x30] sm:$0xff] %vm4374, 0.0
        %4382 = vst.msk [vmem:[#allocation3 + $0x38] sm:$0xff] %vm4374, 0.0
        %4383 = vst.msk [vmem:[#allocation3 + $0x40] sm:$0xff] %vm4374, 0.0
        %4384 = vst.msk [vmem:[#allocation3 + $0x48] sm:$0xff] %vm4374, 0.0
        %4385 = vst.msk [vmem:[#allocation3 + $0x50] sm:$0xff] %vm4374, 0.0
        %4386 = vst.msk [vmem:[#allocation3 + $0x58] sm:$0xff] %vm4374, 0.0
        %4387 = vst.msk [vmem:[#allocation3 + $0x60] sm:$0xff] %vm4374, 0.0
        %4388 = vst.msk [vmem:[#allocation3 + $0x68] sm:$0xff] %vm4374, 0.0
        %4389 = vst.msk [vmem:[#allocation3 + $0x70] sm:$0xff] %vm4374, 0.0
        %4390 = vst.msk [vmem:[#allocation3 + $0x78] sm:$0xff] %vm4374, 0.0
        %4391 = vst.msk [vmem:[#allocation3 + $0x80] sm:$0xff] %vm4374, 0.0
        %4392 = vst.msk [vmem:[#allocation3 + $0x88] sm:$0xff] %vm4374, 0.0
        %4393 = vst.msk [vmem:[#allocation3 + $0x90] sm:$0xff] %vm4374, 0.0
        %4394 = vst.msk [vmem:[#allocation3 + $0x98] sm:$0xff] %vm4374, 0.0
        %4395 = vst.msk [vmem:[#allocation3 + $0xa0] sm:$0xff] %vm4374, 0.0
        %4396 = vst.msk [vmem:[#allocation3 + $0xa8] sm:$0xff] %vm4374, 0.0
        %4397 = vst.msk [vmem:[#allocation3 + $0xb0] sm:$0xff] %vm4374, 0.0
        %4398 = vst.msk [vmem:[#allocation3 + $0xb8] sm:$0xff] %vm4374, 0.0
        %4399 = vst.msk [vmem:[#allocation3 + $0xc0] sm:$0xff] %vm4374, 0.0
        %4400 = vst.msk [vmem:[#allocation3 + $0xc8] sm:$0xff] %vm4374, 0.0
        %4401 = vst.msk [vmem:[#allocation3 + $0xd0] sm:$0xff] %vm4374, 0.0
        %4402 = vst.msk [vmem:[#allocation3 + $0xd8] sm:$0xff] %vm4374, 0.0
        %4403 = vst.msk [vmem:[#allocation3 + $0xe0] sm:$0xff] %vm4374, 0.0
        %4404 = vst.msk [vmem:[#allocation3 + $0xe8] sm:$0xff] %vm4374, 0.0
        %4405 = vst.msk [vmem:[#allocation3 + $0xf0] sm:$0xff] %vm4374, 0.0
        %4406 = vst.msk [vmem:[#allocation3 + $0xf8] sm:$0xff] %vm4374, 0.0
        %4407 = vst.msk [vmem:[#allocation3 + $0x100] sm:$0xff] %vm4374, 0.0
        %4408 = vst.msk [vmem:[#allocation3 + $0x108] sm:$0xff] %vm4374, 0.0
        %4409 = vst.msk [vmem:[#allocation3 + $0x110] sm:$0xff] %vm4374, 0.0
        %4410 = vst.msk [vmem:[#allocation3 + $0x118] sm:$0xff] %vm4374, 0.0
        %4411 = vst.msk [vmem:[#allocation3 + $0x120] sm:$0xff] %vm4374, 0.0
        %4412 = vst.msk [vmem:[#allocation3 + $0x128] sm:$0xff] %vm4374, 0.0
        %4413 = vst.msk [vmem:[#allocation3 + $0x130] sm:$0xff] %vm4374, 0.0
        %4414 = vst.msk [vmem:[#allocation3 + $0x138] sm:$0xff] %vm4374, 0.0
        %4415 = vst.msk [vmem:[#allocation3 + $0x20] sm:$0xff] %vm4374, %v4342
        %4416 = vst.msk [vmem:[#allocation3 + $0x28] sm:$0xff] %vm4374, %v4343
        %4417 = vst.msk [vmem:[#allocation3 + $0x30] sm:$0xff] %vm4374, %v4344
        %4418 = vst.msk [vmem:[#allocation3 + $0x38] sm:$0xff] %vm4374, %v4345
        %4419 = vst.msk [vmem:[#allocation3 + $0x40] sm:$0xff] %vm4374, %v4346
        %4420 = vst.msk [vmem:[#allocation3 + $0x48] sm:$0xff] %vm4374, %v4347
        %4421 = vst.msk [vmem:[#allocation3 + $0x50] sm:$0xff] %vm4374, %v4348
        %4422 = vst.msk [vmem:[#allocation3 + $0x58] sm:$0xff] %vm4374, %v4349
        %4423 = vst.msk [vmem:[#allocation3 + $0x60] sm:$0xff] %vm4374, %v4350
        %4424 = vst.msk [vmem:[#allocation3 + $0x68] sm:$0xff] %vm4374, %v4351
        %4425 = vst.msk [vmem:[#allocation3 + $0x70] sm:$0xff] %vm4374, %v4352
        %4426 = vst.msk [vmem:[#allocation3 + $0x78] sm:$0xff] %vm4374, %v4353
        %4427 = vst.msk [vmem:[#allocation3 + $0x80] sm:$0xff] %vm4374, %v4354
        %4428 = vst.msk [vmem:[#allocation3 + $0x88] sm:$0xff] %vm4374, %v4355
        %4429 = vst.msk [vmem:[#allocation3 + $0x90] sm:$0xff] %vm4374, %v4356
        %4430 = vst.msk [vmem:[#allocation3 + $0x98] sm:$0xff] %vm4374, %v4357
        %4431 = vst.msk [vmem:[#allocation3 + $0xa0] sm:$0xff] %vm4374, %v4358
        %4432 = vst.msk [vmem:[#allocation3 + $0xa8] sm:$0xff] %vm4374, %v4359
        %4433 = vst.msk [vmem:[#allocation3 + $0xb0] sm:$0xff] %vm4374, %v4360
        %4434 = vst.msk [vmem:[#allocation3 + $0xb8] sm:$0xff] %vm4374, %v4361
        %4435 = vst.msk [vmem:[#allocation3 + $0xc0] sm:$0xff] %vm4374, %v4362
        %4436 = vst.msk [vmem:[#allocation3 + $0xc8] sm:$0xff] %vm4374, %v4363
        %4437 = vst.msk [vmem:[#allocation3 + $0xd0] sm:$0xff] %vm4374, %v4364
        %4438 = vst.msk [vmem:[#allocation3 + $0xd8] sm:$0xff] %vm4374, %v4365
        %4439 = vst.msk [vmem:[#allocation3 + $0xe0] sm:$0xff] %vm4374, %v4366
        %4440 = vst.msk [vmem:[#allocation3 + $0xe8] sm:$0xff] %vm4374, %v4367
        %4441 = vst.msk [vmem:[#allocation3 + $0xf0] sm:$0xff] %vm4374, %v4368
        %4442 = vst.msk [vmem:[#allocation3 + $0xf8] sm:$0xff] %vm4374, %v4369
        %4443 = vst.msk [vmem:[#allocation3 + $0x100] sm:$0xff] %vm4374, %v4370
        %4444 = vst.msk [vmem:[#allocation3 + $0x108] sm:$0xff] %vm4374, %v4371
        %4445 = vst.msk [vmem:[#allocation3 + $0x110] sm:$0xff] %vm4374, %v4372
        %4446 = vst.msk [vmem:[#allocation3 + $0x118] sm:$0xff] %vm4374, %v4373
        %v4447 = vld [vmem:[#allocation3 + $0xf] sm:$0xff]
        %v4448 = vld [vmem:[#allocation3 + $0x17] sm:$0xff]
        %v4449 = vld [vmem:[#allocation3 + $0x1f] sm:$0xff]
        %v4450 = vld [vmem:[#allocation3 + $0x27] sm:$0xff]
        %v4451 = vld [vmem:[#allocation3 + $0x2f] sm:$0xff]
        %v4452 = vld [vmem:[#allocation3 + $0x37] sm:$0xff]
        %v4453 = vld [vmem:[#allocation3 + $0x3f] sm:$0xff]
        %v4454 = vld [vmem:[#allocation3 + $0x47] sm:$0xff]
        %v4455 = vld [vmem:[#allocation3 + $0x4f] sm:$0xff]
        %v4456 = vld [vmem:[#allocation3 + $0x57] sm:$0xff]
        %v4457 = vld [vmem:[#allocation3 + $0x5f] sm:$0xff]
        %v4458 = vld [vmem:[#allocation3 + $0x67] sm:$0xff]
        %v4459 = vld [vmem:[#allocation3 + $0x6f] sm:$0xff]
        %v4460 = vld [vmem:[#allocation3 + $0x77] sm:$0xff]
        %v4461 = vld [vmem:[#allocation3 + $0x7f] sm:$0xff]
        %v4462 = vld [vmem:[#allocation3 + $0x87] sm:$0xff]
        %v4463 = vld [vmem:[#allocation3 + $0x8f] sm:$0xff]
        %v4464 = vld [vmem:[#allocation3 + $0x97] sm:$0xff]
        %v4465 = vld [vmem:[#allocation3 + $0x9f] sm:$0xff]
        %v4466 = vld [vmem:[#allocation3 + $0xa7] sm:$0xff]
        %v4467 = vld [vmem:[#allocation3 + $0xaf] sm:$0xff]
        %v4468 = vld [vmem:[#allocation3 + $0xb7] sm:$0xff]
        %v4469 = vld [vmem:[#allocation3 + $0xbf] sm:$0xff]
        %v4470 = vld [vmem:[#allocation3 + $0xc7] sm:$0xff]
        %v4471 = vld [vmem:[#allocation3 + $0xcf] sm:$0xff]
        %v4472 = vld [vmem:[#allocation3 + $0xd7] sm:$0xff]
        %v4473 = vld [vmem:[#allocation3 + $0xdf] sm:$0xff]
        %v4474 = vld [vmem:[#allocation3 + $0xe7] sm:$0xff]
        %v4475 = vld [vmem:[#allocation3 + $0xef] sm:$0xff]
        %v4476 = vld [vmem:[#allocation3 + $0xf7] sm:$0xff]
        %v4477 = vld [vmem:[#allocation3 + $0xff] sm:$0xff]
        %v4478 = vld [vmem:[#allocation3 + $0x107] sm:$0xff]
        %v4479 = vpack.c.bf16 %v4448, %v4447
        %v4480 = vpack.c.bf16 %v4450, %v4449
        %v4481 = vpack.c.bf16 %v4452, %v4451
        %v4482 = vpack.c.bf16 %v4454, %v4453
        %v4483 = vpack.c.bf16 %v4456, %v4455
        %v4484 = vpack.c.bf16 %v4458, %v4457
        %v4485 = vpack.c.bf16 %v4460, %v4459
        %v4486 = vpack.c.bf16 %v4462, %v4461
        %v4487 = vpack.c.bf16 %v4464, %v4463
        %v4488 = vpack.c.bf16 %v4466, %v4465
        %v4489 = vpack.c.bf16 %v4468, %v4467
        %v4490 = vpack.c.bf16 %v4470, %v4469
        %v4491 = vpack.c.bf16 %v4472, %v4471
        %v4492 = vpack.c.bf16 %v4474, %v4473
        %v4493 = vpack.c.bf16 %v4476, %v4475
        %v4494 = vpack.c.bf16 %v4478, %v4477
        %v4495 = vld [vmem:[%s1] sm:$0xf]
        %v4496 = vld [vmem:[%s1 + $0x4] sm:$0xf]
        %v4497 = vld [vmem:[%s1 + $0x8] sm:$0xf]
        %v4498 = vld [vmem:[%s1 + $0xc] sm:$0xf]
        %v4499 = vld [vmem:[%s1 + $0x10] sm:$0xf]
        %v4500 = vld [vmem:[%s1 + $0x14] sm:$0xf]
        %v4501 = vld [vmem:[%s1 + $0x18] sm:$0xf]
        %v4502 = vld [vmem:[%s1 + $0x1c] sm:$0xf]
        %v4503 = vld [vmem:[%s1 + $0x20] sm:$0xf]
        %v4504 = vld [vmem:[%s1 + $0x24] sm:$0xf]
        %v4505 = vld [vmem:[%s1 + $0x28] sm:$0xf]
        %v4506 = vld [vmem:[%s1 + $0x2c] sm:$0xf]
        %v4507 = vld [vmem:[%s1 + $0x30] sm:$0xf]
        %v4508 = vld [vmem:[%s1 + $0x34] sm:$0xf]
        %v4509 = vld [vmem:[%s1 + $0x38] sm:$0xf]
        %v4510 = vld [vmem:[%s1 + $0x3c] sm:$0xf]
        %v4511 = vld [vmem:[%s1 + $0x40] sm:$0xf]
        %v4512 = vld [vmem:[%s1 + $0x44] sm:$0xf]
        %v4513 = vld [vmem:[%s1 + $0x48] sm:$0xf]
        %v4514 = vld [vmem:[%s1 + $0x4c] sm:$0xf]
        %v4515 = vld [vmem:[%s1 + $0x50] sm:$0xf]
        %v4516 = vld [vmem:[%s1 + $0x54] sm:$0xf]
        %v4517 = vld [vmem:[%s1 + $0x58] sm:$0xf]
        %v4518 = vld [vmem:[%s1 + $0x5c] sm:$0xf]
        %v4519 = vld [vmem:[%s1 + $0x60] sm:$0xf]
        %v4520 = vld [vmem:[%s1 + $0x64] sm:$0xf]
        %v4521 = vld [vmem:[%s1 + $0x68] sm:$0xf]
        %v4522 = vld [vmem:[%s1 + $0x6c] sm:$0xf]
        %v4523 = vld [vmem:[%s1 + $0x70] sm:$0xf]
        %v4524 = vld [vmem:[%s1 + $0x74] sm:$0xf]
        %v4525 = vld [vmem:[%s1 + $0x78] sm:$0xf]
        %v4526 = vld [vmem:[%s1 + $0x7c] sm:$0xf]
        %4528 = vset.pattern.permute.xlu0 0
        %4529 = vperm.xlu0 %4528, %v4495
        %v4530 = vpop.permute.xlu0 %4529
        %v4533 = vunpack.c.l.s4 839922192
        %v4534 = vunpack.c.0.s8 %v4533
        %v4535 = vlaneseq
        %v4536 = vshrl.u32 %v4535, 7
        %v4537 = vsub.s32 %v4534, %v4536
        %v4538 = vrot.slane %v4530, %v4537
        %4540 = vset.pattern.permute.xlu0 0
        %4541 = vperm.xlu0 %4540, %v4496
        %v4542 = vpop.permute.xlu0 %4541
        %v4545 = vunpack.c.l.s4 839922192
        %v4546 = vunpack.c.0.s8 %v4545
        %v4547 = vlaneseq
        %v4548 = vshrl.u32 %v4547, 7
        %v4549 = vsub.s32 %v4546, %v4548
        %v4550 = vrot.slane %v4542, %v4549
        %4552 = vset.pattern.permute.xlu0 0
        %4553 = vperm.xlu0 %4552, %v4497
        %v4554 = vpop.permute.xlu0 %4553
        %v4557 = vunpack.c.l.s4 839922192
        %v4558 = vunpack.c.0.s8 %v4557
        %v4559 = vlaneseq
        %v4560 = vshrl.u32 %v4559, 7
        %v4561 = vsub.s32 %v4558, %v4560
        %v4562 = vrot.slane %v4554, %v4561
        %4564 = vset.pattern.permute.xlu0 0
        %4565 = vperm.xlu0 %4564, %v4498
        %v4566 = vpop.permute.xlu0 %4565
        %v4569 = vunpack.c.l.s4 839922192
        %v4570 = vunpack.c.0.s8 %v4569
        %v4571 = vlaneseq
        %v4572 = vshrl.u32 %v4571, 7
        %v4573 = vsub.s32 %v4570, %v4572
        %v4574 = vrot.slane %v4566, %v4573
        %4576 = vset.pattern.permute.xlu0 0
        %4577 = vperm.xlu0 %4576, %v4499
        %v4578 = vpop.permute.xlu0 %4577
        %v4581 = vunpack.c.l.s4 839922192
        %v4582 = vunpack.c.0.s8 %v4581
        %v4583 = vlaneseq
        %v4584 = vshrl.u32 %v4583, 7
        %v4585 = vsub.s32 %v4582, %v4584
        %v4586 = vrot.slane %v4578, %v4585
        %4588 = vset.pattern.permute.xlu0 0
        %4589 = vperm.xlu0 %4588, %v4500
        %v4590 = vpop.permute.xlu0 %4589
        %v4593 = vunpack.c.l.s4 839922192
        %v4594 = vunpack.c.0.s8 %v4593
        %v4595 = vlaneseq
        %v4596 = vshrl.u32 %v4595, 7
        %v4597 = vsub.s32 %v4594, %v4596
        %v4598 = vrot.slane %v4590, %v4597
        %4600 = vset.pattern.permute.xlu0 0
        %4601 = vperm.xlu0 %4600, %v4501
        %v4602 = vpop.permute.xlu0 %4601
        %v4605 = vunpack.c.l.s4 839922192
        %v4606 = vunpack.c.0.s8 %v4605
        %v4607 = vlaneseq
        %v4608 = vshrl.u32 %v4607, 7
        %v4609 = vsub.s32 %v4606, %v4608
        %v4610 = vrot.slane %v4602, %v4609
        %4612 = vset.pattern.permute.xlu0 0
        %4613 = vperm.xlu0 %4612, %v4502
        %v4614 = vpop.permute.xlu0 %4613
        %v4617 = vunpack.c.l.s4 839922192
        %v4618 = vunpack.c.0.s8 %v4617
        %v4619 = vlaneseq
        %v4620 = vshrl.u32 %v4619, 7
        %v4621 = vsub.s32 %v4618, %v4620
        %v4622 = vrot.slane %v4614, %v4621
        %4624 = vset.pattern.permute.xlu0 0
        %4625 = vperm.xlu0 %4624, %v4503
        %v4626 = vpop.permute.xlu0 %4625
        %v4629 = vunpack.c.l.s4 839922192
        %v4630 = vunpack.c.0.s8 %v4629
        %v4631 = vlaneseq
        %v4632 = vshrl.u32 %v4631, 7
        %v4633 = vsub.s32 %v4630, %v4632
        %v4634 = vrot.slane %v4626, %v4633
        %4636 = vset.pattern.permute.xlu0 0
        %4637 = vperm.xlu0 %4636, %v4504
        %v4638 = vpop.permute.xlu0 %4637
        %v4641 = vunpack.c.l.s4 839922192
        %v4642 = vunpack.c.0.s8 %v4641
        %v4643 = vlaneseq
        %v4644 = vshrl.u32 %v4643, 7
        %v4645 = vsub.s32 %v4642, %v4644
        %v4646 = vrot.slane %v4638, %v4645
        %4648 = vset.pattern.permute.xlu0 0
        %4649 = vperm.xlu0 %4648, %v4505
        %v4650 = vpop.permute.xlu0 %4649
        %v4653 = vunpack.c.l.s4 839922192
        %v4654 = vunpack.c.0.s8 %v4653
        %v4655 = vlaneseq
        %v4656 = vshrl.u32 %v4655, 7
        %v4657 = vsub.s32 %v4654, %v4656
        %v4658 = vrot.slane %v4650, %v4657
        %4660 = vset.pattern.permute.xlu0 0
        %4661 = vperm.xlu0 %4660, %v4506
        %v4662 = vpop.permute.xlu0 %4661
        %v4665 = vunpack.c.l.s4 839922192
        %v4666 = vunpack.c.0.s8 %v4665
        %v4667 = vlaneseq
        %v4668 = vshrl.u32 %v4667, 7
        %v4669 = vsub.s32 %v4666, %v4668
        %v4670 = vrot.slane %v4662, %v4669
        %4672 = vset.pattern.permute.xlu0 0
        %4673 = vperm.xlu0 %4672, %v4507
        %v4674 = vpop.permute.xlu0 %4673
        %v4677 = vunpack.c.l.s4 839922192
        %v4678 = vunpack.c.0.s8 %v4677
        %v4679 = vlaneseq
        %v4680 = vshrl.u32 %v4679, 7
        %v4681 = vsub.s32 %v4678, %v4680
        %v4682 = vrot.slane %v4674, %v4681
        %4684 = vset.pattern.permute.xlu0 0
        %4685 = vperm.xlu0 %4684, %v4508
        %v4686 = vpop.permute.xlu0 %4685
        %v4689 = vunpack.c.l.s4 839922192
        %v4690 = vunpack.c.0.s8 %v4689
        %v4691 = vlaneseq
        %v4692 = vshrl.u32 %v4691, 7
        %v4693 = vsub.s32 %v4690, %v4692
        %v4694 = vrot.slane %v4686, %v4693
        %4696 = vset.pattern.permute.xlu0 0
        %4697 = vperm.xlu0 %4696, %v4509
        %v4698 = vpop.permute.xlu0 %4697
        %v4701 = vunpack.c.l.s4 839922192
        %v4702 = vunpack.c.0.s8 %v4701
        %v4703 = vlaneseq
        %v4704 = vshrl.u32 %v4703, 7
        %v4705 = vsub.s32 %v4702, %v4704
        %v4706 = vrot.slane %v4698, %v4705
        %4708 = vset.pattern.permute.xlu0 0
        %4709 = vperm.xlu0 %4708, %v4510
        %v4710 = vpop.permute.xlu0 %4709
        %v4713 = vunpack.c.l.s4 839922192
        %v4714 = vunpack.c.0.s8 %v4713
        %v4715 = vlaneseq
        %v4716 = vshrl.u32 %v4715, 7
        %v4717 = vsub.s32 %v4714, %v4716
        %v4718 = vrot.slane %v4710, %v4717
        %4720 = vset.pattern.permute.xlu0 0
        %4721 = vperm.xlu0 %4720, %v4511
        %v4722 = vpop.permute.xlu0 %4721
        %v4725 = vunpack.c.l.s4 839922192
        %v4726 = vunpack.c.0.s8 %v4725
        %v4727 = vlaneseq
        %v4728 = vshrl.u32 %v4727, 7
        %v4729 = vsub.s32 %v4726, %v4728
        %v4730 = vrot.slane %v4722, %v4729
        %4732 = vset.pattern.permute.xlu0 0
        %4733 = vperm.xlu0 %4732, %v4512
        %v4734 = vpop.permute.xlu0 %4733
        %v4737 = vunpack.c.l.s4 839922192
        %v4738 = vunpack.c.0.s8 %v4737
        %v4739 = vlaneseq
        %v4740 = vshrl.u32 %v4739, 7
        %v4741 = vsub.s32 %v4738, %v4740
        %v4742 = vrot.slane %v4734, %v4741
        %4744 = vset.pattern.permute.xlu0 0
        %4745 = vperm.xlu0 %4744, %v4513
        %v4746 = vpop.permute.xlu0 %4745
        %v4749 = vunpack.c.l.s4 839922192
        %v4750 = vunpack.c.0.s8 %v4749
        %v4751 = vlaneseq
        %v4752 = vshrl.u32 %v4751, 7
        %v4753 = vsub.s32 %v4750, %v4752
        %v4754 = vrot.slane %v4746, %v4753
        %4756 = vset.pattern.permute.xlu0 0
        %4757 = vperm.xlu0 %4756, %v4514
        %v4758 = vpop.permute.xlu0 %4757
        %v4761 = vunpack.c.l.s4 839922192
        %v4762 = vunpack.c.0.s8 %v4761
        %v4763 = vlaneseq
        %v4764 = vshrl.u32 %v4763, 7
        %v4765 = vsub.s32 %v4762, %v4764
        %v4766 = vrot.slane %v4758, %v4765
        %4768 = vset.pattern.permute.xlu0 0
        %4769 = vperm.xlu0 %4768, %v4515
        %v4770 = vpop.permute.xlu0 %4769
        %v4773 = vunpack.c.l.s4 839922192
        %v4774 = vunpack.c.0.s8 %v4773
        %v4775 = vlaneseq
        %v4776 = vshrl.u32 %v4775, 7
        %v4777 = vsub.s32 %v4774, %v4776
        %v4778 = vrot.slane %v4770, %v4777
        %4780 = vset.pattern.permute.xlu0 0
        %4781 = vperm.xlu0 %4780, %v4516
        %v4782 = vpop.permute.xlu0 %4781
        %v4785 = vunpack.c.l.s4 839922192
        %v4786 = vunpack.c.0.s8 %v4785
        %v4787 = vlaneseq
        %v4788 = vshrl.u32 %v4787, 7
        %v4789 = vsub.s32 %v4786, %v4788
        %v4790 = vrot.slane %v4782, %v4789
        %4792 = vset.pattern.permute.xlu0 0
        %4793 = vperm.xlu0 %4792, %v4517
        %v4794 = vpop.permute.xlu0 %4793
        %v4797 = vunpack.c.l.s4 839922192
        %v4798 = vunpack.c.0.s8 %v4797
        %v4799 = vlaneseq
        %v4800 = vshrl.u32 %v4799, 7
        %v4801 = vsub.s32 %v4798, %v4800
        %v4802 = vrot.slane %v4794, %v4801
        %4804 = vset.pattern.permute.xlu0 0
        %4805 = vperm.xlu0 %4804, %v4518
        %v4806 = vpop.permute.xlu0 %4805
        %v4809 = vunpack.c.l.s4 839922192
        %v4810 = vunpack.c.0.s8 %v4809
        %v4811 = vlaneseq
        %v4812 = vshrl.u32 %v4811, 7
        %v4813 = vsub.s32 %v4810, %v4812
        %v4814 = vrot.slane %v4806, %v4813
        %4816 = vset.pattern.permute.xlu0 0
        %4817 = vperm.xlu0 %4816, %v4519
        %v4818 = vpop.permute.xlu0 %4817
        %v4821 = vunpack.c.l.s4 839922192
        %v4822 = vunpack.c.0.s8 %v4821
        %v4823 = vlaneseq
        %v4824 = vshrl.u32 %v4823, 7
        %v4825 = vsub.s32 %v4822, %v4824
        %v4826 = vrot.slane %v4818, %v4825
        %4828 = vset.pattern.permute.xlu0 0
        %4829 = vperm.xlu0 %4828, %v4520
        %v4830 = vpop.permute.xlu0 %4829
        %v4833 = vunpack.c.l.s4 839922192
        %v4834 = vunpack.c.0.s8 %v4833
        %v4835 = vlaneseq
        %v4836 = vshrl.u32 %v4835, 7
        %v4837 = vsub.s32 %v4834, %v4836
        %v4838 = vrot.slane %v4830, %v4837
        %4840 = vset.pattern.permute.xlu0 0
        %4841 = vperm.xlu0 %4840, %v4521
        %v4842 = vpop.permute.xlu0 %4841
        %v4845 = vunpack.c.l.s4 839922192
        %v4846 = vunpack.c.0.s8 %v4845
        %v4847 = vlaneseq
        %v4848 = vshrl.u32 %v4847, 7
        %v4849 = vsub.s32 %v4846, %v4848
        %v4850 = vrot.slane %v4842, %v4849
        %4852 = vset.pattern.permute.xlu0 0
        %4853 = vperm.xlu0 %4852, %v4522
        %v4854 = vpop.permute.xlu0 %4853
        %v4857 = vunpack.c.l.s4 839922192
        %v4858 = vunpack.c.0.s8 %v4857
        %v4859 = vlaneseq
        %v4860 = vshrl.u32 %v4859, 7
        %v4861 = vsub.s32 %v4858, %v4860
        %v4862 = vrot.slane %v4854, %v4861
        %4864 = vset.pattern.permute.xlu0 0
        %4865 = vperm.xlu0 %4864, %v4523
        %v4866 = vpop.permute.xlu0 %4865
        %v4869 = vunpack.c.l.s4 839922192
        %v4870 = vunpack.c.0.s8 %v4869
        %v4871 = vlaneseq
        %v4872 = vshrl.u32 %v4871, 7
        %v4873 = vsub.s32 %v4870, %v4872
        %v4874 = vrot.slane %v4866, %v4873
        %4876 = vset.pattern.permute.xlu0 0
        %4877 = vperm.xlu0 %4876, %v4524
        %v4878 = vpop.permute.xlu0 %4877
        %v4881 = vunpack.c.l.s4 839922192
        %v4882 = vunpack.c.0.s8 %v4881
        %v4883 = vlaneseq
        %v4884 = vshrl.u32 %v4883, 7
        %v4885 = vsub.s32 %v4882, %v4884
        %v4886 = vrot.slane %v4878, %v4885
        %4888 = vset.pattern.permute.xlu0 0
        %4889 = vperm.xlu0 %4888, %v4525
        %v4890 = vpop.permute.xlu0 %4889
        %v4893 = vunpack.c.l.s4 839922192
        %v4894 = vunpack.c.0.s8 %v4893
        %v4895 = vlaneseq
        %v4896 = vshrl.u32 %v4895, 7
        %v4897 = vsub.s32 %v4894, %v4896
        %v4898 = vrot.slane %v4890, %v4897
        %4900 = vset.pattern.permute.xlu0 0
        %4901 = vperm.xlu0 %4900, %v4526
        %v4902 = vpop.permute.xlu0 %4901
        %v4905 = vunpack.c.l.s4 839922192
        %v4906 = vunpack.c.0.s8 %v4905
        %v4907 = vlaneseq
        %v4908 = vshrl.u32 %v4907, 7
        %v4909 = vsub.s32 %v4906, %v4908
        %v4910 = vrot.slane %v4902, %v4909
        %v4943 = vunpack.c.l.b16 %v4538
        %v4944 = vunpack.c.l.b16 %v4550
        %v4945 = vunpack.c.l.b16 %v4562
        %v4946 = vunpack.c.l.b16 %v4574
        %v4947 = vunpack.c.l.b16 %v4586
        %v4948 = vunpack.c.l.b16 %v4598
        %v4949 = vunpack.c.l.b16 %v4610
        %v4950 = vunpack.c.l.b16 %v4622
        %v4951 = vunpack.c.l.b16 %v4634
        %v4952 = vunpack.c.l.b16 %v4646
        %v4953 = vunpack.c.l.b16 %v4658
        %v4954 = vunpack.c.l.b16 %v4670
        %v4955 = vunpack.c.l.b16 %v4682
        %v4956 = vunpack.c.l.b16 %v4694
        %v4957 = vunpack.c.l.b16 %v4706
        %v4958 = vunpack.c.l.b16 %v4718
        %v4959 = vunpack.c.l.b16 %v4730
        %v4960 = vunpack.c.l.b16 %v4742
        %v4961 = vunpack.c.l.b16 %v4754
        %v4962 = vunpack.c.l.b16 %v4766
        %v4963 = vunpack.c.l.b16 %v4778
        %v4964 = vunpack.c.l.b16 %v4790
        %v4965 = vunpack.c.l.b16 %v4802
        %v4966 = vunpack.c.l.b16 %v4814
        %v4967 = vunpack.c.l.b16 %v4826
        %v4968 = vunpack.c.l.b16 %v4838
        %v4969 = vunpack.c.l.b16 %v4850
        %v4970 = vunpack.c.l.b16 %v4862
        %v4971 = vunpack.c.l.b16 %v4874
        %v4972 = vunpack.c.l.b16 %v4886
        %v4973 = vunpack.c.l.b16 %v4898
        %v4974 = vunpack.c.l.b16 %v4910
        %v4975 = vpack.c.b16 %v4944, %v4943
        %v4976 = vpack.c.b16 %v4946, %v4945
        %v4977 = vpack.c.b16 %v4948, %v4947
        %v4978 = vpack.c.b16 %v4950, %v4949
        %v4979 = vpack.c.b16 %v4952, %v4951
        %v4980 = vpack.c.b16 %v4954, %v4953
        %v4981 = vpack.c.b16 %v4956, %v4955
        %v4982 = vpack.c.b16 %v4958, %v4957
        %v4983 = vpack.c.b16 %v4960, %v4959
        %v4984 = vpack.c.b16 %v4962, %v4961
        %v4985 = vpack.c.b16 %v4964, %v4963
        %v4986 = vpack.c.b16 %v4966, %v4965
        %v4987 = vpack.c.b16 %v4968, %v4967
        %v4988 = vpack.c.b16 %v4970, %v4969
        %v4989 = vpack.c.b16 %v4972, %v4971
        %v4990 = vpack.c.b16 %v4974, %v4973
        %v5007 = vmul.bf16 %v4479, %v4975
        %v5008 = vmul.bf16 %v4480, %v4976
        %v5009 = vmul.bf16 %v4481, %v4977
        %v5010 = vmul.bf16 %v4482, %v4978
        %v5011 = vmul.bf16 %v4483, %v4979
        %v5012 = vmul.bf16 %v4484, %v4980
        %v5013 = vmul.bf16 %v4485, %v4981
        %v5014 = vmul.bf16 %v4486, %v4982
        %v5015 = vmul.bf16 %v4487, %v4983
        %v5016 = vmul.bf16 %v4488, %v4984
        %v5017 = vmul.bf16 %v4489, %v4985
        %v5018 = vmul.bf16 %v4490, %v4986
        %v5019 = vmul.bf16 %v4491, %v4987
        %v5020 = vmul.bf16 %v4492, %v4988
        %v5021 = vmul.bf16 %v4493, %v4989
        %v5022 = vmul.bf16 %v4494, %v4990
        %v5023 = vld [vmem:[%s6] sm:$0xf]
        %v5024 = vld [vmem:[%s6 + $0x4] sm:$0xf]
        %v5025 = vld [vmem:[%s6 + $0x8] sm:$0xf]
        %v5026 = vld [vmem:[%s6 + $0xc] sm:$0xf]
        %v5027 = vld [vmem:[#allocation3 + $0x10] sm:$0xff]
        %v5028 = vld [vmem:[#allocation3 + $0x18] sm:$0xff]
        %v5029 = vld [vmem:[#allocation3 + $0x20] sm:$0xff]
        %v5030 = vld [vmem:[#allocation3 + $0x28] sm:$0xff]
        %v5031 = vld [vmem:[#allocation3 + $0x30] sm:$0xff]
        %v5032 = vld [vmem:[#allocation3 + $0x38] sm:$0xff]
        %v5033 = vld [vmem:[#allocation3 + $0x40] sm:$0xff]
        %v5034 = vld [vmem:[#allocation3 + $0x48] sm:$0xff]
        %v5035 = vld [vmem:[#allocation3 + $0x50] sm:$0xff]
        %v5036 = vld [vmem:[#allocation3 + $0x58] sm:$0xff]
        %v5037 = vld [vmem:[#allocation3 + $0x60] sm:$0xff]
        %v5038 = vld [vmem:[#allocation3 + $0x68] sm:$0xff]
        %v5039 = vld [vmem:[#allocation3 + $0x70] sm:$0xff]
        %v5040 = vld [vmem:[#allocation3 + $0x78] sm:$0xff]
        %v5041 = vld [vmem:[#allocation3 + $0x80] sm:$0xff]
        %v5042 = vld [vmem:[#allocation3 + $0x88] sm:$0xff]
        %v5043 = vld [vmem:[#allocation3 + $0x90] sm:$0xff]
        %v5044 = vld [vmem:[#allocation3 + $0x98] sm:$0xff]
        %v5045 = vld [vmem:[#allocation3 + $0xa0] sm:$0xff]
        %v5046 = vld [vmem:[#allocation3 + $0xa8] sm:$0xff]
        %v5047 = vld [vmem:[#allocation3 + $0xb0] sm:$0xff]
        %v5048 = vld [vmem:[#allocation3 + $0xb8] sm:$0xff]
        %v5049 = vld [vmem:[#allocation3 + $0xc0] sm:$0xff]
        %v5050 = vld [vmem:[#allocation3 + $0xc8] sm:$0xff]
        %v5051 = vld [vmem:[#allocation3 + $0xd0] sm:$0xff]
        %v5052 = vld [vmem:[#allocation3 + $0xd8] sm:$0xff]
        %v5053 = vld [vmem:[#allocation3 + $0xe0] sm:$0xff]
        %v5054 = vld [vmem:[#allocation3 + $0xe8] sm:$0xff]
        %v5055 = vld [vmem:[#allocation3 + $0xf0] sm:$0xff]
        %v5056 = vld [vmem:[#allocation3 + $0xf8] sm:$0xff]
        %v5057 = vld [vmem:[#allocation3 + $0x100] sm:$0xff]
        %v5058 = vld [vmem:[#allocation3 + $0x108] sm:$0xff]
        %v5059 = vpack.c.bf16 %v5028, %v5027
        %v5060 = vpack.c.bf16 %v5030, %v5029
        %v5061 = vpack.c.bf16 %v5032, %v5031
        %v5062 = vpack.c.bf16 %v5034, %v5033
        %v5063 = vpack.c.bf16 %v5036, %v5035
        %v5064 = vpack.c.bf16 %v5038, %v5037
        %v5065 = vpack.c.bf16 %v5040, %v5039
        %v5066 = vpack.c.bf16 %v5042, %v5041
        %v5067 = vpack.c.bf16 %v5044, %v5043
        %v5068 = vpack.c.bf16 %v5046, %v5045
        %v5069 = vpack.c.bf16 %v5048, %v5047
        %v5070 = vpack.c.bf16 %v5050, %v5049
        %v5071 = vpack.c.bf16 %v5052, %v5051
        %v5072 = vpack.c.bf16 %v5054, %v5053
        %v5073 = vpack.c.bf16 %v5056, %v5055
        %v5074 = vpack.c.bf16 %v5058, %v5057
        %s5075 = scalar_lea.vmem %s6, 16
        %v5076 = vld [vmem:[%s5075] sm:$0xf]
        %v5077 = vld [vmem:[%s5075 + $0x4] sm:$0xf]
        %v5078 = vld [vmem:[%s5075 + $0x8] sm:$0xf]
        %v5079 = vld [vmem:[%s5075 + $0xc] sm:$0xf]
        %v5084 = vunpack.c.l.b16 %v5076
        %v5085 = vunpack.c.l.b16 %v5077
        %v5086 = vunpack.c.l.b16 %v5078
        %v5087 = vunpack.c.l.b16 %v5079
        %v5088 = vpack.c.b16 %v5085, %v5084
        %v5089 = vpack.c.b16 %v5087, %v5086
        %v5093 = vsel %vm4374, %v5059, 0
        %v5096 = vsel %vm4374, %v5060, 0
        %v5099 = vsel %vm4374, %v5061, 0
        %v5102 = vsel %vm4374, %v5062, 0
        %v5105 = vsel %vm4374, %v5063, 0
        %v5108 = vsel %vm4374, %v5064, 0
        %v5111 = vsel %vm4374, %v5065, 0
        %v5114 = vsel %vm4374, %v5066, 0
        %v5117 = vsel %vm4374, %v5067, 0
        %v5120 = vsel %vm4374, %v5068, 0
        %v5123 = vsel %vm4374, %v5069, 0
        %v5126 = vsel %vm4374, %v5070, 0
        %v5129 = vsel %vm4374, %v5071, 0
        %v5132 = vsel %vm4374, %v5072, 0
        %v5135 = vsel %vm4374, %v5073, 0
        %v5138 = vsel %vm4374, %v5074, 0
        %5140 = vmatprep.subr.bf16.mxu0 0
        %5141 = vmatpush1.bf16.msra.mxu0 0
        %5142 = vmatprep.subr.bf16.mxu0 0
        %5143 = vmatpush1.bf16.msra.mxu0 0
        %5144 = vmatprep.subr.bf16.mxu0 0
        %5145 = vmatpush1.bf16.msra.mxu0 0
        %5146 = vmatprep.subr.bf16.mxu0 0
        %5147 = vmatpush1.bf16.msra.mxu0 0
        %5148 = vmatprep.subr.bf16.mxu0 0
        %5149 = vmatpush1.bf16.msra.mxu0 0
        %5150 = vmatprep.subr.bf16.mxu0 0
        %5151 = vmatpush1.bf16.msra.mxu0 0
        %5152 = vmatprep.subr.bf16.mxu0 0
        %5153 = vmatpush1.bf16.msra.mxu0 %v5089
        %5154 = vmatprep.subr.bf16.mxu0 0
        %5155 = vmatpush1.bf16.msra.mxu0 %v5088
        %5156 = vmatprep.subr.bf16.mxu0 0
        %5157 = vmatpush2.bf16.msra.mxu0 0
        %5158 = vmatprep.subr.bf16.mxu0 0
        %5159 = vmatpush2.bf16.msra.mxu0 0
        %5160 = vmatprep.subr.bf16.mxu0 0
        %5161 = vmatpush2.bf16.msra.mxu0 0
        %5162 = vmatprep.subr.bf16.mxu0 0
        %5163 = vmatpush2.bf16.msra.mxu0 0
        %5164 = vmatprep.subr.bf16.mxu0 0
        %5165 = vmatpush2.bf16.msra.mxu0 0
        %5166 = vmatprep.subr.bf16.mxu0 0
        %5167 = vmatpush2.bf16.msra.mxu0 0
        %5168 = vmatprep.subr.bf16.mxu0 0
        %5169 = vmatpush2.bf16.msra.mxu0 0
        %5170 = vmatprep.subr.bf16.mxu0 0
        %5171 = vmatpush2.bf16.msra.mxu0 0
        %5172 = vmatprep.mubr.bf16.mxu0 0
        %5173 = vmatmul.mubr.bf16.gmra.mxu0 %v5093
        %v5174 = vpop.f32.mrf.mxu0
        %v5175 = vadd.f32 0.0, %v5174
        %v5176 = vpop.f32.mrf.mxu0
        %v5177 = vpop.f32.mrf.mxu0
        %v5178 = vadd.f32 0.0, %v5177
        %v5179 = vpop.f32.mrf.mxu0
        %5180 = vmatprep.mubr.bf16.mxu0 0
        %5181 = vmatmul.mubr.bf16.gmra.mxu0 %v5096
        %v5182 = vpop.f32.mrf.mxu0
        %v5183 = vadd.f32 0.0, %v5182
        %v5184 = vpop.f32.mrf.mxu0
        %v5185 = vpop.f32.mrf.mxu0
        %v5186 = vadd.f32 0.0, %v5185
        %v5187 = vpop.f32.mrf.mxu0
        %5188 = vmatprep.mubr.bf16.mxu0 0
        %5189 = vmatmul.mubr.bf16.gmra.mxu0 %v5099
        %v5190 = vpop.f32.mrf.mxu0
        %v5191 = vadd.f32 0.0, %v5190
        %v5192 = vpop.f32.mrf.mxu0
        %v5193 = vpop.f32.mrf.mxu0
        %v5194 = vadd.f32 0.0, %v5193
        %v5195 = vpop.f32.mrf.mxu0
        %5196 = vmatprep.mubr.bf16.mxu0 0
        %5197 = vmatmul.mubr.bf16.gmra.mxu0 %v5102
        %v5198 = vpop.f32.mrf.mxu0
        %v5199 = vadd.f32 0.0, %v5198
        %v5200 = vpop.f32.mrf.mxu0
        %v5201 = vpop.f32.mrf.mxu0
        %v5202 = vadd.f32 0.0, %v5201
        %v5203 = vpop.f32.mrf.mxu0
        %5204 = vmatprep.mubr.bf16.mxu0 0
        %5205 = vmatmul.mubr.bf16.gmra.mxu0 %v5105
        %v5206 = vpop.f32.mrf.mxu0
        %v5207 = vadd.f32 0.0, %v5206
        %v5208 = vpop.f32.mrf.mxu0
        %v5209 = vpop.f32.mrf.mxu0
        %v5210 = vadd.f32 0.0, %v5209
        %v5211 = vpop.f32.mrf.mxu0
        %5212 = vmatprep.mubr.bf16.mxu0 0
        %5213 = vmatmul.mubr.bf16.gmra.mxu0 %v5108
        %v5214 = vpop.f32.mrf.mxu0
        %v5215 = vadd.f32 0.0, %v5214
        %v5216 = vpop.f32.mrf.mxu0
        %v5217 = vpop.f32.mrf.mxu0
        %v5218 = vadd.f32 0.0, %v5217
        %v5219 = vpop.f32.mrf.mxu0
        %5220 = vmatprep.mubr.bf16.mxu0 0
        %5221 = vmatmul.mubr.bf16.gmra.mxu0 %v5111
        %v5222 = vpop.f32.mrf.mxu0
        %v5223 = vadd.f32 0.0, %v5222
        %v5224 = vpop.f32.mrf.mxu0
        %v5225 = vpop.f32.mrf.mxu0
        %v5226 = vadd.f32 0.0, %v5225
        %v5227 = vpop.f32.mrf.mxu0
        %5228 = vmatprep.mubr.bf16.mxu0 0
        %5229 = vmatmul.mubr.bf16.gmra.mxu0 %v5114
        %v5230 = vpop.f32.mrf.mxu0
        %v5231 = vadd.f32 0.0, %v5230
        %v5232 = vpop.f32.mrf.mxu0
        %v5233 = vpop.f32.mrf.mxu0
        %v5234 = vadd.f32 0.0, %v5233
        %v5235 = vpop.f32.mrf.mxu0
        %5236 = vmatprep.mubr.bf16.mxu0 0
        %5237 = vmatmul.mubr.bf16.gmra.mxu0 %v5117
        %v5238 = vpop.f32.mrf.mxu0
        %v5239 = vadd.f32 0.0, %v5238
        %v5240 = vpop.f32.mrf.mxu0
        %v5241 = vpop.f32.mrf.mxu0
        %v5242 = vadd.f32 0.0, %v5241
        %v5243 = vpop.f32.mrf.mxu0
        %5244 = vmatprep.mubr.bf16.mxu0 0
        %5245 = vmatmul.mubr.bf16.gmra.mxu0 %v5120
        %v5246 = vpop.f32.mrf.mxu0
        %v5247 = vadd.f32 0.0, %v5246
        %v5248 = vpop.f32.mrf.mxu0
        %v5249 = vpop.f32.mrf.mxu0
        %v5250 = vadd.f32 0.0, %v5249
        %v5251 = vpop.f32.mrf.mxu0
        %5252 = vmatprep.mubr.bf16.mxu0 0
        %5253 = vmatmul.mubr.bf16.gmra.mxu0 %v5123
        %v5254 = vpop.f32.mrf.mxu0
        %v5255 = vadd.f32 0.0, %v5254
        %v5256 = vpop.f32.mrf.mxu0
        %v5257 = vpop.f32.mrf.mxu0
        %v5258 = vadd.f32 0.0, %v5257
        %v5259 = vpop.f32.mrf.mxu0
        %5260 = vmatprep.mubr.bf16.mxu0 0
        %5261 = vmatmul.mubr.bf16.gmra.mxu0 %v5126
        %v5262 = vpop.f32.mrf.mxu0
        %v5263 = vadd.f32 0.0, %v5262
        %v5264 = vpop.f32.mrf.mxu0
        %v5265 = vpop.f32.mrf.mxu0
        %v5266 = vadd.f32 0.0, %v5265
        %v5267 = vpop.f32.mrf.mxu0
        %5268 = vmatprep.mubr.bf16.mxu0 0
        %5269 = vmatmul.mubr.bf16.gmra.mxu0 %v5129
        %v5270 = vpop.f32.mrf.mxu0
        %v5271 = vadd.f32 0.0, %v5270
        %v5272 = vpop.f32.mrf.mxu0
        %v5273 = vpop.f32.mrf.mxu0
        %v5274 = vadd.f32 0.0, %v5273
        %v5275 = vpop.f32.mrf.mxu0
        %5276 = vmatprep.mubr.bf16.mxu0 0
        %5277 = vmatmul.mubr.bf16.gmra.mxu0 %v5132
        %v5278 = vpop.f32.mrf.mxu0
        %v5279 = vadd.f32 0.0, %v5278
        %v5280 = vpop.f32.mrf.mxu0
        %v5281 = vpop.f32.mrf.mxu0
        %v5282 = vadd.f32 0.0, %v5281
        %v5283 = vpop.f32.mrf.mxu0
        %5284 = vmatprep.mubr.bf16.mxu0 0
        %5285 = vmatmul.mubr.bf16.gmra.mxu0 %v5135
        %v5286 = vpop.f32.mrf.mxu0
        %v5287 = vadd.f32 0.0, %v5286
        %v5288 = vpop.f32.mrf.mxu0
        %v5289 = vpop.f32.mrf.mxu0
        %v5290 = vadd.f32 0.0, %v5289
        %v5291 = vpop.f32.mrf.mxu0
        %5292 = vmatprep.mubr.bf16.mxu0 0
        %5293 = vmatmul.mubr.bf16.gmra.mxu0 %v5138
        %v5294 = vpop.f32.mrf.mxu0
        %v5295 = vadd.f32 0.0, %v5294
        %v5296 = vpop.f32.mrf.mxu0
        %v5297 = vpop.f32.mrf.mxu0
        %v5298 = vadd.f32 0.0, %v5297
        %v5299 = vpop.f32.mrf.mxu0
        %5300 = vdwg.mxu0
        %v5305 = vunpack.c.l.b16 %v5023
        %v5306 = vunpack.c.l.b16 %v5024
        %v5307 = vunpack.c.l.b16 %v5025
        %v5308 = vunpack.c.l.b16 %v5026
        %v5309 = vpack.c.b16 %v5306, %v5305
        %v5310 = vpack.c.b16 %v5308, %v5307
        %v5314 = vsel %vm4374, %v5007, 0
        %v5317 = vsel %vm4374, %v5008, 0
        %v5320 = vsel %vm4374, %v5009, 0
        %v5323 = vsel %vm4374, %v5010, 0
        %v5326 = vsel %vm4374, %v5011, 0
        %v5329 = vsel %vm4374, %v5012, 0
        %v5332 = vsel %vm4374, %v5013, 0
        %v5335 = vsel %vm4374, %v5014, 0
        %v5338 = vsel %vm4374, %v5015, 0
        %v5341 = vsel %vm4374, %v5016, 0
        %v5344 = vsel %vm4374, %v5017, 0
        %v5347 = vsel %vm4374, %v5018, 0
        %v5350 = vsel %vm4374, %v5019, 0
        %v5353 = vsel %vm4374, %v5020, 0
        %v5356 = vsel %vm4374, %v5021, 0
        %v5359 = vsel %vm4374, %v5022, 0
        %5361 = vmatprep.subr.bf16.mxu0 0
        %5362 = vmatpush1.bf16.msra.mxu0 0
        %5363 = vmatprep.subr.bf16.mxu0 0
        %5364 = vmatpush1.bf16.msra.mxu0 0
        %5365 = vmatprep.subr.bf16.mxu0 0
        %5366 = vmatpush1.bf16.msra.mxu0 0
        %5367 = vmatprep.subr.bf16.mxu0 0
        %5368 = vmatpush1.bf16.msra.mxu0 0
        %5369 = vmatprep.subr.bf16.mxu0 0
        %5370 = vmatpush1.bf16.msra.mxu0 0
        %5371 = vmatprep.subr.bf16.mxu0 0
        %5372 = vmatpush1.bf16.msra.mxu0 0
        %5373 = vmatprep.subr.bf16.mxu0 0
        %5374 = vmatpush1.bf16.msra.mxu0 %v5310
        %5375 = vmatprep.subr.bf16.mxu0 0
        %5376 = vmatpush1.bf16.msra.mxu0 %v5309
        %5377 = vmatprep.subr.bf16.mxu0 0
        %5378 = vmatpush2.bf16.msra.mxu0 0
        %5379 = vmatprep.subr.bf16.mxu0 0
        %5380 = vmatpush2.bf16.msra.mxu0 0
        %5381 = vmatprep.subr.bf16.mxu0 0
        %5382 = vmatpush2.bf16.msra.mxu0 0
        %5383 = vmatprep.subr.bf16.mxu0 0
        %5384 = vmatpush2.bf16.msra.mxu0 0
        %5385 = vmatprep.subr.bf16.mxu0 0
        %5386 = vmatpush2.bf16.msra.mxu0 0
        %5387 = vmatprep.subr.bf16.mxu0 0
        %5388 = vmatpush2.bf16.msra.mxu0 0
        %5389 = vmatprep.subr.bf16.mxu0 0
        %5390 = vmatpush2.bf16.msra.mxu0 0
        %5391 = vmatprep.subr.bf16.mxu0 0
        %5392 = vmatpush2.bf16.msra.mxu0 0
        %5393 = vmatprep.mubr.bf16.mxu0 0
        %5394 = vmatmul.mubr.bf16.gmra.mxu0 %v5314
        %v5395 = vpop.f32.mrf.mxu0
        %v5396 = vadd.f32 %v5175, %v5395
        %v5397 = vpop.f32.mrf.mxu0
        %v5398 = vpop.f32.mrf.mxu0
        %v5399 = vadd.f32 %v5178, %v5398
        %v5400 = vpop.f32.mrf.mxu0
        %5401 = vmatprep.mubr.bf16.mxu0 0
        %5402 = vmatmul.mubr.bf16.gmra.mxu0 %v5317
        %v5403 = vpop.f32.mrf.mxu0
        %v5404 = vadd.f32 %v5183, %v5403
        %v5405 = vpop.f32.mrf.mxu0
        %v5406 = vpop.f32.mrf.mxu0
        %v5407 = vadd.f32 %v5186, %v5406
        %v5408 = vpop.f32.mrf.mxu0
        %5409 = vmatprep.mubr.bf16.mxu0 0
        %5410 = vmatmul.mubr.bf16.gmra.mxu0 %v5320
        %v5411 = vpop.f32.mrf.mxu0
        %v5412 = vadd.f32 %v5191, %v5411
        %v5413 = vpop.f32.mrf.mxu0
        %v5414 = vpop.f32.mrf.mxu0
        %v5415 = vadd.f32 %v5194, %v5414
        %v5416 = vpop.f32.mrf.mxu0
        %5417 = vmatprep.mubr.bf16.mxu0 0
        %5418 = vmatmul.mubr.bf16.gmra.mxu0 %v5323
        %v5419 = vpop.f32.mrf.mxu0
        %v5420 = vadd.f32 %v5199, %v5419
        %v5421 = vpop.f32.mrf.mxu0
        %v5422 = vpop.f32.mrf.mxu0
        %v5423 = vadd.f32 %v5202, %v5422
        %v5424 = vpop.f32.mrf.mxu0
        %5425 = vmatprep.mubr.bf16.mxu0 0
        %5426 = vmatmul.mubr.bf16.gmra.mxu0 %v5326
        %v5427 = vpop.f32.mrf.mxu0
        %v5428 = vadd.f32 %v5207, %v5427
        %v5429 = vpop.f32.mrf.mxu0
        %v5430 = vpop.f32.mrf.mxu0
        %v5431 = vadd.f32 %v5210, %v5430
        %v5432 = vpop.f32.mrf.mxu0
        %5433 = vmatprep.mubr.bf16.mxu0 0
        %5434 = vmatmul.mubr.bf16.gmra.mxu0 %v5329
        %v5435 = vpop.f32.mrf.mxu0
        %v5436 = vadd.f32 %v5215, %v5435
        %v5437 = vpop.f32.mrf.mxu0
        %v5438 = vpop.f32.mrf.mxu0
        %v5439 = vadd.f32 %v5218, %v5438
        %v5440 = vpop.f32.mrf.mxu0
        %5441 = vmatprep.mubr.bf16.mxu0 0
        %5442 = vmatmul.mubr.bf16.gmra.mxu0 %v5332
        %v5443 = vpop.f32.mrf.mxu0
        %v5444 = vadd.f32 %v5223, %v5443
        %v5445 = vpop.f32.mrf.mxu0
        %v5446 = vpop.f32.mrf.mxu0
        %v5447 = vadd.f32 %v5226, %v5446
        %v5448 = vpop.f32.mrf.mxu0
        %5449 = vmatprep.mubr.bf16.mxu0 0
        %5450 = vmatmul.mubr.bf16.gmra.mxu0 %v5335
        %v5451 = vpop.f32.mrf.mxu0
        %v5452 = vadd.f32 %v5231, %v5451
        %v5453 = vpop.f32.mrf.mxu0
        %v5454 = vpop.f32.mrf.mxu0
        %v5455 = vadd.f32 %v5234, %v5454
        %v5456 = vpop.f32.mrf.mxu0
        %5457 = vmatprep.mubr.bf16.mxu0 0
        %5458 = vmatmul.mubr.bf16.gmra.mxu0 %v5338
        %v5459 = vpop.f32.mrf.mxu0
        %v5460 = vadd.f32 %v5239, %v5459
        %v5461 = vpop.f32.mrf.mxu0
        %v5462 = vpop.f32.mrf.mxu0
        %v5463 = vadd.f32 %v5242, %v5462
        %v5464 = vpop.f32.mrf.mxu0
        %5465 = vmatprep.mubr.bf16.mxu0 0
        %5466 = vmatmul.mubr.bf16.gmra.mxu0 %v5341
        %v5467 = vpop.f32.mrf.mxu0
        %v5468 = vadd.f32 %v5247, %v5467
        %v5469 = vpop.f32.mrf.mxu0
        %v5470 = vpop.f32.mrf.mxu0
        %v5471 = vadd.f32 %v5250, %v5470
        %v5472 = vpop.f32.mrf.mxu0
        %5473 = vmatprep.mubr.bf16.mxu0 0
        %5474 = vmatmul.mubr.bf16.gmra.mxu0 %v5344
        %v5475 = vpop.f32.mrf.mxu0
        %v5476 = vadd.f32 %v5255, %v5475
        %v5477 = vpop.f32.mrf.mxu0
        %v5478 = vpop.f32.mrf.mxu0
        %v5479 = vadd.f32 %v5258, %v5478
        %v5480 = vpop.f32.mrf.mxu0
        %5481 = vmatprep.mubr.bf16.mxu0 0
        %5482 = vmatmul.mubr.bf16.gmra.mxu0 %v5347
        %v5483 = vpop.f32.mrf.mxu0
        %v5484 = vadd.f32 %v5263, %v5483
        %v5485 = vpop.f32.mrf.mxu0
        %v5486 = vpop.f32.mrf.mxu0
        %v5487 = vadd.f32 %v5266, %v5486
        %v5488 = vpop.f32.mrf.mxu0
        %5489 = vmatprep.mubr.bf16.mxu0 0
        %5490 = vmatmul.mubr.bf16.gmra.mxu0 %v5350
        %v5491 = vpop.f32.mrf.mxu0
        %v5492 = vadd.f32 %v5271, %v5491
        %v5493 = vpop.f32.mrf.mxu0
        %v5494 = vpop.f32.mrf.mxu0
        %v5495 = vadd.f32 %v5274, %v5494
        %v5496 = vpop.f32.mrf.mxu0
        %5497 = vmatprep.mubr.bf16.mxu0 0
        %5498 = vmatmul.mubr.bf16.gmra.mxu0 %v5353
        %v5499 = vpop.f32.mrf.mxu0
        %v5500 = vadd.f32 %v5279, %v5499
        %v5501 = vpop.f32.mrf.mxu0
        %v5502 = vpop.f32.mrf.mxu0
        %v5503 = vadd.f32 %v5282, %v5502
        %v5504 = vpop.f32.mrf.mxu0
        %5505 = vmatprep.mubr.bf16.mxu0 0
        %5506 = vmatmul.mubr.bf16.gmra.mxu0 %v5356
        %v5507 = vpop.f32.mrf.mxu0
        %v5508 = vadd.f32 %v5287, %v5507
        %v5509 = vpop.f32.mrf.mxu0
        %v5510 = vpop.f32.mrf.mxu0
        %v5511 = vadd.f32 %v5290, %v5510
        %v5512 = vpop.f32.mrf.mxu0
        %5513 = vmatprep.mubr.bf16.mxu0 0
        %5514 = vmatmul.mubr.bf16.gmra.mxu0 %v5359
        %v5515 = vpop.f32.mrf.mxu0
        %v5516 = vadd.f32 %v5295, %v5515
        %v5517 = vpop.f32.mrf.mxu0
        %v5518 = vpop.f32.mrf.mxu0
        %v5519 = vadd.f32 %v5298, %v5518
        %v5520 = vpop.f32.mrf.mxu0
        %5521 = vdwg.mxu0
        %v5522 = vld [vmem:[#allocation3 + $0x11] sm:$0xff]
        %v5523 = vld [vmem:[#allocation3 + $0x19] sm:$0xff]
        %v5524 = vld [vmem:[#allocation3 + $0x21] sm:$0xff]
        %v5525 = vld [vmem:[#allocation3 + $0x29] sm:$0xff]
        %v5526 = vld [vmem:[#allocation3 + $0x31] sm:$0xff]
        %v5527 = vld [vmem:[#allocation3 + $0x39] sm:$0xff]
        %v5528 = vld [vmem:[#allocation3 + $0x41] sm:$0xff]
        %v5529 = vld [vmem:[#allocation3 + $0x49] sm:$0xff]
        %v5530 = vld [vmem:[#allocation3 + $0x51] sm:$0xff]
        %v5531 = vld [vmem:[#allocation3 + $0x59] sm:$0xff]
        %v5532 = vld [vmem:[#allocation3 + $0x61] sm:$0xff]
        %v5533 = vld [vmem:[#allocation3 + $0x69] sm:$0xff]
        %v5534 = vld [vmem:[#allocation3 + $0x71] sm:$0xff]
        %v5535 = vld [vmem:[#allocation3 + $0x79] sm:$0xff]
        %v5536 = vld [vmem:[#allocation3 + $0x81] sm:$0xff]
        %v5537 = vld [vmem:[#allocation3 + $0x89] sm:$0xff]
        %v5538 = vld [vmem:[#allocation3 + $0x91] sm:$0xff]
        %v5539 = vld [vmem:[#allocation3 + $0x99] sm:$0xff]
        %v5540 = vld [vmem:[#allocation3 + $0xa1] sm:$0xff]
        %v5541 = vld [vmem:[#allocation3 + $0xa9] sm:$0xff]
        %v5542 = vld [vmem:[#allocation3 + $0xb1] sm:$0xff]
        %v5543 = vld [vmem:[#allocation3 + $0xb9] sm:$0xff]
        %v5544 = vld [vmem:[#allocation3 + $0xc1] sm:$0xff]
        %v5545 = vld [vmem:[#allocation3 + $0xc9] sm:$0xff]
        %v5546 = vld [vmem:[#allocation3 + $0xd1] sm:$0xff]
        %v5547 = vld [vmem:[#allocation3 + $0xd9] sm:$0xff]
        %v5548 = vld [vmem:[#allocation3 + $0xe1] sm:$0xff]
        %v5549 = vld [vmem:[#allocation3 + $0xe9] sm:$0xff]
        %v5550 = vld [vmem:[#allocation3 + $0xf1] sm:$0xff]
        %v5551 = vld [vmem:[#allocation3 + $0xf9] sm:$0xff]
        %v5552 = vld [vmem:[#allocation3 + $0x101] sm:$0xff]
        %v5553 = vld [vmem:[#allocation3 + $0x109] sm:$0xff]
        %v5554 = vpack.c.bf16 %v5523, %v5522
        %v5555 = vpack.c.bf16 %v5525, %v5524
        %v5556 = vpack.c.bf16 %v5527, %v5526
        %v5557 = vpack.c.bf16 %v5529, %v5528
        %v5558 = vpack.c.bf16 %v5531, %v5530
        %v5559 = vpack.c.bf16 %v5533, %v5532
        %v5560 = vpack.c.bf16 %v5535, %v5534
        %v5561 = vpack.c.bf16 %v5537, %v5536
        %v5562 = vpack.c.bf16 %v5539, %v5538
        %v5563 = vpack.c.bf16 %v5541, %v5540
        %v5564 = vpack.c.bf16 %v5543, %v5542
        %v5565 = vpack.c.bf16 %v5545, %v5544
        %v5566 = vpack.c.bf16 %v5547, %v5546
        %v5567 = vpack.c.bf16 %v5549, %v5548
        %v5568 = vpack.c.bf16 %v5551, %v5550
        %v5569 = vpack.c.bf16 %v5553, %v5552
        %v5570 = vld [vmem:[%s1700] sm:$0xf]
        %v5571 = vld [vmem:[%s1700 + $0x4] sm:$0xf]
        %v5572 = vld [vmem:[%s1700 + $0x8] sm:$0xf]
        %v5573 = vld [vmem:[%s1700 + $0xc] sm:$0xf]
        %v5574 = vld [vmem:[%s1700 + $0x10] sm:$0xf]
        %v5575 = vld [vmem:[%s1700 + $0x14] sm:$0xf]
        %v5576 = vld [vmem:[%s1700 + $0x18] sm:$0xf]
        %v5577 = vld [vmem:[%s1700 + $0x1c] sm:$0xf]
        %v5578 = vld [vmem:[%s1700 + $0x20] sm:$0xf]
        %v5579 = vld [vmem:[%s1700 + $0x24] sm:$0xf]
        %v5580 = vld [vmem:[%s1700 + $0x28] sm:$0xf]
        %v5581 = vld [vmem:[%s1700 + $0x2c] sm:$0xf]
        %v5582 = vld [vmem:[%s1700 + $0x30] sm:$0xf]
        %v5583 = vld [vmem:[%s1700 + $0x34] sm:$0xf]
        %v5584 = vld [vmem:[%s1700 + $0x38] sm:$0xf]
        %v5585 = vld [vmem:[%s1700 + $0x3c] sm:$0xf]
        %v5586 = vld [vmem:[%s1700 + $0x40] sm:$0xf]
        %v5587 = vld [vmem:[%s1700 + $0x44] sm:$0xf]
        %v5588 = vld [vmem:[%s1700 + $0x48] sm:$0xf]
        %v5589 = vld [vmem:[%s1700 + $0x4c] sm:$0xf]
        %v5590 = vld [vmem:[%s1700 + $0x50] sm:$0xf]
        %v5591 = vld [vmem:[%s1700 + $0x54] sm:$0xf]
        %v5592 = vld [vmem:[%s1700 + $0x58] sm:$0xf]
        %v5593 = vld [vmem:[%s1700 + $0x5c] sm:$0xf]
        %v5594 = vld [vmem:[%s1700 + $0x60] sm:$0xf]
        %v5595 = vld [vmem:[%s1700 + $0x64] sm:$0xf]
        %v5596 = vld [vmem:[%s1700 + $0x68] sm:$0xf]
        %v5597 = vld [vmem:[%s1700 + $0x6c] sm:$0xf]
        %v5598 = vld [vmem:[%s1700 + $0x70] sm:$0xf]
        %v5599 = vld [vmem:[%s1700 + $0x74] sm:$0xf]
        %v5600 = vld [vmem:[%s1700 + $0x78] sm:$0xf]
        %v5601 = vld [vmem:[%s1700 + $0x7c] sm:$0xf]
        %5603 = vset.pattern.permute.xlu0 0
        %5604 = vperm.xlu0 %5603, %v5570
        %v5605 = vpop.permute.xlu0 %5604
        %v5608 = vunpack.c.l.s4 839922192
        %v5609 = vunpack.c.0.s8 %v5608
        %v5610 = vlaneseq
        %v5611 = vshrl.u32 %v5610, 7
        %v5612 = vsub.s32 %v5609, %v5611
        %v5613 = vrot.slane %v5605, %v5612
        %5615 = vset.pattern.permute.xlu0 0
        %5616 = vperm.xlu0 %5615, %v5571
        %v5617 = vpop.permute.xlu0 %5616
        %v5620 = vunpack.c.l.s4 839922192
        %v5621 = vunpack.c.0.s8 %v5620
        %v5622 = vlaneseq
        %v5623 = vshrl.u32 %v5622, 7
        %v5624 = vsub.s32 %v5621, %v5623
        %v5625 = vrot.slane %v5617, %v5624
        %5627 = vset.pattern.permute.xlu0 0
        %5628 = vperm.xlu0 %5627, %v5572
        %v5629 = vpop.permute.xlu0 %5628
        %v5632 = vunpack.c.l.s4 839922192
        %v5633 = vunpack.c.0.s8 %v5632
        %v5634 = vlaneseq
        %v5635 = vshrl.u32 %v5634, 7
        %v5636 = vsub.s32 %v5633, %v5635
        %v5637 = vrot.slane %v5629, %v5636
        %5639 = vset.pattern.permute.xlu0 0
        %5640 = vperm.xlu0 %5639, %v5573
        %v5641 = vpop.permute.xlu0 %5640
        %v5644 = vunpack.c.l.s4 839922192
        %v5645 = vunpack.c.0.s8 %v5644
        %v5646 = vlaneseq
        %v5647 = vshrl.u32 %v5646, 7
        %v5648 = vsub.s32 %v5645, %v5647
        %v5649 = vrot.slane %v5641, %v5648
        %5651 = vset.pattern.permute.xlu0 0
        %5652 = vperm.xlu0 %5651, %v5574
        %v5653 = vpop.permute.xlu0 %5652
        %v5656 = vunpack.c.l.s4 839922192
        %v5657 = vunpack.c.0.s8 %v5656
        %v5658 = vlaneseq
        %v5659 = vshrl.u32 %v5658, 7
        %v5660 = vsub.s32 %v5657, %v5659
        %v5661 = vrot.slane %v5653, %v5660
        %5663 = vset.pattern.permute.xlu0 0
        %5664 = vperm.xlu0 %5663, %v5575
        %v5665 = vpop.permute.xlu0 %5664
        %v5668 = vunpack.c.l.s4 839922192
        %v5669 = vunpack.c.0.s8 %v5668
        %v5670 = vlaneseq
        %v5671 = vshrl.u32 %v5670, 7
        %v5672 = vsub.s32 %v5669, %v5671
        %v5673 = vrot.slane %v5665, %v5672
        %5675 = vset.pattern.permute.xlu0 0
        %5676 = vperm.xlu0 %5675, %v5576
        %v5677 = vpop.permute.xlu0 %5676
        %v5680 = vunpack.c.l.s4 839922192
        %v5681 = vunpack.c.0.s8 %v5680
        %v5682 = vlaneseq
        %v5683 = vshrl.u32 %v5682, 7
        %v5684 = vsub.s32 %v5681, %v5683
        %v5685 = vrot.slane %v5677, %v5684
        %5687 = vset.pattern.permute.xlu0 0
        %5688 = vperm.xlu0 %5687, %v5577
        %v5689 = vpop.permute.xlu0 %5688
        %v5692 = vunpack.c.l.s4 839922192
        %v5693 = vunpack.c.0.s8 %v5692
        %v5694 = vlaneseq
        %v5695 = vshrl.u32 %v5694, 7
        %v5696 = vsub.s32 %v5693, %v5695
        %v5697 = vrot.slane %v5689, %v5696
        %5699 = vset.pattern.permute.xlu0 0
        %5700 = vperm.xlu0 %5699, %v5578
        %v5701 = vpop.permute.xlu0 %5700
        %v5704 = vunpack.c.l.s4 839922192
        %v5705 = vunpack.c.0.s8 %v5704
        %v5706 = vlaneseq
        %v5707 = vshrl.u32 %v5706, 7
        %v5708 = vsub.s32 %v5705, %v5707
        %v5709 = vrot.slane %v5701, %v5708
        %5711 = vset.pattern.permute.xlu0 0
        %5712 = vperm.xlu0 %5711, %v5579
        %v5713 = vpop.permute.xlu0 %5712
        %v5716 = vunpack.c.l.s4 839922192
        %v5717 = vunpack.c.0.s8 %v5716
        %v5718 = vlaneseq
        %v5719 = vshrl.u32 %v5718, 7
        %v5720 = vsub.s32 %v5717, %v5719
        %v5721 = vrot.slane %v5713, %v5720
        %5723 = vset.pattern.permute.xlu0 0
        %5724 = vperm.xlu0 %5723, %v5580
        %v5725 = vpop.permute.xlu0 %5724
        %v5728 = vunpack.c.l.s4 839922192
        %v5729 = vunpack.c.0.s8 %v5728
        %v5730 = vlaneseq
        %v5731 = vshrl.u32 %v5730, 7
        %v5732 = vsub.s32 %v5729, %v5731
        %v5733 = vrot.slane %v5725, %v5732
        %5735 = vset.pattern.permute.xlu0 0
        %5736 = vperm.xlu0 %5735, %v5581
        %v5737 = vpop.permute.xlu0 %5736
        %v5740 = vunpack.c.l.s4 839922192
        %v5741 = vunpack.c.0.s8 %v5740
        %v5742 = vlaneseq
        %v5743 = vshrl.u32 %v5742, 7
        %v5744 = vsub.s32 %v5741, %v5743
        %v5745 = vrot.slane %v5737, %v5744
        %5747 = vset.pattern.permute.xlu0 0
        %5748 = vperm.xlu0 %5747, %v5582
        %v5749 = vpop.permute.xlu0 %5748
        %v5752 = vunpack.c.l.s4 839922192
        %v5753 = vunpack.c.0.s8 %v5752
        %v5754 = vlaneseq
        %v5755 = vshrl.u32 %v5754, 7
        %v5756 = vsub.s32 %v5753, %v5755
        %v5757 = vrot.slane %v5749, %v5756
        %5759 = vset.pattern.permute.xlu0 0
        %5760 = vperm.xlu0 %5759, %v5583
        %v5761 = vpop.permute.xlu0 %5760
        %v5764 = vunpack.c.l.s4 839922192
        %v5765 = vunpack.c.0.s8 %v5764
        %v5766 = vlaneseq
        %v5767 = vshrl.u32 %v5766, 7
        %v5768 = vsub.s32 %v5765, %v5767
        %v5769 = vrot.slane %v5761, %v5768
        %5771 = vset.pattern.permute.xlu0 0
        %5772 = vperm.xlu0 %5771, %v5584
        %v5773 = vpop.permute.xlu0 %5772
        %v5776 = vunpack.c.l.s4 839922192
        %v5777 = vunpack.c.0.s8 %v5776
        %v5778 = vlaneseq
        %v5779 = vshrl.u32 %v5778, 7
        %v5780 = vsub.s32 %v5777, %v5779
        %v5781 = vrot.slane %v5773, %v5780
        %5783 = vset.pattern.permute.xlu0 0
        %5784 = vperm.xlu0 %5783, %v5585
        %v5785 = vpop.permute.xlu0 %5784
        %v5788 = vunpack.c.l.s4 839922192
        %v5789 = vunpack.c.0.s8 %v5788
        %v5790 = vlaneseq
        %v5791 = vshrl.u32 %v5790, 7
        %v5792 = vsub.s32 %v5789, %v5791
        %v5793 = vrot.slane %v5785, %v5792
        %5795 = vset.pattern.permute.xlu0 0
        %5796 = vperm.xlu0 %5795, %v5586
        %v5797 = vpop.permute.xlu0 %5796
        %v5800 = vunpack.c.l.s4 839922192
        %v5801 = vunpack.c.0.s8 %v5800
        %v5802 = vlaneseq
        %v5803 = vshrl.u32 %v5802, 7
        %v5804 = vsub.s32 %v5801, %v5803
        %v5805 = vrot.slane %v5797, %v5804
        %5807 = vset.pattern.permute.xlu0 0
        %5808 = vperm.xlu0 %5807, %v5587
        %v5809 = vpop.permute.xlu0 %5808
        %v5812 = vunpack.c.l.s4 839922192
        %v5813 = vunpack.c.0.s8 %v5812
        %v5814 = vlaneseq
        %v5815 = vshrl.u32 %v5814, 7
        %v5816 = vsub.s32 %v5813, %v5815
        %v5817 = vrot.slane %v5809, %v5816
        %5819 = vset.pattern.permute.xlu0 0
        %5820 = vperm.xlu0 %5819, %v5588
        %v5821 = vpop.permute.xlu0 %5820
        %v5824 = vunpack.c.l.s4 839922192
        %v5825 = vunpack.c.0.s8 %v5824
        %v5826 = vlaneseq
        %v5827 = vshrl.u32 %v5826, 7
        %v5828 = vsub.s32 %v5825, %v5827
        %v5829 = vrot.slane %v5821, %v5828
        %5831 = vset.pattern.permute.xlu0 0
        %5832 = vperm.xlu0 %5831, %v5589
        %v5833 = vpop.permute.xlu0 %5832
        %v5836 = vunpack.c.l.s4 839922192
        %v5837 = vunpack.c.0.s8 %v5836
        %v5838 = vlaneseq
        %v5839 = vshrl.u32 %v5838, 7
        %v5840 = vsub.s32 %v5837, %v5839
        %v5841 = vrot.slane %v5833, %v5840
        %5843 = vset.pattern.permute.xlu0 0
        %5844 = vperm.xlu0 %5843, %v5590
        %v5845 = vpop.permute.xlu0 %5844
        %v5848 = vunpack.c.l.s4 839922192
        %v5849 = vunpack.c.0.s8 %v5848
        %v5850 = vlaneseq
        %v5851 = vshrl.u32 %v5850, 7
        %v5852 = vsub.s32 %v5849, %v5851
        %v5853 = vrot.slane %v5845, %v5852
        %5855 = vset.pattern.permute.xlu0 0
        %5856 = vperm.xlu0 %5855, %v5591
        %v5857 = vpop.permute.xlu0 %5856
        %v5860 = vunpack.c.l.s4 839922192
        %v5861 = vunpack.c.0.s8 %v5860
        %v5862 = vlaneseq
        %v5863 = vshrl.u32 %v5862, 7
        %v5864 = vsub.s32 %v5861, %v5863
        %v5865 = vrot.slane %v5857, %v5864
        %5867 = vset.pattern.permute.xlu0 0
        %5868 = vperm.xlu0 %5867, %v5592
        %v5869 = vpop.permute.xlu0 %5868
        %v5872 = vunpack.c.l.s4 839922192
        %v5873 = vunpack.c.0.s8 %v5872
        %v5874 = vlaneseq
        %v5875 = vshrl.u32 %v5874, 7
        %v5876 = vsub.s32 %v5873, %v5875
        %v5877 = vrot.slane %v5869, %v5876
        %5879 = vset.pattern.permute.xlu0 0
        %5880 = vperm.xlu0 %5879, %v5593
        %v5881 = vpop.permute.xlu0 %5880
        %v5884 = vunpack.c.l.s4 839922192
        %v5885 = vunpack.c.0.s8 %v5884
        %v5886 = vlaneseq
        %v5887 = vshrl.u32 %v5886, 7
        %v5888 = vsub.s32 %v5885, %v5887
        %v5889 = vrot.slane %v5881, %v5888
        %5891 = vset.pattern.permute.xlu0 0
        %5892 = vperm.xlu0 %5891, %v5594
        %v5893 = vpop.permute.xlu0 %5892
        %v5896 = vunpack.c.l.s4 839922192
        %v5897 = vunpack.c.0.s8 %v5896
        %v5898 = vlaneseq
        %v5899 = vshrl.u32 %v5898, 7
        %v5900 = vsub.s32 %v5897, %v5899
        %v5901 = vrot.slane %v5893, %v5900
        %5903 = vset.pattern.permute.xlu0 0
        %5904 = vperm.xlu0 %5903, %v5595
        %v5905 = vpop.permute.xlu0 %5904
        %v5908 = vunpack.c.l.s4 839922192
        %v5909 = vunpack.c.0.s8 %v5908
        %v5910 = vlaneseq
        %v5911 = vshrl.u32 %v5910, 7
        %v5912 = vsub.s32 %v5909, %v5911
        %v5913 = vrot.slane %v5905, %v5912
        %5915 = vset.pattern.permute.xlu0 0
        %5916 = vperm.xlu0 %5915, %v5596
        %v5917 = vpop.permute.xlu0 %5916
        %v5920 = vunpack.c.l.s4 839922192
        %v5921 = vunpack.c.0.s8 %v5920
        %v5922 = vlaneseq
        %v5923 = vshrl.u32 %v5922, 7
        %v5924 = vsub.s32 %v5921, %v5923
        %v5925 = vrot.slane %v5917, %v5924
        %5927 = vset.pattern.permute.xlu0 0
        %5928 = vperm.xlu0 %5927, %v5597
        %v5929 = vpop.permute.xlu0 %5928
        %v5932 = vunpack.c.l.s4 839922192
        %v5933 = vunpack.c.0.s8 %v5932
        %v5934 = vlaneseq
        %v5935 = vshrl.u32 %v5934, 7
        %v5936 = vsub.s32 %v5933, %v5935
        %v5937 = vrot.slane %v5929, %v5936
        %5939 = vset.pattern.permute.xlu0 0
        %5940 = vperm.xlu0 %5939, %v5598
        %v5941 = vpop.permute.xlu0 %5940
        %v5944 = vunpack.c.l.s4 839922192
        %v5945 = vunpack.c.0.s8 %v5944
        %v5946 = vlaneseq
        %v5947 = vshrl.u32 %v5946, 7
        %v5948 = vsub.s32 %v5945, %v5947
        %v5949 = vrot.slane %v5941, %v5948
        %5951 = vset.pattern.permute.xlu0 0
        %5952 = vperm.xlu0 %5951, %v5599
        %v5953 = vpop.permute.xlu0 %5952
        %v5956 = vunpack.c.l.s4 839922192
        %v5957 = vunpack.c.0.s8 %v5956
        %v5958 = vlaneseq
        %v5959 = vshrl.u32 %v5958, 7
        %v5960 = vsub.s32 %v5957, %v5959
        %v5961 = vrot.slane %v5953, %v5960
        %5963 = vset.pattern.permute.xlu0 0
        %5964 = vperm.xlu0 %5963, %v5600
        %v5965 = vpop.permute.xlu0 %5964
        %v5968 = vunpack.c.l.s4 839922192
        %v5969 = vunpack.c.0.s8 %v5968
        %v5970 = vlaneseq
        %v5971 = vshrl.u32 %v5970, 7
        %v5972 = vsub.s32 %v5969, %v5971
        %v5973 = vrot.slane %v5965, %v5972
        %5975 = vset.pattern.permute.xlu0 0
        %5976 = vperm.xlu0 %5975, %v5601
        %v5977 = vpop.permute.xlu0 %5976
        %v5980 = vunpack.c.l.s4 839922192
        %v5981 = vunpack.c.0.s8 %v5980
        %v5982 = vlaneseq
        %v5983 = vshrl.u32 %v5982, 7
        %v5984 = vsub.s32 %v5981, %v5983
        %v5985 = vrot.slane %v5977, %v5984
        %v6018 = vunpack.c.l.b16 %v5613
        %v6019 = vunpack.c.l.b16 %v5625
        %v6020 = vunpack.c.l.b16 %v5637
        %v6021 = vunpack.c.l.b16 %v5649
        %v6022 = vunpack.c.l.b16 %v5661
        %v6023 = vunpack.c.l.b16 %v5673
        %v6024 = vunpack.c.l.b16 %v5685
        %v6025 = vunpack.c.l.b16 %v5697
        %v6026 = vunpack.c.l.b16 %v5709
        %v6027 = vunpack.c.l.b16 %v5721
        %v6028 = vunpack.c.l.b16 %v5733
        %v6029 = vunpack.c.l.b16 %v5745
        %v6030 = vunpack.c.l.b16 %v5757
        %v6031 = vunpack.c.l.b16 %v5769
        %v6032 = vunpack.c.l.b16 %v5781
        %v6033 = vunpack.c.l.b16 %v5793
        %v6034 = vunpack.c.l.b16 %v5805
        %v6035 = vunpack.c.l.b16 %v5817
        %v6036 = vunpack.c.l.b16 %v5829
        %v6037 = vunpack.c.l.b16 %v5841
        %v6038 = vunpack.c.l.b16 %v5853
        %v6039 = vunpack.c.l.b16 %v5865
        %v6040 = vunpack.c.l.b16 %v5877
        %v6041 = vunpack.c.l.b16 %v5889
        %v6042 = vunpack.c.l.b16 %v5901
        %v6043 = vunpack.c.l.b16 %v5913
        %v6044 = vunpack.c.l.b16 %v5925
        %v6045 = vunpack.c.l.b16 %v5937
        %v6046 = vunpack.c.l.b16 %v5949
        %v6047 = vunpack.c.l.b16 %v5961
        %v6048 = vunpack.c.l.b16 %v5973
        %v6049 = vunpack.c.l.b16 %v5985
        %v6050 = vpack.c.b16 %v6019, %v6018
        %v6051 = vpack.c.b16 %v6021, %v6020
        %v6052 = vpack.c.b16 %v6023, %v6022
        %v6053 = vpack.c.b16 %v6025, %v6024
        %v6054 = vpack.c.b16 %v6027, %v6026
        %v6055 = vpack.c.b16 %v6029, %v6028
        %v6056 = vpack.c.b16 %v6031, %v6030
        %v6057 = vpack.c.b16 %v6033, %v6032
        %v6058 = vpack.c.b16 %v6035, %v6034
        %v6059 = vpack.c.b16 %v6037, %v6036
        %v6060 = vpack.c.b16 %v6039, %v6038
        %v6061 = vpack.c.b16 %v6041, %v6040
        %v6062 = vpack.c.b16 %v6043, %v6042
        %v6063 = vpack.c.b16 %v6045, %v6044
        %v6064 = vpack.c.b16 %v6047, %v6046
        %v6065 = vpack.c.b16 %v6049, %v6048
        %v6082 = vmul.bf16 %v5554, %v6050
        %v6083 = vmul.bf16 %v5555, %v6051
        %v6084 = vmul.bf16 %v5556, %v6052
        %v6085 = vmul.bf16 %v5557, %v6053
        %v6086 = vmul.bf16 %v5558, %v6054
        %v6087 = vmul.bf16 %v5559, %v6055
        %v6088 = vmul.bf16 %v5560, %v6056
        %v6089 = vmul.bf16 %v5561, %v6057
        %v6090 = vmul.bf16 %v5562, %v6058
        %v6091 = vmul.bf16 %v5563, %v6059
        %v6092 = vmul.bf16 %v5564, %v6060
        %v6093 = vmul.bf16 %v5565, %v6061
        %v6094 = vmul.bf16 %v5566, %v6062
        %v6095 = vmul.bf16 %v5567, %v6063
        %v6096 = vmul.bf16 %v5568, %v6064
        %v6097 = vmul.bf16 %v5569, %v6065
        %s6098 = scalar_lea.vmem %s6, 32
        %v6099 = vld [vmem:[%s6098] sm:$0xf]
        %v6100 = vld [vmem:[%s6098 + $0x4] sm:$0xf]
        %v6101 = vld [vmem:[%s6098 + $0x8] sm:$0xf]
        %v6102 = vld [vmem:[%s6098 + $0xc] sm:$0xf]
        %v6107 = vunpack.c.l.b16 %v6099
        %v6108 = vunpack.c.l.b16 %v6100
        %v6109 = vunpack.c.l.b16 %v6101
        %v6110 = vunpack.c.l.b16 %v6102
        %v6111 = vpack.c.b16 %v6108, %v6107
        %v6112 = vpack.c.b16 %v6110, %v6109
        %v6116 = vsel %vm4374, %v6082, 0
        %v6119 = vsel %vm4374, %v6083, 0
        %v6122 = vsel %vm4374, %v6084, 0
        %v6125 = vsel %vm4374, %v6085, 0
        %v6128 = vsel %vm4374, %v6086, 0
        %v6131 = vsel %vm4374, %v6087, 0
        %v6134 = vsel %vm4374, %v6088, 0
        %v6137 = vsel %vm4374, %v6089, 0
        %v6140 = vsel %vm4374, %v6090, 0
        %v6143 = vsel %vm4374, %v6091, 0
        %v6146 = vsel %vm4374, %v6092, 0
        %v6149 = vsel %vm4374, %v6093, 0
        %v6152 = vsel %vm4374, %v6094, 0
        %v6155 = vsel %vm4374, %v6095, 0
        %v6158 = vsel %vm4374, %v6096, 0
        %v6161 = vsel %vm4374, %v6097, 0
        %6163 = vmatprep.subr.bf16.mxu0 0
        %6164 = vmatpush1.bf16.msra.mxu0 0
        %6165 = vmatprep.subr.bf16.mxu0 0
        %6166 = vmatpush1.bf16.msra.mxu0 0
        %6167 = vmatprep.subr.bf16.mxu0 0
        %6168 = vmatpush1.bf16.msra.mxu0 0
        %6169 = vmatprep.subr.bf16.mxu0 0
        %6170 = vmatpush1.bf16.msra.mxu0 0
        %6171 = vmatprep.subr.bf16.mxu0 0
        %6172 = vmatpush1.bf16.msra.mxu0 0
        %6173 = vmatprep.subr.bf16.mxu0 0
        %6174 = vmatpush1.bf16.msra.mxu0 0
        %6175 = vmatprep.subr.bf16.mxu0 0
        %6176 = vmatpush1.bf16.msra.mxu0 %v6112
        %6177 = vmatprep.subr.bf16.mxu0 0
        %6178 = vmatpush1.bf16.msra.mxu0 %v6111
        %6179 = vmatprep.subr.bf16.mxu0 0
        %6180 = vmatpush2.bf16.msra.mxu0 0
        %6181 = vmatprep.subr.bf16.mxu0 0
        %6182 = vmatpush2.bf16.msra.mxu0 0
        %6183 = vmatprep.subr.bf16.mxu0 0
        %6184 = vmatpush2.bf16.msra.mxu0 0
        %6185 = vmatprep.subr.bf16.mxu0 0
        %6186 = vmatpush2.bf16.msra.mxu0 0
        %6187 = vmatprep.subr.bf16.mxu0 0
        %6188 = vmatpush2.bf16.msra.mxu0 0
        %6189 = vmatprep.subr.bf16.mxu0 0
        %6190 = vmatpush2.bf16.msra.mxu0 0
        %6191 = vmatprep.subr.bf16.mxu0 0
        %6192 = vmatpush2.bf16.msra.mxu0 0
        %6193 = vmatprep.subr.bf16.mxu0 0
        %6194 = vmatpush2.bf16.msra.mxu0 0
        %6195 = vmatprep.mubr.bf16.mxu0 0
        %6196 = vmatmul.mubr.bf16.gmra.mxu0 %v6116
        %v6197 = vpop.f32.mrf.mxu0
        %v6198 = vadd.f32 0.0, %v6197
        %v6199 = vpop.f32.mrf.mxu0
        %v6200 = vpop.f32.mrf.mxu0
        %v6201 = vadd.f32 0.0, %v6200
        %v6202 = vpop.f32.mrf.mxu0
        %6203 = vmatprep.mubr.bf16.mxu0 0
        %6204 = vmatmul.mubr.bf16.gmra.mxu0 %v6119
        %v6205 = vpop.f32.mrf.mxu0
        %v6206 = vadd.f32 0.0, %v6205
        %v6207 = vpop.f32.mrf.mxu0
        %v6208 = vpop.f32.mrf.mxu0
        %v6209 = vadd.f32 0.0, %v6208
        %v6210 = vpop.f32.mrf.mxu0
        %6211 = vmatprep.mubr.bf16.mxu0 0
        %6212 = vmatmul.mubr.bf16.gmra.mxu0 %v6122
        %v6213 = vpop.f32.mrf.mxu0
        %v6214 = vadd.f32 0.0, %v6213
        %v6215 = vpop.f32.mrf.mxu0
        %v6216 = vpop.f32.mrf.mxu0
        %v6217 = vadd.f32 0.0, %v6216
        %v6218 = vpop.f32.mrf.mxu0
        %6219 = vmatprep.mubr.bf16.mxu0 0
        %6220 = vmatmul.mubr.bf16.gmra.mxu0 %v6125
        %v6221 = vpop.f32.mrf.mxu0
        %v6222 = vadd.f32 0.0, %v6221
        %v6223 = vpop.f32.mrf.mxu0
        %v6224 = vpop.f32.mrf.mxu0
        %v6225 = vadd.f32 0.0, %v6224
        %v6226 = vpop.f32.mrf.mxu0
        %6227 = vmatprep.mubr.bf16.mxu0 0
        %6228 = vmatmul.mubr.bf16.gmra.mxu0 %v6128
        %v6229 = vpop.f32.mrf.mxu0
        %v6230 = vadd.f32 0.0, %v6229
        %v6231 = vpop.f32.mrf.mxu0
        %v6232 = vpop.f32.mrf.mxu0
        %v6233 = vadd.f32 0.0, %v6232
        %v6234 = vpop.f32.mrf.mxu0
        %6235 = vmatprep.mubr.bf16.mxu0 0
        %6236 = vmatmul.mubr.bf16.gmra.mxu0 %v6131
        %v6237 = vpop.f32.mrf.mxu0
        %v6238 = vadd.f32 0.0, %v6237
        %v6239 = vpop.f32.mrf.mxu0
        %v6240 = vpop.f32.mrf.mxu0
        %v6241 = vadd.f32 0.0, %v6240
        %v6242 = vpop.f32.mrf.mxu0
        %6243 = vmatprep.mubr.bf16.mxu0 0
        %6244 = vmatmul.mubr.bf16.gmra.mxu0 %v6134
        %v6245 = vpop.f32.mrf.mxu0
        %v6246 = vadd.f32 0.0, %v6245
        %v6247 = vpop.f32.mrf.mxu0
        %v6248 = vpop.f32.mrf.mxu0
        %v6249 = vadd.f32 0.0, %v6248
        %v6250 = vpop.f32.mrf.mxu0
        %6251 = vmatprep.mubr.bf16.mxu0 0
        %6252 = vmatmul.mubr.bf16.gmra.mxu0 %v6137
        %v6253 = vpop.f32.mrf.mxu0
        %v6254 = vadd.f32 0.0, %v6253
        %v6255 = vpop.f32.mrf.mxu0
        %v6256 = vpop.f32.mrf.mxu0
        %v6257 = vadd.f32 0.0, %v6256
        %v6258 = vpop.f32.mrf.mxu0
        %6259 = vmatprep.mubr.bf16.mxu0 0
        %6260 = vmatmul.mubr.bf16.gmra.mxu0 %v6140
        %v6261 = vpop.f32.mrf.mxu0
        %v6262 = vadd.f32 0.0, %v6261
        %v6263 = vpop.f32.mrf.mxu0
        %v6264 = vpop.f32.mrf.mxu0
        %v6265 = vadd.f32 0.0, %v6264
        %v6266 = vpop.f32.mrf.mxu0
        %6267 = vmatprep.mubr.bf16.mxu0 0
        %6268 = vmatmul.mubr.bf16.gmra.mxu0 %v6143
        %v6269 = vpop.f32.mrf.mxu0
        %v6270 = vadd.f32 0.0, %v6269
        %v6271 = vpop.f32.mrf.mxu0
        %v6272 = vpop.f32.mrf.mxu0
        %v6273 = vadd.f32 0.0, %v6272
        %v6274 = vpop.f32.mrf.mxu0
        %6275 = vmatprep.mubr.bf16.mxu0 0
        %6276 = vmatmul.mubr.bf16.gmra.mxu0 %v6146
        %v6277 = vpop.f32.mrf.mxu0
        %v6278 = vadd.f32 0.0, %v6277
        %v6279 = vpop.f32.mrf.mxu0
        %v6280 = vpop.f32.mrf.mxu0
        %v6281 = vadd.f32 0.0, %v6280
        %v6282 = vpop.f32.mrf.mxu0
        %6283 = vmatprep.mubr.bf16.mxu0 0
        %6284 = vmatmul.mubr.bf16.gmra.mxu0 %v6149
        %v6285 = vpop.f32.mrf.mxu0
        %v6286 = vadd.f32 0.0, %v6285
        %v6287 = vpop.f32.mrf.mxu0
        %v6288 = vpop.f32.mrf.mxu0
        %v6289 = vadd.f32 0.0, %v6288
        %v6290 = vpop.f32.mrf.mxu0
        %6291 = vmatprep.mubr.bf16.mxu0 0
        %6292 = vmatmul.mubr.bf16.gmra.mxu0 %v6152
        %v6293 = vpop.f32.mrf.mxu0
        %v6294 = vadd.f32 0.0, %v6293
        %v6295 = vpop.f32.mrf.mxu0
        %v6296 = vpop.f32.mrf.mxu0
        %v6297 = vadd.f32 0.0, %v6296
        %v6298 = vpop.f32.mrf.mxu0
        %6299 = vmatprep.mubr.bf16.mxu0 0
        %6300 = vmatmul.mubr.bf16.gmra.mxu0 %v6155
        %v6301 = vpop.f32.mrf.mxu0
        %v6302 = vadd.f32 0.0, %v6301
        %v6303 = vpop.f32.mrf.mxu0
        %v6304 = vpop.f32.mrf.mxu0
        %v6305 = vadd.f32 0.0, %v6304
        %v6306 = vpop.f32.mrf.mxu0
        %6307 = vmatprep.mubr.bf16.mxu0 0
        %6308 = vmatmul.mubr.bf16.gmra.mxu0 %v6158
        %v6309 = vpop.f32.mrf.mxu0
        %v6310 = vadd.f32 0.0, %v6309
        %v6311 = vpop.f32.mrf.mxu0
        %v6312 = vpop.f32.mrf.mxu0
        %v6313 = vadd.f32 0.0, %v6312
        %v6314 = vpop.f32.mrf.mxu0
        %6315 = vmatprep.mubr.bf16.mxu0 0
        %6316 = vmatmul.mubr.bf16.gmra.mxu0 %v6161
        %v6317 = vpop.f32.mrf.mxu0
        %v6318 = vadd.f32 0.0, %v6317
        %v6319 = vpop.f32.mrf.mxu0
        %v6320 = vpop.f32.mrf.mxu0
        %v6321 = vadd.f32 0.0, %v6320
        %v6322 = vpop.f32.mrf.mxu0
        %6323 = vdwg.mxu0
        %v6324 = vadd.f32 %v5396, %v6198
        %v6325 = vadd.f32 %v5399, %v6201
        %v6326 = vadd.f32 %v5404, %v6206
        %v6327 = vadd.f32 %v5407, %v6209
        %v6328 = vadd.f32 %v5412, %v6214
        %v6329 = vadd.f32 %v5415, %v6217
        %v6330 = vadd.f32 %v5420, %v6222
        %v6331 = vadd.f32 %v5423, %v6225
        %v6332 = vadd.f32 %v5428, %v6230
        %v6333 = vadd.f32 %v5431, %v6233
        %v6334 = vadd.f32 %v5436, %v6238
        %v6335 = vadd.f32 %v5439, %v6241
        %v6336 = vadd.f32 %v5444, %v6246
        %v6337 = vadd.f32 %v5447, %v6249
        %v6338 = vadd.f32 %v5452, %v6254
        %v6339 = vadd.f32 %v5455, %v6257
        %v6340 = vadd.f32 %v5460, %v6262
        %v6341 = vadd.f32 %v5463, %v6265
        %v6342 = vadd.f32 %v5468, %v6270
        %v6343 = vadd.f32 %v5471, %v6273
        %v6344 = vadd.f32 %v5476, %v6278
        %v6345 = vadd.f32 %v5479, %v6281
        %v6346 = vadd.f32 %v5484, %v6286
        %v6347 = vadd.f32 %v5487, %v6289
        %v6348 = vadd.f32 %v5492, %v6294
        %v6349 = vadd.f32 %v5495, %v6297
        %v6350 = vadd.f32 %v5500, %v6302
        %v6351 = vadd.f32 %v5503, %v6305
        %v6352 = vadd.f32 %v5508, %v6310
        %v6353 = vadd.f32 %v5511, %v6313
        %v6354 = vadd.f32 %v5516, %v6318
        %v6355 = vadd.f32 %v5519, %v6321
        %v6356 = vld [vmem:[#allocation3 + $0x1f] sm:$0xff]
        %v6357 = vld [vmem:[#allocation3 + $0x27] sm:$0xff]
        %v6358 = vld [vmem:[#allocation3 + $0x2f] sm:$0xff]
        %v6359 = vld [vmem:[#allocation3 + $0x37] sm:$0xff]
        %v6360 = vld [vmem:[#allocation3 + $0x3f] sm:$0xff]
        %v6361 = vld [vmem:[#allocation3 + $0x47] sm:$0xff]
        %v6362 = vld [vmem:[#allocation3 + $0x4f] sm:$0xff]
        %v6363 = vld [vmem:[#allocation3 + $0x57] sm:$0xff]
        %v6364 = vld [vmem:[#allocation3 + $0x5f] sm:$0xff]
        %v6365 = vld [vmem:[#allocation3 + $0x67] sm:$0xff]
        %v6366 = vld [vmem:[#allocation3 + $0x6f] sm:$0xff]
        %v6367 = vld [vmem:[#allocation3 + $0x77] sm:$0xff]
        %v6368 = vld [vmem:[#allocation3 + $0x7f] sm:$0xff]
        %v6369 = vld [vmem:[#allocation3 + $0x87] sm:$0xff]
        %v6370 = vld [vmem:[#allocation3 + $0x8f] sm:$0xff]
        %v6371 = vld [vmem:[#allocation3 + $0x97] sm:$0xff]
        %v6372 = vld [vmem:[#allocation3 + $0x9f] sm:$0xff]
        %v6373 = vld [vmem:[#allocation3 + $0xa7] sm:$0xff]
        %v6374 = vld [vmem:[#allocation3 + $0xaf] sm:$0xff]
        %v6375 = vld [vmem:[#allocation3 + $0xb7] sm:$0xff]
        %v6376 = vld [vmem:[#allocation3 + $0xbf] sm:$0xff]
        %v6377 = vld [vmem:[#allocation3 + $0xc7] sm:$0xff]
        %v6378 = vld [vmem:[#allocation3 + $0xcf] sm:$0xff]
        %v6379 = vld [vmem:[#allocation3 + $0xd7] sm:$0xff]
        %v6380 = vld [vmem:[#allocation3 + $0xdf] sm:$0xff]
        %v6381 = vld [vmem:[#allocation3 + $0xe7] sm:$0xff]
        %v6382 = vld [vmem:[#allocation3 + $0xef] sm:$0xff]
        %v6383 = vld [vmem:[#allocation3 + $0xf7] sm:$0xff]
        %v6384 = vld [vmem:[#allocation3 + $0xff] sm:$0xff]
        %v6385 = vld [vmem:[#allocation3 + $0x107] sm:$0xff]
        %v6386 = vld [vmem:[#allocation3 + $0x10f] sm:$0xff]
        %v6387 = vld [vmem:[#allocation3 + $0x117] sm:$0xff]
        %v6388 = vpack.c.bf16 %v6357, %v6356
        %v6389 = vpack.c.bf16 %v6359, %v6358
        %v6390 = vpack.c.bf16 %v6361, %v6360
        %v6391 = vpack.c.bf16 %v6363, %v6362
        %v6392 = vpack.c.bf16 %v6365, %v6364
        %v6393 = vpack.c.bf16 %v6367, %v6366
        %v6394 = vpack.c.bf16 %v6369, %v6368
        %v6395 = vpack.c.bf16 %v6371, %v6370
        %v6396 = vpack.c.bf16 %v6373, %v6372
        %v6397 = vpack.c.bf16 %v6375, %v6374
        %v6398 = vpack.c.bf16 %v6377, %v6376
        %v6399 = vpack.c.bf16 %v6379, %v6378
        %v6400 = vpack.c.bf16 %v6381, %v6380
        %v6401 = vpack.c.bf16 %v6383, %v6382
        %v6402 = vpack.c.bf16 %v6385, %v6384
        %v6403 = vpack.c.bf16 %v6387, %v6386
        %v6404 = vmul.bf16 %v6388, %v4975
        %v6405 = vmul.bf16 %v6389, %v4976
        %v6406 = vmul.bf16 %v6390, %v4977
        %v6407 = vmul.bf16 %v6391, %v4978
        %v6408 = vmul.bf16 %v6392, %v4979
        %v6409 = vmul.bf16 %v6393, %v4980
        %v6410 = vmul.bf16 %v6394, %v4981
        %v6411 = vmul.bf16 %v6395, %v4982
        %v6412 = vmul.bf16 %v6396, %v4983
        %v6413 = vmul.bf16 %v6397, %v4984
        %v6414 = vmul.bf16 %v6398, %v4985
        %v6415 = vmul.bf16 %v6399, %v4986
        %v6416 = vmul.bf16 %v6400, %v4987
        %v6417 = vmul.bf16 %v6401, %v4988
        %v6418 = vmul.bf16 %v6402, %v4989
        %v6419 = vmul.bf16 %v6403, %v4990
        %s6420 = scalar_lea.vmem %s6, 48
        %v6421 = vld [vmem:[%s6420] sm:$0xf]
        %v6422 = vld [vmem:[%s6420 + $0x4] sm:$0xf]
        %v6423 = vld [vmem:[%s6420 + $0x8] sm:$0xf]
        %v6424 = vld [vmem:[%s6420 + $0xc] sm:$0xf]
        %v6429 = vunpack.c.l.b16 %v6421
        %v6430 = vunpack.c.l.b16 %v6422
        %v6431 = vunpack.c.l.b16 %v6423
        %v6432 = vunpack.c.l.b16 %v6424
        %v6433 = vpack.c.b16 %v6430, %v6429
        %v6434 = vpack.c.b16 %v6432, %v6431
        %v6438 = vsel %vm4374, %v6404, 0
        %v6441 = vsel %vm4374, %v6405, 0
        %v6444 = vsel %vm4374, %v6406, 0
        %v6447 = vsel %vm4374, %v6407, 0
        %v6450 = vsel %vm4374, %v6408, 0
        %v6453 = vsel %vm4374, %v6409, 0
        %v6456 = vsel %vm4374, %v6410, 0
        %v6459 = vsel %vm4374, %v6411, 0
        %v6462 = vsel %vm4374, %v6412, 0
        %v6465 = vsel %vm4374, %v6413, 0
        %v6468 = vsel %vm4374, %v6414, 0
        %v6471 = vsel %vm4374, %v6415, 0
        %v6474 = vsel %vm4374, %v6416, 0
        %v6477 = vsel %vm4374, %v6417, 0
        %v6480 = vsel %vm4374, %v6418, 0
        %v6483 = vsel %vm4374, %v6419, 0
        %6485 = vmatprep.subr.bf16.mxu0 0
        %6486 = vmatpush1.bf16.msra.mxu0 0
        %6487 = vmatprep.subr.bf16.mxu0 0
        %6488 = vmatpush1.bf16.msra.mxu0 0
        %6489 = vmatprep.subr.bf16.mxu0 0
        %6490 = vmatpush1.bf16.msra.mxu0 0
        %6491 = vmatprep.subr.bf16.mxu0 0
        %6492 = vmatpush1.bf16.msra.mxu0 0
        %6493 = vmatprep.subr.bf16.mxu0 0
        %6494 = vmatpush1.bf16.msra.mxu0 0
        %6495 = vmatprep.subr.bf16.mxu0 0
        %6496 = vmatpush1.bf16.msra.mxu0 0
        %6497 = vmatprep.subr.bf16.mxu0 0
        %6498 = vmatpush1.bf16.msra.mxu0 %v6434
        %6499 = vmatprep.subr.bf16.mxu0 0
        %6500 = vmatpush1.bf16.msra.mxu0 %v6433
        %6501 = vmatprep.subr.bf16.mxu0 0
        %6502 = vmatpush2.bf16.msra.mxu0 0
        %6503 = vmatprep.subr.bf16.mxu0 0
        %6504 = vmatpush2.bf16.msra.mxu0 0
        %6505 = vmatprep.subr.bf16.mxu0 0
        %6506 = vmatpush2.bf16.msra.mxu0 0
        %6507 = vmatprep.subr.bf16.mxu0 0
        %6508 = vmatpush2.bf16.msra.mxu0 0
        %6509 = vmatprep.subr.bf16.mxu0 0
        %6510 = vmatpush2.bf16.msra.mxu0 0
        %6511 = vmatprep.subr.bf16.mxu0 0
        %6512 = vmatpush2.bf16.msra.mxu0 0
        %6513 = vmatprep.subr.bf16.mxu0 0
        %6514 = vmatpush2.bf16.msra.mxu0 0
        %6515 = vmatprep.subr.bf16.mxu0 0
        %6516 = vmatpush2.bf16.msra.mxu0 0
        %6517 = vmatprep.mubr.bf16.mxu0 0
        %6518 = vmatmul.mubr.bf16.gmra.mxu0 %v6438
        %v6519 = vpop.f32.mrf.mxu0
        %v6520 = vadd.f32 0.0, %v6519
        %v6521 = vpop.f32.mrf.mxu0
        %v6522 = vpop.f32.mrf.mxu0
        %v6523 = vadd.f32 0.0, %v6522
        %v6524 = vpop.f32.mrf.mxu0
        %6525 = vmatprep.mubr.bf16.mxu0 0
        %6526 = vmatmul.mubr.bf16.gmra.mxu0 %v6441
        %v6527 = vpop.f32.mrf.mxu0
        %v6528 = vadd.f32 0.0, %v6527
        %v6529 = vpop.f32.mrf.mxu0
        %v6530 = vpop.f32.mrf.mxu0
        %v6531 = vadd.f32 0.0, %v6530
        %v6532 = vpop.f32.mrf.mxu0
        %6533 = vmatprep.mubr.bf16.mxu0 0
        %6534 = vmatmul.mubr.bf16.gmra.mxu0 %v6444
        %v6535 = vpop.f32.mrf.mxu0
        %v6536 = vadd.f32 0.0, %v6535
        %v6537 = vpop.f32.mrf.mxu0
        %v6538 = vpop.f32.mrf.mxu0
        %v6539 = vadd.f32 0.0, %v6538
        %v6540 = vpop.f32.mrf.mxu0
        %6541 = vmatprep.mubr.bf16.mxu0 0
        %6542 = vmatmul.mubr.bf16.gmra.mxu0 %v6447
        %v6543 = vpop.f32.mrf.mxu0
        %v6544 = vadd.f32 0.0, %v6543
        %v6545 = vpop.f32.mrf.mxu0
        %v6546 = vpop.f32.mrf.mxu0
        %v6547 = vadd.f32 0.0, %v6546
        %v6548 = vpop.f32.mrf.mxu0
        %6549 = vmatprep.mubr.bf16.mxu0 0
        %6550 = vmatmul.mubr.bf16.gmra.mxu0 %v6450
        %v6551 = vpop.f32.mrf.mxu0
        %v6552 = vadd.f32 0.0, %v6551
        %v6553 = vpop.f32.mrf.mxu0
        %v6554 = vpop.f32.mrf.mxu0
        %v6555 = vadd.f32 0.0, %v6554
        %v6556 = vpop.f32.mrf.mxu0
        %6557 = vmatprep.mubr.bf16.mxu0 0
        %6558 = vmatmul.mubr.bf16.gmra.mxu0 %v6453
        %v6559 = vpop.f32.mrf.mxu0
        %v6560 = vadd.f32 0.0, %v6559
        %v6561 = vpop.f32.mrf.mxu0
        %v6562 = vpop.f32.mrf.mxu0
        %v6563 = vadd.f32 0.0, %v6562
        %v6564 = vpop.f32.mrf.mxu0
        %6565 = vmatprep.mubr.bf16.mxu0 0
        %6566 = vmatmul.mubr.bf16.gmra.mxu0 %v6456
        %v6567 = vpop.f32.mrf.mxu0
        %v6568 = vadd.f32 0.0, %v6567
        %v6569 = vpop.f32.mrf.mxu0
        %v6570 = vpop.f32.mrf.mxu0
        %v6571 = vadd.f32 0.0, %v6570
        %v6572 = vpop.f32.mrf.mxu0
        %6573 = vmatprep.mubr.bf16.mxu0 0
        %6574 = vmatmul.mubr.bf16.gmra.mxu0 %v6459
        %v6575 = vpop.f32.mrf.mxu0
        %v6576 = vadd.f32 0.0, %v6575
        %v6577 = vpop.f32.mrf.mxu0
        %v6578 = vpop.f32.mrf.mxu0
        %v6579 = vadd.f32 0.0, %v6578
        %v6580 = vpop.f32.mrf.mxu0
        %6581 = vmatprep.mubr.bf16.mxu0 0
        %6582 = vmatmul.mubr.bf16.gmra.mxu0 %v6462
        %v6583 = vpop.f32.mrf.mxu0
        %v6584 = vadd.f32 0.0, %v6583
        %v6585 = vpop.f32.mrf.mxu0
        %v6586 = vpop.f32.mrf.mxu0
        %v6587 = vadd.f32 0.0, %v6586
        %v6588 = vpop.f32.mrf.mxu0
        %6589 = vmatprep.mubr.bf16.mxu0 0
        %6590 = vmatmul.mubr.bf16.gmra.mxu0 %v6465
        %v6591 = vpop.f32.mrf.mxu0
        %v6592 = vadd.f32 0.0, %v6591
        %v6593 = vpop.f32.mrf.mxu0
        %v6594 = vpop.f32.mrf.mxu0
        %v6595 = vadd.f32 0.0, %v6594
        %v6596 = vpop.f32.mrf.mxu0
        %6597 = vmatprep.mubr.bf16.mxu0 0
        %6598 = vmatmul.mubr.bf16.gmra.mxu0 %v6468
        %v6599 = vpop.f32.mrf.mxu0
        %v6600 = vadd.f32 0.0, %v6599
        %v6601 = vpop.f32.mrf.mxu0
        %v6602 = vpop.f32.mrf.mxu0
        %v6603 = vadd.f32 0.0, %v6602
        %v6604 = vpop.f32.mrf.mxu0
        %6605 = vmatprep.mubr.bf16.mxu0 0
        %6606 = vmatmul.mubr.bf16.gmra.mxu0 %v6471
        %v6607 = vpop.f32.mrf.mxu0
        %v6608 = vadd.f32 0.0, %v6607
        %v6609 = vpop.f32.mrf.mxu0
        %v6610 = vpop.f32.mrf.mxu0
        %v6611 = vadd.f32 0.0, %v6610
        %v6612 = vpop.f32.mrf.mxu0
        %6613 = vmatprep.mubr.bf16.mxu0 0
        %6614 = vmatmul.mubr.bf16.gmra.mxu0 %v6474
        %v6615 = vpop.f32.mrf.mxu0
        %v6616 = vadd.f32 0.0, %v6615
        %v6617 = vpop.f32.mrf.mxu0
        %v6618 = vpop.f32.mrf.mxu0
        %v6619 = vadd.f32 0.0, %v6618
        %v6620 = vpop.f32.mrf.mxu0
        %6621 = vmatprep.mubr.bf16.mxu0 0
        %6622 = vmatmul.mubr.bf16.gmra.mxu0 %v6477
        %v6623 = vpop.f32.mrf.mxu0
        %v6624 = vadd.f32 0.0, %v6623
        %v6625 = vpop.f32.mrf.mxu0
        %v6626 = vpop.f32.mrf.mxu0
        %v6627 = vadd.f32 0.0, %v6626
        %v6628 = vpop.f32.mrf.mxu0
        %6629 = vmatprep.mubr.bf16.mxu0 0
        %6630 = vmatmul.mubr.bf16.gmra.mxu0 %v6480
        %v6631 = vpop.f32.mrf.mxu0
        %v6632 = vadd.f32 0.0, %v6631
        %v6633 = vpop.f32.mrf.mxu0
        %v6634 = vpop.f32.mrf.mxu0
        %v6635 = vadd.f32 0.0, %v6634
        %v6636 = vpop.f32.mrf.mxu0
        %6637 = vmatprep.mubr.bf16.mxu0 0
        %6638 = vmatmul.mubr.bf16.gmra.mxu0 %v6483
        %v6639 = vpop.f32.mrf.mxu0
        %v6640 = vadd.f32 0.0, %v6639
        %v6641 = vpop.f32.mrf.mxu0
        %v6642 = vpop.f32.mrf.mxu0
        %v6643 = vadd.f32 0.0, %v6642
        %v6644 = vpop.f32.mrf.mxu0
        %6645 = vdwg.mxu0
        %v6646 = vadd.f32 %v6324, %v6520
        %v6647 = vadd.f32 %v6325, %v6523
        %v6648 = vadd.f32 %v6326, %v6528
        %v6649 = vadd.f32 %v6327, %v6531
        %v6650 = vadd.f32 %v6328, %v6536
        %v6651 = vadd.f32 %v6329, %v6539
        %v6652 = vadd.f32 %v6330, %v6544
        %v6653 = vadd.f32 %v6331, %v6547
        %v6654 = vadd.f32 %v6332, %v6552
        %v6655 = vadd.f32 %v6333, %v6555
        %v6656 = vadd.f32 %v6334, %v6560
        %v6657 = vadd.f32 %v6335, %v6563
        %v6658 = vadd.f32 %v6336, %v6568
        %v6659 = vadd.f32 %v6337, %v6571
        %v6660 = vadd.f32 %v6338, %v6576
        %v6661 = vadd.f32 %v6339, %v6579
        %v6662 = vadd.f32 %v6340, %v6584
        %v6663 = vadd.f32 %v6341, %v6587
        %v6664 = vadd.f32 %v6342, %v6592
        %v6665 = vadd.f32 %v6343, %v6595
        %v6666 = vadd.f32 %v6344, %v6600
        %v6667 = vadd.f32 %v6345, %v6603
        %v6668 = vadd.f32 %v6346, %v6608
        %v6669 = vadd.f32 %v6347, %v6611
        %v6670 = vadd.f32 %v6348, %v6616
        %v6671 = vadd.f32 %v6349, %v6619
        %v6672 = vadd.f32 %v6350, %v6624
        %v6673 = vadd.f32 %v6351, %v6627
        %v6674 = vadd.f32 %v6352, %v6632
        %v6675 = vadd.f32 %v6353, %v6635
        %v6676 = vadd.f32 %v6354, %v6640
        %v6677 = vadd.f32 %v6355, %v6643
        %v6678 = vld [vmem:[#allocation3 + $0x20] sm:$0xff]
        %v6679 = vld [vmem:[#allocation3 + $0x28] sm:$0xff]
        %v6680 = vld [vmem:[#allocation3 + $0x30] sm:$0xff]
        %v6681 = vld [vmem:[#allocation3 + $0x38] sm:$0xff]
        %v6682 = vld [vmem:[#allocation3 + $0x40] sm:$0xff]
        %v6683 = vld [vmem:[#allocation3 + $0x48] sm:$0xff]
        %v6684 = vld [vmem:[#allocation3 + $0x50] sm:$0xff]
        %v6685 = vld [vmem:[#allocation3 + $0x58] sm:$0xff]
        %v6686 = vld [vmem:[#allocation3 + $0x60] sm:$0xff]
        %v6687 = vld [vmem:[#allocation3 + $0x68] sm:$0xff]
        %v6688 = vld [vmem:[#allocation3 + $0x70] sm:$0xff]
        %v6689 = vld [vmem:[#allocation3 + $0x78] sm:$0xff]
        %v6690 = vld [vmem:[#allocation3 + $0x80] sm:$0xff]
        %v6691 = vld [vmem:[#allocation3 + $0x88] sm:$0xff]
        %v6692 = vld [vmem:[#allocation3 + $0x90] sm:$0xff]
        %v6693 = vld [vmem:[#allocation3 + $0x98] sm:$0xff]
        %v6694 = vld [vmem:[#allocation3 + $0xa0] sm:$0xff]
        %v6695 = vld [vmem:[#allocation3 + $0xa8] sm:$0xff]
        %v6696 = vld [vmem:[#allocation3 + $0xb0] sm:$0xff]
        %v6697 = vld [vmem:[#allocation3 + $0xb8] sm:$0xff]
        %v6698 = vld [vmem:[#allocation3 + $0xc0] sm:$0xff]
        %v6699 = vld [vmem:[#allocation3 + $0xc8] sm:$0xff]
        %v6700 = vld [vmem:[#allocation3 + $0xd0] sm:$0xff]
        %v6701 = vld [vmem:[#allocation3 + $0xd8] sm:$0xff]
        %v6702 = vld [vmem:[#allocation3 + $0xe0] sm:$0xff]
        %v6703 = vld [vmem:[#allocation3 + $0xe8] sm:$0xff]
        %v6704 = vld [vmem:[#allocation3 + $0xf0] sm:$0xff]
        %v6705 = vld [vmem:[#allocation3 + $0xf8] sm:$0xff]
        %v6706 = vld [vmem:[#allocation3 + $0x100] sm:$0xff]
        %v6707 = vld [vmem:[#allocation3 + $0x108] sm:$0xff]
        %v6708 = vld [vmem:[#allocation3 + $0x110] sm:$0xff]
        %v6709 = vld [vmem:[#allocation3 + $0x118] sm:$0xff]
        %v6710 = vpack.c.bf16 %v6679, %v6678
        %v6711 = vpack.c.bf16 %v6681, %v6680
        %v6712 = vpack.c.bf16 %v6683, %v6682
        %v6713 = vpack.c.bf16 %v6685, %v6684
        %v6714 = vpack.c.bf16 %v6687, %v6686
        %v6715 = vpack.c.bf16 %v6689, %v6688
        %v6716 = vpack.c.bf16 %v6691, %v6690
        %v6717 = vpack.c.bf16 %v6693, %v6692
        %v6718 = vpack.c.bf16 %v6695, %v6694
        %v6719 = vpack.c.bf16 %v6697, %v6696
        %v6720 = vpack.c.bf16 %v6699, %v6698
        %v6721 = vpack.c.bf16 %v6701, %v6700
        %v6722 = vpack.c.bf16 %v6703, %v6702
        %v6723 = vpack.c.bf16 %v6705, %v6704
        %v6724 = vpack.c.bf16 %v6707, %v6706
        %v6725 = vpack.c.bf16 %v6709, %v6708
        %s6726 = scalar_lea.vmem %s6, 64
        %v6727 = vld [vmem:[%s6726] sm:$0xf]
        %v6728 = vld [vmem:[%s6726 + $0x4] sm:$0xf]
        %v6729 = vld [vmem:[%s6726 + $0x8] sm:$0xf]
        %v6730 = vld [vmem:[%s6726 + $0xc] sm:$0xf]
        %v6735 = vunpack.c.l.b16 %v6727
        %v6736 = vunpack.c.l.b16 %v6728
        %v6737 = vunpack.c.l.b16 %v6729
        %v6738 = vunpack.c.l.b16 %v6730
        %v6739 = vpack.c.b16 %v6736, %v6735
        %v6740 = vpack.c.b16 %v6738, %v6737
        %v6744 = vsel %vm4374, %v6710, 0
        %v6747 = vsel %vm4374, %v6711, 0
        %v6750 = vsel %vm4374, %v6712, 0
        %v6753 = vsel %vm4374, %v6713, 0
        %v6756 = vsel %vm4374, %v6714, 0
        %v6759 = vsel %vm4374, %v6715, 0
        %v6762 = vsel %vm4374, %v6716, 0
        %v6765 = vsel %vm4374, %v6717, 0
        %v6768 = vsel %vm4374, %v6718, 0
        %v6771 = vsel %vm4374, %v6719, 0
        %v6774 = vsel %vm4374, %v6720, 0
        %v6777 = vsel %vm4374, %v6721, 0
        %v6780 = vsel %vm4374, %v6722, 0
        %v6783 = vsel %vm4374, %v6723, 0
        %v6786 = vsel %vm4374, %v6724, 0
        %v6789 = vsel %vm4374, %v6725, 0
        %6791 = vmatprep.subr.bf16.mxu0 0
        %6792 = vmatpush1.bf16.msra.mxu0 0
        %6793 = vmatprep.subr.bf16.mxu0 0
        %6794 = vmatpush1.bf16.msra.mxu0 0
        %6795 = vmatprep.subr.bf16.mxu0 0
        %6796 = vmatpush1.bf16.msra.mxu0 0
        %6797 = vmatprep.subr.bf16.mxu0 0
        %6798 = vmatpush1.bf16.msra.mxu0 0
        %6799 = vmatprep.subr.bf16.mxu0 0
        %6800 = vmatpush1.bf16.msra.mxu0 0
        %6801 = vmatprep.subr.bf16.mxu0 0
        %6802 = vmatpush1.bf16.msra.mxu0 0
        %6803 = vmatprep.subr.bf16.mxu0 0
        %6804 = vmatpush1.bf16.msra.mxu0 %v6740
        %6805 = vmatprep.subr.bf16.mxu0 0
        %6806 = vmatpush1.bf16.msra.mxu0 %v6739
        %6807 = vmatprep.subr.bf16.mxu0 0
        %6808 = vmatpush2.bf16.msra.mxu0 0
        %6809 = vmatprep.subr.bf16.mxu0 0
        %6810 = vmatpush2.bf16.msra.mxu0 0
        %6811 = vmatprep.subr.bf16.mxu0 0
        %6812 = vmatpush2.bf16.msra.mxu0 0
        %6813 = vmatprep.subr.bf16.mxu0 0
        %6814 = vmatpush2.bf16.msra.mxu0 0
        %6815 = vmatprep.subr.bf16.mxu0 0
        %6816 = vmatpush2.bf16.msra.mxu0 0
        %6817 = vmatprep.subr.bf16.mxu0 0
        %6818 = vmatpush2.bf16.msra.mxu0 0
        %6819 = vmatprep.subr.bf16.mxu0 0
        %6820 = vmatpush2.bf16.msra.mxu0 0
        %6821 = vmatprep.subr.bf16.mxu0 0
        %6822 = vmatpush2.bf16.msra.mxu0 0
        %6823 = vmatprep.mubr.bf16.mxu0 0
        %6824 = vmatmul.mubr.bf16.gmra.mxu0 %v6744
        %v6825 = vpop.f32.mrf.mxu0
        %v6826 = vadd.f32 0.0, %v6825
        %v6827 = vpop.f32.mrf.mxu0
        %v6828 = vpop.f32.mrf.mxu0
        %v6829 = vadd.f32 0.0, %v6828
        %v6830 = vpop.f32.mrf.mxu0
        %6831 = vmatprep.mubr.bf16.mxu0 0
        %6832 = vmatmul.mubr.bf16.gmra.mxu0 %v6747
        %v6833 = vpop.f32.mrf.mxu0
        %v6834 = vadd.f32 0.0, %v6833
        %v6835 = vpop.f32.mrf.mxu0
        %v6836 = vpop.f32.mrf.mxu0
        %v6837 = vadd.f32 0.0, %v6836
        %v6838 = vpop.f32.mrf.mxu0
        %6839 = vmatprep.mubr.bf16.mxu0 0
        %6840 = vmatmul.mubr.bf16.gmra.mxu0 %v6750
        %v6841 = vpop.f32.mrf.mxu0
        %v6842 = vadd.f32 0.0, %v6841
        %v6843 = vpop.f32.mrf.mxu0
        %v6844 = vpop.f32.mrf.mxu0
        %v6845 = vadd.f32 0.0, %v6844
        %v6846 = vpop.f32.mrf.mxu0
        %6847 = vmatprep.mubr.bf16.mxu0 0
        %6848 = vmatmul.mubr.bf16.gmra.mxu0 %v6753
        %v6849 = vpop.f32.mrf.mxu0
        %v6850 = vadd.f32 0.0, %v6849
        %v6851 = vpop.f32.mrf.mxu0
        %v6852 = vpop.f32.mrf.mxu0
        %v6853 = vadd.f32 0.0, %v6852
        %v6854 = vpop.f32.mrf.mxu0
        %6855 = vmatprep.mubr.bf16.mxu0 0
        %6856 = vmatmul.mubr.bf16.gmra.mxu0 %v6756
        %v6857 = vpop.f32.mrf.mxu0
        %v6858 = vadd.f32 0.0, %v6857
        %v6859 = vpop.f32.mrf.mxu0
        %v6860 = vpop.f32.mrf.mxu0
        %v6861 = vadd.f32 0.0, %v6860
        %v6862 = vpop.f32.mrf.mxu0
        %6863 = vmatprep.mubr.bf16.mxu0 0
        %6864 = vmatmul.mubr.bf16.gmra.mxu0 %v6759
        %v6865 = vpop.f32.mrf.mxu0
        %v6866 = vadd.f32 0.0, %v6865
        %v6867 = vpop.f32.mrf.mxu0
        %v6868 = vpop.f32.mrf.mxu0
        %v6869 = vadd.f32 0.0, %v6868
        %v6870 = vpop.f32.mrf.mxu0
        %6871 = vmatprep.mubr.bf16.mxu0 0
        %6872 = vmatmul.mubr.bf16.gmra.mxu0 %v6762
        %v6873 = vpop.f32.mrf.mxu0
        %v6874 = vadd.f32 0.0, %v6873
        %v6875 = vpop.f32.mrf.mxu0
        %v6876 = vpop.f32.mrf.mxu0
        %v6877 = vadd.f32 0.0, %v6876
        %v6878 = vpop.f32.mrf.mxu0
        %6879 = vmatprep.mubr.bf16.mxu0 0
        %6880 = vmatmul.mubr.bf16.gmra.mxu0 %v6765
        %v6881 = vpop.f32.mrf.mxu0
        %v6882 = vadd.f32 0.0, %v6881
        %v6883 = vpop.f32.mrf.mxu0
        %v6884 = vpop.f32.mrf.mxu0
        %v6885 = vadd.f32 0.0, %v6884
        %v6886 = vpop.f32.mrf.mxu0
        %6887 = vmatprep.mubr.bf16.mxu0 0
        %6888 = vmatmul.mubr.bf16.gmra.mxu0 %v6768
        %v6889 = vpop.f32.mrf.mxu0
        %v6890 = vadd.f32 0.0, %v6889
        %v6891 = vpop.f32.mrf.mxu0
        %v6892 = vpop.f32.mrf.mxu0
        %v6893 = vadd.f32 0.0, %v6892
        %v6894 = vpop.f32.mrf.mxu0
        %6895 = vmatprep.mubr.bf16.mxu0 0
        %6896 = vmatmul.mubr.bf16.gmra.mxu0 %v6771
        %v6897 = vpop.f32.mrf.mxu0
        %v6898 = vadd.f32 0.0, %v6897
        %v6899 = vpop.f32.mrf.mxu0
        %v6900 = vpop.f32.mrf.mxu0
        %v6901 = vadd.f32 0.0, %v6900
        %v6902 = vpop.f32.mrf.mxu0
        %6903 = vmatprep.mubr.bf16.mxu0 0
        %6904 = vmatmul.mubr.bf16.gmra.mxu0 %v6774
        %v6905 = vpop.f32.mrf.mxu0
        %v6906 = vadd.f32 0.0, %v6905
        %v6907 = vpop.f32.mrf.mxu0
        %v6908 = vpop.f32.mrf.mxu0
        %v6909 = vadd.f32 0.0, %v6908
        %v6910 = vpop.f32.mrf.mxu0
        %6911 = vmatprep.mubr.bf16.mxu0 0
        %6912 = vmatmul.mubr.bf16.gmra.mxu0 %v6777
        %v6913 = vpop.f32.mrf.mxu0
        %v6914 = vadd.f32 0.0, %v6913
        %v6915 = vpop.f32.mrf.mxu0
        %v6916 = vpop.f32.mrf.mxu0
        %v6917 = vadd.f32 0.0, %v6916
        %v6918 = vpop.f32.mrf.mxu0
        %6919 = vmatprep.mubr.bf16.mxu0 0
        %6920 = vmatmul.mubr.bf16.gmra.mxu0 %v6780
        %v6921 = vpop.f32.mrf.mxu0
        %v6922 = vadd.f32 0.0, %v6921
        %v6923 = vpop.f32.mrf.mxu0
        %v6924 = vpop.f32.mrf.mxu0
        %v6925 = vadd.f32 0.0, %v6924
        %v6926 = vpop.f32.mrf.mxu0
        %6927 = vmatprep.mubr.bf16.mxu0 0
        %6928 = vmatmul.mubr.bf16.gmra.mxu0 %v6783
        %v6929 = vpop.f32.mrf.mxu0
        %v6930 = vadd.f32 0.0, %v6929
        %v6931 = vpop.f32.mrf.mxu0
        %v6932 = vpop.f32.mrf.mxu0
        %v6933 = vadd.f32 0.0, %v6932
        %v6934 = vpop.f32.mrf.mxu0
        %6935 = vmatprep.mubr.bf16.mxu0 0
        %6936 = vmatmul.mubr.bf16.gmra.mxu0 %v6786
        %v6937 = vpop.f32.mrf.mxu0
        %v6938 = vadd.f32 0.0, %v6937
        %v6939 = vpop.f32.mrf.mxu0
        %v6940 = vpop.f32.mrf.mxu0
        %v6941 = vadd.f32 0.0, %v6940
        %v6942 = vpop.f32.mrf.mxu0
        %6943 = vmatprep.mubr.bf16.mxu0 0
        %6944 = vmatmul.mubr.bf16.gmra.mxu0 %v6789
        %v6945 = vpop.f32.mrf.mxu0
        %v6946 = vadd.f32 0.0, %v6945
        %v6947 = vpop.f32.mrf.mxu0
        %v6948 = vpop.f32.mrf.mxu0
        %v6949 = vadd.f32 0.0, %v6948
        %v6950 = vpop.f32.mrf.mxu0
        %6951 = vdwg.mxu0
        %v6952 = vadd.f32 %v6646, %v6826
        %v6953 = vadd.f32 %v6647, %v6829
        %v6954 = vadd.f32 %v6648, %v6834
        %v6955 = vadd.f32 %v6649, %v6837
        %v6956 = vadd.f32 %v6650, %v6842
        %v6957 = vadd.f32 %v6651, %v6845
        %v6958 = vadd.f32 %v6652, %v6850
        %v6959 = vadd.f32 %v6653, %v6853
        %v6960 = vadd.f32 %v6654, %v6858
        %v6961 = vadd.f32 %v6655, %v6861
        %v6962 = vadd.f32 %v6656, %v6866
        %v6963 = vadd.f32 %v6657, %v6869
        %v6964 = vadd.f32 %v6658, %v6874
        %v6965 = vadd.f32 %v6659, %v6877
        %v6966 = vadd.f32 %v6660, %v6882
        %v6967 = vadd.f32 %v6661, %v6885
        %v6968 = vadd.f32 %v6662, %v6890
        %v6969 = vadd.f32 %v6663, %v6893
        %v6970 = vadd.f32 %v6664, %v6898
        %v6971 = vadd.f32 %v6665, %v6901
        %v6972 = vadd.f32 %v6666, %v6906
        %v6973 = vadd.f32 %v6667, %v6909
        %v6974 = vadd.f32 %v6668, %v6914
        %v6975 = vadd.f32 %v6669, %v6917
        %v6976 = vadd.f32 %v6670, %v6922
        %v6977 = vadd.f32 %v6671, %v6925
        %v6978 = vadd.f32 %v6672, %v6930
        %v6979 = vadd.f32 %v6673, %v6933
        %v6980 = vadd.f32 %v6674, %v6938
        %v6981 = vadd.f32 %v6675, %v6941
        %v6982 = vadd.f32 %v6676, %v6946
        %v6983 = vadd.f32 %v6677, %v6949
        %v6984 = vld [vmem:[#allocation3 + $0x21] sm:$0xff]
        %v6985 = vld [vmem:[#allocation3 + $0x29] sm:$0xff]
        %v6986 = vld [vmem:[#allocation3 + $0x31] sm:$0xff]
        %v6987 = vld [vmem:[#allocation3 + $0x39] sm:$0xff]
        %v6988 = vld [vmem:[#allocation3 + $0x41] sm:$0xff]
        %v6989 = vld [vmem:[#allocation3 + $0x49] sm:$0xff]
        %v6990 = vld [vmem:[#allocation3 + $0x51] sm:$0xff]
        %v6991 = vld [vmem:[#allocation3 + $0x59] sm:$0xff]
        %v6992 = vld [vmem:[#allocation3 + $0x61] sm:$0xff]
        %v6993 = vld [vmem:[#allocation3 + $0x69] sm:$0xff]
        %v6994 = vld [vmem:[#allocation3 + $0x71] sm:$0xff]
        %v6995 = vld [vmem:[#allocation3 + $0x79] sm:$0xff]
        %v6996 = vld [vmem:[#allocation3 + $0x81] sm:$0xff]
        %v6997 = vld [vmem:[#allocation3 + $0x89] sm:$0xff]
        %v6998 = vld [vmem:[#allocation3 + $0x91] sm:$0xff]
        %v6999 = vld [vmem:[#allocation3 + $0x99] sm:$0xff]
        %v7000 = vld [vmem:[#allocation3 + $0xa1] sm:$0xff]
        %v7001 = vld [vmem:[#allocation3 + $0xa9] sm:$0xff]
        %v7002 = vld [vmem:[#allocation3 + $0xb1] sm:$0xff]
        %v7003 = vld [vmem:[#allocation3 + $0xb9] sm:$0xff]
        %v7004 = vld [vmem:[#allocation3 + $0xc1] sm:$0xff]
        %v7005 = vld [vmem:[#allocation3 + $0xc9] sm:$0xff]
        %v7006 = vld [vmem:[#allocation3 + $0xd1] sm:$0xff]
        %v7007 = vld [vmem:[#allocation3 + $0xd9] sm:$0xff]
        %v7008 = vld [vmem:[#allocation3 + $0xe1] sm:$0xff]
        %v7009 = vld [vmem:[#allocation3 + $0xe9] sm:$0xff]
        %v7010 = vld [vmem:[#allocation3 + $0xf1] sm:$0xff]
        %v7011 = vld [vmem:[#allocation3 + $0xf9] sm:$0xff]
        %v7012 = vld [vmem:[#allocation3 + $0x101] sm:$0xff]
        %v7013 = vld [vmem:[#allocation3 + $0x109] sm:$0xff]
        %v7014 = vld [vmem:[#allocation3 + $0x111] sm:$0xff]
        %v7015 = vld [vmem:[#allocation3 + $0x119] sm:$0xff]
        %v7016 = vpack.c.bf16 %v6985, %v6984
        %v7017 = vpack.c.bf16 %v6987, %v6986
        %v7018 = vpack.c.bf16 %v6989, %v6988
        %v7019 = vpack.c.bf16 %v6991, %v6990
        %v7020 = vpack.c.bf16 %v6993, %v6992
        %v7021 = vpack.c.bf16 %v6995, %v6994
        %v7022 = vpack.c.bf16 %v6997, %v6996
        %v7023 = vpack.c.bf16 %v6999, %v6998
        %v7024 = vpack.c.bf16 %v7001, %v7000
        %v7025 = vpack.c.bf16 %v7003, %v7002
        %v7026 = vpack.c.bf16 %v7005, %v7004
        %v7027 = vpack.c.bf16 %v7007, %v7006
        %v7028 = vpack.c.bf16 %v7009, %v7008
        %v7029 = vpack.c.bf16 %v7011, %v7010
        %v7030 = vpack.c.bf16 %v7013, %v7012
        %v7031 = vpack.c.bf16 %v7015, %v7014
        %v7032 = vmul.bf16 %v7016, %v6050
        %v7033 = vmul.bf16 %v7017, %v6051
        %v7034 = vmul.bf16 %v7018, %v6052
        %v7035 = vmul.bf16 %v7019, %v6053
        %v7036 = vmul.bf16 %v7020, %v6054
        %v7037 = vmul.bf16 %v7021, %v6055
        %v7038 = vmul.bf16 %v7022, %v6056
        %v7039 = vmul.bf16 %v7023, %v6057
        %v7040 = vmul.bf16 %v7024, %v6058
        %v7041 = vmul.bf16 %v7025, %v6059
        %v7042 = vmul.bf16 %v7026, %v6060
        %v7043 = vmul.bf16 %v7027, %v6061
        %v7044 = vmul.bf16 %v7028, %v6062
        %v7045 = vmul.bf16 %v7029, %v6063
        %v7046 = vmul.bf16 %v7030, %v6064
        %v7047 = vmul.bf16 %v7031, %v6065
        %s7048 = scalar_lea.vmem %s6, 80
        %v7049 = vld [vmem:[%s7048] sm:$0xf]
        %v7050 = vld [vmem:[%s7048 + $0x4] sm:$0xf]
        %v7051 = vld [vmem:[%s7048 + $0x8] sm:$0xf]
        %v7052 = vld [vmem:[%s7048 + $0xc] sm:$0xf]
        %v7057 = vunpack.c.l.b16 %v7049
        %v7058 = vunpack.c.l.b16 %v7050
        %v7059 = vunpack.c.l.b16 %v7051
        %v7060 = vunpack.c.l.b16 %v7052
        %v7061 = vpack.c.b16 %v7058, %v7057
        %v7062 = vpack.c.b16 %v7060, %v7059
        %v7066 = vsel %vm4374, %v7032, 0
        %v7069 = vsel %vm4374, %v7033, 0
        %v7072 = vsel %vm4374, %v7034, 0
        %v7075 = vsel %vm4374, %v7035, 0
        %v7078 = vsel %vm4374, %v7036, 0
        %v7081 = vsel %vm4374, %v7037, 0
        %v7084 = vsel %vm4374, %v7038, 0
        %v7087 = vsel %vm4374, %v7039, 0
        %v7090 = vsel %vm4374, %v7040, 0
        %v7093 = vsel %vm4374, %v7041, 0
        %v7096 = vsel %vm4374, %v7042, 0
        %v7099 = vsel %vm4374, %v7043, 0
        %v7102 = vsel %vm4374, %v7044, 0
        %v7105 = vsel %vm4374, %v7045, 0
        %v7108 = vsel %vm4374, %v7046, 0
        %v7111 = vsel %vm4374, %v7047, 0
        %7113 = vmatprep.subr.bf16.mxu0 0
        %7114 = vmatpush1.bf16.msra.mxu0 0
        %7115 = vmatprep.subr.bf16.mxu0 0
        %7116 = vmatpush1.bf16.msra.mxu0 0
        %7117 = vmatprep.subr.bf16.mxu0 0
        %7118 = vmatpush1.bf16.msra.mxu0 0
        %7119 = vmatprep.subr.bf16.mxu0 0
        %7120 = vmatpush1.bf16.msra.mxu0 0
        %7121 = vmatprep.subr.bf16.mxu0 0
        %7122 = vmatpush1.bf16.msra.mxu0 0
        %7123 = vmatprep.subr.bf16.mxu0 0
        %7124 = vmatpush1.bf16.msra.mxu0 0
        %7125 = vmatprep.subr.bf16.mxu0 0
        %7126 = vmatpush1.bf16.msra.mxu0 %v7062
        %7127 = vmatprep.subr.bf16.mxu0 0
        %7128 = vmatpush1.bf16.msra.mxu0 %v7061
        %7129 = vmatprep.subr.bf16.mxu0 0
        %7130 = vmatpush2.bf16.msra.mxu0 0
        %7131 = vmatprep.subr.bf16.mxu0 0
        %7132 = vmatpush2.bf16.msra.mxu0 0
        %7133 = vmatprep.subr.bf16.mxu0 0
        %7134 = vmatpush2.bf16.msra.mxu0 0
        %7135 = vmatprep.subr.bf16.mxu0 0
        %7136 = vmatpush2.bf16.msra.mxu0 0
        %7137 = vmatprep.subr.bf16.mxu0 0
        %7138 = vmatpush2.bf16.msra.mxu0 0
        %7139 = vmatprep.subr.bf16.mxu0 0
        %7140 = vmatpush2.bf16.msra.mxu0 0
        %7141 = vmatprep.subr.bf16.mxu0 0
        %7142 = vmatpush2.bf16.msra.mxu0 0
        %7143 = vmatprep.subr.bf16.mxu0 0
        %7144 = vmatpush2.bf16.msra.mxu0 0
        %7145 = vmatprep.mubr.bf16.mxu0 0
        %7146 = vmatmul.mubr.bf16.gmra.mxu0 %v7066
        %v7147 = vpop.f32.mrf.mxu0
        %v7148 = vadd.f32 0.0, %v7147
        %v7149 = vpop.f32.mrf.mxu0
        %v7150 = vpop.f32.mrf.mxu0
        %v7151 = vadd.f32 0.0, %v7150
        %v7152 = vpop.f32.mrf.mxu0
        %7153 = vmatprep.mubr.bf16.mxu0 0
        %7154 = vmatmul.mubr.bf16.gmra.mxu0 %v7069
        %v7155 = vpop.f32.mrf.mxu0
        %v7156 = vadd.f32 0.0, %v7155
        %v7157 = vpop.f32.mrf.mxu0
        %v7158 = vpop.f32.mrf.mxu0
        %v7159 = vadd.f32 0.0, %v7158
        %v7160 = vpop.f32.mrf.mxu0
        %7161 = vmatprep.mubr.bf16.mxu0 0
        %7162 = vmatmul.mubr.bf16.gmra.mxu0 %v7072
        %v7163 = vpop.f32.mrf.mxu0
        %v7164 = vadd.f32 0.0, %v7163
        %v7165 = vpop.f32.mrf.mxu0
        %v7166 = vpop.f32.mrf.mxu0
        %v7167 = vadd.f32 0.0, %v7166
        %v7168 = vpop.f32.mrf.mxu0
        %7169 = vmatprep.mubr.bf16.mxu0 0
        %7170 = vmatmul.mubr.bf16.gmra.mxu0 %v7075
        %v7171 = vpop.f32.mrf.mxu0
        %v7172 = vadd.f32 0.0, %v7171
        %v7173 = vpop.f32.mrf.mxu0
        %v7174 = vpop.f32.mrf.mxu0
        %v7175 = vadd.f32 0.0, %v7174
        %v7176 = vpop.f32.mrf.mxu0
        %7177 = vmatprep.mubr.bf16.mxu0 0
        %7178 = vmatmul.mubr.bf16.gmra.mxu0 %v7078
        %v7179 = vpop.f32.mrf.mxu0
        %v7180 = vadd.f32 0.0, %v7179
        %v7181 = vpop.f32.mrf.mxu0
        %v7182 = vpop.f32.mrf.mxu0
        %v7183 = vadd.f32 0.0, %v7182
        %v7184 = vpop.f32.mrf.mxu0
        %7185 = vmatprep.mubr.bf16.mxu0 0
        %7186 = vmatmul.mubr.bf16.gmra.mxu0 %v7081
        %v7187 = vpop.f32.mrf.mxu0
        %v7188 = vadd.f32 0.0, %v7187
        %v7189 = vpop.f32.mrf.mxu0
        %v7190 = vpop.f32.mrf.mxu0
        %v7191 = vadd.f32 0.0, %v7190
        %v7192 = vpop.f32.mrf.mxu0
        %7193 = vmatprep.mubr.bf16.mxu0 0
        %7194 = vmatmul.mubr.bf16.gmra.mxu0 %v7084
        %v7195 = vpop.f32.mrf.mxu0
        %v7196 = vadd.f32 0.0, %v7195
        %v7197 = vpop.f32.mrf.mxu0
        %v7198 = vpop.f32.mrf.mxu0
        %v7199 = vadd.f32 0.0, %v7198
        %v7200 = vpop.f32.mrf.mxu0
        %7201 = vmatprep.mubr.bf16.mxu0 0
        %7202 = vmatmul.mubr.bf16.gmra.mxu0 %v7087
        %v7203 = vpop.f32.mrf.mxu0
        %v7204 = vadd.f32 0.0, %v7203
        %v7205 = vpop.f32.mrf.mxu0
        %v7206 = vpop.f32.mrf.mxu0
        %v7207 = vadd.f32 0.0, %v7206
        %v7208 = vpop.f32.mrf.mxu0
        %7209 = vmatprep.mubr.bf16.mxu0 0
        %7210 = vmatmul.mubr.bf16.gmra.mxu0 %v7090
        %v7211 = vpop.f32.mrf.mxu0
        %v7212 = vadd.f32 0.0, %v7211
        %v7213 = vpop.f32.mrf.mxu0
        %v7214 = vpop.f32.mrf.mxu0
        %v7215 = vadd.f32 0.0, %v7214
        %v7216 = vpop.f32.mrf.mxu0
        %7217 = vmatprep.mubr.bf16.mxu0 0
        %7218 = vmatmul.mubr.bf16.gmra.mxu0 %v7093
        %v7219 = vpop.f32.mrf.mxu0
        %v7220 = vadd.f32 0.0, %v7219
        %v7221 = vpop.f32.mrf.mxu0
        %v7222 = vpop.f32.mrf.mxu0
        %v7223 = vadd.f32 0.0, %v7222
        %v7224 = vpop.f32.mrf.mxu0
        %7225 = vmatprep.mubr.bf16.mxu0 0
        %7226 = vmatmul.mubr.bf16.gmra.mxu0 %v7096
        %v7227 = vpop.f32.mrf.mxu0
        %v7228 = vadd.f32 0.0, %v7227
        %v7229 = vpop.f32.mrf.mxu0
        %v7230 = vpop.f32.mrf.mxu0
        %v7231 = vadd.f32 0.0, %v7230
        %v7232 = vpop.f32.mrf.mxu0
        %7233 = vmatprep.mubr.bf16.mxu0 0
        %7234 = vmatmul.mubr.bf16.gmra.mxu0 %v7099
        %v7235 = vpop.f32.mrf.mxu0
        %v7236 = vadd.f32 0.0, %v7235
        %v7237 = vpop.f32.mrf.mxu0
        %v7238 = vpop.f32.mrf.mxu0
        %v7239 = vadd.f32 0.0, %v7238
        %v7240 = vpop.f32.mrf.mxu0
        %7241 = vmatprep.mubr.bf16.mxu0 0
        %7242 = vmatmul.mubr.bf16.gmra.mxu0 %v7102
        %v7243 = vpop.f32.mrf.mxu0
        %v7244 = vadd.f32 0.0, %v7243
        %v7245 = vpop.f32.mrf.mxu0
        %v7246 = vpop.f32.mrf.mxu0
        %v7247 = vadd.f32 0.0, %v7246
        %v7248 = vpop.f32.mrf.mxu0
        %7249 = vmatprep.mubr.bf16.mxu0 0
        %7250 = vmatmul.mubr.bf16.gmra.mxu0 %v7105
        %v7251 = vpop.f32.mrf.mxu0
        %v7252 = vadd.f32 0.0, %v7251
        %v7253 = vpop.f32.mrf.mxu0
        %v7254 = vpop.f32.mrf.mxu0
        %v7255 = vadd.f32 0.0, %v7254
        %v7256 = vpop.f32.mrf.mxu0
        %7257 = vmatprep.mubr.bf16.mxu0 0
        %7258 = vmatmul.mubr.bf16.gmra.mxu0 %v7108
        %v7259 = vpop.f32.mrf.mxu0
        %v7260 = vadd.f32 0.0, %v7259
        %v7261 = vpop.f32.mrf.mxu0
        %v7262 = vpop.f32.mrf.mxu0
        %v7263 = vadd.f32 0.0, %v7262
        %v7264 = vpop.f32.mrf.mxu0
        %7265 = vmatprep.mubr.bf16.mxu0 0
        %7266 = vmatmul.mubr.bf16.gmra.mxu0 %v7111
        %v7267 = vpop.f32.mrf.mxu0
        %v7268 = vadd.f32 0.0, %v7267
        %v7269 = vpop.f32.mrf.mxu0
        %v7270 = vpop.f32.mrf.mxu0
        %v7271 = vadd.f32 0.0, %v7270
        %v7272 = vpop.f32.mrf.mxu0
        %7273 = vdwg.mxu0
        %v7274 = vadd.f32 %v6952, %v7148
        %v7275 = vadd.f32 %v6953, %v7151
        %v7276 = vadd.f32 %v6954, %v7156
        %v7277 = vadd.f32 %v6955, %v7159
        %v7278 = vadd.f32 %v6956, %v7164
        %v7279 = vadd.f32 %v6957, %v7167
        %v7280 = vadd.f32 %v6958, %v7172
        %v7281 = vadd.f32 %v6959, %v7175
        %v7282 = vadd.f32 %v6960, %v7180
        %v7283 = vadd.f32 %v6961, %v7183
        %v7284 = vadd.f32 %v6962, %v7188
        %v7285 = vadd.f32 %v6963, %v7191
        %v7286 = vadd.f32 %v6964, %v7196
        %v7287 = vadd.f32 %v6965, %v7199
        %v7288 = vadd.f32 %v6966, %v7204
        %v7289 = vadd.f32 %v6967, %v7207
        %v7290 = vadd.f32 %v6968, %v7212
        %v7291 = vadd.f32 %v6969, %v7215
        %v7292 = vadd.f32 %v6970, %v7220
        %v7293 = vadd.f32 %v6971, %v7223
        %v7294 = vadd.f32 %v6972, %v7228
        %v7295 = vadd.f32 %v6973, %v7231
        %v7296 = vadd.f32 %v6974, %v7236
        %v7297 = vadd.f32 %v6975, %v7239
        %v7298 = vadd.f32 %v6976, %v7244
        %v7299 = vadd.f32 %v6977, %v7247
        %v7300 = vadd.f32 %v6978, %v7252
        %v7301 = vadd.f32 %v6979, %v7255
        %v7302 = vadd.f32 %v6980, %v7260
        %v7303 = vadd.f32 %v6981, %v7263
        %v7304 = vadd.f32 %v6982, %v7268
        %v7305 = vadd.f32 %v6983, %v7271
        %v7306 = vld [vmem:[#allocation3 + $0x2f] sm:$0xff]
        %v7307 = vld [vmem:[#allocation3 + $0x37] sm:$0xff]
        %v7308 = vld [vmem:[#allocation3 + $0x3f] sm:$0xff]
        %v7309 = vld [vmem:[#allocation3 + $0x47] sm:$0xff]
        %v7310 = vld [vmem:[#allocation3 + $0x4f] sm:$0xff]
        %v7311 = vld [vmem:[#allocation3 + $0x57] sm:$0xff]
        %v7312 = vld [vmem:[#allocation3 + $0x5f] sm:$0xff]
        %v7313 = vld [vmem:[#allocation3 + $0x67] sm:$0xff]
        %v7314 = vld [vmem:[#allocation3 + $0x6f] sm:$0xff]
        %v7315 = vld [vmem:[#allocation3 + $0x77] sm:$0xff]
        %v7316 = vld [vmem:[#allocation3 + $0x7f] sm:$0xff]
        %v7317 = vld [vmem:[#allocation3 + $0x87] sm:$0xff]
        %v7318 = vld [vmem:[#allocation3 + $0x8f] sm:$0xff]
        %v7319 = vld [vmem:[#allocation3 + $0x97] sm:$0xff]
        %v7320 = vld [vmem:[#allocation3 + $0x9f] sm:$0xff]
        %v7321 = vld [vmem:[#allocation3 + $0xa7] sm:$0xff]
        %v7322 = vld [vmem:[#allocation3 + $0xaf] sm:$0xff]
        %v7323 = vld [vmem:[#allocation3 + $0xb7] sm:$0xff]
        %v7324 = vld [vmem:[#allocation3 + $0xbf] sm:$0xff]
        %v7325 = vld [vmem:[#allocation3 + $0xc7] sm:$0xff]
        %v7326 = vld [vmem:[#allocation3 + $0xcf] sm:$0xff]
        %v7327 = vld [vmem:[#allocation3 + $0xd7] sm:$0xff]
        %v7328 = vld [vmem:[#allocation3 + $0xdf] sm:$0xff]
        %v7329 = vld [vmem:[#allocation3 + $0xe7] sm:$0xff]
        %v7330 = vld [vmem:[#allocation3 + $0xef] sm:$0xff]
        %v7331 = vld [vmem:[#allocation3 + $0xf7] sm:$0xff]
        %v7332 = vld [vmem:[#allocation3 + $0xff] sm:$0xff]
        %v7333 = vld [vmem:[#allocation3 + $0x107] sm:$0xff]
        %v7334 = vld [vmem:[#allocation3 + $0x10f] sm:$0xff]
        %v7335 = vld [vmem:[#allocation3 + $0x117] sm:$0xff]
        %v7336 = vld [vmem:[#allocation3 + $0x11f] sm:$0xff]
        %v7337 = vld [vmem:[#allocation3 + $0x127] sm:$0xff]
        %v7338 = vpack.c.bf16 %v7307, %v7306
        %v7339 = vpack.c.bf16 %v7309, %v7308
        %v7340 = vpack.c.bf16 %v7311, %v7310
        %v7341 = vpack.c.bf16 %v7313, %v7312
        %v7342 = vpack.c.bf16 %v7315, %v7314
        %v7343 = vpack.c.bf16 %v7317, %v7316
        %v7344 = vpack.c.bf16 %v7319, %v7318
        %v7345 = vpack.c.bf16 %v7321, %v7320
        %v7346 = vpack.c.bf16 %v7323, %v7322
        %v7347 = vpack.c.bf16 %v7325, %v7324
        %v7348 = vpack.c.bf16 %v7327, %v7326
        %v7349 = vpack.c.bf16 %v7329, %v7328
        %v7350 = vpack.c.bf16 %v7331, %v7330
        %v7351 = vpack.c.bf16 %v7333, %v7332
        %v7352 = vpack.c.bf16 %v7335, %v7334
        %v7353 = vpack.c.bf16 %v7337, %v7336
        %v7354 = vmul.bf16 %v7338, %v4975
        %v7355 = vmul.bf16 %v7339, %v4976
        %v7356 = vmul.bf16 %v7340, %v4977
        %v7357 = vmul.bf16 %v7341, %v4978
        %v7358 = vmul.bf16 %v7342, %v4979
        %v7359 = vmul.bf16 %v7343, %v4980
        %v7360 = vmul.bf16 %v7344, %v4981
        %v7361 = vmul.bf16 %v7345, %v4982
        %v7362 = vmul.bf16 %v7346, %v4983
        %v7363 = vmul.bf16 %v7347, %v4984
        %v7364 = vmul.bf16 %v7348, %v4985
        %v7365 = vmul.bf16 %v7349, %v4986
        %v7366 = vmul.bf16 %v7350, %v4987
        %v7367 = vmul.bf16 %v7351, %v4988
        %v7368 = vmul.bf16 %v7352, %v4989
        %v7369 = vmul.bf16 %v7353, %v4990
        %s7370 = scalar_lea.vmem %s6, 96
        %v7371 = vld [vmem:[%s7370] sm:$0xf]
        %v7372 = vld [vmem:[%s7370 + $0x4] sm:$0xf]
        %v7373 = vld [vmem:[%s7370 + $0x8] sm:$0xf]
        %v7374 = vld [vmem:[%s7370 + $0xc] sm:$0xf]
        %v7379 = vunpack.c.l.b16 %v7371
        %v7380 = vunpack.c.l.b16 %v7372
        %v7381 = vunpack.c.l.b16 %v7373
        %v7382 = vunpack.c.l.b16 %v7374
        %v7383 = vpack.c.b16 %v7380, %v7379
        %v7384 = vpack.c.b16 %v7382, %v7381
        %v7388 = vsel %vm4374, %v7354, 0
        %v7391 = vsel %vm4374, %v7355, 0
        %v7394 = vsel %vm4374, %v7356, 0
        %v7397 = vsel %vm4374, %v7357, 0
        %v7400 = vsel %vm4374, %v7358, 0
        %v7403 = vsel %vm4374, %v7359, 0
        %v7406 = vsel %vm4374, %v7360, 0
        %v7409 = vsel %vm4374, %v7361, 0
        %v7412 = vsel %vm4374, %v7362, 0
        %v7415 = vsel %vm4374, %v7363, 0
        %v7418 = vsel %vm4374, %v7364, 0
        %v7421 = vsel %vm4374, %v7365, 0
        %v7424 = vsel %vm4374, %v7366, 0
        %v7427 = vsel %vm4374, %v7367, 0
        %v7430 = vsel %vm4374, %v7368, 0
        %v7433 = vsel %vm4374, %v7369, 0
        %7435 = vmatprep.subr.bf16.mxu0 0
        %7436 = vmatpush1.bf16.msra.mxu0 0
        %7437 = vmatprep.subr.bf16.mxu0 0
        %7438 = vmatpush1.bf16.msra.mxu0 0
        %7439 = vmatprep.subr.bf16.mxu0 0
        %7440 = vmatpush1.bf16.msra.mxu0 0
        %7441 = vmatprep.subr.bf16.mxu0 0
        %7442 = vmatpush1.bf16.msra.mxu0 0
        %7443 = vmatprep.subr.bf16.mxu0 0
        %7444 = vmatpush1.bf16.msra.mxu0 0
        %7445 = vmatprep.subr.bf16.mxu0 0
        %7446 = vmatpush1.bf16.msra.mxu0 0
        %7447 = vmatprep.subr.bf16.mxu0 0
        %7448 = vmatpush1.bf16.msra.mxu0 %v7384
        %7449 = vmatprep.subr.bf16.mxu0 0
        %7450 = vmatpush1.bf16.msra.mxu0 %v7383
        %7451 = vmatprep.subr.bf16.mxu0 0
        %7452 = vmatpush2.bf16.msra.mxu0 0
        %7453 = vmatprep.subr.bf16.mxu0 0
        %7454 = vmatpush2.bf16.msra.mxu0 0
        %7455 = vmatprep.subr.bf16.mxu0 0
        %7456 = vmatpush2.bf16.msra.mxu0 0
        %7457 = vmatprep.subr.bf16.mxu0 0
        %7458 = vmatpush2.bf16.msra.mxu0 0
        %7459 = vmatprep.subr.bf16.mxu0 0
        %7460 = vmatpush2.bf16.msra.mxu0 0
        %7461 = vmatprep.subr.bf16.mxu0 0
        %7462 = vmatpush2.bf16.msra.mxu0 0
        %7463 = vmatprep.subr.bf16.mxu0 0
        %7464 = vmatpush2.bf16.msra.mxu0 0
        %7465 = vmatprep.subr.bf16.mxu0 0
        %7466 = vmatpush2.bf16.msra.mxu0 0
        %7467 = vmatprep.mubr.bf16.mxu0 0
        %7468 = vmatmul.mubr.bf16.gmra.mxu0 %v7388
        %v7469 = vpop.f32.mrf.mxu0
        %v7470 = vadd.f32 0.0, %v7469
        %v7471 = vpop.f32.mrf.mxu0
        %v7472 = vpop.f32.mrf.mxu0
        %v7473 = vadd.f32 0.0, %v7472
        %v7474 = vpop.f32.mrf.mxu0
        %7475 = vmatprep.mubr.bf16.mxu0 0
        %7476 = vmatmul.mubr.bf16.gmra.mxu0 %v7391
        %v7477 = vpop.f32.mrf.mxu0
        %v7478 = vadd.f32 0.0, %v7477
        %v7479 = vpop.f32.mrf.mxu0
        %v7480 = vpop.f32.mrf.mxu0
        %v7481 = vadd.f32 0.0, %v7480
        %v7482 = vpop.f32.mrf.mxu0
        %7483 = vmatprep.mubr.bf16.mxu0 0
        %7484 = vmatmul.mubr.bf16.gmra.mxu0 %v7394
        %v7485 = vpop.f32.mrf.mxu0
        %v7486 = vadd.f32 0.0, %v7485
        %v7487 = vpop.f32.mrf.mxu0
        %v7488 = vpop.f32.mrf.mxu0
        %v7489 = vadd.f32 0.0, %v7488
        %v7490 = vpop.f32.mrf.mxu0
        %7491 = vmatprep.mubr.bf16.mxu0 0
        %7492 = vmatmul.mubr.bf16.gmra.mxu0 %v7397
        %v7493 = vpop.f32.mrf.mxu0
        %v7494 = vadd.f32 0.0, %v7493
        %v7495 = vpop.f32.mrf.mxu0
        %v7496 = vpop.f32.mrf.mxu0
        %v7497 = vadd.f32 0.0, %v7496
        %v7498 = vpop.f32.mrf.mxu0
        %7499 = vmatprep.mubr.bf16.mxu0 0
        %7500 = vmatmul.mubr.bf16.gmra.mxu0 %v7400
        %v7501 = vpop.f32.mrf.mxu0
        %v7502 = vadd.f32 0.0, %v7501
        %v7503 = vpop.f32.mrf.mxu0
        %v7504 = vpop.f32.mrf.mxu0
        %v7505 = vadd.f32 0.0, %v7504
        %v7506 = vpop.f32.mrf.mxu0
        %7507 = vmatprep.mubr.bf16.mxu0 0
        %7508 = vmatmul.mubr.bf16.gmra.mxu0 %v7403
        %v7509 = vpop.f32.mrf.mxu0
        %v7510 = vadd.f32 0.0, %v7509
        %v7511 = vpop.f32.mrf.mxu0
        %v7512 = vpop.f32.mrf.mxu0
        %v7513 = vadd.f32 0.0, %v7512
        %v7514 = vpop.f32.mrf.mxu0
        %7515 = vmatprep.mubr.bf16.mxu0 0
        %7516 = vmatmul.mubr.bf16.gmra.mxu0 %v7406
        %v7517 = vpop.f32.mrf.mxu0
        %v7518 = vadd.f32 0.0, %v7517
        %v7519 = vpop.f32.mrf.mxu0
        %v7520 = vpop.f32.mrf.mxu0
        %v7521 = vadd.f32 0.0, %v7520
        %v7522 = vpop.f32.mrf.mxu0
        %7523 = vmatprep.mubr.bf16.mxu0 0
        %7524 = vmatmul.mubr.bf16.gmra.mxu0 %v7409
        %v7525 = vpop.f32.mrf.mxu0
        %v7526 = vadd.f32 0.0, %v7525
        %v7527 = vpop.f32.mrf.mxu0
        %v7528 = vpop.f32.mrf.mxu0
        %v7529 = vadd.f32 0.0, %v7528
        %v7530 = vpop.f32.mrf.mxu0
        %7531 = vmatprep.mubr.bf16.mxu0 0
        %7532 = vmatmul.mubr.bf16.gmra.mxu0 %v7412
        %v7533 = vpop.f32.mrf.mxu0
        %v7534 = vadd.f32 0.0, %v7533
        %v7535 = vpop.f32.mrf.mxu0
        %v7536 = vpop.f32.mrf.mxu0
        %v7537 = vadd.f32 0.0, %v7536
        %v7538 = vpop.f32.mrf.mxu0
        %7539 = vmatprep.mubr.bf16.mxu0 0
        %7540 = vmatmul.mubr.bf16.gmra.mxu0 %v7415
        %v7541 = vpop.f32.mrf.mxu0
        %v7542 = vadd.f32 0.0, %v7541
        %v7543 = vpop.f32.mrf.mxu0
        %v7544 = vpop.f32.mrf.mxu0
        %v7545 = vadd.f32 0.0, %v7544
        %v7546 = vpop.f32.mrf.mxu0
        %7547 = vmatprep.mubr.bf16.mxu0 0
        %7548 = vmatmul.mubr.bf16.gmra.mxu0 %v7418
        %v7549 = vpop.f32.mrf.mxu0
        %v7550 = vadd.f32 0.0, %v7549
        %v7551 = vpop.f32.mrf.mxu0
        %v7552 = vpop.f32.mrf.mxu0
        %v7553 = vadd.f32 0.0, %v7552
        %v7554 = vpop.f32.mrf.mxu0
        %7555 = vmatprep.mubr.bf16.mxu0 0
        %7556 = vmatmul.mubr.bf16.gmra.mxu0 %v7421
        %v7557 = vpop.f32.mrf.mxu0
        %v7558 = vadd.f32 0.0, %v7557
        %v7559 = vpop.f32.mrf.mxu0
        %v7560 = vpop.f32.mrf.mxu0
        %v7561 = vadd.f32 0.0, %v7560
        %v7562 = vpop.f32.mrf.mxu0
        %7563 = vmatprep.mubr.bf16.mxu0 0
        %7564 = vmatmul.mubr.bf16.gmra.mxu0 %v7424
        %v7565 = vpop.f32.mrf.mxu0
        %v7566 = vadd.f32 0.0, %v7565
        %v7567 = vpop.f32.mrf.mxu0
        %v7568 = vpop.f32.mrf.mxu0
        %v7569 = vadd.f32 0.0, %v7568
        %v7570 = vpop.f32.mrf.mxu0
        %7571 = vmatprep.mubr.bf16.mxu0 0
        %7572 = vmatmul.mubr.bf16.gmra.mxu0 %v7427
        %v7573 = vpop.f32.mrf.mxu0
        %v7574 = vadd.f32 0.0, %v7573
        %v7575 = vpop.f32.mrf.mxu0
        %v7576 = vpop.f32.mrf.mxu0
        %v7577 = vadd.f32 0.0, %v7576
        %v7578 = vpop.f32.mrf.mxu0
        %7579 = vmatprep.mubr.bf16.mxu0 0
        %7580 = vmatmul.mubr.bf16.gmra.mxu0 %v7430
        %v7581 = vpop.f32.mrf.mxu0
        %v7582 = vadd.f32 0.0, %v7581
        %v7583 = vpop.f32.mrf.mxu0
        %v7584 = vpop.f32.mrf.mxu0
        %v7585 = vadd.f32 0.0, %v7584
        %v7586 = vpop.f32.mrf.mxu0
        %7587 = vmatprep.mubr.bf16.mxu0 0
        %7588 = vmatmul.mubr.bf16.gmra.mxu0 %v7433
        %v7589 = vpop.f32.mrf.mxu0
        %v7590 = vadd.f32 0.0, %v7589
        %v7591 = vpop.f32.mrf.mxu0
        %v7592 = vpop.f32.mrf.mxu0
        %v7593 = vadd.f32 0.0, %v7592
        %v7594 = vpop.f32.mrf.mxu0
        %7595 = vdwg.mxu0
        %v7596 = vadd.f32 %v7274, %v7470
        %v7597 = vadd.f32 %v7275, %v7473
        %v7598 = vadd.f32 %v7276, %v7478
        %v7599 = vadd.f32 %v7277, %v7481
        %v7600 = vadd.f32 %v7278, %v7486
        %v7601 = vadd.f32 %v7279, %v7489
        %v7602 = vadd.f32 %v7280, %v7494
        %v7603 = vadd.f32 %v7281, %v7497
        %v7604 = vadd.f32 %v7282, %v7502
        %v7605 = vadd.f32 %v7283, %v7505
        %v7606 = vadd.f32 %v7284, %v7510
        %v7607 = vadd.f32 %v7285, %v7513
        %v7608 = vadd.f32 %v7286, %v7518
        %v7609 = vadd.f32 %v7287, %v7521
        %v7610 = vadd.f32 %v7288, %v7526
        %v7611 = vadd.f32 %v7289, %v7529
        %v7612 = vadd.f32 %v7290, %v7534
        %v7613 = vadd.f32 %v7291, %v7537
        %v7614 = vadd.f32 %v7292, %v7542
        %v7615 = vadd.f32 %v7293, %v7545
        %v7616 = vadd.f32 %v7294, %v7550
        %v7617 = vadd.f32 %v7295, %v7553
        %v7618 = vadd.f32 %v7296, %v7558
        %v7619 = vadd.f32 %v7297, %v7561
        %v7620 = vadd.f32 %v7298, %v7566
        %v7621 = vadd.f32 %v7299, %v7569
        %v7622 = vadd.f32 %v7300, %v7574
        %v7623 = vadd.f32 %v7301, %v7577
        %v7624 = vadd.f32 %v7302, %v7582
        %v7625 = vadd.f32 %v7303, %v7585
        %v7626 = vadd.f32 %v7304, %v7590
        %v7627 = vadd.f32 %v7305, %v7593
        %v7628 = vld [vmem:[#allocation3 + $0x30] sm:$0xff]
        %v7629 = vld [vmem:[#allocation3 + $0x38] sm:$0xff]
        %v7630 = vld [vmem:[#allocation3 + $0x40] sm:$0xff]
        %v7631 = vld [vmem:[#allocation3 + $0x48] sm:$0xff]
        %v7632 = vld [vmem:[#allocation3 + $0x50] sm:$0xff]
        %v7633 = vld [vmem:[#allocation3 + $0x58] sm:$0xff]
        %v7634 = vld [vmem:[#allocation3 + $0x60] sm:$0xff]
        %v7635 = vld [vmem:[#allocation3 + $0x68] sm:$0xff]
        %v7636 = vld [vmem:[#allocation3 + $0x70] sm:$0xff]
        %v7637 = vld [vmem:[#allocation3 + $0x78] sm:$0xff]
        %v7638 = vld [vmem:[#allocation3 + $0x80] sm:$0xff]
        %v7639 = vld [vmem:[#allocation3 + $0x88] sm:$0xff]
        %v7640 = vld [vmem:[#allocation3 + $0x90] sm:$0xff]
        %v7641 = vld [vmem:[#allocation3 + $0x98] sm:$0xff]
        %v7642 = vld [vmem:[#allocation3 + $0xa0] sm:$0xff]
        %v7643 = vld [vmem:[#allocation3 + $0xa8] sm:$0xff]
        %v7644 = vld [vmem:[#allocation3 + $0xb0] sm:$0xff]
        %v7645 = vld [vmem:[#allocation3 + $0xb8] sm:$0xff]
        %v7646 = vld [vmem:[#allocation3 + $0xc0] sm:$0xff]
        %v7647 = vld [vmem:[#allocation3 + $0xc8] sm:$0xff]
        %v7648 = vld [vmem:[#allocation3 + $0xd0] sm:$0xff]
        %v7649 = vld [vmem:[#allocation3 + $0xd8] sm:$0xff]
        %v7650 = vld [vmem:[#allocation3 + $0xe0] sm:$0xff]
        %v7651 = vld [vmem:[#allocation3 + $0xe8] sm:$0xff]
        %v7652 = vld [vmem:[#allocation3 + $0xf0] sm:$0xff]
        %v7653 = vld [vmem:[#allocation3 + $0xf8] sm:$0xff]
        %v7654 = vld [vmem:[#allocation3 + $0x100] sm:$0xff]
        %v7655 = vld [vmem:[#allocation3 + $0x108] sm:$0xff]
        %v7656 = vld [vmem:[#allocation3 + $0x110] sm:$0xff]
        %v7657 = vld [vmem:[#allocation3 + $0x118] sm:$0xff]
        %v7658 = vld [vmem:[#allocation3 + $0x120] sm:$0xff]
        %v7659 = vld [vmem:[#allocation3 + $0x128] sm:$0xff]
        %v7660 = vpack.c.bf16 %v7629, %v7628
        %v7661 = vpack.c.bf16 %v7631, %v7630
        %v7662 = vpack.c.bf16 %v7633, %v7632
        %v7663 = vpack.c.bf16 %v7635, %v7634
        %v7664 = vpack.c.bf16 %v7637, %v7636
        %v7665 = vpack.c.bf16 %v7639, %v7638
        %v7666 = vpack.c.bf16 %v7641, %v7640
        %v7667 = vpack.c.bf16 %v7643, %v7642
        %v7668 = vpack.c.bf16 %v7645, %v7644
        %v7669 = vpack.c.bf16 %v7647, %v7646
        %v7670 = vpack.c.bf16 %v7649, %v7648
        %v7671 = vpack.c.bf16 %v7651, %v7650
        %v7672 = vpack.c.bf16 %v7653, %v7652
        %v7673 = vpack.c.bf16 %v7655, %v7654
        %v7674 = vpack.c.bf16 %v7657, %v7656
        %v7675 = vpack.c.bf16 %v7659, %v7658
        %s7676 = scalar_lea.vmem %s6, 112
        %v7677 = vld [vmem:[%s7676] sm:$0xf]
        %v7678 = vld [vmem:[%s7676 + $0x4] sm:$0xf]
        %v7679 = vld [vmem:[%s7676 + $0x8] sm:$0xf]
        %v7680 = vld [vmem:[%s7676 + $0xc] sm:$0xf]
        %v7685 = vunpack.c.l.b16 %v7677
        %v7686 = vunpack.c.l.b16 %v7678
        %v7687 = vunpack.c.l.b16 %v7679
        %v7688 = vunpack.c.l.b16 %v7680
        %v7689 = vpack.c.b16 %v7686, %v7685
        %v7690 = vpack.c.b16 %v7688, %v7687
        %v7694 = vsel %vm4374, %v7660, 0
        %v7697 = vsel %vm4374, %v7661, 0
        %v7700 = vsel %vm4374, %v7662, 0
        %v7703 = vsel %vm4374, %v7663, 0
        %v7706 = vsel %vm4374, %v7664, 0
        %v7709 = vsel %vm4374, %v7665, 0
        %v7712 = vsel %vm4374, %v7666, 0
        %v7715 = vsel %vm4374, %v7667, 0
        %v7718 = vsel %vm4374, %v7668, 0
        %v7721 = vsel %vm4374, %v7669, 0
        %v7724 = vsel %vm4374, %v7670, 0
        %v7727 = vsel %vm4374, %v7671, 0
        %v7730 = vsel %vm4374, %v7672, 0
        %v7733 = vsel %vm4374, %v7673, 0
        %v7736 = vsel %vm4374, %v7674, 0
        %v7739 = vsel %vm4374, %v7675, 0
        %7741 = vmatprep.subr.bf16.mxu0 0
        %7742 = vmatpush1.bf16.msra.mxu0 0
        %7743 = vmatprep.subr.bf16.mxu0 0
        %7744 = vmatpush1.bf16.msra.mxu0 0
        %7745 = vmatprep.subr.bf16.mxu0 0
        %7746 = vmatpush1.bf16.msra.mxu0 0
        %7747 = vmatprep.subr.bf16.mxu0 0
        %7748 = vmatpush1.bf16.msra.mxu0 0
        %7749 = vmatprep.subr.bf16.mxu0 0
        %7750 = vmatpush1.bf16.msra.mxu0 0
        %7751 = vmatprep.subr.bf16.mxu0 0
        %7752 = vmatpush1.bf16.msra.mxu0 0
        %7753 = vmatprep.subr.bf16.mxu0 0
        %7754 = vmatpush1.bf16.msra.mxu0 %v7690
        %7755 = vmatprep.subr.bf16.mxu0 0
        %7756 = vmatpush1.bf16.msra.mxu0 %v7689
        %7757 = vmatprep.subr.bf16.mxu0 0
        %7758 = vmatpush2.bf16.msra.mxu0 0
        %7759 = vmatprep.subr.bf16.mxu0 0
        %7760 = vmatpush2.bf16.msra.mxu0 0
        %7761 = vmatprep.subr.bf16.mxu0 0
        %7762 = vmatpush2.bf16.msra.mxu0 0
        %7763 = vmatprep.subr.bf16.mxu0 0
        %7764 = vmatpush2.bf16.msra.mxu0 0
        %7765 = vmatprep.subr.bf16.mxu0 0
        %7766 = vmatpush2.bf16.msra.mxu0 0
        %7767 = vmatprep.subr.bf16.mxu0 0
        %7768 = vmatpush2.bf16.msra.mxu0 0
        %7769 = vmatprep.subr.bf16.mxu0 0
        %7770 = vmatpush2.bf16.msra.mxu0 0
        %7771 = vmatprep.subr.bf16.mxu0 0
        %7772 = vmatpush2.bf16.msra.mxu0 0
        %7773 = vmatprep.mubr.bf16.mxu0 0
        %7774 = vmatmul.mubr.bf16.gmra.mxu0 %v7694
        %v7775 = vpop.f32.mrf.mxu0
        %v7776 = vadd.f32 0.0, %v7775
        %v7777 = vpop.f32.mrf.mxu0
        %v7778 = vpop.f32.mrf.mxu0
        %v7779 = vadd.f32 0.0, %v7778
        %v7780 = vpop.f32.mrf.mxu0
        %7781 = vmatprep.mubr.bf16.mxu0 0
        %7782 = vmatmul.mubr.bf16.gmra.mxu0 %v7697
        %v7783 = vpop.f32.mrf.mxu0
        %v7784 = vadd.f32 0.0, %v7783
        %v7785 = vpop.f32.mrf.mxu0
        %v7786 = vpop.f32.mrf.mxu0
        %v7787 = vadd.f32 0.0, %v7786
        %v7788 = vpop.f32.mrf.mxu0
        %7789 = vmatprep.mubr.bf16.mxu0 0
        %7790 = vmatmul.mubr.bf16.gmra.mxu0 %v7700
        %v7791 = vpop.f32.mrf.mxu0
        %v7792 = vadd.f32 0.0, %v7791
        %v7793 = vpop.f32.mrf.mxu0
        %v7794 = vpop.f32.mrf.mxu0
        %v7795 = vadd.f32 0.0, %v7794
        %v7796 = vpop.f32.mrf.mxu0
        %7797 = vmatprep.mubr.bf16.mxu0 0
        %7798 = vmatmul.mubr.bf16.gmra.mxu0 %v7703
        %v7799 = vpop.f32.mrf.mxu0
        %v7800 = vadd.f32 0.0, %v7799
        %v7801 = vpop.f32.mrf.mxu0
        %v7802 = vpop.f32.mrf.mxu0
        %v7803 = vadd.f32 0.0, %v7802
        %v7804 = vpop.f32.mrf.mxu0
        %7805 = vmatprep.mubr.bf16.mxu0 0
        %7806 = vmatmul.mubr.bf16.gmra.mxu0 %v7706
        %v7807 = vpop.f32.mrf.mxu0
        %v7808 = vadd.f32 0.0, %v7807
        %v7809 = vpop.f32.mrf.mxu0
        %v7810 = vpop.f32.mrf.mxu0
        %v7811 = vadd.f32 0.0, %v7810
        %v7812 = vpop.f32.mrf.mxu0
        %7813 = vmatprep.mubr.bf16.mxu0 0
        %7814 = vmatmul.mubr.bf16.gmra.mxu0 %v7709
        %v7815 = vpop.f32.mrf.mxu0
        %v7816 = vadd.f32 0.0, %v7815
        %v7817 = vpop.f32.mrf.mxu0
        %v7818 = vpop.f32.mrf.mxu0
        %v7819 = vadd.f32 0.0, %v7818
        %v7820 = vpop.f32.mrf.mxu0
        %7821 = vmatprep.mubr.bf16.mxu0 0
        %7822 = vmatmul.mubr.bf16.gmra.mxu0 %v7712
        %v7823 = vpop.f32.mrf.mxu0
        %v7824 = vadd.f32 0.0, %v7823
        %v7825 = vpop.f32.mrf.mxu0
        %v7826 = vpop.f32.mrf.mxu0
        %v7827 = vadd.f32 0.0, %v7826
        %v7828 = vpop.f32.mrf.mxu0
        %7829 = vmatprep.mubr.bf16.mxu0 0
        %7830 = vmatmul.mubr.bf16.gmra.mxu0 %v7715
        %v7831 = vpop.f32.mrf.mxu0
        %v7832 = vadd.f32 0.0, %v7831
        %v7833 = vpop.f32.mrf.mxu0
        %v7834 = vpop.f32.mrf.mxu0
        %v7835 = vadd.f32 0.0, %v7834
        %v7836 = vpop.f32.mrf.mxu0
        %7837 = vmatprep.mubr.bf16.mxu0 0
        %7838 = vmatmul.mubr.bf16.gmra.mxu0 %v7718
        %v7839 = vpop.f32.mrf.mxu0
        %v7840 = vadd.f32 0.0, %v7839
        %v7841 = vpop.f32.mrf.mxu0
        %v7842 = vpop.f32.mrf.mxu0
        %v7843 = vadd.f32 0.0, %v7842
        %v7844 = vpop.f32.mrf.mxu0
        %7845 = vmatprep.mubr.bf16.mxu0 0
        %7846 = vmatmul.mubr.bf16.gmra.mxu0 %v7721
        %v7847 = vpop.f32.mrf.mxu0
        %v7848 = vadd.f32 0.0, %v7847
        %v7849 = vpop.f32.mrf.mxu0
        %v7850 = vpop.f32.mrf.mxu0
        %v7851 = vadd.f32 0.0, %v7850
        %v7852 = vpop.f32.mrf.mxu0
        %7853 = vmatprep.mubr.bf16.mxu0 0
        %7854 = vmatmul.mubr.bf16.gmra.mxu0 %v7724
        %v7855 = vpop.f32.mrf.mxu0
        %v7856 = vadd.f32 0.0, %v7855
        %v7857 = vpop.f32.mrf.mxu0
        %v7858 = vpop.f32.mrf.mxu0
        %v7859 = vadd.f32 0.0, %v7858
        %v7860 = vpop.f32.mrf.mxu0
        %7861 = vmatprep.mubr.bf16.mxu0 0
        %7862 = vmatmul.mubr.bf16.gmra.mxu0 %v7727
        %v7863 = vpop.f32.mrf.mxu0
        %v7864 = vadd.f32 0.0, %v7863
        %v7865 = vpop.f32.mrf.mxu0
        %v7866 = vpop.f32.mrf.mxu0
        %v7867 = vadd.f32 0.0, %v7866
        %v7868 = vpop.f32.mrf.mxu0
        %7869 = vmatprep.mubr.bf16.mxu0 0
        %7870 = vmatmul.mubr.bf16.gmra.mxu0 %v7730
        %v7871 = vpop.f32.mrf.mxu0
        %v7872 = vadd.f32 0.0, %v7871
        %v7873 = vpop.f32.mrf.mxu0
        %v7874 = vpop.f32.mrf.mxu0
        %v7875 = vadd.f32 0.0, %v7874
        %v7876 = vpop.f32.mrf.mxu0
        %7877 = vmatprep.mubr.bf16.mxu0 0
        %7878 = vmatmul.mubr.bf16.gmra.mxu0 %v7733
        %v7879 = vpop.f32.mrf.mxu0
        %v7880 = vadd.f32 0.0, %v7879
        %v7881 = vpop.f32.mrf.mxu0
        %v7882 = vpop.f32.mrf.mxu0
        %v7883 = vadd.f32 0.0, %v7882
        %v7884 = vpop.f32.mrf.mxu0
        %7885 = vmatprep.mubr.bf16.mxu0 0
        %7886 = vmatmul.mubr.bf16.gmra.mxu0 %v7736
        %v7887 = vpop.f32.mrf.mxu0
        %v7888 = vadd.f32 0.0, %v7887
        %v7889 = vpop.f32.mrf.mxu0
        %v7890 = vpop.f32.mrf.mxu0
        %v7891 = vadd.f32 0.0, %v7890
        %v7892 = vpop.f32.mrf.mxu0
        %7893 = vmatprep.mubr.bf16.mxu0 0
        %7894 = vmatmul.mubr.bf16.gmra.mxu0 %v7739
        %v7895 = vpop.f32.mrf.mxu0
        %v7896 = vadd.f32 0.0, %v7895
        %v7897 = vpop.f32.mrf.mxu0
        %v7898 = vpop.f32.mrf.mxu0
        %v7899 = vadd.f32 0.0, %v7898
        %v7900 = vpop.f32.mrf.mxu0
        %7901 = vdwg.mxu0
        %v7902 = vadd.f32 %v7596, %v7776
        %v7903 = vadd.f32 %v7597, %v7779
        %v7904 = vadd.f32 %v7598, %v7784
        %v7905 = vadd.f32 %v7599, %v7787
        %v7906 = vadd.f32 %v7600, %v7792
        %v7907 = vadd.f32 %v7601, %v7795
        %v7908 = vadd.f32 %v7602, %v7800
        %v7909 = vadd.f32 %v7603, %v7803
        %v7910 = vadd.f32 %v7604, %v7808
        %v7911 = vadd.f32 %v7605, %v7811
        %v7912 = vadd.f32 %v7606, %v7816
        %v7913 = vadd.f32 %v7607, %v7819
        %v7914 = vadd.f32 %v7608, %v7824
        %v7915 = vadd.f32 %v7609, %v7827
        %v7916 = vadd.f32 %v7610, %v7832
        %v7917 = vadd.f32 %v7611, %v7835
        %v7918 = vadd.f32 %v7612, %v7840
        %v7919 = vadd.f32 %v7613, %v7843
        %v7920 = vadd.f32 %v7614, %v7848
        %v7921 = vadd.f32 %v7615, %v7851
        %v7922 = vadd.f32 %v7616, %v7856
        %v7923 = vadd.f32 %v7617, %v7859
        %v7924 = vadd.f32 %v7618, %v7864
        %v7925 = vadd.f32 %v7619, %v7867
        %v7926 = vadd.f32 %v7620, %v7872
        %v7927 = vadd.f32 %v7621, %v7875
        %v7928 = vadd.f32 %v7622, %v7880
        %v7929 = vadd.f32 %v7623, %v7883
        %v7930 = vadd.f32 %v7624, %v7888
        %v7931 = vadd.f32 %v7625, %v7891
        %v7932 = vadd.f32 %v7626, %v7896
        %v7933 = vadd.f32 %v7627, %v7899
        %v7934 = vld [vmem:[#allocation3 + $0x31] sm:$0xff]
        %v7935 = vld [vmem:[#allocation3 + $0x39] sm:$0xff]
        %v7936 = vld [vmem:[#allocation3 + $0x41] sm:$0xff]
        %v7937 = vld [vmem:[#allocation3 + $0x49] sm:$0xff]
        %v7938 = vld [vmem:[#allocation3 + $0x51] sm:$0xff]
        %v7939 = vld [vmem:[#allocation3 + $0x59] sm:$0xff]
        %v7940 = vld [vmem:[#allocation3 + $0x61] sm:$0xff]
        %v7941 = vld [vmem:[#allocation3 + $0x69] sm:$0xff]
        %v7942 = vld [vmem:[#allocation3 + $0x71] sm:$0xff]
        %v7943 = vld [vmem:[#allocation3 + $0x79] sm:$0xff]
        %v7944 = vld [vmem:[#allocation3 + $0x81] sm:$0xff]
        %v7945 = vld [vmem:[#allocation3 + $0x89] sm:$0xff]
        %v7946 = vld [vmem:[#allocation3 + $0x91] sm:$0xff]
        %v7947 = vld [vmem:[#allocation3 + $0x99] sm:$0xff]
        %v7948 = vld [vmem:[#allocation3 + $0xa1] sm:$0xff]
        %v7949 = vld [vmem:[#allocation3 + $0xa9] sm:$0xff]
        %v7950 = vld [vmem:[#allocation3 + $0xb1] sm:$0xff]
        %v7951 = vld [vmem:[#allocation3 + $0xb9] sm:$0xff]
        %v7952 = vld [vmem:[#allocation3 + $0xc1] sm:$0xff]
        %v7953 = vld [vmem:[#allocation3 + $0xc9] sm:$0xff]
        %v7954 = vld [vmem:[#allocation3 + $0xd1] sm:$0xff]
        %v7955 = vld [vmem:[#allocation3 + $0xd9] sm:$0xff]
        %v7956 = vld [vmem:[#allocation3 + $0xe1] sm:$0xff]
        %v7957 = vld [vmem:[#allocation3 + $0xe9] sm:$0xff]
        %v7958 = vld [vmem:[#allocation3 + $0xf1] sm:$0xff]
        %v7959 = vld [vmem:[#allocation3 + $0xf9] sm:$0xff]
        %v7960 = vld [vmem:[#allocation3 + $0x101] sm:$0xff]
        %v7961 = vld [vmem:[#allocation3 + $0x109] sm:$0xff]
        %v7962 = vld [vmem:[#allocation3 + $0x111] sm:$0xff]
        %v7963 = vld [vmem:[#allocation3 + $0x119] sm:$0xff]
        %v7964 = vld [vmem:[#allocation3 + $0x121] sm:$0xff]
        %v7965 = vld [vmem:[#allocation3 + $0x129] sm:$0xff]
        %v7966 = vpack.c.bf16 %v7935, %v7934
        %v7967 = vpack.c.bf16 %v7937, %v7936
        %v7968 = vpack.c.bf16 %v7939, %v7938
        %v7969 = vpack.c.bf16 %v7941, %v7940
        %v7970 = vpack.c.bf16 %v7943, %v7942
        %v7971 = vpack.c.bf16 %v7945, %v7944
        %v7972 = vpack.c.bf16 %v7947, %v7946
        %v7973 = vpack.c.bf16 %v7949, %v7948
        %v7974 = vpack.c.bf16 %v7951, %v7950
        %v7975 = vpack.c.bf16 %v7953, %v7952
        %v7976 = vpack.c.bf16 %v7955, %v7954
        %v7977 = vpack.c.bf16 %v7957, %v7956
        %v7978 = vpack.c.bf16 %v7959, %v7958
        %v7979 = vpack.c.bf16 %v7961, %v7960
        %v7980 = vpack.c.bf16 %v7963, %v7962
        %v7981 = vpack.c.bf16 %v7965, %v7964
        %v7982 = vmul.bf16 %v7966, %v6050
        %v7983 = vmul.bf16 %v7967, %v6051
        %v7984 = vmul.bf16 %v7968, %v6052
        %v7985 = vmul.bf16 %v7969, %v6053
        %v7986 = vmul.bf16 %v7970, %v6054
        %v7987 = vmul.bf16 %v7971, %v6055
        %v7988 = vmul.bf16 %v7972, %v6056
        %v7989 = vmul.bf16 %v7973, %v6057
        %v7990 = vmul.bf16 %v7974, %v6058
        %v7991 = vmul.bf16 %v7975, %v6059
        %v7992 = vmul.bf16 %v7976, %v6060
        %v7993 = vmul.bf16 %v7977, %v6061
        %v7994 = vmul.bf16 %v7978, %v6062
        %v7995 = vmul.bf16 %v7979, %v6063
        %v7996 = vmul.bf16 %v7980, %v6064
        %v7997 = vmul.bf16 %v7981, %v6065
        %s7998 = scalar_lea.vmem %s6, 128
        %v7999 = vld [vmem:[%s7998] sm:$0xf]
        %v8000 = vld [vmem:[%s7998 + $0x4] sm:$0xf]
        %v8001 = vld [vmem:[%s7998 + $0x8] sm:$0xf]
        %v8002 = vld [vmem:[%s7998 + $0xc] sm:$0xf]
        %v8007 = vunpack.c.l.b16 %v7999
        %v8008 = vunpack.c.l.b16 %v8000
        %v8009 = vunpack.c.l.b16 %v8001
        %v8010 = vunpack.c.l.b16 %v8002
        %v8011 = vpack.c.b16 %v8008, %v8007
        %v8012 = vpack.c.b16 %v8010, %v8009
        %v8016 = vsel %vm4374, %v7982, 0
        %v8019 = vsel %vm4374, %v7983, 0
        %v8022 = vsel %vm4374, %v7984, 0
        %v8025 = vsel %vm4374, %v7985, 0
        %v8028 = vsel %vm4374, %v7986, 0
        %v8031 = vsel %vm4374, %v7987, 0
        %v8034 = vsel %vm4374, %v7988, 0
        %v8037 = vsel %vm4374, %v7989, 0
        %v8040 = vsel %vm4374, %v7990, 0
        %v8043 = vsel %vm4374, %v7991, 0
        %v8046 = vsel %vm4374, %v7992, 0
        %v8049 = vsel %vm4374, %v7993, 0
        %v8052 = vsel %vm4374, %v7994, 0
        %v8055 = vsel %vm4374, %v7995, 0
        %v8058 = vsel %vm4374, %v7996, 0
        %v8061 = vsel %vm4374, %v7997, 0
        %8063 = vmatprep.subr.bf16.mxu0 0
        %8064 = vmatpush1.bf16.msra.mxu0 0
        %8065 = vmatprep.subr.bf16.mxu0 0
        %8066 = vmatpush1.bf16.msra.mxu0 0
        %8067 = vmatprep.subr.bf16.mxu0 0
        %8068 = vmatpush1.bf16.msra.mxu0 0
        %8069 = vmatprep.subr.bf16.mxu0 0
        %8070 = vmatpush1.bf16.msra.mxu0 0
        %8071 = vmatprep.subr.bf16.mxu0 0
        %8072 = vmatpush1.bf16.msra.mxu0 0
        %8073 = vmatprep.subr.bf16.mxu0 0
        %8074 = vmatpush1.bf16.msra.mxu0 0
        %8075 = vmatprep.subr.bf16.mxu0 0
        %8076 = vmatpush1.bf16.msra.mxu0 %v8012
        %8077 = vmatprep.subr.bf16.mxu0 0
        %8078 = vmatpush1.bf16.msra.mxu0 %v8011
        %8079 = vmatprep.subr.bf16.mxu0 0
        %8080 = vmatpush2.bf16.msra.mxu0 0
        %8081 = vmatprep.subr.bf16.mxu0 0
        %8082 = vmatpush2.bf16.msra.mxu0 0
        %8083 = vmatprep.subr.bf16.mxu0 0
        %8084 = vmatpush2.bf16.msra.mxu0 0
        %8085 = vmatprep.subr.bf16.mxu0 0
        %8086 = vmatpush2.bf16.msra.mxu0 0
        %8087 = vmatprep.subr.bf16.mxu0 0
        %8088 = vmatpush2.bf16.msra.mxu0 0
        %8089 = vmatprep.subr.bf16.mxu0 0
        %8090 = vmatpush2.bf16.msra.mxu0 0
        %8091 = vmatprep.subr.bf16.mxu0 0
        %8092 = vmatpush2.bf16.msra.mxu0 0
        %8093 = vmatprep.subr.bf16.mxu0 0
        %8094 = vmatpush2.bf16.msra.mxu0 0
        %8095 = vmatprep.mubr.bf16.mxu0 0
        %8096 = vmatmul.mubr.bf16.gmra.mxu0 %v8016
        %v8097 = vpop.f32.mrf.mxu0
        %v8098 = vadd.f32 0.0, %v8097
        %v8099 = vpop.f32.mrf.mxu0
        %v8100 = vpop.f32.mrf.mxu0
        %v8101 = vadd.f32 0.0, %v8100
        %v8102 = vpop.f32.mrf.mxu0
        %8103 = vmatprep.mubr.bf16.mxu0 0
        %8104 = vmatmul.mubr.bf16.gmra.mxu0 %v8019
        %v8105 = vpop.f32.mrf.mxu0
        %v8106 = vadd.f32 0.0, %v8105
        %v8107 = vpop.f32.mrf.mxu0
        %v8108 = vpop.f32.mrf.mxu0
        %v8109 = vadd.f32 0.0, %v8108
        %v8110 = vpop.f32.mrf.mxu0
        %8111 = vmatprep.mubr.bf16.mxu0 0
        %8112 = vmatmul.mubr.bf16.gmra.mxu0 %v8022
        %v8113 = vpop.f32.mrf.mxu0
        %v8114 = vadd.f32 0.0, %v8113
        %v8115 = vpop.f32.mrf.mxu0
        %v8116 = vpop.f32.mrf.mxu0
        %v8117 = vadd.f32 0.0, %v8116
        %v8118 = vpop.f32.mrf.mxu0
        %8119 = vmatprep.mubr.bf16.mxu0 0
        %8120 = vmatmul.mubr.bf16.gmra.mxu0 %v8025
        %v8121 = vpop.f32.mrf.mxu0
        %v8122 = vadd.f32 0.0, %v8121
        %v8123 = vpop.f32.mrf.mxu0
        %v8124 = vpop.f32.mrf.mxu0
        %v8125 = vadd.f32 0.0, %v8124
        %v8126 = vpop.f32.mrf.mxu0
        %8127 = vmatprep.mubr.bf16.mxu0 0
        %8128 = vmatmul.mubr.bf16.gmra.mxu0 %v8028
        %v8129 = vpop.f32.mrf.mxu0
        %v8130 = vadd.f32 0.0, %v8129
        %v8131 = vpop.f32.mrf.mxu0
        %v8132 = vpop.f32.mrf.mxu0
        %v8133 = vadd.f32 0.0, %v8132
        %v8134 = vpop.f32.mrf.mxu0
        %8135 = vmatprep.mubr.bf16.mxu0 0
        %8136 = vmatmul.mubr.bf16.gmra.mxu0 %v8031
        %v8137 = vpop.f32.mrf.mxu0
        %v8138 = vadd.f32 0.0, %v8137
        %v8139 = vpop.f32.mrf.mxu0
        %v8140 = vpop.f32.mrf.mxu0
        %v8141 = vadd.f32 0.0, %v8140
        %v8142 = vpop.f32.mrf.mxu0
        %8143 = vmatprep.mubr.bf16.mxu0 0
        %8144 = vmatmul.mubr.bf16.gmra.mxu0 %v8034
        %v8145 = vpop.f32.mrf.mxu0
        %v8146 = vadd.f32 0.0, %v8145
        %v8147 = vpop.f32.mrf.mxu0
        %v8148 = vpop.f32.mrf.mxu0
        %v8149 = vadd.f32 0.0, %v8148
        %v8150 = vpop.f32.mrf.mxu0
        %8151 = vmatprep.mubr.bf16.mxu0 0
        %8152 = vmatmul.mubr.bf16.gmra.mxu0 %v8037
        %v8153 = vpop.f32.mrf.mxu0
        %v8154 = vadd.f32 0.0, %v8153
        %v8155 = vpop.f32.mrf.mxu0
        %v8156 = vpop.f32.mrf.mxu0
        %v8157 = vadd.f32 0.0, %v8156
        %v8158 = vpop.f32.mrf.mxu0
        %8159 = vmatprep.mubr.bf16.mxu0 0
        %8160 = vmatmul.mubr.bf16.gmra.mxu0 %v8040
        %v8161 = vpop.f32.mrf.mxu0
        %v8162 = vadd.f32 0.0, %v8161
        %v8163 = vpop.f32.mrf.mxu0
        %v8164 = vpop.f32.mrf.mxu0
        %v8165 = vadd.f32 0.0, %v8164
        %v8166 = vpop.f32.mrf.mxu0
        %8167 = vmatprep.mubr.bf16.mxu0 0
        %8168 = vmatmul.mubr.bf16.gmra.mxu0 %v8043
        %v8169 = vpop.f32.mrf.mxu0
        %v8170 = vadd.f32 0.0, %v8169
        %v8171 = vpop.f32.mrf.mxu0
        %v8172 = vpop.f32.mrf.mxu0
        %v8173 = vadd.f32 0.0, %v8172
        %v8174 = vpop.f32.mrf.mxu0
        %8175 = vmatprep.mubr.bf16.mxu0 0
        %8176 = vmatmul.mubr.bf16.gmra.mxu0 %v8046
        %v8177 = vpop.f32.mrf.mxu0
        %v8178 = vadd.f32 0.0, %v8177
        %v8179 = vpop.f32.mrf.mxu0
        %v8180 = vpop.f32.mrf.mxu0
        %v8181 = vadd.f32 0.0, %v8180
        %v8182 = vpop.f32.mrf.mxu0
        %8183 = vmatprep.mubr.bf16.mxu0 0
        %8184 = vmatmul.mubr.bf16.gmra.mxu0 %v8049
        %v8185 = vpop.f32.mrf.mxu0
        %v8186 = vadd.f32 0.0, %v8185
        %v8187 = vpop.f32.mrf.mxu0
        %v8188 = vpop.f32.mrf.mxu0
        %v8189 = vadd.f32 0.0, %v8188
        %v8190 = vpop.f32.mrf.mxu0
        %8191 = vmatprep.mubr.bf16.mxu0 0
        %8192 = vmatmul.mubr.bf16.gmra.mxu0 %v8052
        %v8193 = vpop.f32.mrf.mxu0
        %v8194 = vadd.f32 0.0, %v8193
        %v8195 = vpop.f32.mrf.mxu0
        %v8196 = vpop.f32.mrf.mxu0
        %v8197 = vadd.f32 0.0, %v8196
        %v8198 = vpop.f32.mrf.mxu0
        %8199 = vmatprep.mubr.bf16.mxu0 0
        %8200 = vmatmul.mubr.bf16.gmra.mxu0 %v8055
        %v8201 = vpop.f32.mrf.mxu0
        %v8202 = vadd.f32 0.0, %v8201
        %v8203 = vpop.f32.mrf.mxu0
        %v8204 = vpop.f32.mrf.mxu0
        %v8205 = vadd.f32 0.0, %v8204
        %v8206 = vpop.f32.mrf.mxu0
        %8207 = vmatprep.mubr.bf16.mxu0 0
        %8208 = vmatmul.mubr.bf16.gmra.mxu0 %v8058
        %v8209 = vpop.f32.mrf.mxu0
        %v8210 = vadd.f32 0.0, %v8209
        %v8211 = vpop.f32.mrf.mxu0
        %v8212 = vpop.f32.mrf.mxu0
        %v8213 = vadd.f32 0.0, %v8212
        %v8214 = vpop.f32.mrf.mxu0
        %8215 = vmatprep.mubr.bf16.mxu0 0
        %8216 = vmatmul.mubr.bf16.gmra.mxu0 %v8061
        %v8217 = vpop.f32.mrf.mxu0
        %v8218 = vadd.f32 0.0, %v8217
        %v8219 = vpop.f32.mrf.mxu0
        %v8220 = vpop.f32.mrf.mxu0
        %v8221 = vadd.f32 0.0, %v8220
        %v8222 = vpop.f32.mrf.mxu0
        %8223 = vdwg.mxu0
        %v8224 = vadd.f32 %v7902, %v8098
        %v8225 = vadd.f32 %v7903, %v8101
        %v8226 = vadd.f32 %v7904, %v8106
        %v8227 = vadd.f32 %v7905, %v8109
        %v8228 = vadd.f32 %v7906, %v8114
        %v8229 = vadd.f32 %v7907, %v8117
        %v8230 = vadd.f32 %v7908, %v8122
        %v8231 = vadd.f32 %v7909, %v8125
        %v8232 = vadd.f32 %v7910, %v8130
        %v8233 = vadd.f32 %v7911, %v8133
        %v8234 = vadd.f32 %v7912, %v8138
        %v8235 = vadd.f32 %v7913, %v8141
        %v8236 = vadd.f32 %v7914, %v8146
        %v8237 = vadd.f32 %v7915, %v8149
        %v8238 = vadd.f32 %v7916, %v8154
        %v8239 = vadd.f32 %v7917, %v8157
        %v8240 = vadd.f32 %v7918, %v8162
        %v8241 = vadd.f32 %v7919, %v8165
        %v8242 = vadd.f32 %v7920, %v8170
        %v8243 = vadd.f32 %v7921, %v8173
        %v8244 = vadd.f32 %v7922, %v8178
        %v8245 = vadd.f32 %v7923, %v8181
        %v8246 = vadd.f32 %v7924, %v8186
        %v8247 = vadd.f32 %v7925, %v8189
        %v8248 = vadd.f32 %v7926, %v8194
        %v8249 = vadd.f32 %v7927, %v8197
        %v8250 = vadd.f32 %v7928, %v8202
        %v8251 = vadd.f32 %v7929, %v8205
        %v8252 = vadd.f32 %v7930, %v8210
        %v8253 = vadd.f32 %v7931, %v8213
        %v8254 = vadd.f32 %v7932, %v8218
        %v8255 = vadd.f32 %v7933, %v8221
        %v8256 = vld [vmem:[#allocation5] sm:$0x1]
        %v8258 = vlaneseq
        %v8259 = vshrl.u32 %v8258, 7
        %v8260 = vsub.s32 0, %v8259
        %v8261 = vrot.slane %v8256, %v8260
        %v8263 = vadd.f32 %v8224, %v8261
        %v8264 = vadd.f32 %v8225, %v8261
        %v8265 = vadd.f32 %v8226, %v8261
        %v8266 = vadd.f32 %v8227, %v8261
        %v8267 = vadd.f32 %v8228, %v8261
        %v8268 = vadd.f32 %v8229, %v8261
        %v8269 = vadd.f32 %v8230, %v8261
        %v8270 = vadd.f32 %v8231, %v8261
        %v8271 = vadd.f32 %v8232, %v8261
        %v8272 = vadd.f32 %v8233, %v8261
        %v8273 = vadd.f32 %v8234, %v8261
        %v8274 = vadd.f32 %v8235, %v8261
        %v8275 = vadd.f32 %v8236, %v8261
        %v8276 = vadd.f32 %v8237, %v8261
        %v8277 = vadd.f32 %v8238, %v8261
        %v8278 = vadd.f32 %v8239, %v8261
        %v8279 = vadd.f32 %v8240, %v8261
        %v8280 = vadd.f32 %v8241, %v8261
        %v8281 = vadd.f32 %v8242, %v8261
        %v8282 = vadd.f32 %v8243, %v8261
        %v8283 = vadd.f32 %v8244, %v8261
        %v8284 = vadd.f32 %v8245, %v8261
        %v8285 = vadd.f32 %v8246, %v8261
        %v8286 = vadd.f32 %v8247, %v8261
        %v8287 = vadd.f32 %v8248, %v8261
        %v8288 = vadd.f32 %v8249, %v8261
        %v8289 = vadd.f32 %v8250, %v8261
        %v8290 = vadd.f32 %v8251, %v8261
        %v8291 = vadd.f32 %v8252, %v8261
        %v8292 = vadd.f32 %v8253, %v8261
        %v8293 = vadd.f32 %v8254, %v8261
        %v8294 = vadd.f32 %v8255, %v8261
        %v8295 = vmax.f32 %v8263, 0.0
        %v8296 = vmax.f32 %v8264, 0.0
        %v8297 = vmax.f32 %v8265, 0.0
        %v8298 = vmax.f32 %v8266, 0.0
        %v8299 = vmax.f32 %v8267, 0.0
        %v8300 = vmax.f32 %v8268, 0.0
        %v8301 = vmax.f32 %v8269, 0.0
        %v8302 = vmax.f32 %v8270, 0.0
        %v8303 = vmax.f32 %v8271, 0.0
        %v8304 = vmax.f32 %v8272, 0.0
        %v8305 = vmax.f32 %v8273, 0.0
        %v8306 = vmax.f32 %v8274, 0.0
        %v8307 = vmax.f32 %v8275, 0.0
        %v8308 = vmax.f32 %v8276, 0.0
        %v8309 = vmax.f32 %v8277, 0.0
        %v8310 = vmax.f32 %v8278, 0.0
        %v8311 = vmax.f32 %v8279, 0.0
        %v8312 = vmax.f32 %v8280, 0.0
        %v8313 = vmax.f32 %v8281, 0.0
        %v8314 = vmax.f32 %v8282, 0.0
        %v8315 = vmax.f32 %v8283, 0.0
        %v8316 = vmax.f32 %v8284, 0.0
        %v8317 = vmax.f32 %v8285, 0.0
        %v8318 = vmax.f32 %v8286, 0.0
        %v8319 = vmax.f32 %v8287, 0.0
        %v8320 = vmax.f32 %v8288, 0.0
        %v8321 = vmax.f32 %v8289, 0.0
        %v8322 = vmax.f32 %v8290, 0.0
        %v8323 = vmax.f32 %v8291, 0.0
        %v8324 = vmax.f32 %v8292, 0.0
        %v8325 = vmax.f32 %v8293, 0.0
        %v8326 = vmax.f32 %v8294, 0.0
        %v8327 = vpack.c.bf16 %v8296, %v8295
        %v8328 = vpack.c.bf16 %v8298, %v8297
        %v8329 = vpack.c.bf16 %v8300, %v8299
        %v8330 = vpack.c.bf16 %v8302, %v8301
        %v8331 = vpack.c.bf16 %v8304, %v8303
        %v8332 = vpack.c.bf16 %v8306, %v8305
        %v8333 = vpack.c.bf16 %v8308, %v8307
        %v8334 = vpack.c.bf16 %v8310, %v8309
        %v8335 = vpack.c.bf16 %v8312, %v8311
        %v8336 = vpack.c.bf16 %v8314, %v8313
        %v8337 = vpack.c.bf16 %v8316, %v8315
        %v8338 = vpack.c.bf16 %v8318, %v8317
        %v8339 = vpack.c.bf16 %v8320, %v8319
        %v8340 = vpack.c.bf16 %v8322, %v8321
        %v8341 = vpack.c.bf16 %v8324, %v8323
        %v8342 = vpack.c.bf16 %v8326, %v8325
        %v8343 = vld [vmem:[%s3] sm:$0xff]
        %v8344 = vld [vmem:[%s3 + $0x8] sm:$0xff]
        %v8345 = vld [vmem:[%s3 + $0x10] sm:$0xff]
        %v8346 = vld [vmem:[%s3 + $0x18] sm:$0xff]
        %v8347 = vld [vmem:[%s3 + $0x20] sm:$0xff]
        %v8348 = vld [vmem:[%s3 + $0x28] sm:$0xff]
        %v8349 = vld [vmem:[%s3 + $0x30] sm:$0xff]
        %v8350 = vld [vmem:[%s3 + $0x38] sm:$0xff]
        %v8359 = vunpack.c.l.b16 %v8343
        %v8360 = vunpack.c.h.b16 %v8343
        %v8361 = vunpack.c.l.b16 %v8344
        %v8362 = vunpack.c.h.b16 %v8344
        %v8363 = vunpack.c.l.b16 %v8345
        %v8364 = vunpack.c.h.b16 %v8345
        %v8365 = vunpack.c.l.b16 %v8346
        %v8366 = vunpack.c.h.b16 %v8346
        %v8367 = vunpack.c.l.b16 %v8347
        %v8368 = vunpack.c.h.b16 %v8347
        %v8369 = vunpack.c.l.b16 %v8348
        %v8370 = vunpack.c.h.b16 %v8348
        %v8371 = vunpack.c.l.b16 %v8349
        %v8372 = vunpack.c.h.b16 %v8349
        %v8373 = vunpack.c.l.b16 %v8350
        %v8374 = vunpack.c.h.b16 %v8350
        %v8375 = vpack.c.b16 %v8361, %v8359
        %v8376 = vpack.c.b16 %v8362, %v8360
        %v8377 = vpack.c.b16 %v8365, %v8363
        %v8378 = vpack.c.b16 %v8366, %v8364
        %v8379 = vpack.c.b16 %v8369, %v8367
        %v8380 = vpack.c.b16 %v8370, %v8368
        %v8381 = vpack.c.b16 %v8373, %v8371
        %v8382 = vpack.c.b16 %v8374, %v8372
        %8391 = vmatprep.subr.bf16.mxu0 0
        %8392 = vmatpush1.bf16.msra.mxu0 %v8334
        %8393 = vmatprep.subr.bf16.mxu0 0
        %8394 = vmatpush1.bf16.msra.mxu0 %v8333
        %8395 = vmatprep.subr.bf16.mxu0 0
        %8396 = vmatpush1.bf16.msra.mxu0 %v8332
        %8397 = vmatprep.subr.bf16.mxu0 0
        %8398 = vmatpush1.bf16.msra.mxu0 %v8331
        %8399 = vmatprep.subr.bf16.mxu0 0
        %8400 = vmatpush1.bf16.msra.mxu0 %v8330
        %8401 = vmatprep.subr.bf16.mxu0 0
        %8402 = vmatpush1.bf16.msra.mxu0 %v8329
        %8403 = vmatprep.subr.bf16.mxu0 0
        %8404 = vmatpush1.bf16.msra.mxu0 %v8328
        %8405 = vmatprep.subr.bf16.mxu0 0
        %8406 = vmatpush1.bf16.msra.mxu0 %v8327
        %8407 = vmatprep.subr.bf16.mxu0 0
        %8408 = vmatpush2.bf16.msra.mxu0 %v8342
        %8409 = vmatprep.subr.bf16.mxu0 0
        %8410 = vmatpush2.bf16.msra.mxu0 %v8341
        %8411 = vmatprep.subr.bf16.mxu0 0
        %8412 = vmatpush2.bf16.msra.mxu0 %v8340
        %8413 = vmatprep.subr.bf16.mxu0 0
        %8414 = vmatpush2.bf16.msra.mxu0 %v8339
        %8415 = vmatprep.subr.bf16.mxu0 0
        %8416 = vmatpush2.bf16.msra.mxu0 %v8338
        %8417 = vmatprep.subr.bf16.mxu0 0
        %8418 = vmatpush2.bf16.msra.mxu0 %v8337
        %8419 = vmatprep.subr.bf16.mxu0 0
        %8420 = vmatpush2.bf16.msra.mxu0 %v8336
        %8421 = vmatprep.subr.bf16.mxu0 0
        %8422 = vmatpush2.bf16.msra.mxu0 %v8335
        %8423 = vmatprep.mubr.bf16.mxu0 %v8376
        %8424 = vmatmul.mubr.bf16.gmra.mxu0 %v8375
        %v8425 = vpop.f32.mrf.mxu0
        %v8426 = vadd.f32 0.0, %v8425
        %v8427 = vpop.f32.mrf.mxu0
        %v8428 = vpop.f32.mrf.mxu0
        %v8429 = vadd.f32 0.0, %v8428
        %v8430 = vpop.f32.mrf.mxu0
        %8431 = vmatprep.mubr.bf16.mxu0 %v8378
        %8432 = vmatmul.mubr.bf16.gmra.mxu0 %v8377
        %v8433 = vpop.f32.mrf.mxu0
        %v8434 = vadd.f32 0.0, %v8433
        %v8435 = vpop.f32.mrf.mxu0
        %v8436 = vpop.f32.mrf.mxu0
        %v8437 = vadd.f32 0.0, %v8436
        %v8438 = vpop.f32.mrf.mxu0
        %8439 = vmatprep.mubr.bf16.mxu0 %v8380
        %8440 = vmatmul.mubr.bf16.gmra.mxu0 %v8379
        %v8441 = vpop.f32.mrf.mxu0
        %v8442 = vadd.f32 0.0, %v8441
        %v8443 = vpop.f32.mrf.mxu0
        %v8444 = vpop.f32.mrf.mxu0
        %v8445 = vadd.f32 0.0, %v8444
        %v8446 = vpop.f32.mrf.mxu0
        %8447 = vmatprep.mubr.bf16.mxu0 %v8382
        %8448 = vmatmul.mubr.bf16.gmra.mxu0 %v8381
        %v8449 = vpop.f32.mrf.mxu0
        %v8450 = vadd.f32 0.0, %v8449
        %v8451 = vpop.f32.mrf.mxu0
        %v8452 = vpop.f32.mrf.mxu0
        %v8453 = vadd.f32 0.0, %v8452
        %v8454 = vpop.f32.mrf.mxu0
        %8455 = vdwg.mxu0
        %s8456 = scalar_lea.vmem %s3, 64
        %v8457 = vld [vmem:[%s8456] sm:$0xff]
        %v8458 = vld [vmem:[%s8456 + $0x8] sm:$0xff]
        %v8459 = vld [vmem:[%s8456 + $0x10] sm:$0xff]
        %v8460 = vld [vmem:[%s8456 + $0x18] sm:$0xff]
        %v8461 = vld [vmem:[%s8456 + $0x20] sm:$0xff]
        %v8462 = vld [vmem:[%s8456 + $0x28] sm:$0xff]
        %v8463 = vld [vmem:[%s8456 + $0x30] sm:$0xff]
        %v8464 = vld [vmem:[%s8456 + $0x38] sm:$0xff]
        %v8473 = vunpack.c.l.b16 %v8457
        %v8474 = vunpack.c.h.b16 %v8457
        %v8475 = vunpack.c.l.b16 %v8458
        %v8476 = vunpack.c.h.b16 %v8458
        %v8477 = vunpack.c.l.b16 %v8459
        %v8478 = vunpack.c.h.b16 %v8459
        %v8479 = vunpack.c.l.b16 %v8460
        %v8480 = vunpack.c.h.b16 %v8460
        %v8481 = vunpack.c.l.b16 %v8461
        %v8482 = vunpack.c.h.b16 %v8461
        %v8483 = vunpack.c.l.b16 %v8462
        %v8484 = vunpack.c.h.b16 %v8462
        %v8485 = vunpack.c.l.b16 %v8463
        %v8486 = vunpack.c.h.b16 %v8463
        %v8487 = vunpack.c.l.b16 %v8464
        %v8488 = vunpack.c.h.b16 %v8464
        %v8489 = vpack.c.b16 %v8475, %v8473
        %v8490 = vpack.c.b16 %v8476, %v8474
        %v8491 = vpack.c.b16 %v8479, %v8477
        %v8492 = vpack.c.b16 %v8480, %v8478
        %v8493 = vpack.c.b16 %v8483, %v8481
        %v8494 = vpack.c.b16 %v8484, %v8482
        %v8495 = vpack.c.b16 %v8487, %v8485
        %v8496 = vpack.c.b16 %v8488, %v8486
        %8505 = vmatprep.subr.bf16.mxu0 0
        %8506 = vmatpush1.bf16.msra.mxu0 %v8334
        %8507 = vmatprep.subr.bf16.mxu0 0
        %8508 = vmatpush1.bf16.msra.mxu0 %v8333
        %8509 = vmatprep.subr.bf16.mxu0 0
        %8510 = vmatpush1.bf16.msra.mxu0 %v8332
        %8511 = vmatprep.subr.bf16.mxu0 0
        %8512 = vmatpush1.bf16.msra.mxu0 %v8331
        %8513 = vmatprep.subr.bf16.mxu0 0
        %8514 = vmatpush1.bf16.msra.mxu0 %v8330
        %8515 = vmatprep.subr.bf16.mxu0 0
        %8516 = vmatpush1.bf16.msra.mxu0 %v8329
        %8517 = vmatprep.subr.bf16.mxu0 0
        %8518 = vmatpush1.bf16.msra.mxu0 %v8328
        %8519 = vmatprep.subr.bf16.mxu0 0
        %8520 = vmatpush1.bf16.msra.mxu0 %v8327
        %8521 = vmatprep.subr.bf16.mxu0 0
        %8522 = vmatpush2.bf16.msra.mxu0 %v8342
        %8523 = vmatprep.subr.bf16.mxu0 0
        %8524 = vmatpush2.bf16.msra.mxu0 %v8341
        %8525 = vmatprep.subr.bf16.mxu0 0
        %8526 = vmatpush2.bf16.msra.mxu0 %v8340
        %8527 = vmatprep.subr.bf16.mxu0 0
        %8528 = vmatpush2.bf16.msra.mxu0 %v8339
        %8529 = vmatprep.subr.bf16.mxu0 0
        %8530 = vmatpush2.bf16.msra.mxu0 %v8338
        %8531 = vmatprep.subr.bf16.mxu0 0
        %8532 = vmatpush2.bf16.msra.mxu0 %v8337
        %8533 = vmatprep.subr.bf16.mxu0 0
        %8534 = vmatpush2.bf16.msra.mxu0 %v8336
        %8535 = vmatprep.subr.bf16.mxu0 0
        %8536 = vmatpush2.bf16.msra.mxu0 %v8335
        %8537 = vmatprep.mubr.bf16.mxu0 %v8490
        %8538 = vmatmul.mubr.bf16.gmra.mxu0 %v8489
        %v8539 = vpop.f32.mrf.mxu0
        %v8540 = vadd.f32 0.0, %v8539
        %v8541 = vpop.f32.mrf.mxu0
        %v8542 = vpop.f32.mrf.mxu0
        %v8543 = vadd.f32 0.0, %v8542
        %v8544 = vpop.f32.mrf.mxu0
        %8545 = vmatprep.mubr.bf16.mxu0 %v8492
        %8546 = vmatmul.mubr.bf16.gmra.mxu0 %v8491
        %v8547 = vpop.f32.mrf.mxu0
        %v8548 = vadd.f32 0.0, %v8547
        %v8549 = vpop.f32.mrf.mxu0
        %v8550 = vpop.f32.mrf.mxu0
        %v8551 = vadd.f32 0.0, %v8550
        %v8552 = vpop.f32.mrf.mxu0
        %8553 = vmatprep.mubr.bf16.mxu0 %v8494
        %8554 = vmatmul.mubr.bf16.gmra.mxu0 %v8493
        %v8555 = vpop.f32.mrf.mxu0
        %v8556 = vadd.f32 0.0, %v8555
        %v8557 = vpop.f32.mrf.mxu0
        %v8558 = vpop.f32.mrf.mxu0
        %v8559 = vadd.f32 0.0, %v8558
        %v8560 = vpop.f32.mrf.mxu0
        %8561 = vmatprep.mubr.bf16.mxu0 %v8496
        %8562 = vmatmul.mubr.bf16.gmra.mxu0 %v8495
        %v8563 = vpop.f32.mrf.mxu0
        %v8564 = vadd.f32 0.0, %v8563
        %v8565 = vpop.f32.mrf.mxu0
        %v8566 = vpop.f32.mrf.mxu0
        %v8567 = vadd.f32 0.0, %v8566
        %v8568 = vpop.f32.mrf.mxu0
        %8569 = vdwg.mxu0
        %s8570 = scalar_lea.vmem %s3, 128
        %v8571 = vld [vmem:[%s8570] sm:$0xff]
        %v8572 = vld [vmem:[%s8570 + $0x8] sm:$0xff]
        %v8573 = vld [vmem:[%s8570 + $0x10] sm:$0xff]
        %v8574 = vld [vmem:[%s8570 + $0x18] sm:$0xff]
        %v8575 = vld [vmem:[%s8570 + $0x20] sm:$0xff]
        %v8576 = vld [vmem:[%s8570 + $0x28] sm:$0xff]
        %v8577 = vld [vmem:[%s8570 + $0x30] sm:$0xff]
        %v8578 = vld [vmem:[%s8570 + $0x38] sm:$0xff]
        %v8587 = vunpack.c.l.b16 %v8571
        %v8588 = vunpack.c.h.b16 %v8571
        %v8589 = vunpack.c.l.b16 %v8572
        %v8590 = vunpack.c.h.b16 %v8572
        %v8591 = vunpack.c.l.b16 %v8573
        %v8592 = vunpack.c.h.b16 %v8573
        %v8593 = vunpack.c.l.b16 %v8574
        %v8594 = vunpack.c.h.b16 %v8574
        %v8595 = vunpack.c.l.b16 %v8575
        %v8596 = vunpack.c.h.b16 %v8575
        %v8597 = vunpack.c.l.b16 %v8576
        %v8598 = vunpack.c.h.b16 %v8576
        %v8599 = vunpack.c.l.b16 %v8577
        %v8600 = vunpack.c.h.b16 %v8577
        %v8601 = vunpack.c.l.b16 %v8578
        %v8602 = vunpack.c.h.b16 %v8578
        %v8603 = vpack.c.b16 %v8589, %v8587
        %v8604 = vpack.c.b16 %v8590, %v8588
        %v8605 = vpack.c.b16 %v8593, %v8591
        %v8606 = vpack.c.b16 %v8594, %v8592
        %v8607 = vpack.c.b16 %v8597, %v8595
        %v8608 = vpack.c.b16 %v8598, %v8596
        %v8609 = vpack.c.b16 %v8601, %v8599
        %v8610 = vpack.c.b16 %v8602, %v8600
        %8619 = vmatprep.subr.bf16.mxu0 0
        %8620 = vmatpush1.bf16.msra.mxu0 %v8334
        %8621 = vmatprep.subr.bf16.mxu0 0
        %8622 = vmatpush1.bf16.msra.mxu0 %v8333
        %8623 = vmatprep.subr.bf16.mxu0 0
        %8624 = vmatpush1.bf16.msra.mxu0 %v8332
        %8625 = vmatprep.subr.bf16.mxu0 0
        %8626 = vmatpush1.bf16.msra.mxu0 %v8331
        %8627 = vmatprep.subr.bf16.mxu0 0
        %8628 = vmatpush1.bf16.msra.mxu0 %v8330
        %8629 = vmatprep.subr.bf16.mxu0 0
        %8630 = vmatpush1.bf16.msra.mxu0 %v8329
        %8631 = vmatprep.subr.bf16.mxu0 0
        %8632 = vmatpush1.bf16.msra.mxu0 %v8328
        %8633 = vmatprep.subr.bf16.mxu0 0
        %8634 = vmatpush1.bf16.msra.mxu0 %v8327
        %8635 = vmatprep.subr.bf16.mxu0 0
        %8636 = vmatpush2.bf16.msra.mxu0 %v8342
        %8637 = vmatprep.subr.bf16.mxu0 0
        %8638 = vmatpush2.bf16.msra.mxu0 %v8341
        %8639 = vmatprep.subr.bf16.mxu0 0
        %8640 = vmatpush2.bf16.msra.mxu0 %v8340
        %8641 = vmatprep.subr.bf16.mxu0 0
        %8642 = vmatpush2.bf16.msra.mxu0 %v8339
        %8643 = vmatprep.subr.bf16.mxu0 0
        %8644 = vmatpush2.bf16.msra.mxu0 %v8338
        %8645 = vmatprep.subr.bf16.mxu0 0
        %8646 = vmatpush2.bf16.msra.mxu0 %v8337
        %8647 = vmatprep.subr.bf16.mxu0 0
        %8648 = vmatpush2.bf16.msra.mxu0 %v8336
        %8649 = vmatprep.subr.bf16.mxu0 0
        %8650 = vmatpush2.bf16.msra.mxu0 %v8335
        %8651 = vmatprep.mubr.bf16.mxu0 %v8604
        %8652 = vmatmul.mubr.bf16.gmra.mxu0 %v8603
        %v8653 = vpop.f32.mrf.mxu0
        %v8654 = vadd.f32 0.0, %v8653
        %v8655 = vpop.f32.mrf.mxu0
        %v8656 = vpop.f32.mrf.mxu0
        %v8657 = vadd.f32 0.0, %v8656
        %v8658 = vpop.f32.mrf.mxu0
        %8659 = vmatprep.mubr.bf16.mxu0 %v8606
        %8660 = vmatmul.mubr.bf16.gmra.mxu0 %v8605
        %v8661 = vpop.f32.mrf.mxu0
        %v8662 = vadd.f32 0.0, %v8661
        %v8663 = vpop.f32.mrf.mxu0
        %v8664 = vpop.f32.mrf.mxu0
        %v8665 = vadd.f32 0.0, %v8664
        %v8666 = vpop.f32.mrf.mxu0
        %8667 = vmatprep.mubr.bf16.mxu0 %v8608
        %8668 = vmatmul.mubr.bf16.gmra.mxu0 %v8607
        %v8669 = vpop.f32.mrf.mxu0
        %v8670 = vadd.f32 0.0, %v8669
        %v8671 = vpop.f32.mrf.mxu0
        %v8672 = vpop.f32.mrf.mxu0
        %v8673 = vadd.f32 0.0, %v8672
        %v8674 = vpop.f32.mrf.mxu0
        %8675 = vmatprep.mubr.bf16.mxu0 %v8610
        %8676 = vmatmul.mubr.bf16.gmra.mxu0 %v8609
        %v8677 = vpop.f32.mrf.mxu0
        %v8678 = vadd.f32 0.0, %v8677
        %v8679 = vpop.f32.mrf.mxu0
        %v8680 = vpop.f32.mrf.mxu0
        %v8681 = vadd.f32 0.0, %v8680
        %v8682 = vpop.f32.mrf.mxu0
        %8683 = vdwg.mxu0
        %s8684 = scalar_lea.vmem %s3, 192
        %v8685 = vld [vmem:[%s8684] sm:$0xff]
        %v8686 = vld [vmem:[%s8684 + $0x8] sm:$0xff]
        %v8687 = vld [vmem:[%s8684 + $0x10] sm:$0xff]
        %v8688 = vld [vmem:[%s8684 + $0x18] sm:$0xff]
        %v8689 = vld [vmem:[%s8684 + $0x20] sm:$0xff]
        %v8690 = vld [vmem:[%s8684 + $0x28] sm:$0xff]
        %v8691 = vld [vmem:[%s8684 + $0x30] sm:$0xff]
        %v8692 = vld [vmem:[%s8684 + $0x38] sm:$0xff]
        %v8701 = vunpack.c.l.b16 %v8685
        %v8702 = vunpack.c.h.b16 %v8685
        %v8703 = vunpack.c.l.b16 %v8686
        %v8704 = vunpack.c.h.b16 %v8686
        %v8705 = vunpack.c.l.b16 %v8687
        %v8706 = vunpack.c.h.b16 %v8687
        %v8707 = vunpack.c.l.b16 %v8688
        %v8708 = vunpack.c.h.b16 %v8688
        %v8709 = vunpack.c.l.b16 %v8689
        %v8710 = vunpack.c.h.b16 %v8689
        %v8711 = vunpack.c.l.b16 %v8690
        %v8712 = vunpack.c.h.b16 %v8690
        %v8713 = vunpack.c.l.b16 %v8691
        %v8714 = vunpack.c.h.b16 %v8691
        %v8715 = vunpack.c.l.b16 %v8692
        %v8716 = vunpack.c.h.b16 %v8692
        %v8717 = vpack.c.b16 %v8703, %v8701
        %v8718 = vpack.c.b16 %v8704, %v8702
        %v8719 = vpack.c.b16 %v8707, %v8705
        %v8720 = vpack.c.b16 %v8708, %v8706
        %v8721 = vpack.c.b16 %v8711, %v8709
        %v8722 = vpack.c.b16 %v8712, %v8710
        %v8723 = vpack.c.b16 %v8715, %v8713
        %v8724 = vpack.c.b16 %v8716, %v8714
        %8733 = vmatprep.subr.bf16.mxu0 0
        %8734 = vmatpush1.bf16.msra.mxu0 %v8334
        %8735 = vmatprep.subr.bf16.mxu0 0
        %8736 = vmatpush1.bf16.msra.mxu0 %v8333
        %8737 = vmatprep.subr.bf16.mxu0 0
        %8738 = vmatpush1.bf16.msra.mxu0 %v8332
        %8739 = vmatprep.subr.bf16.mxu0 0
        %8740 = vmatpush1.bf16.msra.mxu0 %v8331
        %8741 = vmatprep.subr.bf16.mxu0 0
        %8742 = vmatpush1.bf16.msra.mxu0 %v8330
        %8743 = vmatprep.subr.bf16.mxu0 0
        %8744 = vmatpush1.bf16.msra.mxu0 %v8329
        %8745 = vmatprep.subr.bf16.mxu0 0
        %8746 = vmatpush1.bf16.msra.mxu0 %v8328
        %8747 = vmatprep.subr.bf16.mxu0 0
        %8748 = vmatpush1.bf16.msra.mxu0 %v8327
        %8749 = vmatprep.subr.bf16.mxu0 0
        %8750 = vmatpush2.bf16.msra.mxu0 %v8342
        %8751 = vmatprep.subr.bf16.mxu0 0
        %8752 = vmatpush2.bf16.msra.mxu0 %v8341
        %8753 = vmatprep.subr.bf16.mxu0 0
        %8754 = vmatpush2.bf16.msra.mxu0 %v8340
        %8755 = vmatprep.subr.bf16.mxu0 0
        %8756 = vmatpush2.bf16.msra.mxu0 %v8339
        %8757 = vmatprep.subr.bf16.mxu0 0
        %8758 = vmatpush2.bf16.msra.mxu0 %v8338
        %8759 = vmatprep.subr.bf16.mxu0 0
        %8760 = vmatpush2.bf16.msra.mxu0 %v8337
        %8761 = vmatprep.subr.bf16.mxu0 0
        %8762 = vmatpush2.bf16.msra.mxu0 %v8336
        %8763 = vmatprep.subr.bf16.mxu0 0
        %8764 = vmatpush2.bf16.msra.mxu0 %v8335
        %8765 = vmatprep.mubr.bf16.mxu0 %v8718
        %8766 = vmatmul.mubr.bf16.gmra.mxu0 %v8717
        %v8767 = vpop.f32.mrf.mxu0
        %v8768 = vadd.f32 0.0, %v8767
        %v8769 = vpop.f32.mrf.mxu0
        %v8770 = vpop.f32.mrf.mxu0
        %v8771 = vadd.f32 0.0, %v8770
        %v8772 = vpop.f32.mrf.mxu0
        %8773 = vmatprep.mubr.bf16.mxu0 %v8720
        %8774 = vmatmul.mubr.bf16.gmra.mxu0 %v8719
        %v8775 = vpop.f32.mrf.mxu0
        %v8776 = vadd.f32 0.0, %v8775
        %v8777 = vpop.f32.mrf.mxu0
        %v8778 = vpop.f32.mrf.mxu0
        %v8779 = vadd.f32 0.0, %v8778
        %v8780 = vpop.f32.mrf.mxu0
        %8781 = vmatprep.mubr.bf16.mxu0 %v8722
        %8782 = vmatmul.mubr.bf16.gmra.mxu0 %v8721
        %v8783 = vpop.f32.mrf.mxu0
        %v8784 = vadd.f32 0.0, %v8783
        %v8785 = vpop.f32.mrf.mxu0
        %v8786 = vpop.f32.mrf.mxu0
        %v8787 = vadd.f32 0.0, %v8786
        %v8788 = vpop.f32.mrf.mxu0
        %8789 = vmatprep.mubr.bf16.mxu0 %v8724
        %8790 = vmatmul.mubr.bf16.gmra.mxu0 %v8723
        %v8791 = vpop.f32.mrf.mxu0
        %v8792 = vadd.f32 0.0, %v8791
        %v8793 = vpop.f32.mrf.mxu0
        %v8794 = vpop.f32.mrf.mxu0
        %v8795 = vadd.f32 0.0, %v8794
        %v8796 = vpop.f32.mrf.mxu0
        %8797 = vdwg.mxu0
        %v8798 = vmax.f32 %v8426, %v8540
        %v8799 = vmax.f32 %v8429, %v8543
        %v8800 = vmax.f32 %v8434, %v8548
        %v8801 = vmax.f32 %v8437, %v8551
        %v8802 = vmax.f32 %v8442, %v8556
        %v8803 = vmax.f32 %v8445, %v8559
        %v8804 = vmax.f32 %v8450, %v8564
        %v8805 = vmax.f32 %v8453, %v8567
        %v8806 = vmax.f32 %v8654, %v8768
        %v8807 = vmax.f32 %v8657, %v8771
        %v8808 = vmax.f32 %v8662, %v8776
        %v8809 = vmax.f32 %v8665, %v8779
        %v8810 = vmax.f32 %v8670, %v8784
        %v8811 = vmax.f32 %v8673, %v8787
        %v8812 = vmax.f32 %v8678, %v8792
        %v8813 = vmax.f32 %v8681, %v8795
        %v8814 = vmax.f32 %v8798, %v8806
        %v8815 = vmax.f32 %v8799, %v8807
        %v8816 = vmax.f32 %v8800, %v8808
        %v8817 = vmax.f32 %v8801, %v8809
        %v8818 = vmax.f32 %v8802, %v8810
        %v8819 = vmax.f32 %v8803, %v8811
        %v8820 = vmax.f32 %v8804, %v8812
        %v8821 = vmax.f32 %v8805, %v8813
        %vm8822 = vcmask 523264
        %8823 = vst.msk [vmem:[#allocation4] sm:$0xff] %vm8822, 0.0
        %8824 = vst.msk [vmem:[#allocation4 + $0x8] sm:$0xff] %vm8822, 0.0
        %8825 = vst.msk [vmem:[#allocation4 + $0x10] sm:$0xff] %vm8822, 0.0
        %8826 = vst.msk [vmem:[#allocation4 + $0x18] sm:$0xff] %vm8822, 0.0
        %8827 = vst.msk [vmem:[#allocation4 + $0x20] sm:$0xff] %vm8822, 0.0
        %8828 = vst.msk [vmem:[#allocation4 + $0x28] sm:$0xff] %vm8822, 0.0
        %8829 = vst.msk [vmem:[#allocation4 + $0x30] sm:$0xff] %vm8822, 0.0
        %8830 = vst.msk [vmem:[#allocation4 + $0x38] sm:$0xff] %vm8822, 0.0
        %8831 = vst.msk [vmem:[#allocation4 + $0x40] sm:$0xff] %vm8822, 0.0
        %8832 = vst.msk [vmem:[#allocation4 + $0x48] sm:$0xff] %vm8822, 0.0
        %8833 = vst.msk [vmem:[#allocation4 + $0x50] sm:$0xff] %vm8822, 0.0
        %8834 = vst.msk [vmem:[#allocation4 + $0x58] sm:$0xff] %vm8822, 0.0
        %8835 = vst.msk [vmem:[#allocation4 + $0x10] sm:$0xff] %vm8822, %v8814
        %8836 = vst.msk [vmem:[#allocation4 + $0x18] sm:$0xff] %vm8822, %v8815
        %8837 = vst.msk [vmem:[#allocation4 + $0x20] sm:$0xff] %vm8822, %v8816
        %8838 = vst.msk [vmem:[#allocation4 + $0x28] sm:$0xff] %vm8822, %v8817
        %8839 = vst.msk [vmem:[#allocation4 + $0x30] sm:$0xff] %vm8822, %v8818
        %8840 = vst.msk [vmem:[#allocation4 + $0x38] sm:$0xff] %vm8822, %v8819
        %8841 = vst.msk [vmem:[#allocation4 + $0x40] sm:$0xff] %vm8822, %v8820
        %8842 = vst.msk [vmem:[#allocation4 + $0x48] sm:$0xff] %vm8822, %v8821
        %v8843 = vld [vmem:[#allocation4 + $0x7] sm:$0xff]
        %v8844 = vld [vmem:[#allocation4 + $0xf] sm:$0xff]
        %v8845 = vld [vmem:[#allocation4 + $0x17] sm:$0xff]
        %v8846 = vld [vmem:[#allocation4 + $0x1f] sm:$0xff]
        %v8847 = vld [vmem:[#allocation4 + $0x27] sm:$0xff]
        %v8848 = vld [vmem:[#allocation4 + $0x2f] sm:$0xff]
        %v8849 = vld [vmem:[#allocation4 + $0x37] sm:$0xff]
        %v8850 = vld [vmem:[#allocation4 + $0x3f] sm:$0xff]
        %v8851 = vpack.c.bf16 %v8844, %v8843
        %v8852 = vpack.c.bf16 %v8846, %v8845
        %v8853 = vpack.c.bf16 %v8848, %v8847
        %v8854 = vpack.c.bf16 %v8850, %v8849
        %v8855 = vld [vmem:[%s2] sm:$0xf]
        %v8856 = vld [vmem:[%s2 + $0x4] sm:$0xf]
        %v8857 = vld [vmem:[%s2 + $0x8] sm:$0xf]
        %v8858 = vld [vmem:[%s2 + $0xc] sm:$0xf]
        %v8859 = vld [vmem:[%s2 + $0x10] sm:$0xf]
        %v8860 = vld [vmem:[%s2 + $0x14] sm:$0xf]
        %v8861 = vld [vmem:[%s2 + $0x18] sm:$0xf]
        %v8862 = vld [vmem:[%s2 + $0x1c] sm:$0xf]
        %8864 = vset.pattern.permute.xlu0 0
        %8865 = vperm.xlu0 %8864, %v8855
        %v8866 = vpop.permute.xlu0 %8865
        %v8869 = vunpack.c.l.s4 839922192
        %v8870 = vunpack.c.0.s8 %v8869
        %v8871 = vlaneseq
        %v8872 = vshrl.u32 %v8871, 7
        %v8873 = vsub.s32 %v8870, %v8872
        %v8874 = vrot.slane %v8866, %v8873
        %8876 = vset.pattern.permute.xlu0 0
        %8877 = vperm.xlu0 %8876, %v8856
        %v8878 = vpop.permute.xlu0 %8877
        %v8881 = vunpack.c.l.s4 839922192
        %v8882 = vunpack.c.0.s8 %v8881
        %v8883 = vlaneseq
        %v8884 = vshrl.u32 %v8883, 7
        %v8885 = vsub.s32 %v8882, %v8884
        %v8886 = vrot.slane %v8878, %v8885
        %8888 = vset.pattern.permute.xlu0 0
        %8889 = vperm.xlu0 %8888, %v8857
        %v8890 = vpop.permute.xlu0 %8889
        %v8893 = vunpack.c.l.s4 839922192
        %v8894 = vunpack.c.0.s8 %v8893
        %v8895 = vlaneseq
        %v8896 = vshrl.u32 %v8895, 7
        %v8897 = vsub.s32 %v8894, %v8896
        %v8898 = vrot.slane %v8890, %v8897
        %8900 = vset.pattern.permute.xlu0 0
        %8901 = vperm.xlu0 %8900, %v8858
        %v8902 = vpop.permute.xlu0 %8901
        %v8905 = vunpack.c.l.s4 839922192
        %v8906 = vunpack.c.0.s8 %v8905
        %v8907 = vlaneseq
        %v8908 = vshrl.u32 %v8907, 7
        %v8909 = vsub.s32 %v8906, %v8908
        %v8910 = vrot.slane %v8902, %v8909
        %8912 = vset.pattern.permute.xlu0 0
        %8913 = vperm.xlu0 %8912, %v8859
        %v8914 = vpop.permute.xlu0 %8913
        %v8917 = vunpack.c.l.s4 839922192
        %v8918 = vunpack.c.0.s8 %v8917
        %v8919 = vlaneseq
        %v8920 = vshrl.u32 %v8919, 7
        %v8921 = vsub.s32 %v8918, %v8920
        %v8922 = vrot.slane %v8914, %v8921
        %8924 = vset.pattern.permute.xlu0 0
        %8925 = vperm.xlu0 %8924, %v8860
        %v8926 = vpop.permute.xlu0 %8925
        %v8929 = vunpack.c.l.s4 839922192
        %v8930 = vunpack.c.0.s8 %v8929
        %v8931 = vlaneseq
        %v8932 = vshrl.u32 %v8931, 7
        %v8933 = vsub.s32 %v8930, %v8932
        %v8934 = vrot.slane %v8926, %v8933
        %8936 = vset.pattern.permute.xlu0 0
        %8937 = vperm.xlu0 %8936, %v8861
        %v8938 = vpop.permute.xlu0 %8937
        %v8941 = vunpack.c.l.s4 839922192
        %v8942 = vunpack.c.0.s8 %v8941
        %v8943 = vlaneseq
        %v8944 = vshrl.u32 %v8943, 7
        %v8945 = vsub.s32 %v8942, %v8944
        %v8946 = vrot.slane %v8938, %v8945
        %8948 = vset.pattern.permute.xlu0 0
        %8949 = vperm.xlu0 %8948, %v8862
        %v8950 = vpop.permute.xlu0 %8949
        %v8953 = vunpack.c.l.s4 839922192
        %v8954 = vunpack.c.0.s8 %v8953
        %v8955 = vlaneseq
        %v8956 = vshrl.u32 %v8955, 7
        %v8957 = vsub.s32 %v8954, %v8956
        %v8958 = vrot.slane %v8950, %v8957
        %v8967 = vunpack.c.l.b16 %v8874
        %v8968 = vunpack.c.l.b16 %v8886
        %v8969 = vunpack.c.l.b16 %v8898
        %v8970 = vunpack.c.l.b16 %v8910
        %v8971 = vunpack.c.l.b16 %v8922
        %v8972 = vunpack.c.l.b16 %v8934
        %v8973 = vunpack.c.l.b16 %v8946
        %v8974 = vunpack.c.l.b16 %v8958
        %v8975 = vpack.c.b16 %v8968, %v8967
        %v8976 = vpack.c.b16 %v8970, %v8969
        %v8977 = vpack.c.b16 %v8972, %v8971
        %v8978 = vpack.c.b16 %v8974, %v8973
        %v8983 = vmul.bf16 %v8851, %v8975
        %v8984 = vmul.bf16 %v8852, %v8976
        %v8985 = vmul.bf16 %v8853, %v8977
        %v8986 = vmul.bf16 %v8854, %v8978
        %v8987 = vld [vmem:[%s8] sm:$0xf]
        %v8988 = vld [vmem:[%s8 + $0x4] sm:$0xf]
        %v8989 = vld [vmem:[%s8 + $0x8] sm:$0xf]
        %v8990 = vld [vmem:[%s8 + $0xc] sm:$0xf]
        %v8991 = vld [vmem:[%s8 + $0x10] sm:$0xf]
        %v8992 = vld [vmem:[%s8 + $0x14] sm:$0xf]
        %v8993 = vld [vmem:[%s8 + $0x18] sm:$0xf]
        %v8994 = vld [vmem:[%s8 + $0x1c] sm:$0xf]
        %v8995 = vld [vmem:[#allocation4 + $0x8] sm:$0xff]
        %v8996 = vld [vmem:[#allocation4 + $0x10] sm:$0xff]
        %v8997 = vld [vmem:[#allocation4 + $0x18] sm:$0xff]
        %v8998 = vld [vmem:[#allocation4 + $0x20] sm:$0xff]
        %v8999 = vld [vmem:[#allocation4 + $0x28] sm:$0xff]
        %v9000 = vld [vmem:[#allocation4 + $0x30] sm:$0xff]
        %v9001 = vld [vmem:[#allocation4 + $0x38] sm:$0xff]
        %v9002 = vld [vmem:[#allocation4 + $0x40] sm:$0xff]
        %v9003 = vpack.c.bf16 %v8996, %v8995
        %v9004 = vpack.c.bf16 %v8998, %v8997
        %v9005 = vpack.c.bf16 %v9000, %v8999
        %v9006 = vpack.c.bf16 %v9002, %v9001
        %s9007 = scalar_lea.vmem %s8, 32
        %v9008 = vld [vmem:[%s9007] sm:$0xf]
        %v9009 = vld [vmem:[%s9007 + $0x4] sm:$0xf]
        %v9010 = vld [vmem:[%s9007 + $0x8] sm:$0xf]
        %v9011 = vld [vmem:[%s9007 + $0xc] sm:$0xf]
        %v9012 = vld [vmem:[%s9007 + $0x10] sm:$0xf]
        %v9013 = vld [vmem:[%s9007 + $0x14] sm:$0xf]
        %v9014 = vld [vmem:[%s9007 + $0x18] sm:$0xf]
        %v9015 = vld [vmem:[%s9007 + $0x1c] sm:$0xf]
        %v9024 = vunpack.c.l.b16 %v9008
        %v9025 = vunpack.c.l.b16 %v9009
        %v9026 = vunpack.c.l.b16 %v9010
        %v9027 = vunpack.c.l.b16 %v9011
        %v9028 = vunpack.c.l.b16 %v9012
        %v9029 = vunpack.c.l.b16 %v9013
        %v9030 = vunpack.c.l.b16 %v9014
        %v9031 = vunpack.c.l.b16 %v9015
        %v9032 = vpack.c.b16 %v9025, %v9024
        %v9033 = vpack.c.b16 %v9027, %v9026
        %v9034 = vpack.c.b16 %v9029, %v9028
        %v9035 = vpack.c.b16 %v9031, %v9030
        %v9041 = vsel %vm8822, %v9003, 0
        %v9044 = vsel %vm8822, %v9004, 0
        %v9047 = vsel %vm8822, %v9005, 0
        %v9050 = vsel %vm8822, %v9006, 0
        %9052 = vmatprep.subr.bf16.mxu0 0
        %9053 = vmatpush1.bf16.msra.mxu0 0
        %9054 = vmatprep.subr.bf16.mxu0 0
        %9055 = vmatpush1.bf16.msra.mxu0 0
        %9056 = vmatprep.subr.bf16.mxu0 0
        %9057 = vmatpush1.bf16.msra.mxu0 0
        %9058 = vmatprep.subr.bf16.mxu0 0
        %9059 = vmatpush1.bf16.msra.mxu0 0
        %9060 = vmatprep.subr.bf16.mxu0 0
        %9061 = vmatpush1.bf16.msra.mxu0 %v9035
        %9062 = vmatprep.subr.bf16.mxu0 0
        %9063 = vmatpush1.bf16.msra.mxu0 %v9034
        %9064 = vmatprep.subr.bf16.mxu0 0
        %9065 = vmatpush1.bf16.msra.mxu0 %v9033
        %9066 = vmatprep.subr.bf16.mxu0 0
        %9067 = vmatpush1.bf16.msra.mxu0 %v9032
        %9068 = vmatprep.subr.bf16.mxu0 0
        %9069 = vmatpush2.bf16.msra.mxu0 0
        %9070 = vmatprep.subr.bf16.mxu0 0
        %9071 = vmatpush2.bf16.msra.mxu0 0
        %9072 = vmatprep.subr.bf16.mxu0 0
        %9073 = vmatpush2.bf16.msra.mxu0 0
        %9074 = vmatprep.subr.bf16.mxu0 0
        %9075 = vmatpush2.bf16.msra.mxu0 0
        %9076 = vmatprep.subr.bf16.mxu0 0
        %9077 = vmatpush2.bf16.msra.mxu0 0
        %9078 = vmatprep.subr.bf16.mxu0 0
        %9079 = vmatpush2.bf16.msra.mxu0 0
        %9080 = vmatprep.subr.bf16.mxu0 0
        %9081 = vmatpush2.bf16.msra.mxu0 0
        %9082 = vmatprep.subr.bf16.mxu0 0
        %9083 = vmatpush2.bf16.msra.mxu0 0
        %9084 = vmatprep.mubr.bf16.mxu0 0
        %9085 = vmatmul.mubr.bf16.gmra.mxu0 %v9041
        %v9086 = vpop.f32.mrf.mxu0
        %v9087 = vadd.f32 0.0, %v9086
        %v9088 = vpop.f32.mrf.mxu0
        %v9089 = vpop.f32.mrf.mxu0
        %v9090 = vadd.f32 0.0, %v9089
        %v9091 = vpop.f32.mrf.mxu0
        %9092 = vmatprep.mubr.bf16.mxu0 0
        %9093 = vmatmul.mubr.bf16.gmra.mxu0 %v9044
        %v9094 = vpop.f32.mrf.mxu0
        %v9095 = vadd.f32 0.0, %v9094
        %v9096 = vpop.f32.mrf.mxu0
        %v9097 = vpop.f32.mrf.mxu0
        %v9098 = vadd.f32 0.0, %v9097
        %v9099 = vpop.f32.mrf.mxu0
        %9100 = vmatprep.mubr.bf16.mxu0 0
        %9101 = vmatmul.mubr.bf16.gmra.mxu0 %v9047
        %v9102 = vpop.f32.mrf.mxu0
        %v9103 = vadd.f32 0.0, %v9102
        %v9104 = vpop.f32.mrf.mxu0
        %v9105 = vpop.f32.mrf.mxu0
        %v9106 = vadd.f32 0.0, %v9105
        %v9107 = vpop.f32.mrf.mxu0
        %9108 = vmatprep.mubr.bf16.mxu0 0
        %9109 = vmatmul.mubr.bf16.gmra.mxu0 %v9050
        %v9110 = vpop.f32.mrf.mxu0
        %v9111 = vadd.f32 0.0, %v9110
        %v9112 = vpop.f32.mrf.mxu0
        %v9113 = vpop.f32.mrf.mxu0
        %v9114 = vadd.f32 0.0, %v9113
        %v9115 = vpop.f32.mrf.mxu0
        %9116 = vdwg.mxu0
        %v9125 = vunpack.c.l.b16 %v8987
        %v9126 = vunpack.c.l.b16 %v8988
        %v9127 = vunpack.c.l.b16 %v8989
        %v9128 = vunpack.c.l.b16 %v8990
        %v9129 = vunpack.c.l.b16 %v8991
        %v9130 = vunpack.c.l.b16 %v8992
        %v9131 = vunpack.c.l.b16 %v8993
        %v9132 = vunpack.c.l.b16 %v8994
        %v9133 = vpack.c.b16 %v9126, %v9125
        %v9134 = vpack.c.b16 %v9128, %v9127
        %v9135 = vpack.c.b16 %v9130, %v9129
        %v9136 = vpack.c.b16 %v9132, %v9131
        %v9142 = vsel %vm8822, %v8983, 0
        %v9145 = vsel %vm8822, %v8984, 0
        %v9148 = vsel %vm8822, %v8985, 0
        %v9151 = vsel %vm8822, %v8986, 0
        %9153 = vmatprep.subr.bf16.mxu0 0
        %9154 = vmatpush1.bf16.msra.mxu0 0
        %9155 = vmatprep.subr.bf16.mxu0 0
        %9156 = vmatpush1.bf16.msra.mxu0 0
        %9157 = vmatprep.subr.bf16.mxu0 0
        %9158 = vmatpush1.bf16.msra.mxu0 0
        %9159 = vmatprep.subr.bf16.mxu0 0
        %9160 = vmatpush1.bf16.msra.mxu0 0
        %9161 = vmatprep.subr.bf16.mxu0 0
        %9162 = vmatpush1.bf16.msra.mxu0 %v9136
        %9163 = vmatprep.subr.bf16.mxu0 0
        %9164 = vmatpush1.bf16.msra.mxu0 %v9135
        %9165 = vmatprep.subr.bf16.mxu0 0
        %9166 = vmatpush1.bf16.msra.mxu0 %v9134
        %9167 = vmatprep.subr.bf16.mxu0 0
        %9168 = vmatpush1.bf16.msra.mxu0 %v9133
        %9169 = vmatprep.subr.bf16.mxu0 0
        %9170 = vmatpush2.bf16.msra.mxu0 0
        %9171 = vmatprep.subr.bf16.mxu0 0
        %9172 = vmatpush2.bf16.msra.mxu0 0
        %9173 = vmatprep.subr.bf16.mxu0 0
        %9174 = vmatpush2.bf16.msra.mxu0 0
        %9175 = vmatprep.subr.bf16.mxu0 0
        %9176 = vmatpush2.bf16.msra.mxu0 0
        %9177 = vmatprep.subr.bf16.mxu0 0
        %9178 = vmatpush2.bf16.msra.mxu0 0
        %9179 = vmatprep.subr.bf16.mxu0 0
        %9180 = vmatpush2.bf16.msra.mxu0 0
        %9181 = vmatprep.subr.bf16.mxu0 0
        %9182 = vmatpush2.bf16.msra.mxu0 0
        %9183 = vmatprep.subr.bf16.mxu0 0
        %9184 = vmatpush2.bf16.msra.mxu0 0
        %9185 = vmatprep.mubr.bf16.mxu0 0
        %9186 = vmatmul.mubr.bf16.gmra.mxu0 %v9142
        %v9187 = vpop.f32.mrf.mxu0
        %v9188 = vadd.f32 %v9087, %v9187
        %v9189 = vpop.f32.mrf.mxu0
        %v9190 = vpop.f32.mrf.mxu0
        %v9191 = vadd.f32 %v9090, %v9190
        %v9192 = vpop.f32.mrf.mxu0
        %9193 = vmatprep.mubr.bf16.mxu0 0
        %9194 = vmatmul.mubr.bf16.gmra.mxu0 %v9145
        %v9195 = vpop.f32.mrf.mxu0
        %v9196 = vadd.f32 %v9095, %v9195
        %v9197 = vpop.f32.mrf.mxu0
        %v9198 = vpop.f32.mrf.mxu0
        %v9199 = vadd.f32 %v9098, %v9198
        %v9200 = vpop.f32.mrf.mxu0
        %9201 = vmatprep.mubr.bf16.mxu0 0
        %9202 = vmatmul.mubr.bf16.gmra.mxu0 %v9148
        %v9203 = vpop.f32.mrf.mxu0
        %v9204 = vadd.f32 %v9103, %v9203
        %v9205 = vpop.f32.mrf.mxu0
        %v9206 = vpop.f32.mrf.mxu0
        %v9207 = vadd.f32 %v9106, %v9206
        %v9208 = vpop.f32.mrf.mxu0
        %9209 = vmatprep.mubr.bf16.mxu0 0
        %9210 = vmatmul.mubr.bf16.gmra.mxu0 %v9151
        %v9211 = vpop.f32.mrf.mxu0
        %v9212 = vadd.f32 %v9111, %v9211
        %v9213 = vpop.f32.mrf.mxu0
        %v9214 = vpop.f32.mrf.mxu0
        %v9215 = vadd.f32 %v9114, %v9214
        %v9216 = vpop.f32.mrf.mxu0
        %9217 = vdwg.mxu0
        %v9218 = vld [vmem:[#allocation4 + $0x9] sm:$0xff]
        %v9219 = vld [vmem:[#allocation4 + $0x11] sm:$0xff]
        %v9220 = vld [vmem:[#allocation4 + $0x19] sm:$0xff]
        %v9221 = vld [vmem:[#allocation4 + $0x21] sm:$0xff]
        %v9222 = vld [vmem:[#allocation4 + $0x29] sm:$0xff]
        %v9223 = vld [vmem:[#allocation4 + $0x31] sm:$0xff]
        %v9224 = vld [vmem:[#allocation4 + $0x39] sm:$0xff]
        %v9225 = vld [vmem:[#allocation4 + $0x41] sm:$0xff]
        %v9226 = vpack.c.bf16 %v9219, %v9218
        %v9227 = vpack.c.bf16 %v9221, %v9220
        %v9228 = vpack.c.bf16 %v9223, %v9222
        %v9229 = vpack.c.bf16 %v9225, %v9224
        %s9230 = scalar_lea.vmem %s2, 32
        %v9231 = vld [vmem:[%s9230] sm:$0xf]
        %v9232 = vld [vmem:[%s9230 + $0x4] sm:$0xf]
        %v9233 = vld [vmem:[%s9230 + $0x8] sm:$0xf]
        %v9234 = vld [vmem:[%s9230 + $0xc] sm:$0xf]
        %v9235 = vld [vmem:[%s9230 + $0x10] sm:$0xf]
        %v9236 = vld [vmem:[%s9230 + $0x14] sm:$0xf]
        %v9237 = vld [vmem:[%s9230 + $0x18] sm:$0xf]
        %v9238 = vld [vmem:[%s9230 + $0x1c] sm:$0xf]
        %9240 = vset.pattern.permute.xlu0 0
        %9241 = vperm.xlu0 %9240, %v9231
        %v9242 = vpop.permute.xlu0 %9241
        %v9245 = vunpack.c.l.s4 839922192
        %v9246 = vunpack.c.0.s8 %v9245
        %v9247 = vlaneseq
        %v9248 = vshrl.u32 %v9247, 7
        %v9249 = vsub.s32 %v9246, %v9248
        %v9250 = vrot.slane %v9242, %v9249
        %9252 = vset.pattern.permute.xlu0 0
        %9253 = vperm.xlu0 %9252, %v9232
        %v9254 = vpop.permute.xlu0 %9253
        %v9257 = vunpack.c.l.s4 839922192
        %v9258 = vunpack.c.0.s8 %v9257
        %v9259 = vlaneseq
        %v9260 = vshrl.u32 %v9259, 7
        %v9261 = vsub.s32 %v9258, %v9260
        %v9262 = vrot.slane %v9254, %v9261
        %9264 = vset.pattern.permute.xlu0 0
        %9265 = vperm.xlu0 %9264, %v9233
        %v9266 = vpop.permute.xlu0 %9265
        %v9269 = vunpack.c.l.s4 839922192
        %v9270 = vunpack.c.0.s8 %v9269
        %v9271 = vlaneseq
        %v9272 = vshrl.u32 %v9271, 7
        %v9273 = vsub.s32 %v9270, %v9272
        %v9274 = vrot.slane %v9266, %v9273
        %9276 = vset.pattern.permute.xlu0 0
        %9277 = vperm.xlu0 %9276, %v9234
        %v9278 = vpop.permute.xlu0 %9277
        %v9281 = vunpack.c.l.s4 839922192
        %v9282 = vunpack.c.0.s8 %v9281
        %v9283 = vlaneseq
        %v9284 = vshrl.u32 %v9283, 7
        %v9285 = vsub.s32 %v9282, %v9284
        %v9286 = vrot.slane %v9278, %v9285
        %9288 = vset.pattern.permute.xlu0 0
        %9289 = vperm.xlu0 %9288, %v9235
        %v9290 = vpop.permute.xlu0 %9289
        %v9293 = vunpack.c.l.s4 839922192
        %v9294 = vunpack.c.0.s8 %v9293
        %v9295 = vlaneseq
        %v9296 = vshrl.u32 %v9295, 7
        %v9297 = vsub.s32 %v9294, %v9296
        %v9298 = vrot.slane %v9290, %v9297
        %9300 = vset.pattern.permute.xlu0 0
        %9301 = vperm.xlu0 %9300, %v9236
        %v9302 = vpop.permute.xlu0 %9301
        %v9305 = vunpack.c.l.s4 839922192
        %v9306 = vunpack.c.0.s8 %v9305
        %v9307 = vlaneseq
        %v9308 = vshrl.u32 %v9307, 7
        %v9309 = vsub.s32 %v9306, %v9308
        %v9310 = vrot.slane %v9302, %v9309
        %9312 = vset.pattern.permute.xlu0 0
        %9313 = vperm.xlu0 %9312, %v9237
        %v9314 = vpop.permute.xlu0 %9313
        %v9317 = vunpack.c.l.s4 839922192
        %v9318 = vunpack.c.0.s8 %v9317
        %v9319 = vlaneseq
        %v9320 = vshrl.u32 %v9319, 7
        %v9321 = vsub.s32 %v9318, %v9320
        %v9322 = vrot.slane %v9314, %v9321
        %9324 = vset.pattern.permute.xlu0 0
        %9325 = vperm.xlu0 %9324, %v9238
        %v9326 = vpop.permute.xlu0 %9325
        %v9329 = vunpack.c.l.s4 839922192
        %v9330 = vunpack.c.0.s8 %v9329
        %v9331 = vlaneseq
        %v9332 = vshrl.u32 %v9331, 7
        %v9333 = vsub.s32 %v9330, %v9332
        %v9334 = vrot.slane %v9326, %v9333
        %v9343 = vunpack.c.l.b16 %v9250
        %v9344 = vunpack.c.l.b16 %v9262
        %v9345 = vunpack.c.l.b16 %v9274
        %v9346 = vunpack.c.l.b16 %v9286
        %v9347 = vunpack.c.l.b16 %v9298
        %v9348 = vunpack.c.l.b16 %v9310
        %v9349 = vunpack.c.l.b16 %v9322
        %v9350 = vunpack.c.l.b16 %v9334
        %v9351 = vpack.c.b16 %v9344, %v9343
        %v9352 = vpack.c.b16 %v9346, %v9345
        %v9353 = vpack.c.b16 %v9348, %v9347
        %v9354 = vpack.c.b16 %v9350, %v9349
        %v9359 = vmul.bf16 %v9226, %v9351
        %v9360 = vmul.bf16 %v9227, %v9352
        %v9361 = vmul.bf16 %v9228, %v9353
        %v9362 = vmul.bf16 %v9229, %v9354
        %s9363 = scalar_lea.vmem %s8, 64
        %v9364 = vld [vmem:[%s9363] sm:$0xf]
        %v9365 = vld [vmem:[%s9363 + $0x4] sm:$0xf]
        %v9366 = vld [vmem:[%s9363 + $0x8] sm:$0xf]
        %v9367 = vld [vmem:[%s9363 + $0xc] sm:$0xf]
        %v9368 = vld [vmem:[%s9363 + $0x10] sm:$0xf]
        %v9369 = vld [vmem:[%s9363 + $0x14] sm:$0xf]
        %v9370 = vld [vmem:[%s9363 + $0x18] sm:$0xf]
        %v9371 = vld [vmem:[%s9363 + $0x1c] sm:$0xf]
        %v9380 = vunpack.c.l.b16 %v9364
        %v9381 = vunpack.c.l.b16 %v9365
        %v9382 = vunpack.c.l.b16 %v9366
        %v9383 = vunpack.c.l.b16 %v9367
        %v9384 = vunpack.c.l.b16 %v9368
        %v9385 = vunpack.c.l.b16 %v9369
        %v9386 = vunpack.c.l.b16 %v9370
        %v9387 = vunpack.c.l.b16 %v9371
        %v9388 = vpack.c.b16 %v9381, %v9380
        %v9389 = vpack.c.b16 %v9383, %v9382
        %v9390 = vpack.c.b16 %v9385, %v9384
        %v9391 = vpack.c.b16 %v9387, %v9386
        %v9397 = vsel %vm8822, %v9359, 0
        %v9400 = vsel %vm8822, %v9360, 0
        %v9403 = vsel %vm8822, %v9361, 0
        %v9406 = vsel %vm8822, %v9362, 0
        %9408 = vmatprep.subr.bf16.mxu0 0
        %9409 = vmatpush1.bf16.msra.mxu0 0
        %9410 = vmatprep.subr.bf16.mxu0 0
        %9411 = vmatpush1.bf16.msra.mxu0 0
        %9412 = vmatprep.subr.bf16.mxu0 0
        %9413 = vmatpush1.bf16.msra.mxu0 0
        %9414 = vmatprep.subr.bf16.mxu0 0
        %9415 = vmatpush1.bf16.msra.mxu0 0
        %9416 = vmatprep.subr.bf16.mxu0 0
        %9417 = vmatpush1.bf16.msra.mxu0 %v9391
        %9418 = vmatprep.subr.bf16.mxu0 0
        %9419 = vmatpush1.bf16.msra.mxu0 %v9390
        %9420 = vmatprep.subr.bf16.mxu0 0
        %9421 = vmatpush1.bf16.msra.mxu0 %v9389
        %9422 = vmatprep.subr.bf16.mxu0 0
        %9423 = vmatpush1.bf16.msra.mxu0 %v9388
        %9424 = vmatprep.subr.bf16.mxu0 0
        %9425 = vmatpush2.bf16.msra.mxu0 0
        %9426 = vmatprep.subr.bf16.mxu0 0
        %9427 = vmatpush2.bf16.msra.mxu0 0
        %9428 = vmatprep.subr.bf16.mxu0 0
        %9429 = vmatpush2.bf16.msra.mxu0 0
        %9430 = vmatprep.subr.bf16.mxu0 0
        %9431 = vmatpush2.bf16.msra.mxu0 0
        %9432 = vmatprep.subr.bf16.mxu0 0
        %9433 = vmatpush2.bf16.msra.mxu0 0
        %9434 = vmatprep.subr.bf16.mxu0 0
        %9435 = vmatpush2.bf16.msra.mxu0 0
        %9436 = vmatprep.subr.bf16.mxu0 0
        %9437 = vmatpush2.bf16.msra.mxu0 0
        %9438 = vmatprep.subr.bf16.mxu0 0
        %9439 = vmatpush2.bf16.msra.mxu0 0
        %9440 = vmatprep.mubr.bf16.mxu0 0
        %9441 = vmatmul.mubr.bf16.gmra.mxu0 %v9397
        %v9442 = vpop.f32.mrf.mxu0
        %v9443 = vadd.f32 0.0, %v9442
        %v9444 = vpop.f32.mrf.mxu0
        %v9445 = vpop.f32.mrf.mxu0
        %v9446 = vadd.f32 0.0, %v9445
        %v9447 = vpop.f32.mrf.mxu0
        %9448 = vmatprep.mubr.bf16.mxu0 0
        %9449 = vmatmul.mubr.bf16.gmra.mxu0 %v9400
        %v9450 = vpop.f32.mrf.mxu0
        %v9451 = vadd.f32 0.0, %v9450
        %v9452 = vpop.f32.mrf.mxu0
        %v9453 = vpop.f32.mrf.mxu0
        %v9454 = vadd.f32 0.0, %v9453
        %v9455 = vpop.f32.mrf.mxu0
        %9456 = vmatprep.mubr.bf16.mxu0 0
        %9457 = vmatmul.mubr.bf16.gmra.mxu0 %v9403
        %v9458 = vpop.f32.mrf.mxu0
        %v9459 = vadd.f32 0.0, %v9458
        %v9460 = vpop.f32.mrf.mxu0
        %v9461 = vpop.f32.mrf.mxu0
        %v9462 = vadd.f32 0.0, %v9461
        %v9463 = vpop.f32.mrf.mxu0
        %9464 = vmatprep.mubr.bf16.mxu0 0
        %9465 = vmatmul.mubr.bf16.gmra.mxu0 %v9406
        %v9466 = vpop.f32.mrf.mxu0
        %v9467 = vadd.f32 0.0, %v9466
        %v9468 = vpop.f32.mrf.mxu0
        %v9469 = vpop.f32.mrf.mxu0
        %v9470 = vadd.f32 0.0, %v9469
        %v9471 = vpop.f32.mrf.mxu0
        %9472 = vdwg.mxu0
        %v9473 = vadd.f32 %v9188, %v9443
        %v9474 = vadd.f32 %v9191, %v9446
        %v9475 = vadd.f32 %v9196, %v9451
        %v9476 = vadd.f32 %v9199, %v9454
        %v9477 = vadd.f32 %v9204, %v9459
        %v9478 = vadd.f32 %v9207, %v9462
        %v9479 = vadd.f32 %v9212, %v9467
        %v9480 = vadd.f32 %v9215, %v9470
        %v9481 = vld [vmem:[#allocation4 + $0xf] sm:$0xff]
        %v9482 = vld [vmem:[#allocation4 + $0x17] sm:$0xff]
        %v9483 = vld [vmem:[#allocation4 + $0x1f] sm:$0xff]
        %v9484 = vld [vmem:[#allocation4 + $0x27] sm:$0xff]
        %v9485 = vld [vmem:[#allocation4 + $0x2f] sm:$0xff]
        %v9486 = vld [vmem:[#allocation4 + $0x37] sm:$0xff]
        %v9487 = vld [vmem:[#allocation4 + $0x3f] sm:$0xff]
        %v9488 = vld [vmem:[#allocation4 + $0x47] sm:$0xff]
        %v9489 = vpack.c.bf16 %v9482, %v9481
        %v9490 = vpack.c.bf16 %v9484, %v9483
        %v9491 = vpack.c.bf16 %v9486, %v9485
        %v9492 = vpack.c.bf16 %v9488, %v9487
        %v9493 = vmul.bf16 %v9489, %v8975
        %v9494 = vmul.bf16 %v9490, %v8976
        %v9495 = vmul.bf16 %v9491, %v8977
        %v9496 = vmul.bf16 %v9492, %v8978
        %s9497 = scalar_lea.vmem %s8, 96
        %v9498 = vld [vmem:[%s9497] sm:$0xf]
        %v9499 = vld [vmem:[%s9497 + $0x4] sm:$0xf]
        %v9500 = vld [vmem:[%s9497 + $0x8] sm:$0xf]
        %v9501 = vld [vmem:[%s9497 + $0xc] sm:$0xf]
        %v9502 = vld [vmem:[%s9497 + $0x10] sm:$0xf]
        %v9503 = vld [vmem:[%s9497 + $0x14] sm:$0xf]
        %v9504 = vld [vmem:[%s9497 + $0x18] sm:$0xf]
        %v9505 = vld [vmem:[%s9497 + $0x1c] sm:$0xf]
        %v9514 = vunpack.c.l.b16 %v9498
        %v9515 = vunpack.c.l.b16 %v9499
        %v9516 = vunpack.c.l.b16 %v9500
        %v9517 = vunpack.c.l.b16 %v9501
        %v9518 = vunpack.c.l.b16 %v9502
        %v9519 = vunpack.c.l.b16 %v9503
        %v9520 = vunpack.c.l.b16 %v9504
        %v9521 = vunpack.c.l.b16 %v9505
        %v9522 = vpack.c.b16 %v9515, %v9514
        %v9523 = vpack.c.b16 %v9517, %v9516
        %v9524 = vpack.c.b16 %v9519, %v9518
        %v9525 = vpack.c.b16 %v9521, %v9520
        %v9531 = vsel %vm8822, %v9493, 0
        %v9534 = vsel %vm8822, %v9494, 0
        %v9537 = vsel %vm8822, %v9495, 0
        %v9540 = vsel %vm8822, %v9496, 0
        %9542 = vmatprep.subr.bf16.mxu0 0
        %9543 = vmatpush1.bf16.msra.mxu0 0
        %9544 = vmatprep.subr.bf16.mxu0 0
        %9545 = vmatpush1.bf16.msra.mxu0 0
        %9546 = vmatprep.subr.bf16.mxu0 0
        %9547 = vmatpush1.bf16.msra.mxu0 0
        %9548 = vmatprep.subr.bf16.mxu0 0
        %9549 = vmatpush1.bf16.msra.mxu0 0
        %9550 = vmatprep.subr.bf16.mxu0 0
        %9551 = vmatpush1.bf16.msra.mxu0 %v9525
        %9552 = vmatprep.subr.bf16.mxu0 0
        %9553 = vmatpush1.bf16.msra.mxu0 %v9524
        %9554 = vmatprep.subr.bf16.mxu0 0
        %9555 = vmatpush1.bf16.msra.mxu0 %v9523
        %9556 = vmatprep.subr.bf16.mxu0 0
        %9557 = vmatpush1.bf16.msra.mxu0 %v9522
        %9558 = vmatprep.subr.bf16.mxu0 0
        %9559 = vmatpush2.bf16.msra.mxu0 0
        %9560 = vmatprep.subr.bf16.mxu0 0
        %9561 = vmatpush2.bf16.msra.mxu0 0
        %9562 = vmatprep.subr.bf16.mxu0 0
        %9563 = vmatpush2.bf16.msra.mxu0 0
        %9564 = vmatprep.subr.bf16.mxu0 0
        %9565 = vmatpush2.bf16.msra.mxu0 0
        %9566 = vmatprep.subr.bf16.mxu0 0
        %9567 = vmatpush2.bf16.msra.mxu0 0
        %9568 = vmatprep.subr.bf16.mxu0 0
        %9569 = vmatpush2.bf16.msra.mxu0 0
        %9570 = vmatprep.subr.bf16.mxu0 0
        %9571 = vmatpush2.bf16.msra.mxu0 0
        %9572 = vmatprep.subr.bf16.mxu0 0
        %9573 = vmatpush2.bf16.msra.mxu0 0
        %9574 = vmatprep.mubr.bf16.mxu0 0
        %9575 = vmatmul.mubr.bf16.gmra.mxu0 %v9531
        %v9576 = vpop.f32.mrf.mxu0
        %v9577 = vadd.f32 0.0, %v9576
        %v9578 = vpop.f32.mrf.mxu0
        %v9579 = vpop.f32.mrf.mxu0
        %v9580 = vadd.f32 0.0, %v9579
        %v9581 = vpop.f32.mrf.mxu0
        %9582 = vmatprep.mubr.bf16.mxu0 0
        %9583 = vmatmul.mubr.bf16.gmra.mxu0 %v9534
        %v9584 = vpop.f32.mrf.mxu0
        %v9585 = vadd.f32 0.0, %v9584
        %v9586 = vpop.f32.mrf.mxu0
        %v9587 = vpop.f32.mrf.mxu0
        %v9588 = vadd.f32 0.0, %v9587
        %v9589 = vpop.f32.mrf.mxu0
        %9590 = vmatprep.mubr.bf16.mxu0 0
        %9591 = vmatmul.mubr.bf16.gmra.mxu0 %v9537
        %v9592 = vpop.f32.mrf.mxu0
        %v9593 = vadd.f32 0.0, %v9592
        %v9594 = vpop.f32.mrf.mxu0
        %v9595 = vpop.f32.mrf.mxu0
        %v9596 = vadd.f32 0.0, %v9595
        %v9597 = vpop.f32.mrf.mxu0
        %9598 = vmatprep.mubr.bf16.mxu0 0
        %9599 = vmatmul.mubr.bf16.gmra.mxu0 %v9540
        %v9600 = vpop.f32.mrf.mxu0
        %v9601 = vadd.f32 0.0, %v9600
        %v9602 = vpop.f32.mrf.mxu0
        %v9603 = vpop.f32.mrf.mxu0
        %v9604 = vadd.f32 0.0, %v9603
        %v9605 = vpop.f32.mrf.mxu0
        %9606 = vdwg.mxu0
        %v9607 = vadd.f32 %v9473, %v9577
        %v9608 = vadd.f32 %v9474, %v9580
        %v9609 = vadd.f32 %v9475, %v9585
        %v9610 = vadd.f32 %v9476, %v9588
        %v9611 = vadd.f32 %v9477, %v9593
        %v9612 = vadd.f32 %v9478, %v9596
        %v9613 = vadd.f32 %v9479, %v9601
        %v9614 = vadd.f32 %v9480, %v9604
        %v9615 = vld [vmem:[#allocation4 + $0x10] sm:$0xff]
        %v9616 = vld [vmem:[#allocation4 + $0x18] sm:$0xff]
        %v9617 = vld [vmem:[#allocation4 + $0x20] sm:$0xff]
        %v9618 = vld [vmem:[#allocation4 + $0x28] sm:$0xff]
        %v9619 = vld [vmem:[#allocation4 + $0x30] sm:$0xff]
        %v9620 = vld [vmem:[#allocation4 + $0x38] sm:$0xff]
        %v9621 = vld [vmem:[#allocation4 + $0x40] sm:$0xff]
        %v9622 = vld [vmem:[#allocation4 + $0x48] sm:$0xff]
        %v9623 = vpack.c.bf16 %v9616, %v9615
        %v9624 = vpack.c.bf16 %v9618, %v9617
        %v9625 = vpack.c.bf16 %v9620, %v9619
        %v9626 = vpack.c.bf16 %v9622, %v9621
        %s9627 = scalar_lea.vmem %s8, 128
        %v9628 = vld [vmem:[%s9627] sm:$0xf]
        %v9629 = vld [vmem:[%s9627 + $0x4] sm:$0xf]
        %v9630 = vld [vmem:[%s9627 + $0x8] sm:$0xf]
        %v9631 = vld [vmem:[%s9627 + $0xc] sm:$0xf]
        %v9632 = vld [vmem:[%s9627 + $0x10] sm:$0xf]
        %v9633 = vld [vmem:[%s9627 + $0x14] sm:$0xf]
        %v9634 = vld [vmem:[%s9627 + $0x18] sm:$0xf]
        %v9635 = vld [vmem:[%s9627 + $0x1c] sm:$0xf]
        %v9644 = vunpack.c.l.b16 %v9628
        %v9645 = vunpack.c.l.b16 %v9629
        %v9646 = vunpack.c.l.b16 %v9630
        %v9647 = vunpack.c.l.b16 %v9631
        %v9648 = vunpack.c.l.b16 %v9632
        %v9649 = vunpack.c.l.b16 %v9633
        %v9650 = vunpack.c.l.b16 %v9634
        %v9651 = vunpack.c.l.b16 %v9635
        %v9652 = vpack.c.b16 %v9645, %v9644
        %v9653 = vpack.c.b16 %v9647, %v9646
        %v9654 = vpack.c.b16 %v9649, %v9648
        %v9655 = vpack.c.b16 %v9651, %v9650
        %v9661 = vsel %vm8822, %v9623, 0
        %v9664 = vsel %vm8822, %v9624, 0
        %v9667 = vsel %vm8822, %v9625, 0
        %v9670 = vsel %vm8822, %v9626, 0
        %9672 = vmatprep.subr.bf16.mxu0 0
        %9673 = vmatpush1.bf16.msra.mxu0 0
        %9674 = vmatprep.subr.bf16.mxu0 0
        %9675 = vmatpush1.bf16.msra.mxu0 0
        %9676 = vmatprep.subr.bf16.mxu0 0
        %9677 = vmatpush1.bf16.msra.mxu0 0
        %9678 = vmatprep.subr.bf16.mxu0 0
        %9679 = vmatpush1.bf16.msra.mxu0 0
        %9680 = vmatprep.subr.bf16.mxu0 0
        %9681 = vmatpush1.bf16.msra.mxu0 %v9655
        %9682 = vmatprep.subr.bf16.mxu0 0
        %9683 = vmatpush1.bf16.msra.mxu0 %v9654
        %9684 = vmatprep.subr.bf16.mxu0 0
        %9685 = vmatpush1.bf16.msra.mxu0 %v9653
        %9686 = vmatprep.subr.bf16.mxu0 0
        %9687 = vmatpush1.bf16.msra.mxu0 %v9652
        %9688 = vmatprep.subr.bf16.mxu0 0
        %9689 = vmatpush2.bf16.msra.mxu0 0
        %9690 = vmatprep.subr.bf16.mxu0 0
        %9691 = vmatpush2.bf16.msra.mxu0 0
        %9692 = vmatprep.subr.bf16.mxu0 0
        %9693 = vmatpush2.bf16.msra.mxu0 0
        %9694 = vmatprep.subr.bf16.mxu0 0
        %9695 = vmatpush2.bf16.msra.mxu0 0
        %9696 = vmatprep.subr.bf16.mxu0 0
        %9697 = vmatpush2.bf16.msra.mxu0 0
        %9698 = vmatprep.subr.bf16.mxu0 0
        %9699 = vmatpush2.bf16.msra.mxu0 0
        %9700 = vmatprep.subr.bf16.mxu0 0
        %9701 = vmatpush2.bf16.msra.mxu0 0
        %9702 = vmatprep.subr.bf16.mxu0 0
        %9703 = vmatpush2.bf16.msra.mxu0 0
        %9704 = vmatprep.mubr.bf16.mxu0 0
        %9705 = vmatmul.mubr.bf16.gmra.mxu0 %v9661
        %v9706 = vpop.f32.mrf.mxu0
        %v9707 = vadd.f32 0.0, %v9706
        %v9708 = vpop.f32.mrf.mxu0
        %v9709 = vpop.f32.mrf.mxu0
        %v9710 = vadd.f32 0.0, %v9709
        %v9711 = vpop.f32.mrf.mxu0
        %9712 = vmatprep.mubr.bf16.mxu0 0
        %9713 = vmatmul.mubr.bf16.gmra.mxu0 %v9664
        %v9714 = vpop.f32.mrf.mxu0
        %v9715 = vadd.f32 0.0, %v9714
        %v9716 = vpop.f32.mrf.mxu0
        %v9717 = vpop.f32.mrf.mxu0
        %v9718 = vadd.f32 0.0, %v9717
        %v9719 = vpop.f32.mrf.mxu0
        %9720 = vmatprep.mubr.bf16.mxu0 0
        %9721 = vmatmul.mubr.bf16.gmra.mxu0 %v9667
        %v9722 = vpop.f32.mrf.mxu0
        %v9723 = vadd.f32 0.0, %v9722
        %v9724 = vpop.f32.mrf.mxu0
        %v9725 = vpop.f32.mrf.mxu0
        %v9726 = vadd.f32 0.0, %v9725
        %v9727 = vpop.f32.mrf.mxu0
        %9728 = vmatprep.mubr.bf16.mxu0 0
        %9729 = vmatmul.mubr.bf16.gmra.mxu0 %v9670
        %v9730 = vpop.f32.mrf.mxu0
        %v9731 = vadd.f32 0.0, %v9730
        %v9732 = vpop.f32.mrf.mxu0
        %v9733 = vpop.f32.mrf.mxu0
        %v9734 = vadd.f32 0.0, %v9733
        %v9735 = vpop.f32.mrf.mxu0
        %9736 = vdwg.mxu0
        %v9737 = vadd.f32 %v9607, %v9707
        %v9738 = vadd.f32 %v9608, %v9710
        %v9739 = vadd.f32 %v9609, %v9715
        %v9740 = vadd.f32 %v9610, %v9718
        %v9741 = vadd.f32 %v9611, %v9723
        %v9742 = vadd.f32 %v9612, %v9726
        %v9743 = vadd.f32 %v9613, %v9731
        %v9744 = vadd.f32 %v9614, %v9734
        %v9745 = vld [vmem:[#allocation4 + $0x11] sm:$0xff]
        %v9746 = vld [vmem:[#allocation4 + $0x19] sm:$0xff]
        %v9747 = vld [vmem:[#allocation4 + $0x21] sm:$0xff]
        %v9748 = vld [vmem:[#allocation4 + $0x29] sm:$0xff]
        %v9749 = vld [vmem:[#allocation4 + $0x31] sm:$0xff]
        %v9750 = vld [vmem:[#allocation4 + $0x39] sm:$0xff]
        %v9751 = vld [vmem:[#allocation4 + $0x41] sm:$0xff]
        %v9752 = vld [vmem:[#allocation4 + $0x49] sm:$0xff]
        %v9753 = vpack.c.bf16 %v9746, %v9745
        %v9754 = vpack.c.bf16 %v9748, %v9747
        %v9755 = vpack.c.bf16 %v9750, %v9749
        %v9756 = vpack.c.bf16 %v9752, %v9751
        %v9757 = vmul.bf16 %v9753, %v9351
        %v9758 = vmul.bf16 %v9754, %v9352
        %v9759 = vmul.bf16 %v9755, %v9353
        %v9760 = vmul.bf16 %v9756, %v9354
        %s9761 = scalar_lea.vmem %s8, 160
        %v9762 = vld [vmem:[%s9761] sm:$0xf]
        %v9763 = vld [vmem:[%s9761 + $0x4] sm:$0xf]
        %v9764 = vld [vmem:[%s9761 + $0x8] sm:$0xf]
        %v9765 = vld [vmem:[%s9761 + $0xc] sm:$0xf]
        %v9766 = vld [vmem:[%s9761 + $0x10] sm:$0xf]
        %v9767 = vld [vmem:[%s9761 + $0x14] sm:$0xf]
        %v9768 = vld [vmem:[%s9761 + $0x18] sm:$0xf]
        %v9769 = vld [vmem:[%s9761 + $0x1c] sm:$0xf]
        %v9778 = vunpack.c.l.b16 %v9762
        %v9779 = vunpack.c.l.b16 %v9763
        %v9780 = vunpack.c.l.b16 %v9764
        %v9781 = vunpack.c.l.b16 %v9765
        %v9782 = vunpack.c.l.b16 %v9766
        %v9783 = vunpack.c.l.b16 %v9767
        %v9784 = vunpack.c.l.b16 %v9768
        %v9785 = vunpack.c.l.b16 %v9769
        %v9786 = vpack.c.b16 %v9779, %v9778
        %v9787 = vpack.c.b16 %v9781, %v9780
        %v9788 = vpack.c.b16 %v9783, %v9782
        %v9789 = vpack.c.b16 %v9785, %v9784
        %v9795 = vsel %vm8822, %v9757, 0
        %v9798 = vsel %vm8822, %v9758, 0
        %v9801 = vsel %vm8822, %v9759, 0
        %v9804 = vsel %vm8822, %v9760, 0
        %9806 = vmatprep.subr.bf16.mxu0 0
        %9807 = vmatpush1.bf16.msra.mxu0 0
        %9808 = vmatprep.subr.bf16.mxu0 0
        %9809 = vmatpush1.bf16.msra.mxu0 0
        %9810 = vmatprep.subr.bf16.mxu0 0
        %9811 = vmatpush1.bf16.msra.mxu0 0
        %9812 = vmatprep.subr.bf16.mxu0 0
        %9813 = vmatpush1.bf16.msra.mxu0 0
        %9814 = vmatprep.subr.bf16.mxu0 0
        %9815 = vmatpush1.bf16.msra.mxu0 %v9789
        %9816 = vmatprep.subr.bf16.mxu0 0
        %9817 = vmatpush1.bf16.msra.mxu0 %v9788
        %9818 = vmatprep.subr.bf16.mxu0 0
        %9819 = vmatpush1.bf16.msra.mxu0 %v9787
        %9820 = vmatprep.subr.bf16.mxu0 0
        %9821 = vmatpush1.bf16.msra.mxu0 %v9786
        %9822 = vmatprep.subr.bf16.mxu0 0
        %9823 = vmatpush2.bf16.msra.mxu0 0
        %9824 = vmatprep.subr.bf16.mxu0 0
        %9825 = vmatpush2.bf16.msra.mxu0 0
        %9826 = vmatprep.subr.bf16.mxu0 0
        %9827 = vmatpush2.bf16.msra.mxu0 0
        %9828 = vmatprep.subr.bf16.mxu0 0
        %9829 = vmatpush2.bf16.msra.mxu0 0
        %9830 = vmatprep.subr.bf16.mxu0 0
        %9831 = vmatpush2.bf16.msra.mxu0 0
        %9832 = vmatprep.subr.bf16.mxu0 0
        %9833 = vmatpush2.bf16.msra.mxu0 0
        %9834 = vmatprep.subr.bf16.mxu0 0
        %9835 = vmatpush2.bf16.msra.mxu0 0
        %9836 = vmatprep.subr.bf16.mxu0 0
        %9837 = vmatpush2.bf16.msra.mxu0 0
        %9838 = vmatprep.mubr.bf16.mxu0 0
        %9839 = vmatmul.mubr.bf16.gmra.mxu0 %v9795
        %v9840 = vpop.f32.mrf.mxu0
        %v9841 = vadd.f32 0.0, %v9840
        %v9842 = vpop.f32.mrf.mxu0
        %v9843 = vpop.f32.mrf.mxu0
        %v9844 = vadd.f32 0.0, %v9843
        %v9845 = vpop.f32.mrf.mxu0
        %9846 = vmatprep.mubr.bf16.mxu0 0
        %9847 = vmatmul.mubr.bf16.gmra.mxu0 %v9798
        %v9848 = vpop.f32.mrf.mxu0
        %v9849 = vadd.f32 0.0, %v9848
        %v9850 = vpop.f32.mrf.mxu0
        %v9851 = vpop.f32.mrf.mxu0
        %v9852 = vadd.f32 0.0, %v9851
        %v9853 = vpop.f32.mrf.mxu0
        %9854 = vmatprep.mubr.bf16.mxu0 0
        %9855 = vmatmul.mubr.bf16.gmra.mxu0 %v9801
        %v9856 = vpop.f32.mrf.mxu0
        %v9857 = vadd.f32 0.0, %v9856
        %v9858 = vpop.f32.mrf.mxu0
        %v9859 = vpop.f32.mrf.mxu0
        %v9860 = vadd.f32 0.0, %v9859
        %v9861 = vpop.f32.mrf.mxu0
        %9862 = vmatprep.mubr.bf16.mxu0 0
        %9863 = vmatmul.mubr.bf16.gmra.mxu0 %v9804
        %v9864 = vpop.f32.mrf.mxu0
        %v9865 = vadd.f32 0.0, %v9864
        %v9866 = vpop.f32.mrf.mxu0
        %v9867 = vpop.f32.mrf.mxu0
        %v9868 = vadd.f32 0.0, %v9867
        %v9869 = vpop.f32.mrf.mxu0
        %9870 = vdwg.mxu0
        %v9871 = vadd.f32 %v9737, %v9841
        %v9872 = vadd.f32 %v9738, %v9844
        %v9873 = vadd.f32 %v9739, %v9849
        %v9874 = vadd.f32 %v9740, %v9852
        %v9875 = vadd.f32 %v9741, %v9857
        %v9876 = vadd.f32 %v9742, %v9860
        %v9877 = vadd.f32 %v9743, %v9865
        %v9878 = vadd.f32 %v9744, %v9868
        %v9879 = vld [vmem:[#allocation4 + $0x17] sm:$0xff]
        %v9880 = vld [vmem:[#allocation4 + $0x1f] sm:$0xff]
        %v9881 = vld [vmem:[#allocation4 + $0x27] sm:$0xff]
        %v9882 = vld [vmem:[#allocation4 + $0x2f] sm:$0xff]
        %v9883 = vld [vmem:[#allocation4 + $0x37] sm:$0xff]
        %v9884 = vld [vmem:[#allocation4 + $0x3f] sm:$0xff]
        %v9885 = vld [vmem:[#allocation4 + $0x47] sm:$0xff]
        %v9886 = vld [vmem:[#allocation4 + $0x4f] sm:$0xff]
        %v9887 = vpack.c.bf16 %v9880, %v9879
        %v9888 = vpack.c.bf16 %v9882, %v9881
        %v9889 = vpack.c.bf16 %v9884, %v9883
        %v9890 = vpack.c.bf16 %v9886, %v9885
        %v9891 = vmul.bf16 %v9887, %v8975
        %v9892 = vmul.bf16 %v9888, %v8976
        %v9893 = vmul.bf16 %v9889, %v8977
        %v9894 = vmul.bf16 %v9890, %v8978
        %s9895 = scalar_lea.vmem %s8, 192
        %v9896 = vld [vmem:[%s9895] sm:$0xf]
        %v9897 = vld [vmem:[%s9895 + $0x4] sm:$0xf]
        %v9898 = vld [vmem:[%s9895 + $0x8] sm:$0xf]
        %v9899 = vld [vmem:[%s9895 + $0xc] sm:$0xf]
        %v9900 = vld [vmem:[%s9895 + $0x10] sm:$0xf]
        %v9901 = vld [vmem:[%s9895 + $0x14] sm:$0xf]
        %v9902 = vld [vmem:[%s9895 + $0x18] sm:$0xf]
        %v9903 = vld [vmem:[%s9895 + $0x1c] sm:$0xf]
        %v9912 = vunpack.c.l.b16 %v9896
        %v9913 = vunpack.c.l.b16 %v9897
        %v9914 = vunpack.c.l.b16 %v9898
        %v9915 = vunpack.c.l.b16 %v9899
        %v9916 = vunpack.c.l.b16 %v9900
        %v9917 = vunpack.c.l.b16 %v9901
        %v9918 = vunpack.c.l.b16 %v9902
        %v9919 = vunpack.c.l.b16 %v9903
        %v9920 = vpack.c.b16 %v9913, %v9912
        %v9921 = vpack.c.b16 %v9915, %v9914
        %v9922 = vpack.c.b16 %v9917, %v9916
        %v9923 = vpack.c.b16 %v9919, %v9918
        %v9929 = vsel %vm8822, %v9891, 0
        %v9932 = vsel %vm8822, %v9892, 0
        %v9935 = vsel %vm8822, %v9893, 0
        %v9938 = vsel %vm8822, %v9894, 0
        %9940 = vmatprep.subr.bf16.mxu0 0
        %9941 = vmatpush1.bf16.msra.mxu0 0
        %9942 = vmatprep.subr.bf16.mxu0 0
        %9943 = vmatpush1.bf16.msra.mxu0 0
        %9944 = vmatprep.subr.bf16.mxu0 0
        %9945 = vmatpush1.bf16.msra.mxu0 0
        %9946 = vmatprep.subr.bf16.mxu0 0
        %9947 = vmatpush1.bf16.msra.mxu0 0
        %9948 = vmatprep.subr.bf16.mxu0 0
        %9949 = vmatpush1.bf16.msra.mxu0 %v9923
        %9950 = vmatprep.subr.bf16.mxu0 0
        %9951 = vmatpush1.bf16.msra.mxu0 %v9922
        %9952 = vmatprep.subr.bf16.mxu0 0
        %9953 = vmatpush1.bf16.msra.mxu0 %v9921
        %9954 = vmatprep.subr.bf16.mxu0 0
        %9955 = vmatpush1.bf16.msra.mxu0 %v9920
        %9956 = vmatprep.subr.bf16.mxu0 0
        %9957 = vmatpush2.bf16.msra.mxu0 0
        %9958 = vmatprep.subr.bf16.mxu0 0
        %9959 = vmatpush2.bf16.msra.mxu0 0
        %9960 = vmatprep.subr.bf16.mxu0 0
        %9961 = vmatpush2.bf16.msra.mxu0 0
        %9962 = vmatprep.subr.bf16.mxu0 0
        %9963 = vmatpush2.bf16.msra.mxu0 0
        %9964 = vmatprep.subr.bf16.mxu0 0
        %9965 = vmatpush2.bf16.msra.mxu0 0
        %9966 = vmatprep.subr.bf16.mxu0 0
        %9967 = vmatpush2.bf16.msra.mxu0 0
        %9968 = vmatprep.subr.bf16.mxu0 0
        %9969 = vmatpush2.bf16.msra.mxu0 0
        %9970 = vmatprep.subr.bf16.mxu0 0
        %9971 = vmatpush2.bf16.msra.mxu0 0
        %9972 = vmatprep.mubr.bf16.mxu0 0
        %9973 = vmatmul.mubr.bf16.gmra.mxu0 %v9929
        %v9974 = vpop.f32.mrf.mxu0
        %v9975 = vadd.f32 0.0, %v9974
        %v9976 = vpop.f32.mrf.mxu0
        %v9977 = vpop.f32.mrf.mxu0
        %v9978 = vadd.f32 0.0, %v9977
        %v9979 = vpop.f32.mrf.mxu0
        %9980 = vmatprep.mubr.bf16.mxu0 0
        %9981 = vmatmul.mubr.bf16.gmra.mxu0 %v9932
        %v9982 = vpop.f32.mrf.mxu0
        %v9983 = vadd.f32 0.0, %v9982
        %v9984 = vpop.f32.mrf.mxu0
        %v9985 = vpop.f32.mrf.mxu0
        %v9986 = vadd.f32 0.0, %v9985
        %v9987 = vpop.f32.mrf.mxu0
        %9988 = vmatprep.mubr.bf16.mxu0 0
        %9989 = vmatmul.mubr.bf16.gmra.mxu0 %v9935
        %v9990 = vpop.f32.mrf.mxu0
        %v9991 = vadd.f32 0.0, %v9990
        %v9992 = vpop.f32.mrf.mxu0
        %v9993 = vpop.f32.mrf.mxu0
        %v9994 = vadd.f32 0.0, %v9993
        %v9995 = vpop.f32.mrf.mxu0
        %9996 = vmatprep.mubr.bf16.mxu0 0
        %9997 = vmatmul.mubr.bf16.gmra.mxu0 %v9938
        %v9998 = vpop.f32.mrf.mxu0
        %v9999 = vadd.f32 0.0, %v9998
        %v10000 = vpop.f32.mrf.mxu0
        %v10001 = vpop.f32.mrf.mxu0
        %v10002 = vadd.f32 0.0, %v10001
        %v10003 = vpop.f32.mrf.mxu0
        %10004 = vdwg.mxu0
        %v10005 = vadd.f32 %v9871, %v9975
        %v10006 = vadd.f32 %v9872, %v9978
        %v10007 = vadd.f32 %v9873, %v9983
        %v10008 = vadd.f32 %v9874, %v9986
        %v10009 = vadd.f32 %v9875, %v9991
        %v10010 = vadd.f32 %v9876, %v9994
        %v10011 = vadd.f32 %v9877, %v9999
        %v10012 = vadd.f32 %v9878, %v10002
        %v10013 = vld [vmem:[#allocation4 + $0x18] sm:$0xff]
        %v10014 = vld [vmem:[#allocation4 + $0x20] sm:$0xff]
        %v10015 = vld [vmem:[#allocation4 + $0x28] sm:$0xff]
        %v10016 = vld [vmem:[#allocation4 + $0x30] sm:$0xff]
        %v10017 = vld [vmem:[#allocation4 + $0x38] sm:$0xff]
        %v10018 = vld [vmem:[#allocation4 + $0x40] sm:$0xff]
        %v10019 = vld [vmem:[#allocation4 + $0x48] sm:$0xff]
        %v10020 = vld [vmem:[#allocation4 + $0x50] sm:$0xff]
        %v10021 = vpack.c.bf16 %v10014, %v10013
        %v10022 = vpack.c.bf16 %v10016, %v10015
        %v10023 = vpack.c.bf16 %v10018, %v10017
        %v10024 = vpack.c.bf16 %v10020, %v10019
        %s10025 = scalar_lea.vmem %s8, 224
        %v10026 = vld [vmem:[%s10025] sm:$0xf]
        %v10027 = vld [vmem:[%s10025 + $0x4] sm:$0xf]
        %v10028 = vld [vmem:[%s10025 + $0x8] sm:$0xf]
        %v10029 = vld [vmem:[%s10025 + $0xc] sm:$0xf]
        %v10030 = vld [vmem:[%s10025 + $0x10] sm:$0xf]
        %v10031 = vld [vmem:[%s10025 + $0x14] sm:$0xf]
        %v10032 = vld [vmem:[%s10025 + $0x18] sm:$0xf]
        %v10033 = vld [vmem:[%s10025 + $0x1c] sm:$0xf]
        %v10042 = vunpack.c.l.b16 %v10026
        %v10043 = vunpack.c.l.b16 %v10027
        %v10044 = vunpack.c.l.b16 %v10028
        %v10045 = vunpack.c.l.b16 %v10029
        %v10046 = vunpack.c.l.b16 %v10030
        %v10047 = vunpack.c.l.b16 %v10031
        %v10048 = vunpack.c.l.b16 %v10032
        %v10049 = vunpack.c.l.b16 %v10033
        %v10050 = vpack.c.b16 %v10043, %v10042
        %v10051 = vpack.c.b16 %v10045, %v10044
        %v10052 = vpack.c.b16 %v10047, %v10046
        %v10053 = vpack.c.b16 %v10049, %v10048
        %v10059 = vsel %vm8822, %v10021, 0
        %v10062 = vsel %vm8822, %v10022, 0
        %v10065 = vsel %vm8822, %v10023, 0
        %v10068 = vsel %vm8822, %v10024, 0
        %10070 = vmatprep.subr.bf16.mxu0 0
        %10071 = vmatpush1.bf16.msra.mxu0 0
        %10072 = vmatprep.subr.bf16.mxu0 0
        %10073 = vmatpush1.bf16.msra.mxu0 0
        %10074 = vmatprep.subr.bf16.mxu0 0
        %10075 = vmatpush1.bf16.msra.mxu0 0
        %10076 = vmatprep.subr.bf16.mxu0 0
        %10077 = vmatpush1.bf16.msra.mxu0 0
        %10078 = vmatprep.subr.bf16.mxu0 0
        %10079 = vmatpush1.bf16.msra.mxu0 %v10053
        %10080 = vmatprep.subr.bf16.mxu0 0
        %10081 = vmatpush1.bf16.msra.mxu0 %v10052
        %10082 = vmatprep.subr.bf16.mxu0 0
        %10083 = vmatpush1.bf16.msra.mxu0 %v10051
        %10084 = vmatprep.subr.bf16.mxu0 0
        %10085 = vmatpush1.bf16.msra.mxu0 %v10050
        %10086 = vmatprep.subr.bf16.mxu0 0
        %10087 = vmatpush2.bf16.msra.mxu0 0
        %10088 = vmatprep.subr.bf16.mxu0 0
        %10089 = vmatpush2.bf16.msra.mxu0 0
        %10090 = vmatprep.subr.bf16.mxu0 0
        %10091 = vmatpush2.bf16.msra.mxu0 0
        %10092 = vmatprep.subr.bf16.mxu0 0
        %10093 = vmatpush2.bf16.msra.mxu0 0
        %10094 = vmatprep.subr.bf16.mxu0 0
        %10095 = vmatpush2.bf16.msra.mxu0 0
        %10096 = vmatprep.subr.bf16.mxu0 0
        %10097 = vmatpush2.bf16.msra.mxu0 0
        %10098 = vmatprep.subr.bf16.mxu0 0
        %10099 = vmatpush2.bf16.msra.mxu0 0
        %10100 = vmatprep.subr.bf16.mxu0 0
        %10101 = vmatpush2.bf16.msra.mxu0 0
        %10102 = vmatprep.mubr.bf16.mxu0 0
        %10103 = vmatmul.mubr.bf16.gmra.mxu0 %v10059
        %v10104 = vpop.f32.mrf.mxu0
        %v10105 = vadd.f32 0.0, %v10104
        %v10106 = vpop.f32.mrf.mxu0
        %v10107 = vpop.f32.mrf.mxu0
        %v10108 = vadd.f32 0.0, %v10107
        %v10109 = vpop.f32.mrf.mxu0
        %10110 = vmatprep.mubr.bf16.mxu0 0
        %10111 = vmatmul.mubr.bf16.gmra.mxu0 %v10062
        %v10112 = vpop.f32.mrf.mxu0
        %v10113 = vadd.f32 0.0, %v10112
        %v10114 = vpop.f32.mrf.mxu0
        %v10115 = vpop.f32.mrf.mxu0
        %v10116 = vadd.f32 0.0, %v10115
        %v10117 = vpop.f32.mrf.mxu0
        %10118 = vmatprep.mubr.bf16.mxu0 0
        %10119 = vmatmul.mubr.bf16.gmra.mxu0 %v10065
        %v10120 = vpop.f32.mrf.mxu0
        %v10121 = vadd.f32 0.0, %v10120
        %v10122 = vpop.f32.mrf.mxu0
        %v10123 = vpop.f32.mrf.mxu0
        %v10124 = vadd.f32 0.0, %v10123
        %v10125 = vpop.f32.mrf.mxu0
        %10126 = vmatprep.mubr.bf16.mxu0 0
        %10127 = vmatmul.mubr.bf16.gmra.mxu0 %v10068
        %v10128 = vpop.f32.mrf.mxu0
        %v10129 = vadd.f32 0.0, %v10128
        %v10130 = vpop.f32.mrf.mxu0
        %v10131 = vpop.f32.mrf.mxu0
        %v10132 = vadd.f32 0.0, %v10131
        %v10133 = vpop.f32.mrf.mxu0
        %10134 = vdwg.mxu0
        %v10135 = vadd.f32 %v10005, %v10105
        %v10136 = vadd.f32 %v10006, %v10108
        %v10137 = vadd.f32 %v10007, %v10113
        %v10138 = vadd.f32 %v10008, %v10116
        %v10139 = vadd.f32 %v10009, %v10121
        %v10140 = vadd.f32 %v10010, %v10124
        %v10141 = vadd.f32 %v10011, %v10129
        %v10142 = vadd.f32 %v10012, %v10132
        %v10143 = vld [vmem:[#allocation4 + $0x19] sm:$0xff]
        %v10144 = vld [vmem:[#allocation4 + $0x21] sm:$0xff]
        %v10145 = vld [vmem:[#allocation4 + $0x29] sm:$0xff]
        %v10146 = vld [vmem:[#allocation4 + $0x31] sm:$0xff]
        %v10147 = vld [vmem:[#allocation4 + $0x39] sm:$0xff]
        %v10148 = vld [vmem:[#allocation4 + $0x41] sm:$0xff]
        %v10149 = vld [vmem:[#allocation4 + $0x49] sm:$0xff]
        %v10150 = vld [vmem:[#allocation4 + $0x51] sm:$0xff]
        %v10151 = vpack.c.bf16 %v10144, %v10143
        %v10152 = vpack.c.bf16 %v10146, %v10145
        %v10153 = vpack.c.bf16 %v10148, %v10147
        %v10154 = vpack.c.bf16 %v10150, %v10149
        %v10155 = vmul.bf16 %v10151, %v9351
        %v10156 = vmul.bf16 %v10152, %v9352
        %v10157 = vmul.bf16 %v10153, %v9353
        %v10158 = vmul.bf16 %v10154, %v9354
        %s10159 = scalar_lea.vmem %s8, 256
        %v10160 = vld [vmem:[%s10159] sm:$0xf]
        %v10161 = vld [vmem:[%s10159 + $0x4] sm:$0xf]
        %v10162 = vld [vmem:[%s10159 + $0x8] sm:$0xf]
        %v10163 = vld [vmem:[%s10159 + $0xc] sm:$0xf]
        %v10164 = vld [vmem:[%s10159 + $0x10] sm:$0xf]
        %v10165 = vld [vmem:[%s10159 + $0x14] sm:$0xf]
        %v10166 = vld [vmem:[%s10159 + $0x18] sm:$0xf]
        %v10167 = vld [vmem:[%s10159 + $0x1c] sm:$0xf]
        %v10176 = vunpack.c.l.b16 %v10160
        %v10177 = vunpack.c.l.b16 %v10161
        %v10178 = vunpack.c.l.b16 %v10162
        %v10179 = vunpack.c.l.b16 %v10163
        %v10180 = vunpack.c.l.b16 %v10164
        %v10181 = vunpack.c.l.b16 %v10165
        %v10182 = vunpack.c.l.b16 %v10166
        %v10183 = vunpack.c.l.b16 %v10167
        %v10184 = vpack.c.b16 %v10177, %v10176
        %v10185 = vpack.c.b16 %v10179, %v10178
        %v10186 = vpack.c.b16 %v10181, %v10180
        %v10187 = vpack.c.b16 %v10183, %v10182
        %v10193 = vsel %vm8822, %v10155, 0
        %v10196 = vsel %vm8822, %v10156, 0
        %v10199 = vsel %vm8822, %v10157, 0
        %v10202 = vsel %vm8822, %v10158, 0
        %10204 = vmatprep.subr.bf16.mxu0 0
        %10205 = vmatpush1.bf16.msra.mxu0 0
        %10206 = vmatprep.subr.bf16.mxu0 0
        %10207 = vmatpush1.bf16.msra.mxu0 0
        %10208 = vmatprep.subr.bf16.mxu0 0
        %10209 = vmatpush1.bf16.msra.mxu0 0
        %10210 = vmatprep.subr.bf16.mxu0 0
        %10211 = vmatpush1.bf16.msra.mxu0 0
        %10212 = vmatprep.subr.bf16.mxu0 0
        %10213 = vmatpush1.bf16.msra.mxu0 %v10187
        %10214 = vmatprep.subr.bf16.mxu0 0
        %10215 = vmatpush1.bf16.msra.mxu0 %v10186
        %10216 = vmatprep.subr.bf16.mxu0 0
        %10217 = vmatpush1.bf16.msra.mxu0 %v10185
        %10218 = vmatprep.subr.bf16.mxu0 0
        %10219 = vmatpush1.bf16.msra.mxu0 %v10184
        %10220 = vmatprep.subr.bf16.mxu0 0
        %10221 = vmatpush2.bf16.msra.mxu0 0
        %10222 = vmatprep.subr.bf16.mxu0 0
        %10223 = vmatpush2.bf16.msra.mxu0 0
        %10224 = vmatprep.subr.bf16.mxu0 0
        %10225 = vmatpush2.bf16.msra.mxu0 0
        %10226 = vmatprep.subr.bf16.mxu0 0
        %10227 = vmatpush2.bf16.msra.mxu0 0
        %10228 = vmatprep.subr.bf16.mxu0 0
        %10229 = vmatpush2.bf16.msra.mxu0 0
        %10230 = vmatprep.subr.bf16.mxu0 0
        %10231 = vmatpush2.bf16.msra.mxu0 0
        %10232 = vmatprep.subr.bf16.mxu0 0
        %10233 = vmatpush2.bf16.msra.mxu0 0
        %10234 = vmatprep.subr.bf16.mxu0 0
        %10235 = vmatpush2.bf16.msra.mxu0 0
        %10236 = vmatprep.mubr.bf16.mxu0 0
        %10237 = vmatmul.mubr.bf16.gmra.mxu0 %v10193
        %v10238 = vpop.f32.mrf.mxu0
        %v10239 = vadd.f32 0.0, %v10238
        %v10240 = vpop.f32.mrf.mxu0
        %v10241 = vpop.f32.mrf.mxu0
        %v10242 = vadd.f32 0.0, %v10241
        %v10243 = vpop.f32.mrf.mxu0
        %10244 = vmatprep.mubr.bf16.mxu0 0
        %10245 = vmatmul.mubr.bf16.gmra.mxu0 %v10196
        %v10246 = vpop.f32.mrf.mxu0
        %v10247 = vadd.f32 0.0, %v10246
        %v10248 = vpop.f32.mrf.mxu0
        %v10249 = vpop.f32.mrf.mxu0
        %v10250 = vadd.f32 0.0, %v10249
        %v10251 = vpop.f32.mrf.mxu0
        %10252 = vmatprep.mubr.bf16.mxu0 0
        %10253 = vmatmul.mubr.bf16.gmra.mxu0 %v10199
        %v10254 = vpop.f32.mrf.mxu0
        %v10255 = vadd.f32 0.0, %v10254
        %v10256 = vpop.f32.mrf.mxu0
        %v10257 = vpop.f32.mrf.mxu0
        %v10258 = vadd.f32 0.0, %v10257
        %v10259 = vpop.f32.mrf.mxu0
        %10260 = vmatprep.mubr.bf16.mxu0 0
        %10261 = vmatmul.mubr.bf16.gmra.mxu0 %v10202
        %v10262 = vpop.f32.mrf.mxu0
        %v10263 = vadd.f32 0.0, %v10262
        %v10264 = vpop.f32.mrf.mxu0
        %v10265 = vpop.f32.mrf.mxu0
        %v10266 = vadd.f32 0.0, %v10265
        %v10267 = vpop.f32.mrf.mxu0
        %10268 = vdwg.mxu0
        %v10269 = vadd.f32 %v10135, %v10239
        %v10270 = vadd.f32 %v10136, %v10242
        %v10271 = vadd.f32 %v10137, %v10247
        %v10272 = vadd.f32 %v10138, %v10250
        %v10273 = vadd.f32 %v10139, %v10255
        %v10274 = vadd.f32 %v10140, %v10258
        %v10275 = vadd.f32 %v10141, %v10263
        %v10276 = vadd.f32 %v10142, %v10266
        %v10277 = vld [vmem:[#allocation8] sm:$0x1]
        %v10279 = vlaneseq
        %v10280 = vshrl.u32 %v10279, 7
        %v10281 = vsub.s32 0, %v10280
        %v10282 = vrot.slane %v10277, %v10281
        %v10284 = vadd.f32 %v10269, %v10282
        %v10285 = vadd.f32 %v10270, %v10282
        %v10286 = vadd.f32 %v10271, %v10282
        %v10287 = vadd.f32 %v10272, %v10282
        %v10288 = vadd.f32 %v10273, %v10282
        %v10289 = vadd.f32 %v10274, %v10282
        %v10290 = vadd.f32 %v10275, %v10282
        %v10291 = vadd.f32 %v10276, %v10282
        %v10292 = vmax.f32 %v10284, 0.0
        %v10293 = vmax.f32 %v10285, 0.0
        %v10294 = vmax.f32 %v10286, 0.0
        %v10295 = vmax.f32 %v10287, 0.0
        %v10296 = vmax.f32 %v10288, 0.0
        %v10297 = vmax.f32 %v10289, 0.0
        %v10298 = vmax.f32 %v10290, 0.0
        %v10299 = vmax.f32 %v10291, 0.0
        %v10300 = vsel %vm8822, %v10292, 0.0
        %v10301 = vsel %vm8822, %v10293, 0.0
        %v10302 = vadd.f32 %v10300, %v10301
        %v10303 = vsel %vm8822, %v10294, 0.0
        %v10304 = vadd.f32 %v10302, %v10303
        %v10305 = vsel %vm8822, %v10295, 0.0
        %v10306 = vadd.f32 %v10304, %v10305
        %v10307 = vsel %vm8822, %v10296, 0.0
        %v10308 = vadd.f32 %v10306, %v10307
        %v10309 = vsel %vm8822, %v10297, 0.0
        %v10310 = vadd.f32 %v10308, %v10309
        %v10311 = vsel %vm8822, %v10298, 0.0
        %v10312 = vadd.f32 %v10310, %v10311
        %v10313 = vsel %vm8822, %v10299, 0.0
        %v10314 = vadd.f32 %v10312, %v10313
        %v10315 = vrot.slane %v10314, 4
        %v10316 = vadd.f32 %v10314, %v10315
        %v10317 = vrot.slane %v10316, 2
        %v10318 = vadd.f32 %v10316, %v10317
        %v10319 = vrot.slane %v10318, 1
        %v10320 = vadd.f32 %v10318, %v10319
        %v10321 = vmul.f32 %v10320, 0.015625
        %v10322 = vld [vmem:[#allocation10] sm:$0x1]
        %v10323 = vmul.f32 %v10321, %v10322
        %v10324 = vld [vmem:[#allocation11] sm:$0x1]
        %v10325 = vadd.f32 %v10323, %v10324
        %v10326 = vmax.f32 %v10325, 0.0
        %vm10327 = vcmask 516096
        %10328 = vst.msk [vmem:[%s456] sm:$0x1] %vm10327, %v10326
        %s10329 = sand.u32 %s294, 1
        %s10330 = scalar_lea.sflag [#allocation7], %s10329
        %s10331 = sand.u32 %s294, 1
        %s10332 = scalar_lea.vmem [#allocation13], %s10331
        // Predicated region
        $region85: #{cnn_backbone_forward.1} parent=67 // pred_check
          %p10333 = pneg %p304
        $region86: #{cnn_backbone_forward.1} parent=67 // pred_check_branch
          %10335 = sbr.rel (%p10333) target = $region88
        $region87: #{cnn_backbone_forward.1} parent=67 // pred_region
          %s10337 = ssub.s32 16, 16
          %10338 = vsyncadd %s10330, %s10337
          %s10339 = smul.addr %s29, 16
          %s10340 = scalar_lea.hbm %s12, %s10339
          %s10342 = sshll.u32 %s10332, 4
          %s10343 = int_to_ptr.vmem [resolvable:$true] %s10342
          %10345 = dma.vmem_to_hbm [thread:$0]  %s10343, 16, %s10340, %s10330
        $region88: #{cnn_backbone_forward.1} parent=67 // pred_fallthru
          _
      $region68: #{cnn_backbone_forward.1} parent=5 // pred_fallthru
        _
      %p10346 = scmp.le.s32.totalorder 2, %s24
      // Predicated region
      $region89: #{cnn_backbone_forward.1} parent=5 // pred_check
        %p10347 = pneg %p10346
      $region90: #{cnn_backbone_forward.1} parent=5 // pred_check_branch
        %10349 = sbr.rel (%p10347) target = $region92
      $region91: #{cnn_backbone_forward.1} parent=5 // pred_region
        %s10350 = ssub.s32 %s24, 2
        // Predicated region
        $region93: #{cnn_backbone_forward.1} parent=91 // pred_check
          %p10351 = pneg %p310
        $region94: #{cnn_backbone_forward.1} parent=91 // pred_check_branch
          %10353 = sbr.rel (%p10351) target = $region96
        $region95: #{cnn_backbone_forward.1} parent=91 // pred_region
          %s10354 = sand.u32 %s295, 1
          %s10355 = scalar_lea.sflag [#allocation7], %s10354
          %s10356 = sand.u32 %s295, 1
          %s10357 = scalar_lea.vmem [#allocation13], %s10356
          %10358 = dma.done %s10355, 16
        $region96: #{cnn_backbone_forward.1} parent=91 // pred_fallthru
          _
      $region92: #{cnn_backbone_forward.1} parent=5 // pred_fallthru
        _
    $region6: #{cnn_backbone_forward.1} parent=1 // loop_footer
      %s28 = sadd.s32 1, %s24
    $region7: #{cnn_backbone_forward.1} parent=1 // loop_footer_branch
      %23 = sbr.rel target = $region3
    $region8: #{cnn_backbone_forward.1} parent=1 // loop_exit
      _
    %10359 = vsyncpa [#allocation6], 1
    %s10360 = scalar_lea.sflag [#allocation6], 1
    %10361 = vsyncpa %s10360, 1
    %10362 = vsyncpa [#allocation9], 1
    %10363 = vsyncpa [#allocation12], 1
    %10364 = vsyncpa [#allocation7], 1
    %s10365 = scalar_lea.sflag [#allocation7], 1
    %10366 = vsyncpa %s10365, 1

</llo_original>
